<compile_context>
chip_gen: v6e
topology: v6e:2x2x1
jax: 0.10.0
libtpu: 0.0.40
codegen_flags: <defaults>
</compile_context>

<pallas_src>
import functools

import numpy as np

import jax
import jax.numpy as jnp
from jax import lax
from jax.experimental import pallas as pl
from jax.experimental.pallas import tpu as pltpu

# Older jax releases call this TPUCompilerParams.
_CompilerParams = getattr(pltpu, "CompilerParams", None)
if _CompilerParams is None:  # pragma: no cover - older jax fallback
    _CompilerParams = pltpu.TPUCompilerParams

# ---------------------------------------------------------------------------
# Flat-lane width chain (per-sample prefix widths).  flat index p = 32*i + j.
#   conv1 out valid at p = 32*i1 +   j1    (i1, j1 < 30)
#   pool1 out valid at p = 64*i2 + 2*j2    (i2, j2 < 15)
#   conv2 out valid at p = 64*i3 + 2*j3    (i3, j3 < 13)
#   pool2 out valid at p = 128*i4 + 4*j4   (i4, j4 < 6)
# ---------------------------------------------------------------------------
W_O1 = 892   # conv1 cols needed
W_M1 = 859   # pool1 cols needed
W_O2 = 727   # conv2 cols needed
W_M2 = 661   # pool2 cols needed

# Static asserts for the bound chain (review correctness concern): any edit to
# the layout fails loudly instead of silently reading wrapped/garbage columns.
assert W_M2 >= 128 * 5 + 4 * 5 + 1      # covers all pool2 outputs (i4, j4 < 6)
assert W_O2 >= W_M2 + 66                # pool2 window reads (shift <= 66)
assert W_M1 >= W_O2 + 132               # conv2 taps (shift <= 132)
assert W_O1 >= W_M1 + 33                # pool1 window reads (shift <= 33)
assert 1024 >= W_O1 + 66                # conv1 taps stay inside the sample

CONV1_SHIFTS = tuple(32 * di + dj for di in range(3) for dj in range(3))
CONV2_SHIFTS = tuple(64 * di + 2 * dj for di in range(3) for dj in range(3))


def _pool2_selection():
    """(W_M2, 36) 0/1 matrix: in-place pool2 lanes -> the 36 (i4, j4) features."""
    sel = np.zeros((W_M2, 36), np.float32)
    for i4 in range(6):
        for j4 in range(6):
            sel[128 * i4 + 4 * j4, 6 * i4 + j4] = 1.0
    return sel


# ---------------------------------------------------------------------------
# Fused forward kernel: one grid step == one batch tile, everything in VMEM.
# ---------------------------------------------------------------------------
def _make_kernel(bt):
    base = (bt - 1) * 1024
    l_o1 = base + W_O1
    l_m1 = base + W_M1
    l_o2 = base + W_O2
    l_m2 = base + W_M2

    def kernel(x_ref, w1_ref, b1_ref, w2_ref, b2_ref, sel_ref, rowmask_ref,
               gs_ref, f1w_ref, f1b_ref, f2w_ref, f2b_ref, f3w_ref, f3b_ref,
               out_ref, fold_ref):
        f32 = jnp.float32
        xrow = x_ref[0]                       # (1, bt*1024), batch along lanes

        # ---- conv1 (1->6, 3x3) + bias + ReLU : one MXU matmul ---------------
        t1 = jnp.concatenate([xrow[:, s:s + l_o1] for s in CONV1_SHIFTS],
                             axis=0)          # (9, l_o1) tap stack
        o1 = jnp.dot(w1_ref[...], t1, preferred_element_type=f32) + b1_ref[...]
        o1 = jnp.maximum(o1, 0.0)             # (6, l_o1)

        # ---- max-pool 2x2 (pooled values stay at p = 64*i2 + 2*j2) ----------
        m1 = jnp.maximum(jnp.maximum(o1[:, 0:l_m1], o1[:, 1:1 + l_m1]),
                         jnp.maximum(o1[:, 32:32 + l_m1], o1[:, 33:33 + l_m1]))

        # ---- conv2 (6->16, 3x3) + bias + ReLU : one MXU matmul --------------
        t2 = jnp.concatenate([m1[:, s:s + l_o2] for s in CONV2_SHIFTS],
                             axis=0)          # (54, l_o2) = (tap, cin) stack
        o2 = jnp.dot(w2_ref[...], t2, preferred_element_type=f32) + b2_ref[...]
        o2 = jnp.maximum(o2, 0.0)             # (16, l_o2)

        # ---- max-pool 2x2 (pooled values stay at p = 128*i4 + 4*j4) ---------
        m2 = jnp.maximum(jnp.maximum(o2[:, 0:l_m2], o2[:, 2:2 + l_m2]),
                         jnp.maximum(o2[:, 64:64 + l_m2], o2[:, 66:66 + l_m2]))

        # ---- fold batch from lanes to sublanes (aligned slice-stores) -------
        for b in range(bt):
            fold_ref[b * 16:(b + 1) * 16, :] = m2[:, b * 1024:b * 1024 + W_M2]

        # ---- compact the 36 valid pooled positions per (sample, channel) ----
        xc = jnp.dot(fold_ref[...], sel_ref[...],
                     preferred_element_type=f32)          # (bt*16, 36)

        # ---- rebuild PyTorch (C,H,W)-major flatten as dense (bt, 576) -------
        rm = rowmask_ref[...]                              # (bt*16, 16) 0/1
        xce = jnp.concatenate([xc * rm[:, c:c + 1] for c in range(16)], axis=1)
        xflat = jnp.dot(gs_ref[...], xce,
                        preferred_element_type=f32)        # (bt, 576)

        # ---- fc1 / fc2 / fc3 as real batched matmuls ------------------------
        h = jnp.maximum(jnp.dot(xflat, f1w_ref[...],
                                preferred_element_type=f32) + f1b_ref[...], 0.0)
        h = jnp.maximum(jnp.dot(h, f2w_ref[...],
                                preferred_element_type=f32) + f2b_ref[...], 0.0)
        out = jnp.dot(h, f3w_ref[...],
                      preferred_element_type=f32) + f3b_ref[...]
        out_ref[0] = out                                   # (bt, 128) lane-dense

    return kernel


# ---------------------------------------------------------------------------
# Wrapper: one fused pallas_call, grid over batch tiles, "parallel" megacore.
# ---------------------------------------------------------------------------
@functools.partial(jax.jit, static_argnames=("b_tile",))
def net_forward(x_nchw, kp, b_tile=32):
    f32 = jnp.float32
    n = x_nchw.shape[0]
    bt = max(1, min(b_tile, n))
    nt = (n + bt - 1) // bt
    n_pad = nt * bt

    x = x_nchw.astype(f32).reshape(n, 1024)
    if n_pad != n:
        x = jnp.pad(x, ((0, n_pad - n), (0, 0)))
    x_rows = x.reshape(nt, 1, bt * 1024)       # batch tile packed along lanes

    # Tile-size dependent 0/1 constants (host-built, folded into the call).
    rowmask = np.zeros((bt * 16, 16), np.float32)
    rowmask[np.arange(bt * 16), np.arange(bt * 16) % 16] = 1.0
    gs = np.kron(np.eye(bt, dtype=np.float32), np.ones((1, 16), np.float32))

    def cspec(shape):
        return pl.BlockSpec(shape, lambda i: (0,) * len(shape))

    out = pl.pallas_call(
        _make_kernel(bt),
        out_shape=jax.ShapeDtypeStruct((nt, bt, 128), f32),
        grid=(nt,),
        in_specs=[
            pl.BlockSpec((1, 1, bt * 1024), lambda i: (i, 0, 0)),   # x tile
            cspec((6, 9)),            # conv1 w
            cspec((6, 1)),            # conv1 b
            cspec((16, 54)),          # conv2 w (tap-stacked)
            cspec((16, 1)),           # conv2 b
            cspec((W_M2, 36)),        # pool2 selection
            cspec((bt * 16, 16)),     # row-channel mask
            cspec((bt, bt * 16)),     # per-sample group-sum
            cspec((576, 120)),        # fc1 w
            cspec((1, 120)),          # fc1 b
            cspec((120, 84)),         # fc2 w
            cspec((1, 84)),           # fc2 b
            cspec((84, 128)),         # fc3 w (padded to 128 lanes)
            cspec((1, 128)),          # fc3 b (padded)
        ],
        out_specs=pl.BlockSpec((1, bt, 128), lambda i: (i, 0, 0)),
        scratch_shapes=[pltpu.VMEM((bt * 16, W_M2), jnp.float32)],
        compiler_params=_CompilerParams(
            dimension_semantics=("parallel",),
            vmem_limit_bytes=48 * 1024 * 1024),
    )(x_rows, kp["w1k"], kp["b1k"], kp["w2k"], kp["b2k"], kp["sel"],
      jnp.asarray(rowmask), jnp.asarray(gs),
      kp["fc1w"], kp["fc1b"], kp["fc2w"], kp["fc2b"], kp["fc3w"], kp["fc3b"])

    return out.reshape(n_pad, 128)[:n, :10]


# ---------------------------------------------------------------------------
# One-time parameter preparation (PyTorch layouts -> kernel layouts).
# ---------------------------------------------------------------------------
def make_kernel_params(params):
    f32 = jnp.float32
    fc3w = jnp.zeros((84, 128), f32).at[:, :10].set(params["fc3_w"].T.astype(f32))
    fc3b = jnp.zeros((1, 128), f32).at[:, :10].set(
        params["fc3_b"].astype(f32).reshape(1, 10))
    return {
        # conv1: (6,1,3,3) -> (cout, tap)   tap = 3*di + dj
        "w1k": params["conv1_w"].reshape(6, 9).astype(f32),
        "b1k": params["conv1_b"].reshape(6, 1).astype(f32),
        # conv2: (16,6,3,3) -> (cout, tap*6 + cin)
        "w2k": jnp.transpose(params["conv2_w"], (0, 2, 3, 1)).reshape(16, 54).astype(f32),
        "b2k": params["conv2_b"].reshape(16, 1).astype(f32),
        "sel": jnp.asarray(_pool2_selection(), f32),
        # fc weights transposed to (in, out); PyTorch flatten is channel-major,
        # matching column order c*36 + 6*i4 + j4 produced by the kernel.
        "fc1w": params["fc1_w"].T.astype(f32),
        "fc1b": params["fc1_b"].reshape(1, 120).astype(f32),
        "fc2w": params["fc2_w"].T.astype(f32),
        "fc2b": params["fc2_b"].reshape(1, 84).astype(f32),
        "fc3w": fc3w,
        "fc3b": fc3b,
    }


# ---------------------------------------------------------------------------
# Deterministic parameter init (PyTorch layouts) + pure-JAX reference.
# ---------------------------------------------------------------------------
def init_params(key):
    ks = jax.random.split(key, 10)
    nrm = jax.random.normal
    return {
        "conv1_w": 0.10 * nrm(ks[0], (6, 1, 3, 3), jnp.float32),
        "conv1_b": 0.10 * nrm(ks[1], (6,), jnp.float32),
        "conv2_w": 0.10 * nrm(ks[2], (16, 6, 3, 3), jnp.float32),
        "conv2_b": 0.10 * nrm(ks[3], (16,), jnp.float32),
        "fc1_w": 0.05 * nrm(ks[4], (120, 576), jnp.float32),
        "fc1_b": 0.05 * nrm(ks[5], (120,), jnp.float32),
        "fc2_w": 0.05 * nrm(ks[6], (84, 120), jnp.float32),
        "fc2_b": 0.05 * nrm(ks[7], (84,), jnp.float32),
        "fc3_w": 0.05 * nrm(ks[8], (10, 84), jnp.float32),
        "fc3_b": 0.05 * nrm(ks[9], (10,), jnp.float32),
    }


@jax.jit
def net_reference(x, p):
    """Pure-JAX reference matching the PyTorch Net.forward semantics."""
    dn = ("NCHW", "OIHW", "NCHW")
    hp = lax.Precision.HIGHEST
    y = lax.conv_general_dilated(x, p["conv1_w"], (1, 1), "VALID",
                                 dimension_numbers=dn, precision=hp)
    y = jnp.maximum(y + p["conv1_b"].reshape(1, 6, 1, 1), 0.0)
    y = lax.reduce_window(y, -jnp.inf, lax.max, (1, 1, 2, 2), (1, 1, 2, 2), "VALID")
    y = lax.conv_general_dilated(y, p["conv2_w"], (1, 1), "VALID",
                                 dimension_numbers=dn, precision=hp)
    y = jnp.maximum(y + p["conv2_b"].reshape(1, 16, 1, 1), 0.0)
    y = lax.reduce_window(y, -jnp.inf, lax.max, (1, 1, 2, 2), (1, 1, 2, 2), "VALID")
    y = y.reshape(y.shape[0], 16 * 6 * 6)
    y = jnp.maximum(jnp.dot(y, p["fc1_w"].T, precision=hp) + p["fc1_b"], 0.0)
    y = jnp.maximum(jnp.dot(y, p["fc2_w"].T, precision=hp) + p["fc2_b"], 0.0)
    return jnp.dot(y, p["fc3_w"].T, precision=hp) + p["fc3_b"]


if __name__ == "__main__":
    root = jax.random.PRNGKey(0)
    k_x, k_p = jax.random.split(root)
    params = init_params(k_p)
    kparams = make_kernel_params(params)   # one-time layout prep, off hot path

    # Net's fc1 (16*6*6) implies 32x32 single-channel inputs (LeNet-style).
    # Small demo: 10 samples, batch tile of 4 -> 3 grid steps (exercises the
    # padded last tile and the multi-step "parallel" grid).  Production would
    # use b_tile=32..64.
    x = jax.random.normal(k_x, (10, 1, 32, 32), jnp.float32)

    out = jax.block_until_ready(net_forward(x, kparams, b_tile=4))
    assert out.shape == (10, 10), out.shape
    assert bool(jnp.all(jnp.isfinite(out)))

    ref = jax.block_until_ready(net_reference(x, params))
    # All-f32 path: observed |diff| is ~1e-6; keep the check ~1e-5-class.
    np.testing.assert_allclose(np.asarray(out), np.asarray(ref),
                               rtol=1e-4, atol=1e-5)
    print("KERNEL_OK")
</pallas_src>

<mosaic_0001>
module attributes {stable_mosaic.version = 11 : i64} {
  func.func @kernel(%arg0: i32, %arg1: memref<1x1x4096xf32, #tpu.memory_space<vmem>>, %arg2: memref<6x9xf32, #tpu.memory_space<vmem>>, %arg3: memref<6x1xf32, #tpu.memory_space<vmem>>, %arg4: memref<16x54xf32, #tpu.memory_space<vmem>>, %arg5: memref<16x1xf32, #tpu.memory_space<vmem>>, %arg6: memref<661x36xf32, #tpu.memory_space<vmem>>, %arg7: memref<64x16xf32, #tpu.memory_space<vmem>>, %arg8: memref<4x64xf32, #tpu.memory_space<vmem>>, %arg9: memref<576x120xf32, #tpu.memory_space<vmem>>, %arg10: memref<1x120xf32, #tpu.memory_space<vmem>>, %arg11: memref<120x84xf32, #tpu.memory_space<vmem>>, %arg12: memref<1x84xf32, #tpu.memory_space<vmem>>, %arg13: memref<84x128xf32, #tpu.memory_space<vmem>>, %arg14: memref<1x128xf32, #tpu.memory_space<vmem>>, %arg15: memref<1x4x128xf32, #tpu.memory_space<vmem>>, %arg16: memref<64x661xf32, #tpu.memory_space<vmem>>) attributes {dimension_semantics = [#tpu.dimension_semantics<parallel>], iteration_bounds = array<i64: 3>, scalar_prefetch = 0 : i64, scratch_operands = 1 : i64, tpu.core_type = #tpu.core_type<tc>, window_params = [{transform_indices = @transform_0, window_bounds = array<i64: 1, 1, 4096>}, {pipeline_mode = #tpu.pipeline_mode<synchronous>, transform_indices = @transform_1, window_bounds = array<i64: 6, 9>}, {pipeline_mode = #tpu.pipeline_mode<synchronous>, transform_indices = @transform_2, window_bounds = array<i64: 6, 1>}, {pipeline_mode = #tpu.pipeline_mode<synchronous>, transform_indices = @transform_3, window_bounds = array<i64: 16, 54>}, {pipeline_mode = #tpu.pipeline_mode<synchronous>, transform_indices = @transform_4, window_bounds = array<i64: 16, 1>}, {pipeline_mode = #tpu.pipeline_mode<synchronous>, transform_indices = @transform_5, window_bounds = array<i64: 661, 36>}, {pipeline_mode = #tpu.pipeline_mode<synchronous>, transform_indices = @transform_6, window_bounds = array<i64: 64, 16>}, {pipeline_mode = #tpu.pipeline_mode<synchronous>, transform_indices = @transform_7, window_bounds = array<i64: 4, 64>}, {pipeline_mode = #tpu.pipeline_mode<synchronous>, transform_indices = @transform_8, window_bounds = array<i64: 576, 120>}, {pipeline_mode = #tpu.pipeline_mode<synchronous>, transform_indices = @transform_9, window_bounds = array<i64: 1, 120>}, {pipeline_mode = #tpu.pipeline_mode<synchronous>, transform_indices = @transform_10, window_bounds = array<i64: 120, 84>}, {pipeline_mode = #tpu.pipeline_mode<synchronous>, transform_indices = @transform_11, window_bounds = array<i64: 1, 84>}, {pipeline_mode = #tpu.pipeline_mode<synchronous>, transform_indices = @transform_12, window_bounds = array<i64: 84, 128>}, {pipeline_mode = #tpu.pipeline_mode<synchronous>, transform_indices = @transform_13, window_bounds = array<i64: 1, 128>}, {transform_indices = @transform_14, window_bounds = array<i64: 1, 4, 128>}]} {
    %c0 = arith.constant 0 : index
    %c0_0 = arith.constant 0 : index
    %c0_1 = arith.constant 0 : index
    %0 = vector.load %arg1[%c0, %c0_0, %c0_1] : memref<1x1x4096xf32, #tpu.memory_space<vmem>>, vector<1x1x4096xf32>
    %1 = vector.shape_cast %0 : vector<1x1x4096xf32> to vector<1x4096xf32>
    %2 = vector.extract_strided_slice %1 {offsets = [0, 0], sizes = [1, 3964], strides = [1, 1]} : vector<1x4096xf32> to vector<1x3964xf32>
    %3 = vector.extract_strided_slice %1 {offsets = [0, 1], sizes = [1, 3964], strides = [1, 1]} : vector<1x4096xf32> to vector<1x3964xf32>
    %4 = vector.extract_strided_slice %1 {offsets = [0, 2], sizes = [1, 3964], strides = [1, 1]} : vector<1x4096xf32> to vector<1x3964xf32>
    %5 = vector.extract_strided_slice %1 {offsets = [0, 32], sizes = [1, 3964], strides = [1, 1]} : vector<1x4096xf32> to vector<1x3964xf32>
    %6 = vector.extract_strided_slice %1 {offsets = [0, 33], sizes = [1, 3964], strides = [1, 1]} : vector<1x4096xf32> to vector<1x3964xf32>
    %7 = vector.extract_strided_slice %1 {offsets = [0, 34], sizes = [1, 3964], strides = [1, 1]} : vector<1x4096xf32> to vector<1x3964xf32>
    %8 = vector.extract_strided_slice %1 {offsets = [0, 64], sizes = [1, 3964], strides = [1, 1]} : vector<1x4096xf32> to vector<1x3964xf32>
    %9 = vector.extract_strided_slice %1 {offsets = [0, 65], sizes = [1, 3964], strides = [1, 1]} : vector<1x4096xf32> to vector<1x3964xf32>
    %10 = vector.extract_strided_slice %1 {offsets = [0, 66], sizes = [1, 3964], strides = [1, 1]} : vector<1x4096xf32> to vector<1x3964xf32>
    %11 = tpu.concatenate %2, %3, %4, %5, %6, %7, %8, %9, %10 in 0 : vector<1x3964xf32>, vector<1x3964xf32>, vector<1x3964xf32>, vector<1x3964xf32>, vector<1x3964xf32>, vector<1x3964xf32>, vector<1x3964xf32>, vector<1x3964xf32>, vector<1x3964xf32> -> vector<9x3964xf32>
    %c0_2 = arith.constant 0 : index
    %c0_3 = arith.constant 0 : index
    %12 = vector.load %arg2[%c0_2, %c0_3] : memref<6x9xf32, #tpu.memory_space<vmem>>, vector<6x9xf32>
    %cst = arith.constant dense<0.000000e+00> : vector<6x3964xf32>
    %13 = tpu.matmul %12, %11, %cst {dimension_numbers = #tpu.dot_dimension_numbers<[1], [0], [0], [1], [0, 0, 1, 1], [], []>} : vector<6x9xf32>, vector<9x3964xf32>, vector<6x3964xf32> -> vector<6x3964xf32>
    %c0_4 = arith.constant 0 : index
    %c0_5 = arith.constant 0 : index
    %14 = vector.load %arg3[%c0_4, %c0_5] : memref<6x1xf32, #tpu.memory_space<vmem>>, vector<6x1xf32>
    %15 = vector.broadcast %14 : vector<6x1xf32> to vector<6x3964xf32>
    %16 = arith.addf %13, %15 : vector<6x3964xf32>
    %cst_6 = arith.constant 0.000000e+00 : f32
    %17 = vector.broadcast %cst_6 : f32 to vector<6x3964xf32>
    %18 = arith.maximumf %16, %17 : vector<6x3964xf32>
    %19 = vector.extract_strided_slice %18 {offsets = [0, 0], sizes = [6, 3931], strides = [1, 1]} : vector<6x3964xf32> to vector<6x3931xf32>
    %20 = vector.extract_strided_slice %18 {offsets = [0, 1], sizes = [6, 3931], strides = [1, 1]} : vector<6x3964xf32> to vector<6x3931xf32>
    %21 = arith.maximumf %19, %20 : vector<6x3931xf32>
    %22 = vector.extract_strided_slice %18 {offsets = [0, 32], sizes = [6, 3931], strides = [1, 1]} : vector<6x3964xf32> to vector<6x3931xf32>
    %23 = vector.extract_strided_slice %18 {offsets = [0, 33], sizes = [6, 3931], strides = [1, 1]} : vector<6x3964xf32> to vector<6x3931xf32>
    %24 = arith.maximumf %22, %23 : vector<6x3931xf32>
    %25 = arith.maximumf %21, %24 : vector<6x3931xf32>
    %26 = vector.extract_strided_slice %25 {offsets = [0, 0], sizes = [6, 3799], strides = [1, 1]} : vector<6x3931xf32> to vector<6x3799xf32>
    %27 = vector.extract_strided_slice %25 {offsets = [0, 2], sizes = [6, 3799], strides = [1, 1]} : vector<6x3931xf32> to vector<6x3799xf32>
    %28 = vector.extract_strided_slice %25 {offsets = [0, 4], sizes = [6, 3799], strides = [1, 1]} : vector<6x3931xf32> to vector<6x3799xf32>
    %29 = vector.extract_strided_slice %25 {offsets = [0, 64], sizes = [6, 3799], strides = [1, 1]} : vector<6x3931xf32> to vector<6x3799xf32>
    %30 = vector.extract_strided_slice %25 {offsets = [0, 66], sizes = [6, 3799], strides = [1, 1]} : vector<6x3931xf32> to vector<6x3799xf32>
    %31 = vector.extract_strided_slice %25 {offsets = [0, 68], sizes = [6, 3799], strides = [1, 1]} : vector<6x3931xf32> to vector<6x3799xf32>
    %32 = vector.extract_strided_slice %25 {offsets = [0, 128], sizes = [6, 3799], strides = [1, 1]} : vector<6x3931xf32> to vector<6x3799xf32>
    %33 = vector.extract_strided_slice %25 {offsets = [0, 130], sizes = [6, 3799], strides = [1, 1]} : vector<6x3931xf32> to vector<6x3799xf32>
    %34 = vector.extract_strided_slice %25 {offsets = [0, 132], sizes = [6, 3799], strides = [1, 1]} : vector<6x3931xf32> to vector<6x3799xf32>
    %35 = tpu.concatenate %26, %27, %28, %29, %30, %31, %32, %33, %34 in 0 : vector<6x3799xf32>, vector<6x3799xf32>, vector<6x3799xf32>, vector<6x3799xf32>, vector<6x3799xf32>, vector<6x3799xf32>, vector<6x3799xf32>, vector<6x3799xf32>, vector<6x3799xf32> -> vector<54x3799xf32>
    %c0_7 = arith.constant 0 : index
    %c0_8 = arith.constant 0 : index
    %36 = vector.load %arg4[%c0_7, %c0_8] : memref<16x54xf32, #tpu.memory_space<vmem>>, vector<16x54xf32>
    %cst_9 = arith.constant dense<0.000000e+00> : vector<16x3799xf32>
    %37 = tpu.matmul %36, %35, %cst_9 {dimension_numbers = #tpu.dot_dimension_numbers<[1], [0], [0], [1], [0, 0, 1, 1], [], []>} : vector<16x54xf32>, vector<54x3799xf32>, vector<16x3799xf32> -> vector<16x3799xf32>
    %c0_10 = arith.constant 0 : index
    %c0_11 = arith.constant 0 : index
    %38 = vector.load %arg5[%c0_10, %c0_11] : memref<16x1xf32, #tpu.memory_space<vmem>>, vector<16x1xf32>
    %39 = vector.broadcast %38 : vector<16x1xf32> to vector<16x3799xf32>
    %40 = arith.addf %37, %39 : vector<16x3799xf32>
    %cst_12 = arith.constant 0.000000e+00 : f32
    %41 = vector.broadcast %cst_12 : f32 to vector<16x3799xf32>
    %42 = arith.maximumf %40, %41 : vector<16x3799xf32>
    %43 = vector.extract_strided_slice %42 {offsets = [0, 0], sizes = [16, 3733], strides = [1, 1]} : vector<16x3799xf32> to vector<16x3733xf32>
    %44 = vector.extract_strided_slice %42 {offsets = [0, 2], sizes = [16, 3733], strides = [1, 1]} : vector<16x3799xf32> to vector<16x3733xf32>
    %45 = arith.maximumf %43, %44 : vector<16x3733xf32>
    %46 = vector.extract_strided_slice %42 {offsets = [0, 64], sizes = [16, 3733], strides = [1, 1]} : vector<16x3799xf32> to vector<16x3733xf32>
    %47 = vector.extract_strided_slice %42 {offsets = [0, 66], sizes = [16, 3733], strides = [1, 1]} : vector<16x3799xf32> to vector<16x3733xf32>
    %48 = arith.maximumf %46, %47 : vector<16x3733xf32>
    %49 = arith.maximumf %45, %48 : vector<16x3733xf32>
    %50 = vector.extract_strided_slice %49 {offsets = [0, 0], sizes = [16, 661], strides = [1, 1]} : vector<16x3733xf32> to vector<16x661xf32>
    %c0_13 = arith.constant 0 : index
    %c0_14 = arith.constant 0 : index
    %51 = vector.load %arg16[%c0_13, %c0_14] : memref<64x661xf32, #tpu.memory_space<vmem>>, vector<16x661xf32>
    tpu.vector_store %arg16[%c0_13, %c0_14], %50 {strides = array<i32>} : memref<64x661xf32, #tpu.memory_space<vmem>>, vector<16x661xf32>,
    %52 = vector.extract_strided_slice %49 {offsets = [0, 1024], sizes = [16, 661], strides = [1, 1]} : vector<16x3733xf32> to vector<16x661xf32>
    %c16 = arith.constant 16 : index
    %c0_15 = arith.constant 0 : index
    %53 = vector.load %arg16[%c16, %c0_15] : memref<64x661xf32, #tpu.memory_space<vmem>>, vector<16x661xf32>
    tpu.vector_store %arg16[%c16, %c0_15], %52 {strides = array<i32>} : memref<64x661xf32, #tpu.memory_space<vmem>>, vector<16x661xf32>,
    %54 = vector.extract_strided_slice %49 {offsets = [0, 2048], sizes = [16, 661], strides = [1, 1]} : vector<16x3733xf32> to vector<16x661xf32>
    %c32 = arith.constant 32 : index
    %c0_16 = arith.constant 0 : index
    %55 = vector.load %arg16[%c32, %c0_16] : memref<64x661xf32, #tpu.memory_space<vmem>>, vector<16x661xf32>
    tpu.vector_store %arg16[%c32, %c0_16], %54 {strides = array<i32>} : memref<64x661xf32, #tpu.memory_space<vmem>>, vector<16x661xf32>,
    %56 = vector.extract_strided_slice %49 {offsets = [0, 3072], sizes = [16, 661], strides = [1, 1]} : vector<16x3733xf32> to vector<16x661xf32>
    %c48 = arith.constant 48 : index
    %c0_17 = arith.constant 0 : index
    %57 = vector.load %arg16[%c48, %c0_17] : memref<64x661xf32, #tpu.memory_space<vmem>>, vector<16x661xf32>
    tpu.vector_store %arg16[%c48, %c0_17], %56 {strides = array<i32>} : memref<64x661xf32, #tpu.memory_space<vmem>>, vector<16x661xf32>,
    %c0_18 = arith.constant 0 : index
    %c0_19 = arith.constant 0 : index
    %58 = vector.load %arg16[%c0_18, %c0_19] : memref<64x661xf32, #tpu.memory_space<vmem>>, vector<64x661xf32>
    %c0_20 = arith.constant 0 : index
    %c0_21 = arith.constant 0 : index
    %59 = vector.load %arg6[%c0_20, %c0_21] : memref<661x36xf32, #tpu.memory_space<vmem>>, vector<661x36xf32>
    %cst_22 = arith.constant dense<0.000000e+00> : vector<64x36xf32>
    %60 = tpu.matmul %58, %59, %cst_22 {dimension_numbers = #tpu.dot_dimension_numbers<[1], [0], [0], [1], [0, 0, 1, 1], [], []>} : vector<64x661xf32>, vector<661x36xf32>, vector<64x36xf32> -> vector<64x36xf32>
    %c0_23 = arith.constant 0 : index
    %c0_24 = arith.constant 0 : index
    %61 = vector.load %arg7[%c0_23, %c0_24] : memref<64x16xf32, #tpu.memory_space<vmem>>, vector<64x16xf32>
    %62 = vector.extract_strided_slice %61 {offsets = [0, 0], sizes = [64, 1], strides = [1, 1]} : vector<64x16xf32> to vector<64x1xf32>
    %63 = vector.broadcast %62 : vector<64x1xf32> to vector<64x36xf32>
    %64 = arith.mulf %60, %63 : vector<64x36xf32>
    %65 = vector.extract_strided_slice %61 {offsets = [0, 1], sizes = [64, 1], strides = [1, 1]} : vector<64x16xf32> to vector<64x1xf32>
    %66 = vector.broadcast %65 : vector<64x1xf32> to vector<64x36xf32>
    %67 = arith.mulf %60, %66 : vector<64x36xf32>
    %68 = vector.extract_strided_slice %61 {offsets = [0, 2], sizes = [64, 1], strides = [1, 1]} : vector<64x16xf32> to vector<64x1xf32>
    %69 = vector.broadcast %68 : vector<64x1xf32> to vector<64x36xf32>
    %70 = arith.mulf %60, %69 : vector<64x36xf32>
    %71 = vector.extract_strided_slice %61 {offsets = [0, 3], sizes = [64, 1], strides = [1, 1]} : vector<64x16xf32> to vector<64x1xf32>
    %72 = vector.broadcast %71 : vector<64x1xf32> to vector<64x36xf32>
    %73 = arith.mulf %60, %72 : vector<64x36xf32>
    %74 = vector.extract_strided_slice %61 {offsets = [0, 4], sizes = [64, 1], strides = [1, 1]} : vector<64x16xf32> to vector<64x1xf32>
    %75 = vector.broadcast %74 : vector<64x1xf32> to vector<64x36xf32>
    %76 = arith.mulf %60, %75 : vector<64x36xf32>
    %77 = vector.extract_strided_slice %61 {offsets = [0, 5], sizes = [64, 1], strides = [1, 1]} : vector<64x16xf32> to vector<64x1xf32>
    %78 = vector.broadcast %77 : vector<64x1xf32> to vector<64x36xf32>
    %79 = arith.mulf %60, %78 : vector<64x36xf32>
    %80 = vector.extract_strided_slice %61 {offsets = [0, 6], sizes = [64, 1], strides = [1, 1]} : vector<64x16xf32> to vector<64x1xf32>
    %81 = vector.broadcast %80 : vector<64x1xf32> to vector<64x36xf32>
    %82 = arith.mulf %60, %81 : vector<64x36xf32>
    %83 = vector.extract_strided_slice %61 {offsets = [0, 7], sizes = [64, 1], strides = [1, 1]} : vector<64x16xf32> to vector<64x1xf32>
    %84 = vector.broadcast %83 : vector<64x1xf32> to vector<64x36xf32>
    %85 = arith.mulf %60, %84 : vector<64x36xf32>
    %86 = vector.extract_strided_slice %61 {offsets = [0, 8], sizes = [64, 1], strides = [1, 1]} : vector<64x16xf32> to vector<64x1xf32>
    %87 = vector.broadcast %86 : vector<64x1xf32> to vector<64x36xf32>
    %88 = arith.mulf %60, %87 : vector<64x36xf32>
    %89 = vector.extract_strided_slice %61 {offsets = [0, 9], sizes = [64, 1], strides = [1, 1]} : vector<64x16xf32> to vector<64x1xf32>
    %90 = vector.broadcast %89 : vector<64x1xf32> to vector<64x36xf32>
    %91 = arith.mulf %60, %90 : vector<64x36xf32>
    %92 = vector.extract_strided_slice %61 {offsets = [0, 10], sizes = [64, 1], strides = [1, 1]} : vector<64x16xf32> to vector<64x1xf32>
    %93 = vector.broadcast %92 : vector<64x1xf32> to vector<64x36xf32>
    %94 = arith.mulf %60, %93 : vector<64x36xf32>
    %95 = vector.extract_strided_slice %61 {offsets = [0, 11], sizes = [64, 1], strides = [1, 1]} : vector<64x16xf32> to vector<64x1xf32>
    %96 = vector.broadcast %95 : vector<64x1xf32> to vector<64x36xf32>
    %97 = arith.mulf %60, %96 : vector<64x36xf32>
    %98 = vector.extract_strided_slice %61 {offsets = [0, 12], sizes = [64, 1], strides = [1, 1]} : vector<64x16xf32> to vector<64x1xf32>
    %99 = vector.broadcast %98 : vector<64x1xf32> to vector<64x36xf32>
    %100 = arith.mulf %60, %99 : vector<64x36xf32>
    %101 = vector.extract_strided_slice %61 {offsets = [0, 13], sizes = [64, 1], strides = [1, 1]} : vector<64x16xf32> to vector<64x1xf32>
    %102 = vector.broadcast %101 : vector<64x1xf32> to vector<64x36xf32>
    %103 = arith.mulf %60, %102 : vector<64x36xf32>
    %104 = vector.extract_strided_slice %61 {offsets = [0, 14], sizes = [64, 1], strides = [1, 1]} : vector<64x16xf32> to vector<64x1xf32>
    %105 = vector.broadcast %104 : vector<64x1xf32> to vector<64x36xf32>
    %106 = arith.mulf %60, %105 : vector<64x36xf32>
    %107 = vector.extract_strided_slice %61 {offsets = [0, 15], sizes = [64, 1], strides = [1, 1]} : vector<64x16xf32> to vector<64x1xf32>
    %108 = vector.broadcast %107 : vector<64x1xf32> to vector<64x36xf32>
    %109 = arith.mulf %60, %108 : vector<64x36xf32>
    %110 = tpu.concatenate %64, %67, %70, %73, %76, %79, %82, %85, %88, %91, %94, %97, %100, %103, %106, %109 in 1 : vector<64x36xf32>, vector<64x36xf32>, vector<64x36xf32>, vector<64x36xf32>, vector<64x36xf32>, vector<64x36xf32>, vector<64x36xf32>, vector<64x36xf32>, vector<64x36xf32>, vector<64x36xf32>, vector<64x36xf32>, vector<64x36xf32>, vector<64x36xf32>, vector<64x36xf32>, vector<64x36xf32>, vector<64x36xf32> -> vector<64x576xf32>
    %c0_25 = arith.constant 0 : index
    %c0_26 = arith.constant 0 : index
    %111 = vector.load %arg8[%c0_25, %c0_26] : memref<4x64xf32, #tpu.memory_space<vmem>>, vector<4x64xf32>
    %cst_27 = arith.constant dense<0.000000e+00> : vector<4x576xf32>
    %112 = tpu.matmul %111, %110, %cst_27 {dimension_numbers = #tpu.dot_dimension_numbers<[1], [0], [0], [1], [0, 0, 1, 1], [], []>} : vector<4x64xf32>, vector<64x576xf32>, vector<4x576xf32> -> vector<4x576xf32>
    %c0_28 = arith.constant 0 : index
    %c0_29 = arith.constant 0 : index
    %113 = vector.load %arg9[%c0_28, %c0_29] : memref<576x120xf32, #tpu.memory_space<vmem>>, vector<576x120xf32>
    %cst_30 = arith.constant dense<0.000000e+00> : vector<4x120xf32>
    %114 = tpu.matmul %112, %113, %cst_30 {dimension_numbers = #tpu.dot_dimension_numbers<[1], [0], [0], [1], [0, 0, 1, 1], [], []>} : vector<4x576xf32>, vector<576x120xf32>, vector<4x120xf32> -> vector<4x120xf32>
    %c0_31 = arith.constant 0 : index
    %c0_32 = arith.constant 0 : index
    %115 = vector.load %arg10[%c0_31, %c0_32] : memref<1x120xf32, #tpu.memory_space<vmem>>, vector<1x120xf32>
    %116 = vector.broadcast %115 : vector<1x120xf32> to vector<4x120xf32>
    %117 = arith.addf %114, %116 : vector<4x120xf32>
    %cst_33 = arith.constant 0.000000e+00 : f32
    %118 = vector.broadcast %cst_33 : f32 to vector<4x120xf32>
    %119 = arith.maximumf %117, %118 : vector<4x120xf32>
    %c0_34 = arith.constant 0 : index
    %c0_35 = arith.constant 0 : index
    %120 = vector.load %arg11[%c0_34, %c0_35] : memref<120x84xf32, #tpu.memory_space<vmem>>, vector<120x84xf32>
    %cst_36 = arith.constant dense<0.000000e+00> : vector<4x84xf32>
    %121 = tpu.matmul %119, %120, %cst_36 {dimension_numbers = #tpu.dot_dimension_numbers<[1], [0], [0], [1], [0, 0, 1, 1], [], []>} : vector<4x120xf32>, vector<120x84xf32>, vector<4x84xf32> -> vector<4x84xf32>
    %c0_37 = arith.constant 0 : index
    %c0_38 = arith.constant 0 : index
    %122 = vector.load %arg12[%c0_37, %c0_38] : memref<1x84xf32, #tpu.memory_space<vmem>>, vector<1x84xf32>
    %123 = vector.broadcast %122 : vector<1x84xf32> to vector<4x84xf32>
    %124 = arith.addf %121, %123 : vector<4x84xf32>
    %cst_39 = arith.constant 0.000000e+00 : f32
    %125 = vector.broadcast %cst_39 : f32 to vector<4x84xf32>
    %126 = arith.maximumf %124, %125 : vector<4x84xf32>
    %c0_40 = arith.constant 0 : index
    %c0_41 = arith.constant 0 : index
    %127 = vector.load %arg13[%c0_40, %c0_41] : memref<84x128xf32, #tpu.memory_space<vmem>>, vector<84x128xf32>
    %cst_42 = arith.constant dense<0.000000e+00> : vector<4x128xf32>
    %128 = tpu.matmul %126, %127, %cst_42 {dimension_numbers = #tpu.dot_dimension_numbers<[1], [0], [0], [1], [0, 0, 1, 1], [], []>} : vector<4x84xf32>, vector<84x128xf32>, vector<4x128xf32> -> vector<4x128xf32>
    %c0_43 = arith.constant 0 : index
    %c0_44 = arith.constant 0 : index
    %129 = vector.load %arg14[%c0_43, %c0_44] : memref<1x128xf32, #tpu.memory_space<vmem>>, vector<1x128xf32>
    %130 = vector.broadcast %129 : vector<1x128xf32> to vector<4x128xf32>
    %131 = arith.addf %128, %130 : vector<4x128xf32>
    %c0_45 = arith.constant 0 : index
    %c0_46 = arith.constant 0 : index
    %c0_47 = arith.constant 0 : index
    %132 = vector.load %arg15[%c0_45, %c0_46, %c0_47] : memref<1x4x128xf32, #tpu.memory_space<vmem>>, vector<1x4x128xf32>
    %133 = vector.shape_cast %132 : vector<1x4x128xf32> to vector<4x128xf32>
    %134 = vector.shape_cast %131 : vector<4x128xf32> to vector<1x4x128xf32>
    tpu.vector_store %arg15[%c0_45, %c0_46, %c0_47], %134 {strides = array<i32>} : memref<1x4x128xf32, #tpu.memory_space<vmem>>, vector<1x4x128xf32>,
    return
  }
  func.func @transform_0(%arg0: i32) -> (i32, i32, i32) {
    %c0_i32 = arith.constant 0 : i32
    %c0_i32_0 = arith.constant 0 : i32
    %c0_i32_1 = arith.constant 0 : i32
    return %arg0, %c0_i32, %c0_i32_0 : i32, i32, i32
  }
  func.func @transform_1(%arg0: i32) -> (i32, i32) {
    %c0_i32 = arith.constant 0 : i32
    %c0_i32_0 = arith.constant 0 : i32
    %c0_i32_1 = arith.constant 0 : i32
    return %c0_i32, %c0_i32_0 : i32, i32
  }
  func.func @transform_2(%arg0: i32) -> (i32, i32) {
    %c0_i32 = arith.constant 0 : i32
    %c0_i32_0 = arith.constant 0 : i32
    %c0_i32_1 = arith.constant 0 : i32
    return %c0_i32, %c0_i32_0 : i32, i32
  }
  func.func @transform_3(%arg0: i32) -> (i32, i32) {
    %c0_i32 = arith.constant 0 : i32
    %c0_i32_0 = arith.constant 0 : i32
    %c0_i32_1 = arith.constant 0 : i32
    return %c0_i32, %c0_i32_0 : i32, i32
  }
  func.func @transform_4(%arg0: i32) -> (i32, i32) {
    %c0_i32 = arith.constant 0 : i32
    %c0_i32_0 = arith.constant 0 : i32
    %c0_i32_1 = arith.constant 0 : i32
    return %c0_i32, %c0_i32_0 : i32, i32
  }
  func.func @transform_5(%arg0: i32) -> (i32, i32) {
    %c0_i32 = arith.constant 0 : i32
    %c0_i32_0 = arith.constant 0 : i32
    %c0_i32_1 = arith.constant 0 : i32
    return %c0_i32, %c0_i32_0 : i32, i32
  }
  func.func @transform_6(%arg0: i32) -> (i32, i32) {
    %c0_i32 = arith.constant 0 : i32
    %c0_i32_0 = arith.constant 0 : i32
    %c0_i32_1 = arith.constant 0 : i32
    return %c0_i32, %c0_i32_0 : i32, i32
  }
  func.func @transform_7(%arg0: i32) -> (i32, i32) {
    %c0_i32 = arith.constant 0 : i32
    %c0_i32_0 = arith.constant 0 : i32
    %c0_i32_1 = arith.constant 0 : i32
    return %c0_i32, %c0_i32_0 : i32, i32
  }
  func.func @transform_8(%arg0: i32) -> (i32, i32) {
    %c0_i32 = arith.constant 0 : i32
    %c0_i32_0 = arith.constant 0 : i32
    %c0_i32_1 = arith.constant 0 : i32
    return %c0_i32, %c0_i32_0 : i32, i32
  }
  func.func @transform_9(%arg0: i32) -> (i32, i32) {
    %c0_i32 = arith.constant 0 : i32
    %c0_i32_0 = arith.constant 0 : i32
    %c0_i32_1 = arith.constant 0 : i32
    return %c0_i32, %c0_i32_0 : i32, i32
  }
  func.func @transform_10(%arg0: i32) -> (i32, i32) {
    %c0_i32 = arith.constant 0 : i32
    %c0_i32_0 = arith.constant 0 : i32
    %c0_i32_1 = arith.constant 0 : i32
    return %c0_i32, %c0_i32_0 : i32, i32
  }
  func.func @transform_11(%arg0: i32) -> (i32, i32) {
    %c0_i32 = arith.constant 0 : i32
    %c0_i32_0 = arith.constant 0 : i32
    %c0_i32_1 = arith.constant 0 : i32
    return %c0_i32, %c0_i32_0 : i32, i32
  }
  func.func @transform_12(%arg0: i32) -> (i32, i32) {
    %c0_i32 = arith.constant 0 : i32
    %c0_i32_0 = arith.constant 0 : i32
    %c0_i32_1 = arith.constant 0 : i32
    return %c0_i32, %c0_i32_0 : i32, i32
  }
  func.func @transform_13(%arg0: i32) -> (i32, i32) {
    %c0_i32 = arith.constant 0 : i32
    %c0_i32_0 = arith.constant 0 : i32
    %c0_i32_1 = arith.constant 0 : i32
    return %c0_i32, %c0_i32_0 : i32, i32
  }
  func.func @transform_14(%arg0: i32) -> (i32, i32, i32) {
    %c0_i32 = arith.constant 0 : i32
    %c0_i32_0 = arith.constant 0 : i32
    %c0_i32_1 = arith.constant 0 : i32
    return %arg0, %c0_i32, %c0_i32_0 : i32, i32, i32
  }
}

</mosaic_0001>

<llo_original>
// kernel: net_forward.1
$region0: #{net_forward.1}
  #allocation0 [shape = 'u32[]', space=smem, size = 0x4, offset = 0x4, fixed_abs, tag = 'smem constant byte address 0x4 - core index']
  #allocation1 [shape = 'u32[144,128]{1,0:T(1,128)}', space=vmem, size = 0x12000, scoped, tag = 'internal scratch']
  #allocation2 [shape = 'f32[64,661]{1,0:T(8,128)}', space=vmem, size = 0x30000, scoped, tag = 'scratch operand']
  %s0 = inlined_call_operand.vmem [shape: f32[3,1,4096], index: 0, kind: input, shape index: {}]
  %s1 = inlined_call_operand.vmem [shape: f32[6,9], index: 1, kind: input, shape index: {}]
  %s2 = inlined_call_operand.vmem [shape: f32[6,1], index: 2, kind: input, shape index: {}]
  %s3 = inlined_call_operand.vmem [shape: f32[16,54], index: 3, kind: input, shape index: {}]
  %s4 = inlined_call_operand.vmem [shape: f32[16,1], index: 4, kind: input, shape index: {}]
  %s5 = inlined_call_operand.vmem [shape: f32[661,36], index: 5, kind: input, shape index: {}]
  %s6 = inlined_call_operand.vmem [shape: f32[64,16], index: 6, kind: input, shape index: {}]
  %s7 = inlined_call_operand.vmem [shape: f32[4,64], index: 7, kind: input, shape index: {}]
  %s8 = inlined_call_operand.vmem [shape: f32[576,120], index: 8, kind: input, shape index: {}]
  %s9 = inlined_call_operand.vmem [shape: f32[1,120], index: 9, kind: input, shape index: {}]
  %s10 = inlined_call_operand.vmem [shape: f32[120,84], index: 10, kind: input, shape index: {}]
  %s11 = inlined_call_operand.vmem [shape: f32[1,84], index: 11, kind: input, shape index: {}]
  %s12 = inlined_call_operand.vmem [shape: f32[84,128], index: 12, kind: input, shape index: {}]
  %s13 = inlined_call_operand.vmem [shape: f32[1,128], index: 13, kind: input, shape index: {}]
  %s14 = inlined_call_operand.vmem [shape: f32[3,4,128], index: 14, kind: output, shape index: {}]
  %s15 = sld [smem:[#allocation0]]
  $region89: #{net_forward.1} parent=0
    _
  %s17 = ssub.s32 1, %s15
  %s18 = scalar_select 0, %s17, %s15
  loop: start=0, step=1, limit=5
  $region2: #{net_forward.1} parent=0 // loop_pre_header
    _
  $region3: #{net_forward.1} parent=0 // loop_header
    %s20 = sphi 0, %s24
    %p21 = scmp.ge.s32.totalorder %s20, 5
    %s30 = sphi 0, %s32
    %s33 = sphi 0, %s30
    %s34 = sphi 0, %s33
    %s50 = sphi 0, %s34
    %s54 = sphi 0, %s54
    %s56 = sphi 0, %s54
    %s57 = sphi 0, %s56
    %s71 = sphi 0, %s57
    %s75 = sphi 0, %s75
    %s77 = sphi 0, %s75
    %s78 = sphi 0, %s77
    %s92 = sphi 0, %s78
    %s96 = sphi 0, %s96
    %s98 = sphi 0, %s96
    %s99 = sphi 0, %s98
    %s113 = sphi 0, %s99
    %s117 = sphi 0, %s117
    %s119 = sphi 0, %s117
    %s120 = sphi 0, %s119
    %s134 = sphi 0, %s120
    %s138 = sphi 0, %s138
    %s140 = sphi 0, %s138
    %s141 = sphi 0, %s140
    %s155 = sphi 0, %s141
    %s159 = sphi 0, %s159
    %s161 = sphi 0, %s159
    %s162 = sphi 0, %s161
    %s176 = sphi 0, %s162
    %s180 = sphi 0, %s180
    %s182 = sphi 0, %s180
    %s183 = sphi 0, %s182
    %s197 = sphi 0, %s183
    %s201 = sphi 0, %s201
    %s203 = sphi 0, %s201
    %s204 = sphi 0, %s203
    %s218 = sphi 0, %s204
    %s222 = sphi 0, %s222
    %s224 = sphi 0, %s222
    %s225 = sphi 0, %s224
    %s239 = sphi 0, %s225
    %s243 = sphi 0, %s243
    %s245 = sphi 0, %s243
    %s246 = sphi 0, %s245
    %s260 = sphi 0, %s246
    %s264 = sphi 0, %s264
    %s266 = sphi 0, %s264
    %s267 = sphi 0, %s266
    %s281 = sphi 0, %s267
    %s285 = sphi 0, %s285
    %s287 = sphi 0, %s285
    %s288 = sphi 0, %s287
    %s302 = sphi 0, %s288
    %s306 = sphi 0, %s306
    %s308 = sphi 0, %s306
    %s309 = sphi 0, %s308
    %s323 = sphi 0, %s309
    %s329 = sphi 0, %s331
    %s332 = sphi 0, %s329
    %s333 = sphi 0, %s332
    %s349 = sphi 0, %s333
  $region4: #{net_forward.1} parent=0 // loop_header_branch
    %23 = sbr.rel (%p21) target = $region8
  $region5: #{net_forward.1} parent=0 // loop_body
    %s25 = ssub.s32 %s20, 1
    %s26 = ssub.s32 %s20, 2
    %s27 = sadd.s32 %s20, 1
    %s28 = ssub.s32 %s20, %s27
    %p29 = scmp.eq.s32.totalorder %s28, 0
    %s31 = sadd.s32 %s30, 1
    %s32 = scalar_select %p29, %s30, %s31
    %p35 = pneg %p29
    %p36 = scmp.eq.s32.totalorder %s20, 2
    %p37 = por %p35, %p36
    %p38 = scmp.ne.s32.totalorder %s30, %s33
    %p39 = scmp.eq.s32.totalorder %s20, 0
    %p40 = por %p38, %p39
    %p41 = scmp.ne.s32.totalorder %s30, %s33
    %p42 = scmp.eq.s32.totalorder %s25, 2
    %p43 = por %p41, %p42
    %p44 = scmp.ne.s32.totalorder %s33, %s34
    %p45 = scmp.eq.s32.totalorder %s25, 0
    %p46 = por %p44, %p45
    %p47 = scmp.ne.s32.totalorder %s33, %s34
    %p48 = scmp.eq.s32.totalorder %s26, 2
    %p49 = por %p47, %p48
    %p51 = scmp.ne.s32.totalorder %s34, %s50
    %p52 = scmp.eq.s32.totalorder %s26, 0
    %p53 = por %p51, %p52
    %s55 = sadd.s32 %s54, 1
    %p58 = scmp.eq.s32.totalorder %s20, 2
    %p59 = scmp.ne.s32.totalorder %s54, %s56
    %p60 = scmp.eq.s32.totalorder %s20, 0
    %p61 = por %p59, %p60
    %p62 = scmp.ne.s32.totalorder %s54, %s56
    %p63 = scmp.eq.s32.totalorder %s25, 2
    %p64 = por %p62, %p63
    %p65 = scmp.ne.s32.totalorder %s56, %s57
    %p66 = scmp.eq.s32.totalorder %s25, 0
    %p67 = por %p65, %p66
    %p68 = scmp.ne.s32.totalorder %s56, %s57
    %p69 = scmp.eq.s32.totalorder %s26, 2
    %p70 = por %p68, %p69
    %p72 = scmp.ne.s32.totalorder %s57, %s71
    %p73 = scmp.eq.s32.totalorder %s26, 0
    %p74 = por %p72, %p73
    %s76 = sadd.s32 %s75, 1
    %p79 = scmp.eq.s32.totalorder %s20, 2
    %p80 = scmp.ne.s32.totalorder %s75, %s77
    %p81 = scmp.eq.s32.totalorder %s20, 0
    %p82 = por %p80, %p81
    %p83 = scmp.ne.s32.totalorder %s75, %s77
    %p84 = scmp.eq.s32.totalorder %s25, 2
    %p85 = por %p83, %p84
    %p86 = scmp.ne.s32.totalorder %s77, %s78
    %p87 = scmp.eq.s32.totalorder %s25, 0
    %p88 = por %p86, %p87
    %p89 = scmp.ne.s32.totalorder %s77, %s78
    %p90 = scmp.eq.s32.totalorder %s26, 2
    %p91 = por %p89, %p90
    %p93 = scmp.ne.s32.totalorder %s78, %s92
    %p94 = scmp.eq.s32.totalorder %s26, 0
    %p95 = por %p93, %p94
    %s97 = sadd.s32 %s96, 1
    %p100 = scmp.eq.s32.totalorder %s20, 2
    %p101 = scmp.ne.s32.totalorder %s96, %s98
    %p102 = scmp.eq.s32.totalorder %s20, 0
    %p103 = por %p101, %p102
    %p104 = scmp.ne.s32.totalorder %s96, %s98
    %p105 = scmp.eq.s32.totalorder %s25, 2
    %p106 = por %p104, %p105
    %p107 = scmp.ne.s32.totalorder %s98, %s99
    %p108 = scmp.eq.s32.totalorder %s25, 0
    %p109 = por %p107, %p108
    %p110 = scmp.ne.s32.totalorder %s98, %s99
    %p111 = scmp.eq.s32.totalorder %s26, 2
    %p112 = por %p110, %p111
    %p114 = scmp.ne.s32.totalorder %s99, %s113
    %p115 = scmp.eq.s32.totalorder %s26, 0
    %p116 = por %p114, %p115
    %s118 = sadd.s32 %s117, 1
    %p121 = scmp.eq.s32.totalorder %s20, 2
    %p122 = scmp.ne.s32.totalorder %s117, %s119
    %p123 = scmp.eq.s32.totalorder %s20, 0
    %p124 = por %p122, %p123
    %p125 = scmp.ne.s32.totalorder %s117, %s119
    %p126 = scmp.eq.s32.totalorder %s25, 2
    %p127 = por %p125, %p126
    %p128 = scmp.ne.s32.totalorder %s119, %s120
    %p129 = scmp.eq.s32.totalorder %s25, 0
    %p130 = por %p128, %p129
    %p131 = scmp.ne.s32.totalorder %s119, %s120
    %p132 = scmp.eq.s32.totalorder %s26, 2
    %p133 = por %p131, %p132
    %p135 = scmp.ne.s32.totalorder %s120, %s134
    %p136 = scmp.eq.s32.totalorder %s26, 0
    %p137 = por %p135, %p136
    %s139 = sadd.s32 %s138, 1
    %p142 = scmp.eq.s32.totalorder %s20, 2
    %p143 = scmp.ne.s32.totalorder %s138, %s140
    %p144 = scmp.eq.s32.totalorder %s20, 0
    %p145 = por %p143, %p144
    %p146 = scmp.ne.s32.totalorder %s138, %s140
    %p147 = scmp.eq.s32.totalorder %s25, 2
    %p148 = por %p146, %p147
    %p149 = scmp.ne.s32.totalorder %s140, %s141
    %p150 = scmp.eq.s32.totalorder %s25, 0
    %p151 = por %p149, %p150
    %p152 = scmp.ne.s32.totalorder %s140, %s141
    %p153 = scmp.eq.s32.totalorder %s26, 2
    %p154 = por %p152, %p153
    %p156 = scmp.ne.s32.totalorder %s141, %s155
    %p157 = scmp.eq.s32.totalorder %s26, 0
    %p158 = por %p156, %p157
    %s160 = sadd.s32 %s159, 1
    %p163 = scmp.eq.s32.totalorder %s20, 2
    %p164 = scmp.ne.s32.totalorder %s159, %s161
    %p165 = scmp.eq.s32.totalorder %s20, 0
    %p166 = por %p164, %p165
    %p167 = scmp.ne.s32.totalorder %s159, %s161
    %p168 = scmp.eq.s32.totalorder %s25, 2
    %p169 = por %p167, %p168
    %p170 = scmp.ne.s32.totalorder %s161, %s162
    %p171 = scmp.eq.s32.totalorder %s25, 0
    %p172 = por %p170, %p171
    %p173 = scmp.ne.s32.totalorder %s161, %s162
    %p174 = scmp.eq.s32.totalorder %s26, 2
    %p175 = por %p173, %p174
    %p177 = scmp.ne.s32.totalorder %s162, %s176
    %p178 = scmp.eq.s32.totalorder %s26, 0
    %p179 = por %p177, %p178
    %s181 = sadd.s32 %s180, 1
    %p184 = scmp.eq.s32.totalorder %s20, 2
    %p185 = scmp.ne.s32.totalorder %s180, %s182
    %p186 = scmp.eq.s32.totalorder %s20, 0
    %p187 = por %p185, %p186
    %p188 = scmp.ne.s32.totalorder %s180, %s182
    %p189 = scmp.eq.s32.totalorder %s25, 2
    %p190 = por %p188, %p189
    %p191 = scmp.ne.s32.totalorder %s182, %s183
    %p192 = scmp.eq.s32.totalorder %s25, 0
    %p193 = por %p191, %p192
    %p194 = scmp.ne.s32.totalorder %s182, %s183
    %p195 = scmp.eq.s32.totalorder %s26, 2
    %p196 = por %p194, %p195
    %p198 = scmp.ne.s32.totalorder %s183, %s197
    %p199 = scmp.eq.s32.totalorder %s26, 0
    %p200 = por %p198, %p199
    %s202 = sadd.s32 %s201, 1
    %p205 = scmp.eq.s32.totalorder %s20, 2
    %p206 = scmp.ne.s32.totalorder %s201, %s203
    %p207 = scmp.eq.s32.totalorder %s20, 0
    %p208 = por %p206, %p207
    %p209 = scmp.ne.s32.totalorder %s201, %s203
    %p210 = scmp.eq.s32.totalorder %s25, 2
    %p211 = por %p209, %p210
    %p212 = scmp.ne.s32.totalorder %s203, %s204
    %p213 = scmp.eq.s32.totalorder %s25, 0
    %p214 = por %p212, %p213
    %p215 = scmp.ne.s32.totalorder %s203, %s204
    %p216 = scmp.eq.s32.totalorder %s26, 2
    %p217 = por %p215, %p216
    %p219 = scmp.ne.s32.totalorder %s204, %s218
    %p220 = scmp.eq.s32.totalorder %s26, 0
    %p221 = por %p219, %p220
    %s223 = sadd.s32 %s222, 1
    %p226 = scmp.eq.s32.totalorder %s20, 2
    %p227 = scmp.ne.s32.totalorder %s222, %s224
    %p228 = scmp.eq.s32.totalorder %s20, 0
    %p229 = por %p227, %p228
    %p230 = scmp.ne.s32.totalorder %s222, %s224
    %p231 = scmp.eq.s32.totalorder %s25, 2
    %p232 = por %p230, %p231
    %p233 = scmp.ne.s32.totalorder %s224, %s225
    %p234 = scmp.eq.s32.totalorder %s25, 0
    %p235 = por %p233, %p234
    %p236 = scmp.ne.s32.totalorder %s224, %s225
    %p237 = scmp.eq.s32.totalorder %s26, 2
    %p238 = por %p236, %p237
    %p240 = scmp.ne.s32.totalorder %s225, %s239
    %p241 = scmp.eq.s32.totalorder %s26, 0
    %p242 = por %p240, %p241
    %s244 = sadd.s32 %s243, 1
    %p247 = scmp.eq.s32.totalorder %s20, 2
    %p248 = scmp.ne.s32.totalorder %s243, %s245
    %p249 = scmp.eq.s32.totalorder %s20, 0
    %p250 = por %p248, %p249
    %p251 = scmp.ne.s32.totalorder %s243, %s245
    %p252 = scmp.eq.s32.totalorder %s25, 2
    %p253 = por %p251, %p252
    %p254 = scmp.ne.s32.totalorder %s245, %s246
    %p255 = scmp.eq.s32.totalorder %s25, 0
    %p256 = por %p254, %p255
    %p257 = scmp.ne.s32.totalorder %s245, %s246
    %p258 = scmp.eq.s32.totalorder %s26, 2
    %p259 = por %p257, %p258
    %p261 = scmp.ne.s32.totalorder %s246, %s260
    %p262 = scmp.eq.s32.totalorder %s26, 0
    %p263 = por %p261, %p262
    %s265 = sadd.s32 %s264, 1
    %p268 = scmp.eq.s32.totalorder %s20, 2
    %p269 = scmp.ne.s32.totalorder %s264, %s266
    %p270 = scmp.eq.s32.totalorder %s20, 0
    %p271 = por %p269, %p270
    %p272 = scmp.ne.s32.totalorder %s264, %s266
    %p273 = scmp.eq.s32.totalorder %s25, 2
    %p274 = por %p272, %p273
    %p275 = scmp.ne.s32.totalorder %s266, %s267
    %p276 = scmp.eq.s32.totalorder %s25, 0
    %p277 = por %p275, %p276
    %p278 = scmp.ne.s32.totalorder %s266, %s267
    %p279 = scmp.eq.s32.totalorder %s26, 2
    %p280 = por %p278, %p279
    %p282 = scmp.ne.s32.totalorder %s267, %s281
    %p283 = scmp.eq.s32.totalorder %s26, 0
    %p284 = por %p282, %p283
    %s286 = sadd.s32 %s285, 1
    %p289 = scmp.eq.s32.totalorder %s20, 2
    %p290 = scmp.ne.s32.totalorder %s285, %s287
    %p291 = scmp.eq.s32.totalorder %s20, 0
    %p292 = por %p290, %p291
    %p293 = scmp.ne.s32.totalorder %s285, %s287
    %p294 = scmp.eq.s32.totalorder %s25, 2
    %p295 = por %p293, %p294
    %p296 = scmp.ne.s32.totalorder %s287, %s288
    %p297 = scmp.eq.s32.totalorder %s25, 0
    %p298 = por %p296, %p297
    %p299 = scmp.ne.s32.totalorder %s287, %s288
    %p300 = scmp.eq.s32.totalorder %s26, 2
    %p301 = por %p299, %p300
    %p303 = scmp.ne.s32.totalorder %s288, %s302
    %p304 = scmp.eq.s32.totalorder %s26, 0
    %p305 = por %p303, %p304
    %s307 = sadd.s32 %s306, 1
    %p310 = scmp.eq.s32.totalorder %s20, 2
    %p311 = scmp.ne.s32.totalorder %s306, %s308
    %p312 = scmp.eq.s32.totalorder %s20, 0
    %p313 = por %p311, %p312
    %p314 = scmp.ne.s32.totalorder %s306, %s308
    %p315 = scmp.eq.s32.totalorder %s25, 2
    %p316 = por %p314, %p315
    %p317 = scmp.ne.s32.totalorder %s308, %s309
    %p318 = scmp.eq.s32.totalorder %s25, 0
    %p319 = por %p317, %p318
    %p320 = scmp.ne.s32.totalorder %s308, %s309
    %p321 = scmp.eq.s32.totalorder %s26, 2
    %p322 = por %p320, %p321
    %p324 = scmp.ne.s32.totalorder %s309, %s323
    %p325 = scmp.eq.s32.totalorder %s26, 0
    %p326 = por %p324, %p325
    %s327 = ssub.s32 %s20, %s27
    %p328 = scmp.eq.s32.totalorder %s327, 0
    %s330 = sadd.s32 %s329, 1
    %s331 = scalar_select %p328, %s329, %s330
    %p334 = pneg %p328
    %p335 = scmp.eq.s32.totalorder %s20, 2
    %p336 = por %p334, %p335
    %p337 = scmp.ne.s32.totalorder %s329, %s332
    %p338 = scmp.eq.s32.totalorder %s20, 0
    %p339 = por %p337, %p338
    %p340 = scmp.ne.s32.totalorder %s329, %s332
    %p341 = scmp.eq.s32.totalorder %s25, 2
    %p342 = por %p340, %p341
    %p343 = scmp.ne.s32.totalorder %s332, %s333
    %p344 = scmp.eq.s32.totalorder %s25, 0
    %p345 = por %p343, %p344
    %p346 = scmp.ne.s32.totalorder %s332, %s333
    %p347 = scmp.eq.s32.totalorder %s26, 2
    %p348 = por %p346, %p347
    %p350 = scmp.ne.s32.totalorder %s333, %s349
    %p351 = scmp.eq.s32.totalorder %s26, 0
    %p352 = por %p350, %p351
    %p353 = scmp.le.s32.totalorder 1, %s20
    %p354 = scmp.lt.s32.totalorder %s20, 4
    %p355 = pnand %p353, %p354
    %p356 = pneg %p355
    // Predicated region
    $region9: #{net_forward.1} parent=5 // pred_check
      _
    $region10: #{net_forward.1} parent=5 // pred_check_branch
      %358 = sbr.rel (%p355) target = $region12
    $region11: #{net_forward.1} parent=5 // pred_region
      %s359 = ssub.s32 %s20, 1
      // Predicated region
      $region13: #{net_forward.1} parent=11 // pred_check
        %p360 = pneg %p67
      $region14: #{net_forward.1} parent=11 // pred_check_branch
        %362 = sbr.rel (%p360) target = $region16
      $region15: #{net_forward.1} parent=11 // pred_region
        _
      $region16: #{net_forward.1} parent=11 // pred_fallthru
        _
      // Predicated region
      $region17: #{net_forward.1} parent=11 // pred_check
        %p363 = pneg %p88
      $region18: #{net_forward.1} parent=11 // pred_check_branch
        %365 = sbr.rel (%p363) target = $region20
      $region19: #{net_forward.1} parent=11 // pred_region
        _
      $region20: #{net_forward.1} parent=11 // pred_fallthru
        _
      // Predicated region
      $region21: #{net_forward.1} parent=11 // pred_check
        %p366 = pneg %p109
      $region22: #{net_forward.1} parent=11 // pred_check_branch
        %368 = sbr.rel (%p366) target = $region24
      $region23: #{net_forward.1} parent=11 // pred_region
        _
      $region24: #{net_forward.1} parent=11 // pred_fallthru
        _
      // Predicated region
      $region25: #{net_forward.1} parent=11 // pred_check
        %p369 = pneg %p130
      $region26: #{net_forward.1} parent=11 // pred_check_branch
        %371 = sbr.rel (%p369) target = $region28
      $region27: #{net_forward.1} parent=11 // pred_region
        _
      $region28: #{net_forward.1} parent=11 // pred_fallthru
        _
      // Predicated region
      $region29: #{net_forward.1} parent=11 // pred_check
        %p372 = pneg %p151
      $region30: #{net_forward.1} parent=11 // pred_check_branch
        %374 = sbr.rel (%p372) target = $region32
      $region31: #{net_forward.1} parent=11 // pred_region
        _
      $region32: #{net_forward.1} parent=11 // pred_fallthru
        _
      // Predicated region
      $region33: #{net_forward.1} parent=11 // pred_check
        %p375 = pneg %p172
      $region34: #{net_forward.1} parent=11 // pred_check_branch
        %377 = sbr.rel (%p375) target = $region36
      $region35: #{net_forward.1} parent=11 // pred_region
        _
      $region36: #{net_forward.1} parent=11 // pred_fallthru
        _
      // Predicated region
      $region37: #{net_forward.1} parent=11 // pred_check
        %p378 = pneg %p193
      $region38: #{net_forward.1} parent=11 // pred_check_branch
        %380 = sbr.rel (%p378) target = $region40
      $region39: #{net_forward.1} parent=11 // pred_region
        _
      $region40: #{net_forward.1} parent=11 // pred_fallthru
        _
      // Predicated region
      $region41: #{net_forward.1} parent=11 // pred_check
        %p381 = pneg %p214
      $region42: #{net_forward.1} parent=11 // pred_check_branch
        %383 = sbr.rel (%p381) target = $region44
      $region43: #{net_forward.1} parent=11 // pred_region
        _
      $region44: #{net_forward.1} parent=11 // pred_fallthru
        _
      // Predicated region
      $region45: #{net_forward.1} parent=11 // pred_check
        %p384 = pneg %p235
      $region46: #{net_forward.1} parent=11 // pred_check_branch
        %386 = sbr.rel (%p384) target = $region48
      $region47: #{net_forward.1} parent=11 // pred_region
        _
      $region48: #{net_forward.1} parent=11 // pred_fallthru
        _
      // Predicated region
      $region49: #{net_forward.1} parent=11 // pred_check
        %p387 = pneg %p256
      $region50: #{net_forward.1} parent=11 // pred_check_branch
        %389 = sbr.rel (%p387) target = $region52
      $region51: #{net_forward.1} parent=11 // pred_region
        _
      $region52: #{net_forward.1} parent=11 // pred_fallthru
        _
      // Predicated region
      $region53: #{net_forward.1} parent=11 // pred_check
        %p390 = pneg %p277
      $region54: #{net_forward.1} parent=11 // pred_check_branch
        %392 = sbr.rel (%p390) target = $region56
      $region55: #{net_forward.1} parent=11 // pred_region
        _
      $region56: #{net_forward.1} parent=11 // pred_fallthru
        _
      // Predicated region
      $region57: #{net_forward.1} parent=11 // pred_check
        %p393 = pneg %p298
      $region58: #{net_forward.1} parent=11 // pred_check_branch
        %395 = sbr.rel (%p393) target = $region60
      $region59: #{net_forward.1} parent=11 // pred_region
        _
      $region60: #{net_forward.1} parent=11 // pred_fallthru
        _
      // Predicated region
      $region61: #{net_forward.1} parent=11 // pred_check
        %p396 = pneg %p319
      $region62: #{net_forward.1} parent=11 // pred_check_branch
        %398 = sbr.rel (%p396) target = $region64
      $region63: #{net_forward.1} parent=11 // pred_region
        _
      $region64: #{net_forward.1} parent=11 // pred_fallthru
        _
    $region12: #{net_forward.1} parent=5 // pred_fallthru
      _
    %p399 = scmp.lt.s32.totalorder %s20, 3
    // Predicated region
    $region65: #{net_forward.1} parent=5 // pred_check
      %p400 = pneg %p399
    $region66: #{net_forward.1} parent=5 // pred_check_branch
      %402 = sbr.rel (%p400) target = $region68
    $region67: #{net_forward.1} parent=5 // pred_region
      // Predicated region
      $region69: #{net_forward.1} parent=67 // pred_check
        %p403 = pneg %p40
      $region70: #{net_forward.1} parent=67 // pred_check_branch
        %405 = sbr.rel (%p403) target = $region72
      $region71: #{net_forward.1} parent=67 // pred_region
        %p406 = scmp.lt.s32.totalorder %s20, 2
        %s407 = scalar_select %p406, %s20, 2
        %s408 = smul.addr %s407, 32
        %s409 = scalar_lea.vmem %s0, %s408
      $region72: #{net_forward.1} parent=67 // pred_fallthru
        _
    $region68: #{net_forward.1} parent=5 // pred_fallthru
      _
    %p410 = scmp.le.s32.totalorder 1, %s20
    %p411 = scmp.lt.s32.totalorder %s20, 4
    %p412 = pnand %p410, %p411
    %p413 = pneg %p412
    // Predicated region
    $region73: #{net_forward.1} parent=5 // pred_check
      _
    $region74: #{net_forward.1} parent=5 // pred_check_branch
      %415 = sbr.rel (%p412) target = $region76
    $region75: #{net_forward.1} parent=5 // pred_region
      %s416 = ssub.s32 %s20, 1
      %p417 = scmp.lt.s32.totalorder %s25, 2
      %s418 = scalar_select %p417, %s25, 2
      %s419 = smul.addr %s418, 32
      %s420 = scalar_lea.vmem %s0, %s419
      %p421 = pneg %p46
      %p422 = pneg %p43
      %p423 = pneg %p67
      %p424 = pneg %p64
      %p425 = pneg %p88
      %p426 = pneg %p85
      %p427 = pneg %p109
      %p428 = pneg %p106
      %p429 = pneg %p130
      %p430 = pneg %p127
      %p431 = pneg %p151
      %p432 = pneg %p148
      %p433 = pneg %p172
      %p434 = pneg %p169
      %p435 = pneg %p193
      %p436 = pneg %p190
      %p437 = pneg %p214
      %p438 = pneg %p211
      %p439 = pneg %p235
      %p440 = pneg %p232
      %p441 = pneg %p256
      %p442 = pneg %p253
      %p443 = pneg %p277
      %p444 = pneg %p274
      %p445 = pneg %p298
      %p446 = pneg %p295
      %p447 = pneg %p319
      %p448 = pneg %p316
      %p449 = pneg %p345
      %p450 = pneg %p342
      %p451 = scmp.lt.s32.totalorder %s25, 2
      %s452 = scalar_select %p451, %s25, 2
      %s453 = smul.addr %s452, 4
      %s454 = scalar_lea.vmem %s14, %s453
      %p455 = scmp.lt.s32.totalorder %s25, 2
      %s456 = scalar_select %p455, %s25, 2
      %s457 = smul.addr %s456, 32
      %s458 = scalar_lea.vmem %s0, %s457
      %p459 = scmp.lt.s32.totalorder %s25, 2
      %s460 = scalar_select %p459, %s25, 2
      %s461 = smul.addr %s460, 4
      %s462 = scalar_lea.vmem %s14, %s461
      %v463 = vld [vmem:[%s458] sm:$0xff]
      %v464 = vld [vmem:[%s458 + $0x8] sm:$0xff]
      %v465 = vld [vmem:[%s458 + $0x10] sm:$0xff]
      %v466 = vld [vmem:[%s458 + $0x18] sm:$0xff]
      %v471 = vlaneseq
      %v472 = vshrl.u32 %v471, 7
      %v473 = vsub.s32 0, %v472
      %v474 = vrot.slane %v463, %v473
      %v475 = vlaneseq
      %v476 = vshrl.u32 %v475, 7
      %v477 = vsub.s32 1, %v476
      %v478 = vrot.slane %v463, %v477
      %v479 = vlaneseq
      %v480 = vshrl.u32 %v479, 7
      %v481 = vsub.s32 2, %v480
      %v482 = vrot.slane %v463, %v481
      %v483 = vlaneseq
      %v484 = vshrl.u32 %v483, 7
      %v485 = vsub.s32 3, %v484
      %v486 = vrot.slane %v463, %v485
      %v487 = vlaneseq
      %v488 = vshrl.u32 %v487, 7
      %v489 = vsub.s32 4, %v488
      %v490 = vrot.slane %v463, %v489
      %v491 = vlaneseq
      %v492 = vshrl.u32 %v491, 7
      %v493 = vsub.s32 5, %v492
      %v494 = vrot.slane %v463, %v493
      %v495 = vlaneseq
      %v496 = vshrl.u32 %v495, 7
      %v497 = vsub.s32 6, %v496
      %v498 = vrot.slane %v463, %v497
      %v499 = vlaneseq
      %v500 = vshrl.u32 %v499, 7
      %v501 = vsub.s32 7, %v500
      %v502 = vrot.slane %v463, %v501
      %v503 = vlaneseq
      %v504 = vshrl.u32 %v503, 7
      %v505 = vsub.s32 0, %v504
      %v506 = vrot.slane %v464, %v505
      %v507 = vlaneseq
      %v508 = vshrl.u32 %v507, 7
      %v509 = vsub.s32 1, %v508
      %v510 = vrot.slane %v464, %v509
      %v511 = vlaneseq
      %v512 = vshrl.u32 %v511, 7
      %v513 = vsub.s32 2, %v512
      %v514 = vrot.slane %v464, %v513
      %v515 = vlaneseq
      %v516 = vshrl.u32 %v515, 7
      %v517 = vsub.s32 3, %v516
      %v518 = vrot.slane %v464, %v517
      %v519 = vlaneseq
      %v520 = vshrl.u32 %v519, 7
      %v521 = vsub.s32 4, %v520
      %v522 = vrot.slane %v464, %v521
      %v523 = vlaneseq
      %v524 = vshrl.u32 %v523, 7
      %v525 = vsub.s32 5, %v524
      %v526 = vrot.slane %v464, %v525
      %v527 = vlaneseq
      %v528 = vshrl.u32 %v527, 7
      %v529 = vsub.s32 6, %v528
      %v530 = vrot.slane %v464, %v529
      %v531 = vlaneseq
      %v532 = vshrl.u32 %v531, 7
      %v533 = vsub.s32 7, %v532
      %v534 = vrot.slane %v464, %v533
      %v535 = vlaneseq
      %v536 = vshrl.u32 %v535, 7
      %v537 = vsub.s32 0, %v536
      %v538 = vrot.slane %v465, %v537
      %v539 = vlaneseq
      %v540 = vshrl.u32 %v539, 7
      %v541 = vsub.s32 1, %v540
      %v542 = vrot.slane %v465, %v541
      %v543 = vlaneseq
      %v544 = vshrl.u32 %v543, 7
      %v545 = vsub.s32 2, %v544
      %v546 = vrot.slane %v465, %v545
      %v547 = vlaneseq
      %v548 = vshrl.u32 %v547, 7
      %v549 = vsub.s32 3, %v548
      %v550 = vrot.slane %v465, %v549
      %v551 = vlaneseq
      %v552 = vshrl.u32 %v551, 7
      %v553 = vsub.s32 4, %v552
      %v554 = vrot.slane %v465, %v553
      %v555 = vlaneseq
      %v556 = vshrl.u32 %v555, 7
      %v557 = vsub.s32 5, %v556
      %v558 = vrot.slane %v465, %v557
      %v559 = vlaneseq
      %v560 = vshrl.u32 %v559, 7
      %v561 = vsub.s32 6, %v560
      %v562 = vrot.slane %v465, %v561
      %v563 = vlaneseq
      %v564 = vshrl.u32 %v563, 7
      %v565 = vsub.s32 7, %v564
      %v566 = vrot.slane %v465, %v565
      %v567 = vlaneseq
      %v568 = vshrl.u32 %v567, 7
      %v569 = vsub.s32 0, %v568
      %v570 = vrot.slane %v466, %v569
      %v571 = vlaneseq
      %v572 = vshrl.u32 %v571, 7
      %v573 = vsub.s32 1, %v572
      %v574 = vrot.slane %v466, %v573
      %v575 = vlaneseq
      %v576 = vshrl.u32 %v575, 7
      %v577 = vsub.s32 2, %v576
      %v578 = vrot.slane %v466, %v577
      %v579 = vlaneseq
      %v580 = vshrl.u32 %v579, 7
      %v581 = vsub.s32 3, %v580
      %v582 = vrot.slane %v466, %v581
      %v583 = vlaneseq
      %v584 = vshrl.u32 %v583, 7
      %v585 = vsub.s32 4, %v584
      %v586 = vrot.slane %v466, %v585
      %v587 = vlaneseq
      %v588 = vshrl.u32 %v587, 7
      %v589 = vsub.s32 5, %v588
      %v590 = vrot.slane %v466, %v589
      %v591 = vlaneseq
      %v592 = vshrl.u32 %v591, 7
      %v593 = vsub.s32 6, %v592
      %v594 = vrot.slane %v466, %v593
      %626 = vrot.lane.b32.xlu0 %v474, 127
      %v627 = vpop.permute.xlu0 %626
      %628 = vrot.lane.b32.xlu0 %v478, 127
      %v629 = vpop.permute.xlu0 %628
      %630 = vrot.lane.b32.xlu0 %v482, 127
      %v631 = vpop.permute.xlu0 %630
      %632 = vrot.lane.b32.xlu0 %v486, 127
      %v633 = vpop.permute.xlu0 %632
      %634 = vrot.lane.b32.xlu0 %v490, 127
      %v635 = vpop.permute.xlu0 %634
      %636 = vrot.lane.b32.xlu0 %v494, 127
      %v637 = vpop.permute.xlu0 %636
      %638 = vrot.lane.b32.xlu0 %v498, 127
      %v639 = vpop.permute.xlu0 %638
      %640 = vrot.lane.b32.xlu0 %v502, 127
      %v641 = vpop.permute.xlu0 %640
      %642 = vrot.lane.b32.xlu0 %v506, 127
      %v643 = vpop.permute.xlu0 %642
      %644 = vrot.lane.b32.xlu0 %v510, 127
      %v645 = vpop.permute.xlu0 %644
      %646 = vrot.lane.b32.xlu0 %v514, 127
      %v647 = vpop.permute.xlu0 %646
      %648 = vrot.lane.b32.xlu0 %v518, 127
      %v649 = vpop.permute.xlu0 %648
      %650 = vrot.lane.b32.xlu0 %v522, 127
      %v651 = vpop.permute.xlu0 %650
      %652 = vrot.lane.b32.xlu0 %v526, 127
      %v653 = vpop.permute.xlu0 %652
      %654 = vrot.lane.b32.xlu0 %v530, 127
      %v655 = vpop.permute.xlu0 %654
      %656 = vrot.lane.b32.xlu0 %v534, 127
      %v657 = vpop.permute.xlu0 %656
      %658 = vrot.lane.b32.xlu0 %v538, 127
      %v659 = vpop.permute.xlu0 %658
      %660 = vrot.lane.b32.xlu0 %v542, 127
      %v661 = vpop.permute.xlu0 %660
      %662 = vrot.lane.b32.xlu0 %v546, 127
      %v663 = vpop.permute.xlu0 %662
      %664 = vrot.lane.b32.xlu0 %v550, 127
      %v665 = vpop.permute.xlu0 %664
      %666 = vrot.lane.b32.xlu0 %v554, 127
      %v667 = vpop.permute.xlu0 %666
      %668 = vrot.lane.b32.xlu0 %v558, 127
      %v669 = vpop.permute.xlu0 %668
      %670 = vrot.lane.b32.xlu0 %v562, 127
      %v671 = vpop.permute.xlu0 %670
      %672 = vrot.lane.b32.xlu0 %v566, 127
      %v673 = vpop.permute.xlu0 %672
      %674 = vrot.lane.b32.xlu0 %v570, 127
      %v675 = vpop.permute.xlu0 %674
      %676 = vrot.lane.b32.xlu0 %v574, 127
      %v677 = vpop.permute.xlu0 %676
      %678 = vrot.lane.b32.xlu0 %v578, 127
      %v679 = vpop.permute.xlu0 %678
      %680 = vrot.lane.b32.xlu0 %v582, 127
      %v681 = vpop.permute.xlu0 %680
      %682 = vrot.lane.b32.xlu0 %v586, 127
      %v683 = vpop.permute.xlu0 %682
      %684 = vrot.lane.b32.xlu0 %v590, 127
      %v685 = vpop.permute.xlu0 %684
      %686 = vrot.lane.b32.xlu0 %v594, 127
      %v687 = vpop.permute.xlu0 %686
      %vm688 = vcmask 1039360
      %v689 = vsel %vm688, %v627, %v629
      %v690 = vsel %vm688, %v629, %v631
      %v691 = vsel %vm688, %v631, %v633
      %v692 = vsel %vm688, %v633, %v635
      %v693 = vsel %vm688, %v635, %v637
      %v694 = vsel %vm688, %v637, %v639
      %v695 = vsel %vm688, %v639, %v641
      %v696 = vsel %vm688, %v641, %v643
      %v697 = vsel %vm688, %v643, %v645
      %v698 = vsel %vm688, %v645, %v647
      %v699 = vsel %vm688, %v647, %v649
      %v700 = vsel %vm688, %v649, %v651
      %v701 = vsel %vm688, %v651, %v653
      %v702 = vsel %vm688, %v653, %v655
      %v703 = vsel %vm688, %v655, %v657
      %v704 = vsel %vm688, %v657, %v659
      %v705 = vsel %vm688, %v659, %v661
      %v706 = vsel %vm688, %v661, %v663
      %v707 = vsel %vm688, %v663, %v665
      %v708 = vsel %vm688, %v665, %v667
      %v709 = vsel %vm688, %v667, %v669
      %v710 = vsel %vm688, %v669, %v671
      %v711 = vsel %vm688, %v671, %v673
      %v712 = vsel %vm688, %v673, %v675
      %v713 = vsel %vm688, %v675, %v677
      %v714 = vsel %vm688, %v677, %v679
      %v715 = vsel %vm688, %v679, %v681
      %v716 = vsel %vm688, %v681, %v683
      %v717 = vsel %vm688, %v683, %v685
      %v718 = vsel %vm688, %v685, %v687
      %750 = vrot.lane.b32.xlu0 %v474, 126
      %v751 = vpop.permute.xlu0 %750
      %752 = vrot.lane.b32.xlu0 %v478, 126
      %v753 = vpop.permute.xlu0 %752
      %754 = vrot.lane.b32.xlu0 %v482, 126
      %v755 = vpop.permute.xlu0 %754
      %756 = vrot.lane.b32.xlu0 %v486, 126
      %v757 = vpop.permute.xlu0 %756
      %758 = vrot.lane.b32.xlu0 %v490, 126
      %v759 = vpop.permute.xlu0 %758
      %760 = vrot.lane.b32.xlu0 %v494, 126
      %v761 = vpop.permute.xlu0 %760
      %762 = vrot.lane.b32.xlu0 %v498, 126
      %v763 = vpop.permute.xlu0 %762
      %764 = vrot.lane.b32.xlu0 %v502, 126
      %v765 = vpop.permute.xlu0 %764
      %766 = vrot.lane.b32.xlu0 %v506, 126
      %v767 = vpop.permute.xlu0 %766
      %768 = vrot.lane.b32.xlu0 %v510, 126
      %v769 = vpop.permute.xlu0 %768
      %770 = vrot.lane.b32.xlu0 %v514, 126
      %v771 = vpop.permute.xlu0 %770
      %772 = vrot.lane.b32.xlu0 %v518, 126
      %v773 = vpop.permute.xlu0 %772
      %774 = vrot.lane.b32.xlu0 %v522, 126
      %v775 = vpop.permute.xlu0 %774
      %776 = vrot.lane.b32.xlu0 %v526, 126
      %v777 = vpop.permute.xlu0 %776
      %778 = vrot.lane.b32.xlu0 %v530, 126
      %v779 = vpop.permute.xlu0 %778
      %780 = vrot.lane.b32.xlu0 %v534, 126
      %v781 = vpop.permute.xlu0 %780
      %782 = vrot.lane.b32.xlu0 %v538, 126
      %v783 = vpop.permute.xlu0 %782
      %784 = vrot.lane.b32.xlu0 %v542, 126
      %v785 = vpop.permute.xlu0 %784
      %786 = vrot.lane.b32.xlu0 %v546, 126
      %v787 = vpop.permute.xlu0 %786
      %788 = vrot.lane.b32.xlu0 %v550, 126
      %v789 = vpop.permute.xlu0 %788
      %790 = vrot.lane.b32.xlu0 %v554, 126
      %v791 = vpop.permute.xlu0 %790
      %792 = vrot.lane.b32.xlu0 %v558, 126
      %v793 = vpop.permute.xlu0 %792
      %794 = vrot.lane.b32.xlu0 %v562, 126
      %v795 = vpop.permute.xlu0 %794
      %796 = vrot.lane.b32.xlu0 %v566, 126
      %v797 = vpop.permute.xlu0 %796
      %798 = vrot.lane.b32.xlu0 %v570, 126
      %v799 = vpop.permute.xlu0 %798
      %800 = vrot.lane.b32.xlu0 %v574, 126
      %v801 = vpop.permute.xlu0 %800
      %802 = vrot.lane.b32.xlu0 %v578, 126
      %v803 = vpop.permute.xlu0 %802
      %804 = vrot.lane.b32.xlu0 %v582, 126
      %v805 = vpop.permute.xlu0 %804
      %806 = vrot.lane.b32.xlu0 %v586, 126
      %v807 = vpop.permute.xlu0 %806
      %808 = vrot.lane.b32.xlu0 %v590, 126
      %v809 = vpop.permute.xlu0 %808
      %810 = vrot.lane.b32.xlu0 %v594, 126
      %v811 = vpop.permute.xlu0 %810
      %vm812 = vcmask 1031168
      %v813 = vsel %vm812, %v751, %v753
      %v814 = vsel %vm812, %v753, %v755
      %v815 = vsel %vm812, %v755, %v757
      %v816 = vsel %vm812, %v757, %v759
      %v817 = vsel %vm812, %v759, %v761
      %v818 = vsel %vm812, %v761, %v763
      %v819 = vsel %vm812, %v763, %v765
      %v820 = vsel %vm812, %v765, %v767
      %v821 = vsel %vm812, %v767, %v769
      %v822 = vsel %vm812, %v769, %v771
      %v823 = vsel %vm812, %v771, %v773
      %v824 = vsel %vm812, %v773, %v775
      %v825 = vsel %vm812, %v775, %v777
      %v826 = vsel %vm812, %v777, %v779
      %v827 = vsel %vm812, %v779, %v781
      %v828 = vsel %vm812, %v781, %v783
      %v829 = vsel %vm812, %v783, %v785
      %v830 = vsel %vm812, %v785, %v787
      %v831 = vsel %vm812, %v787, %v789
      %v832 = vsel %vm812, %v789, %v791
      %v833 = vsel %vm812, %v791, %v793
      %v834 = vsel %vm812, %v793, %v795
      %v835 = vsel %vm812, %v795, %v797
      %v836 = vsel %vm812, %v797, %v799
      %v837 = vsel %vm812, %v799, %v801
      %v838 = vsel %vm812, %v801, %v803
      %v839 = vsel %vm812, %v803, %v805
      %v840 = vsel %vm812, %v805, %v807
      %v841 = vsel %vm812, %v807, %v809
      %v842 = vsel %vm812, %v809, %v811
      %v874 = vlaneseq
      %v875 = vshrl.u32 %v874, 7
      %v876 = vsub.s32 7, %v875
      %v877 = vrot.slane %v466, %v876
      %878 = vrot.lane.b32.xlu0 %v474, 96
      %v879 = vpop.permute.xlu0 %878
      %880 = vrot.lane.b32.xlu0 %v478, 96
      %v881 = vpop.permute.xlu0 %880
      %882 = vrot.lane.b32.xlu0 %v482, 96
      %v883 = vpop.permute.xlu0 %882
      %884 = vrot.lane.b32.xlu0 %v486, 96
      %v885 = vpop.permute.xlu0 %884
      %886 = vrot.lane.b32.xlu0 %v490, 96
      %v887 = vpop.permute.xlu0 %886
      %888 = vrot.lane.b32.xlu0 %v494, 96
      %v889 = vpop.permute.xlu0 %888
      %890 = vrot.lane.b32.xlu0 %v498, 96
      %v891 = vpop.permute.xlu0 %890
      %892 = vrot.lane.b32.xlu0 %v502, 96
      %v893 = vpop.permute.xlu0 %892
      %894 = vrot.lane.b32.xlu0 %v506, 96
      %v895 = vpop.permute.xlu0 %894
      %896 = vrot.lane.b32.xlu0 %v510, 96
      %v897 = vpop.permute.xlu0 %896
      %898 = vrot.lane.b32.xlu0 %v514, 96
      %v899 = vpop.permute.xlu0 %898
      %900 = vrot.lane.b32.xlu0 %v518, 96
      %v901 = vpop.permute.xlu0 %900
      %902 = vrot.lane.b32.xlu0 %v522, 96
      %v903 = vpop.permute.xlu0 %902
      %904 = vrot.lane.b32.xlu0 %v526, 96
      %v905 = vpop.permute.xlu0 %904
      %906 = vrot.lane.b32.xlu0 %v530, 96
      %v907 = vpop.permute.xlu0 %906
      %908 = vrot.lane.b32.xlu0 %v534, 96
      %v909 = vpop.permute.xlu0 %908
      %910 = vrot.lane.b32.xlu0 %v538, 96
      %v911 = vpop.permute.xlu0 %910
      %912 = vrot.lane.b32.xlu0 %v542, 96
      %v913 = vpop.permute.xlu0 %912
      %914 = vrot.lane.b32.xlu0 %v546, 96
      %v915 = vpop.permute.xlu0 %914
      %916 = vrot.lane.b32.xlu0 %v550, 96
      %v917 = vpop.permute.xlu0 %916
      %918 = vrot.lane.b32.xlu0 %v554, 96
      %v919 = vpop.permute.xlu0 %918
      %920 = vrot.lane.b32.xlu0 %v558, 96
      %v921 = vpop.permute.xlu0 %920
      %922 = vrot.lane.b32.xlu0 %v562, 96
      %v923 = vpop.permute.xlu0 %922
      %924 = vrot.lane.b32.xlu0 %v566, 96
      %v925 = vpop.permute.xlu0 %924
      %926 = vrot.lane.b32.xlu0 %v570, 96
      %v927 = vpop.permute.xlu0 %926
      %928 = vrot.lane.b32.xlu0 %v574, 96
      %v929 = vpop.permute.xlu0 %928
      %930 = vrot.lane.b32.xlu0 %v578, 96
      %v931 = vpop.permute.xlu0 %930
      %932 = vrot.lane.b32.xlu0 %v582, 96
      %v933 = vpop.permute.xlu0 %932
      %934 = vrot.lane.b32.xlu0 %v586, 96
      %v935 = vpop.permute.xlu0 %934
      %936 = vrot.lane.b32.xlu0 %v590, 96
      %v937 = vpop.permute.xlu0 %936
      %938 = vrot.lane.b32.xlu0 %v594, 96
      %v939 = vpop.permute.xlu0 %938
      %940 = vrot.lane.b32.xlu0 %v877, 96
      %v941 = vpop.permute.xlu0 %940
      %vm942 = vcmask 785408
      %v943 = vsel %vm942, %v879, %v881
      %v944 = vsel %vm942, %v881, %v883
      %v945 = vsel %vm942, %v883, %v885
      %v946 = vsel %vm942, %v885, %v887
      %v947 = vsel %vm942, %v887, %v889
      %v948 = vsel %vm942, %v889, %v891
      %v949 = vsel %vm942, %v891, %v893
      %v950 = vsel %vm942, %v893, %v895
      %v951 = vsel %vm942, %v895, %v897
      %v952 = vsel %vm942, %v897, %v899
      %v953 = vsel %vm942, %v899, %v901
      %v954 = vsel %vm942, %v901, %v903
      %v955 = vsel %vm942, %v903, %v905
      %v956 = vsel %vm942, %v905, %v907
      %v957 = vsel %vm942, %v907, %v909
      %v958 = vsel %vm942, %v909, %v911
      %v959 = vsel %vm942, %v911, %v913
      %v960 = vsel %vm942, %v913, %v915
      %v961 = vsel %vm942, %v915, %v917
      %v962 = vsel %vm942, %v917, %v919
      %v963 = vsel %vm942, %v919, %v921
      %v964 = vsel %vm942, %v921, %v923
      %v965 = vsel %vm942, %v923, %v925
      %v966 = vsel %vm942, %v925, %v927
      %v967 = vsel %vm942, %v927, %v929
      %v968 = vsel %vm942, %v929, %v931
      %v969 = vsel %vm942, %v931, %v933
      %v970 = vsel %vm942, %v933, %v935
      %v971 = vsel %vm942, %v935, %v937
      %v972 = vsel %vm942, %v937, %v939
      %v973 = vsel %vm942, %v939, %v941
      %1005 = vrot.lane.b32.xlu0 %v474, 95
      %v1006 = vpop.permute.xlu0 %1005
      %1007 = vrot.lane.b32.xlu0 %v478, 95
      %v1008 = vpop.permute.xlu0 %1007
      %1009 = vrot.lane.b32.xlu0 %v482, 95
      %v1010 = vpop.permute.xlu0 %1009
      %1011 = vrot.lane.b32.xlu0 %v486, 95
      %v1012 = vpop.permute.xlu0 %1011
      %1013 = vrot.lane.b32.xlu0 %v490, 95
      %v1014 = vpop.permute.xlu0 %1013
      %1015 = vrot.lane.b32.xlu0 %v494, 95
      %v1016 = vpop.permute.xlu0 %1015
      %1017 = vrot.lane.b32.xlu0 %v498, 95
      %v1018 = vpop.permute.xlu0 %1017
      %1019 = vrot.lane.b32.xlu0 %v502, 95
      %v1020 = vpop.permute.xlu0 %1019
      %1021 = vrot.lane.b32.xlu0 %v506, 95
      %v1022 = vpop.permute.xlu0 %1021
      %1023 = vrot.lane.b32.xlu0 %v510, 95
      %v1024 = vpop.permute.xlu0 %1023
      %1025 = vrot.lane.b32.xlu0 %v514, 95
      %v1026 = vpop.permute.xlu0 %1025
      %1027 = vrot.lane.b32.xlu0 %v518, 95
      %v1028 = vpop.permute.xlu0 %1027
      %1029 = vrot.lane.b32.xlu0 %v522, 95
      %v1030 = vpop.permute.xlu0 %1029
      %1031 = vrot.lane.b32.xlu0 %v526, 95
      %v1032 = vpop.permute.xlu0 %1031
      %1033 = vrot.lane.b32.xlu0 %v530, 95
      %v1034 = vpop.permute.xlu0 %1033
      %1035 = vrot.lane.b32.xlu0 %v534, 95
      %v1036 = vpop.permute.xlu0 %1035
      %1037 = vrot.lane.b32.xlu0 %v538, 95
      %v1038 = vpop.permute.xlu0 %1037
      %1039 = vrot.lane.b32.xlu0 %v542, 95
      %v1040 = vpop.permute.xlu0 %1039
      %1041 = vrot.lane.b32.xlu0 %v546, 95
      %v1042 = vpop.permute.xlu0 %1041
      %1043 = vrot.lane.b32.xlu0 %v550, 95
      %v1044 = vpop.permute.xlu0 %1043
      %1045 = vrot.lane.b32.xlu0 %v554, 95
      %v1046 = vpop.permute.xlu0 %1045
      %1047 = vrot.lane.b32.xlu0 %v558, 95
      %v1048 = vpop.permute.xlu0 %1047
      %1049 = vrot.lane.b32.xlu0 %v562, 95
      %v1050 = vpop.permute.xlu0 %1049
      %1051 = vrot.lane.b32.xlu0 %v566, 95
      %v1052 = vpop.permute.xlu0 %1051
      %1053 = vrot.lane.b32.xlu0 %v570, 95
      %v1054 = vpop.permute.xlu0 %1053
      %1055 = vrot.lane.b32.xlu0 %v574, 95
      %v1056 = vpop.permute.xlu0 %1055
      %1057 = vrot.lane.b32.xlu0 %v578, 95
      %v1058 = vpop.permute.xlu0 %1057
      %1059 = vrot.lane.b32.xlu0 %v582, 95
      %v1060 = vpop.permute.xlu0 %1059
      %1061 = vrot.lane.b32.xlu0 %v586, 95
      %v1062 = vpop.permute.xlu0 %1061
      %1063 = vrot.lane.b32.xlu0 %v590, 95
      %v1064 = vpop.permute.xlu0 %1063
      %1065 = vrot.lane.b32.xlu0 %v594, 95
      %v1066 = vpop.permute.xlu0 %1065
      %1067 = vrot.lane.b32.xlu0 %v877, 95
      %v1068 = vpop.permute.xlu0 %1067
      %vm1069 = vcmask 777216
      %v1070 = vsel %vm1069, %v1006, %v1008
      %v1071 = vsel %vm1069, %v1008, %v1010
      %v1072 = vsel %vm1069, %v1010, %v1012
      %v1073 = vsel %vm1069, %v1012, %v1014
      %v1074 = vsel %vm1069, %v1014, %v1016
      %v1075 = vsel %vm1069, %v1016, %v1018
      %v1076 = vsel %vm1069, %v1018, %v1020
      %v1077 = vsel %vm1069, %v1020, %v1022
      %v1078 = vsel %vm1069, %v1022, %v1024
      %v1079 = vsel %vm1069, %v1024, %v1026
      %v1080 = vsel %vm1069, %v1026, %v1028
      %v1081 = vsel %vm1069, %v1028, %v1030
      %v1082 = vsel %vm1069, %v1030, %v1032
      %v1083 = vsel %vm1069, %v1032, %v1034
      %v1084 = vsel %vm1069, %v1034, %v1036
      %v1085 = vsel %vm1069, %v1036, %v1038
      %v1086 = vsel %vm1069, %v1038, %v1040
      %v1087 = vsel %vm1069, %v1040, %v1042
      %v1088 = vsel %vm1069, %v1042, %v1044
      %v1089 = vsel %vm1069, %v1044, %v1046
      %v1090 = vsel %vm1069, %v1046, %v1048
      %v1091 = vsel %vm1069, %v1048, %v1050
      %v1092 = vsel %vm1069, %v1050, %v1052
      %v1093 = vsel %vm1069, %v1052, %v1054
      %v1094 = vsel %vm1069, %v1054, %v1056
      %v1095 = vsel %vm1069, %v1056, %v1058
      %v1096 = vsel %vm1069, %v1058, %v1060
      %v1097 = vsel %vm1069, %v1060, %v1062
      %v1098 = vsel %vm1069, %v1062, %v1064
      %v1099 = vsel %vm1069, %v1064, %v1066
      %v1100 = vsel %vm1069, %v1066, %v1068
      %1132 = vrot.lane.b32.xlu0 %v474, 94
      %v1133 = vpop.permute.xlu0 %1132
      %1134 = vrot.lane.b32.xlu0 %v478, 94
      %v1135 = vpop.permute.xlu0 %1134
      %1136 = vrot.lane.b32.xlu0 %v482, 94
      %v1137 = vpop.permute.xlu0 %1136
      %1138 = vrot.lane.b32.xlu0 %v486, 94
      %v1139 = vpop.permute.xlu0 %1138
      %1140 = vrot.lane.b32.xlu0 %v490, 94
      %v1141 = vpop.permute.xlu0 %1140
      %1142 = vrot.lane.b32.xlu0 %v494, 94
      %v1143 = vpop.permute.xlu0 %1142
      %1144 = vrot.lane.b32.xlu0 %v498, 94
      %v1145 = vpop.permute.xlu0 %1144
      %1146 = vrot.lane.b32.xlu0 %v502, 94
      %v1147 = vpop.permute.xlu0 %1146
      %1148 = vrot.lane.b32.xlu0 %v506, 94
      %v1149 = vpop.permute.xlu0 %1148
      %1150 = vrot.lane.b32.xlu0 %v510, 94
      %v1151 = vpop.permute.xlu0 %1150
      %1152 = vrot.lane.b32.xlu0 %v514, 94
      %v1153 = vpop.permute.xlu0 %1152
      %1154 = vrot.lane.b32.xlu0 %v518, 94
      %v1155 = vpop.permute.xlu0 %1154
      %1156 = vrot.lane.b32.xlu0 %v522, 94
      %v1157 = vpop.permute.xlu0 %1156
      %1158 = vrot.lane.b32.xlu0 %v526, 94
      %v1159 = vpop.permute.xlu0 %1158
      %1160 = vrot.lane.b32.xlu0 %v530, 94
      %v1161 = vpop.permute.xlu0 %1160
      %1162 = vrot.lane.b32.xlu0 %v534, 94
      %v1163 = vpop.permute.xlu0 %1162
      %1164 = vrot.lane.b32.xlu0 %v538, 94
      %v1165 = vpop.permute.xlu0 %1164
      %1166 = vrot.lane.b32.xlu0 %v542, 94
      %v1167 = vpop.permute.xlu0 %1166
      %1168 = vrot.lane.b32.xlu0 %v546, 94
      %v1169 = vpop.permute.xlu0 %1168
      %1170 = vrot.lane.b32.xlu0 %v550, 94
      %v1171 = vpop.permute.xlu0 %1170
      %1172 = vrot.lane.b32.xlu0 %v554, 94
      %v1173 = vpop.permute.xlu0 %1172
      %1174 = vrot.lane.b32.xlu0 %v558, 94
      %v1175 = vpop.permute.xlu0 %1174
      %1176 = vrot.lane.b32.xlu0 %v562, 94
      %v1177 = vpop.permute.xlu0 %1176
      %1178 = vrot.lane.b32.xlu0 %v566, 94
      %v1179 = vpop.permute.xlu0 %1178
      %1180 = vrot.lane.b32.xlu0 %v570, 94
      %v1181 = vpop.permute.xlu0 %1180
      %1182 = vrot.lane.b32.xlu0 %v574, 94
      %v1183 = vpop.permute.xlu0 %1182
      %1184 = vrot.lane.b32.xlu0 %v578, 94
      %v1185 = vpop.permute.xlu0 %1184
      %1186 = vrot.lane.b32.xlu0 %v582, 94
      %v1187 = vpop.permute.xlu0 %1186
      %1188 = vrot.lane.b32.xlu0 %v586, 94
      %v1189 = vpop.permute.xlu0 %1188
      %1190 = vrot.lane.b32.xlu0 %v590, 94
      %v1191 = vpop.permute.xlu0 %1190
      %1192 = vrot.lane.b32.xlu0 %v594, 94
      %v1193 = vpop.permute.xlu0 %1192
      %1194 = vrot.lane.b32.xlu0 %v877, 94
      %v1195 = vpop.permute.xlu0 %1194
      %vm1196 = vcmask 769024
      %v1197 = vsel %vm1196, %v1133, %v1135
      %v1198 = vsel %vm1196, %v1135, %v1137
      %v1199 = vsel %vm1196, %v1137, %v1139
      %v1200 = vsel %vm1196, %v1139, %v1141
      %v1201 = vsel %vm1196, %v1141, %v1143
      %v1202 = vsel %vm1196, %v1143, %v1145
      %v1203 = vsel %vm1196, %v1145, %v1147
      %v1204 = vsel %vm1196, %v1147, %v1149
      %v1205 = vsel %vm1196, %v1149, %v1151
      %v1206 = vsel %vm1196, %v1151, %v1153
      %v1207 = vsel %vm1196, %v1153, %v1155
      %v1208 = vsel %vm1196, %v1155, %v1157
      %v1209 = vsel %vm1196, %v1157, %v1159
      %v1210 = vsel %vm1196, %v1159, %v1161
      %v1211 = vsel %vm1196, %v1161, %v1163
      %v1212 = vsel %vm1196, %v1163, %v1165
      %v1213 = vsel %vm1196, %v1165, %v1167
      %v1214 = vsel %vm1196, %v1167, %v1169
      %v1215 = vsel %vm1196, %v1169, %v1171
      %v1216 = vsel %vm1196, %v1171, %v1173
      %v1217 = vsel %vm1196, %v1173, %v1175
      %v1218 = vsel %vm1196, %v1175, %v1177
      %v1219 = vsel %vm1196, %v1177, %v1179
      %v1220 = vsel %vm1196, %v1179, %v1181
      %v1221 = vsel %vm1196, %v1181, %v1183
      %v1222 = vsel %vm1196, %v1183, %v1185
      %v1223 = vsel %vm1196, %v1185, %v1187
      %v1224 = vsel %vm1196, %v1187, %v1189
      %v1225 = vsel %vm1196, %v1189, %v1191
      %v1226 = vsel %vm1196, %v1191, %v1193
      %v1227 = vsel %vm1196, %v1193, %v1195
      %1259 = vrot.lane.b32.xlu0 %v474, 64
      %v1260 = vpop.permute.xlu0 %1259
      %1261 = vrot.lane.b32.xlu0 %v478, 64
      %v1262 = vpop.permute.xlu0 %1261
      %1263 = vrot.lane.b32.xlu0 %v482, 64
      %v1264 = vpop.permute.xlu0 %1263
      %1265 = vrot.lane.b32.xlu0 %v486, 64
      %v1266 = vpop.permute.xlu0 %1265
      %1267 = vrot.lane.b32.xlu0 %v490, 64
      %v1268 = vpop.permute.xlu0 %1267
      %1269 = vrot.lane.b32.xlu0 %v494, 64
      %v1270 = vpop.permute.xlu0 %1269
      %1271 = vrot.lane.b32.xlu0 %v498, 64
      %v1272 = vpop.permute.xlu0 %1271
      %1273 = vrot.lane.b32.xlu0 %v502, 64
      %v1274 = vpop.permute.xlu0 %1273
      %1275 = vrot.lane.b32.xlu0 %v506, 64
      %v1276 = vpop.permute.xlu0 %1275
      %1277 = vrot.lane.b32.xlu0 %v510, 64
      %v1278 = vpop.permute.xlu0 %1277
      %1279 = vrot.lane.b32.xlu0 %v514, 64
      %v1280 = vpop.permute.xlu0 %1279
      %1281 = vrot.lane.b32.xlu0 %v518, 64
      %v1282 = vpop.permute.xlu0 %1281
      %1283 = vrot.lane.b32.xlu0 %v522, 64
      %v1284 = vpop.permute.xlu0 %1283
      %1285 = vrot.lane.b32.xlu0 %v526, 64
      %v1286 = vpop.permute.xlu0 %1285
      %1287 = vrot.lane.b32.xlu0 %v530, 64
      %v1288 = vpop.permute.xlu0 %1287
      %1289 = vrot.lane.b32.xlu0 %v534, 64
      %v1290 = vpop.permute.xlu0 %1289
      %1291 = vrot.lane.b32.xlu0 %v538, 64
      %v1292 = vpop.permute.xlu0 %1291
      %1293 = vrot.lane.b32.xlu0 %v542, 64
      %v1294 = vpop.permute.xlu0 %1293
      %1295 = vrot.lane.b32.xlu0 %v546, 64
      %v1296 = vpop.permute.xlu0 %1295
      %1297 = vrot.lane.b32.xlu0 %v550, 64
      %v1298 = vpop.permute.xlu0 %1297
      %1299 = vrot.lane.b32.xlu0 %v554, 64
      %v1300 = vpop.permute.xlu0 %1299
      %1301 = vrot.lane.b32.xlu0 %v558, 64
      %v1302 = vpop.permute.xlu0 %1301
      %1303 = vrot.lane.b32.xlu0 %v562, 64
      %v1304 = vpop.permute.xlu0 %1303
      %1305 = vrot.lane.b32.xlu0 %v566, 64
      %v1306 = vpop.permute.xlu0 %1305
      %1307 = vrot.lane.b32.xlu0 %v570, 64
      %v1308 = vpop.permute.xlu0 %1307
      %1309 = vrot.lane.b32.xlu0 %v574, 64
      %v1310 = vpop.permute.xlu0 %1309
      %1311 = vrot.lane.b32.xlu0 %v578, 64
      %v1312 = vpop.permute.xlu0 %1311
      %1313 = vrot.lane.b32.xlu0 %v582, 64
      %v1314 = vpop.permute.xlu0 %1313
      %1315 = vrot.lane.b32.xlu0 %v586, 64
      %v1316 = vpop.permute.xlu0 %1315
      %1317 = vrot.lane.b32.xlu0 %v590, 64
      %v1318 = vpop.permute.xlu0 %1317
      %1319 = vrot.lane.b32.xlu0 %v594, 64
      %v1320 = vpop.permute.xlu0 %1319
      %1321 = vrot.lane.b32.xlu0 %v877, 64
      %v1322 = vpop.permute.xlu0 %1321
      %vm1323 = vcmask 523264
      %v1324 = vsel %vm1323, %v1260, %v1262
      %v1325 = vsel %vm1323, %v1262, %v1264
      %v1326 = vsel %vm1323, %v1264, %v1266
      %v1327 = vsel %vm1323, %v1266, %v1268
      %v1328 = vsel %vm1323, %v1268, %v1270
      %v1329 = vsel %vm1323, %v1270, %v1272
      %v1330 = vsel %vm1323, %v1272, %v1274
      %v1331 = vsel %vm1323, %v1274, %v1276
      %v1332 = vsel %vm1323, %v1276, %v1278
      %v1333 = vsel %vm1323, %v1278, %v1280
      %v1334 = vsel %vm1323, %v1280, %v1282
      %v1335 = vsel %vm1323, %v1282, %v1284
      %v1336 = vsel %vm1323, %v1284, %v1286
      %v1337 = vsel %vm1323, %v1286, %v1288
      %v1338 = vsel %vm1323, %v1288, %v1290
      %v1339 = vsel %vm1323, %v1290, %v1292
      %v1340 = vsel %vm1323, %v1292, %v1294
      %v1341 = vsel %vm1323, %v1294, %v1296
      %v1342 = vsel %vm1323, %v1296, %v1298
      %v1343 = vsel %vm1323, %v1298, %v1300
      %v1344 = vsel %vm1323, %v1300, %v1302
      %v1345 = vsel %vm1323, %v1302, %v1304
      %v1346 = vsel %vm1323, %v1304, %v1306
      %v1347 = vsel %vm1323, %v1306, %v1308
      %v1348 = vsel %vm1323, %v1308, %v1310
      %v1349 = vsel %vm1323, %v1310, %v1312
      %v1350 = vsel %vm1323, %v1312, %v1314
      %v1351 = vsel %vm1323, %v1314, %v1316
      %v1352 = vsel %vm1323, %v1316, %v1318
      %v1353 = vsel %vm1323, %v1318, %v1320
      %v1354 = vsel %vm1323, %v1320, %v1322
      %1386 = vrot.lane.b32.xlu0 %v474, 63
      %v1387 = vpop.permute.xlu0 %1386
      %1388 = vrot.lane.b32.xlu0 %v478, 63
      %v1389 = vpop.permute.xlu0 %1388
      %1390 = vrot.lane.b32.xlu0 %v482, 63
      %v1391 = vpop.permute.xlu0 %1390
      %1392 = vrot.lane.b32.xlu0 %v486, 63
      %v1393 = vpop.permute.xlu0 %1392
      %1394 = vrot.lane.b32.xlu0 %v490, 63
      %v1395 = vpop.permute.xlu0 %1394
      %1396 = vrot.lane.b32.xlu0 %v494, 63
      %v1397 = vpop.permute.xlu0 %1396
      %1398 = vrot.lane.b32.xlu0 %v498, 63
      %v1399 = vpop.permute.xlu0 %1398
      %1400 = vrot.lane.b32.xlu0 %v502, 63
      %v1401 = vpop.permute.xlu0 %1400
      %1402 = vrot.lane.b32.xlu0 %v506, 63
      %v1403 = vpop.permute.xlu0 %1402
      %1404 = vrot.lane.b32.xlu0 %v510, 63
      %v1405 = vpop.permute.xlu0 %1404
      %1406 = vrot.lane.b32.xlu0 %v514, 63
      %v1407 = vpop.permute.xlu0 %1406
      %1408 = vrot.lane.b32.xlu0 %v518, 63
      %v1409 = vpop.permute.xlu0 %1408
      %1410 = vrot.lane.b32.xlu0 %v522, 63
      %v1411 = vpop.permute.xlu0 %1410
      %1412 = vrot.lane.b32.xlu0 %v526, 63
      %v1413 = vpop.permute.xlu0 %1412
      %1414 = vrot.lane.b32.xlu0 %v530, 63
      %v1415 = vpop.permute.xlu0 %1414
      %1416 = vrot.lane.b32.xlu0 %v534, 63
      %v1417 = vpop.permute.xlu0 %1416
      %1418 = vrot.lane.b32.xlu0 %v538, 63
      %v1419 = vpop.permute.xlu0 %1418
      %1420 = vrot.lane.b32.xlu0 %v542, 63
      %v1421 = vpop.permute.xlu0 %1420
      %1422 = vrot.lane.b32.xlu0 %v546, 63
      %v1423 = vpop.permute.xlu0 %1422
      %1424 = vrot.lane.b32.xlu0 %v550, 63
      %v1425 = vpop.permute.xlu0 %1424
      %1426 = vrot.lane.b32.xlu0 %v554, 63
      %v1427 = vpop.permute.xlu0 %1426
      %1428 = vrot.lane.b32.xlu0 %v558, 63
      %v1429 = vpop.permute.xlu0 %1428
      %1430 = vrot.lane.b32.xlu0 %v562, 63
      %v1431 = vpop.permute.xlu0 %1430
      %1432 = vrot.lane.b32.xlu0 %v566, 63
      %v1433 = vpop.permute.xlu0 %1432
      %1434 = vrot.lane.b32.xlu0 %v570, 63
      %v1435 = vpop.permute.xlu0 %1434
      %1436 = vrot.lane.b32.xlu0 %v574, 63
      %v1437 = vpop.permute.xlu0 %1436
      %1438 = vrot.lane.b32.xlu0 %v578, 63
      %v1439 = vpop.permute.xlu0 %1438
      %1440 = vrot.lane.b32.xlu0 %v582, 63
      %v1441 = vpop.permute.xlu0 %1440
      %1442 = vrot.lane.b32.xlu0 %v586, 63
      %v1443 = vpop.permute.xlu0 %1442
      %1444 = vrot.lane.b32.xlu0 %v590, 63
      %v1445 = vpop.permute.xlu0 %1444
      %1446 = vrot.lane.b32.xlu0 %v594, 63
      %v1447 = vpop.permute.xlu0 %1446
      %1448 = vrot.lane.b32.xlu0 %v877, 63
      %v1449 = vpop.permute.xlu0 %1448
      %vm1450 = vcmask 515072
      %v1451 = vsel %vm1450, %v1387, %v1389
      %v1452 = vsel %vm1450, %v1389, %v1391
      %v1453 = vsel %vm1450, %v1391, %v1393
      %v1454 = vsel %vm1450, %v1393, %v1395
      %v1455 = vsel %vm1450, %v1395, %v1397
      %v1456 = vsel %vm1450, %v1397, %v1399
      %v1457 = vsel %vm1450, %v1399, %v1401
      %v1458 = vsel %vm1450, %v1401, %v1403
      %v1459 = vsel %vm1450, %v1403, %v1405
      %v1460 = vsel %vm1450, %v1405, %v1407
      %v1461 = vsel %vm1450, %v1407, %v1409
      %v1462 = vsel %vm1450, %v1409, %v1411
      %v1463 = vsel %vm1450, %v1411, %v1413
      %v1464 = vsel %vm1450, %v1413, %v1415
      %v1465 = vsel %vm1450, %v1415, %v1417
      %v1466 = vsel %vm1450, %v1417, %v1419
      %v1467 = vsel %vm1450, %v1419, %v1421
      %v1468 = vsel %vm1450, %v1421, %v1423
      %v1469 = vsel %vm1450, %v1423, %v1425
      %v1470 = vsel %vm1450, %v1425, %v1427
      %v1471 = vsel %vm1450, %v1427, %v1429
      %v1472 = vsel %vm1450, %v1429, %v1431
      %v1473 = vsel %vm1450, %v1431, %v1433
      %v1474 = vsel %vm1450, %v1433, %v1435
      %v1475 = vsel %vm1450, %v1435, %v1437
      %v1476 = vsel %vm1450, %v1437, %v1439
      %v1477 = vsel %vm1450, %v1439, %v1441
      %v1478 = vsel %vm1450, %v1441, %v1443
      %v1479 = vsel %vm1450, %v1443, %v1445
      %v1480 = vsel %vm1450, %v1445, %v1447
      %v1481 = vsel %vm1450, %v1447, %v1449
      %1513 = vrot.lane.b32.xlu0 %v474, 62
      %v1514 = vpop.permute.xlu0 %1513
      %1515 = vrot.lane.b32.xlu0 %v478, 62
      %v1516 = vpop.permute.xlu0 %1515
      %1517 = vrot.lane.b32.xlu0 %v482, 62
      %v1518 = vpop.permute.xlu0 %1517
      %1519 = vrot.lane.b32.xlu0 %v486, 62
      %v1520 = vpop.permute.xlu0 %1519
      %1521 = vrot.lane.b32.xlu0 %v490, 62
      %v1522 = vpop.permute.xlu0 %1521
      %1523 = vrot.lane.b32.xlu0 %v494, 62
      %v1524 = vpop.permute.xlu0 %1523
      %1525 = vrot.lane.b32.xlu0 %v498, 62
      %v1526 = vpop.permute.xlu0 %1525
      %1527 = vrot.lane.b32.xlu0 %v502, 62
      %v1528 = vpop.permute.xlu0 %1527
      %1529 = vrot.lane.b32.xlu0 %v506, 62
      %v1530 = vpop.permute.xlu0 %1529
      %1531 = vrot.lane.b32.xlu0 %v510, 62
      %v1532 = vpop.permute.xlu0 %1531
      %1533 = vrot.lane.b32.xlu0 %v514, 62
      %v1534 = vpop.permute.xlu0 %1533
      %1535 = vrot.lane.b32.xlu0 %v518, 62
      %v1536 = vpop.permute.xlu0 %1535
      %1537 = vrot.lane.b32.xlu0 %v522, 62
      %v1538 = vpop.permute.xlu0 %1537
      %1539 = vrot.lane.b32.xlu0 %v526, 62
      %v1540 = vpop.permute.xlu0 %1539
      %1541 = vrot.lane.b32.xlu0 %v530, 62
      %v1542 = vpop.permute.xlu0 %1541
      %1543 = vrot.lane.b32.xlu0 %v534, 62
      %v1544 = vpop.permute.xlu0 %1543
      %1545 = vrot.lane.b32.xlu0 %v538, 62
      %v1546 = vpop.permute.xlu0 %1545
      %1547 = vrot.lane.b32.xlu0 %v542, 62
      %v1548 = vpop.permute.xlu0 %1547
      %1549 = vrot.lane.b32.xlu0 %v546, 62
      %v1550 = vpop.permute.xlu0 %1549
      %1551 = vrot.lane.b32.xlu0 %v550, 62
      %v1552 = vpop.permute.xlu0 %1551
      %1553 = vrot.lane.b32.xlu0 %v554, 62
      %v1554 = vpop.permute.xlu0 %1553
      %1555 = vrot.lane.b32.xlu0 %v558, 62
      %v1556 = vpop.permute.xlu0 %1555
      %1557 = vrot.lane.b32.xlu0 %v562, 62
      %v1558 = vpop.permute.xlu0 %1557
      %1559 = vrot.lane.b32.xlu0 %v566, 62
      %v1560 = vpop.permute.xlu0 %1559
      %1561 = vrot.lane.b32.xlu0 %v570, 62
      %v1562 = vpop.permute.xlu0 %1561
      %1563 = vrot.lane.b32.xlu0 %v574, 62
      %v1564 = vpop.permute.xlu0 %1563
      %1565 = vrot.lane.b32.xlu0 %v578, 62
      %v1566 = vpop.permute.xlu0 %1565
      %1567 = vrot.lane.b32.xlu0 %v582, 62
      %v1568 = vpop.permute.xlu0 %1567
      %1569 = vrot.lane.b32.xlu0 %v586, 62
      %v1570 = vpop.permute.xlu0 %1569
      %1571 = vrot.lane.b32.xlu0 %v590, 62
      %v1572 = vpop.permute.xlu0 %1571
      %1573 = vrot.lane.b32.xlu0 %v594, 62
      %v1574 = vpop.permute.xlu0 %1573
      %1575 = vrot.lane.b32.xlu0 %v877, 62
      %v1576 = vpop.permute.xlu0 %1575
      %vm1577 = vcmask 506880
      %v1578 = vsel %vm1577, %v1514, %v1516
      %v1579 = vsel %vm1577, %v1516, %v1518
      %v1580 = vsel %vm1577, %v1518, %v1520
      %v1581 = vsel %vm1577, %v1520, %v1522
      %v1582 = vsel %vm1577, %v1522, %v1524
      %v1583 = vsel %vm1577, %v1524, %v1526
      %v1584 = vsel %vm1577, %v1526, %v1528
      %v1585 = vsel %vm1577, %v1528, %v1530
      %v1586 = vsel %vm1577, %v1530, %v1532
      %v1587 = vsel %vm1577, %v1532, %v1534
      %v1588 = vsel %vm1577, %v1534, %v1536
      %v1589 = vsel %vm1577, %v1536, %v1538
      %v1590 = vsel %vm1577, %v1538, %v1540
      %v1591 = vsel %vm1577, %v1540, %v1542
      %v1592 = vsel %vm1577, %v1542, %v1544
      %v1593 = vsel %vm1577, %v1544, %v1546
      %v1594 = vsel %vm1577, %v1546, %v1548
      %v1595 = vsel %vm1577, %v1548, %v1550
      %v1596 = vsel %vm1577, %v1550, %v1552
      %v1597 = vsel %vm1577, %v1552, %v1554
      %v1598 = vsel %vm1577, %v1554, %v1556
      %v1599 = vsel %vm1577, %v1556, %v1558
      %v1600 = vsel %vm1577, %v1558, %v1560
      %v1601 = vsel %vm1577, %v1560, %v1562
      %v1602 = vsel %vm1577, %v1562, %v1564
      %v1603 = vsel %vm1577, %v1564, %v1566
      %v1604 = vsel %vm1577, %v1566, %v1568
      %v1605 = vsel %vm1577, %v1568, %v1570
      %v1606 = vsel %vm1577, %v1570, %v1572
      %v1607 = vsel %vm1577, %v1572, %v1574
      %v1608 = vsel %vm1577, %v1574, %v1576
      %vm1609 = vcmask 1040384
      %v1610 = vsel %vm1609, %v474, %v689
      %v1611 = vsel %vm1609, %v478, %v690
      %v1612 = vsel %vm1609, %v482, %v691
      %v1613 = vsel %vm1609, %v486, %v692
      %v1614 = vsel %vm1609, %v490, %v693
      %v1615 = vsel %vm1609, %v494, %v694
      %v1616 = vsel %vm1609, %v498, %v695
      %v1617 = vsel %vm1609, %v502, %v696
      %v1618 = vsel %vm1609, %v506, %v697
      %v1619 = vsel %vm1609, %v510, %v698
      %v1620 = vsel %vm1609, %v514, %v699
      %v1621 = vsel %vm1609, %v518, %v700
      %v1622 = vsel %vm1609, %v522, %v701
      %v1623 = vsel %vm1609, %v526, %v702
      %v1624 = vsel %vm1609, %v530, %v703
      %v1625 = vsel %vm1609, %v534, %v704
      %v1626 = vsel %vm1609, %v538, %v705
      %v1627 = vsel %vm1609, %v542, %v706
      %v1628 = vsel %vm1609, %v546, %v707
      %v1629 = vsel %vm1609, %v550, %v708
      %v1630 = vsel %vm1609, %v554, %v709
      %v1631 = vsel %vm1609, %v558, %v710
      %v1632 = vsel %vm1609, %v562, %v711
      %v1633 = vsel %vm1609, %v566, %v712
      %v1634 = vsel %vm1609, %v570, %v713
      %v1635 = vsel %vm1609, %v574, %v714
      %v1636 = vsel %vm1609, %v578, %v715
      %v1637 = vsel %vm1609, %v582, %v716
      %v1638 = vsel %vm1609, %v586, %v717
      %v1639 = vsel %vm1609, %v590, %v718
      %v1640 = vsel %vm1609, %v594, %v687
      %vm1641 = vcmask 1041408
      %v1642 = vsel %vm1641, %v1610, %v813
      %v1643 = vsel %vm1641, %v1611, %v814
      %v1644 = vsel %vm1641, %v1612, %v815
      %v1645 = vsel %vm1641, %v1613, %v816
      %v1646 = vsel %vm1641, %v1614, %v817
      %v1647 = vsel %vm1641, %v1615, %v818
      %v1648 = vsel %vm1641, %v1616, %v819
      %v1649 = vsel %vm1641, %v1617, %v820
      %v1650 = vsel %vm1641, %v1618, %v821
      %v1651 = vsel %vm1641, %v1619, %v822
      %v1652 = vsel %vm1641, %v1620, %v823
      %v1653 = vsel %vm1641, %v1621, %v824
      %v1654 = vsel %vm1641, %v1622, %v825
      %v1655 = vsel %vm1641, %v1623, %v826
      %v1656 = vsel %vm1641, %v1624, %v827
      %v1657 = vsel %vm1641, %v1625, %v828
      %v1658 = vsel %vm1641, %v1626, %v829
      %v1659 = vsel %vm1641, %v1627, %v830
      %v1660 = vsel %vm1641, %v1628, %v831
      %v1661 = vsel %vm1641, %v1629, %v832
      %v1662 = vsel %vm1641, %v1630, %v833
      %v1663 = vsel %vm1641, %v1631, %v834
      %v1664 = vsel %vm1641, %v1632, %v835
      %v1665 = vsel %vm1641, %v1633, %v836
      %v1666 = vsel %vm1641, %v1634, %v837
      %v1667 = vsel %vm1641, %v1635, %v838
      %v1668 = vsel %vm1641, %v1636, %v839
      %v1669 = vsel %vm1641, %v1637, %v840
      %v1670 = vsel %vm1641, %v1638, %v841
      %v1671 = vsel %vm1641, %v1639, %v842
      %v1672 = vsel %vm1641, %v1640, %v811
      %vm1673 = vcmask 1042432
      %v1674 = vsel %vm1673, %v1642, %v943
      %v1675 = vsel %vm1673, %v1643, %v944
      %v1676 = vsel %vm1673, %v1644, %v945
      %v1677 = vsel %vm1673, %v1645, %v946
      %v1678 = vsel %vm1673, %v1646, %v947
      %v1679 = vsel %vm1673, %v1647, %v948
      %v1680 = vsel %vm1673, %v1648, %v949
      %v1681 = vsel %vm1673, %v1649, %v950
      %v1682 = vsel %vm1673, %v1650, %v951
      %v1683 = vsel %vm1673, %v1651, %v952
      %v1684 = vsel %vm1673, %v1652, %v953
      %v1685 = vsel %vm1673, %v1653, %v954
      %v1686 = vsel %vm1673, %v1654, %v955
      %v1687 = vsel %vm1673, %v1655, %v956
      %v1688 = vsel %vm1673, %v1656, %v957
      %v1689 = vsel %vm1673, %v1657, %v958
      %v1690 = vsel %vm1673, %v1658, %v959
      %v1691 = vsel %vm1673, %v1659, %v960
      %v1692 = vsel %vm1673, %v1660, %v961
      %v1693 = vsel %vm1673, %v1661, %v962
      %v1694 = vsel %vm1673, %v1662, %v963
      %v1695 = vsel %vm1673, %v1663, %v964
      %v1696 = vsel %vm1673, %v1664, %v965
      %v1697 = vsel %vm1673, %v1665, %v966
      %v1698 = vsel %vm1673, %v1666, %v967
      %v1699 = vsel %vm1673, %v1667, %v968
      %v1700 = vsel %vm1673, %v1668, %v969
      %v1701 = vsel %vm1673, %v1669, %v970
      %v1702 = vsel %vm1673, %v1670, %v971
      %v1703 = vsel %vm1673, %v1671, %v972
      %v1704 = vsel %vm1673, %v1672, %v973
      %vm1705 = vcmask 1043456
      %v1706 = vsel %vm1705, %v1674, %v1070
      %v1707 = vsel %vm1705, %v1675, %v1071
      %v1708 = vsel %vm1705, %v1676, %v1072
      %v1709 = vsel %vm1705, %v1677, %v1073
      %v1710 = vsel %vm1705, %v1678, %v1074
      %v1711 = vsel %vm1705, %v1679, %v1075
      %v1712 = vsel %vm1705, %v1680, %v1076
      %v1713 = vsel %vm1705, %v1681, %v1077
      %v1714 = vsel %vm1705, %v1682, %v1078
      %v1715 = vsel %vm1705, %v1683, %v1079
      %v1716 = vsel %vm1705, %v1684, %v1080
      %v1717 = vsel %vm1705, %v1685, %v1081
      %v1718 = vsel %vm1705, %v1686, %v1082
      %v1719 = vsel %vm1705, %v1687, %v1083
      %v1720 = vsel %vm1705, %v1688, %v1084
      %v1721 = vsel %vm1705, %v1689, %v1085
      %v1722 = vsel %vm1705, %v1690, %v1086
      %v1723 = vsel %vm1705, %v1691, %v1087
      %v1724 = vsel %vm1705, %v1692, %v1088
      %v1725 = vsel %vm1705, %v1693, %v1089
      %v1726 = vsel %vm1705, %v1694, %v1090
      %v1727 = vsel %vm1705, %v1695, %v1091
      %v1728 = vsel %vm1705, %v1696, %v1092
      %v1729 = vsel %vm1705, %v1697, %v1093
      %v1730 = vsel %vm1705, %v1698, %v1094
      %v1731 = vsel %vm1705, %v1699, %v1095
      %v1732 = vsel %vm1705, %v1700, %v1096
      %v1733 = vsel %vm1705, %v1701, %v1097
      %v1734 = vsel %vm1705, %v1702, %v1098
      %v1735 = vsel %vm1705, %v1703, %v1099
      %v1736 = vsel %vm1705, %v1704, %v1100
      %vm1737 = vcmask 1044480
      %v1738 = vsel %vm1737, %v1706, %v1197
      %v1739 = vsel %vm1737, %v1707, %v1198
      %v1740 = vsel %vm1737, %v1708, %v1199
      %v1741 = vsel %vm1737, %v1709, %v1200
      %v1742 = vsel %vm1737, %v1710, %v1201
      %v1743 = vsel %vm1737, %v1711, %v1202
      %v1744 = vsel %vm1737, %v1712, %v1203
      %v1745 = vsel %vm1737, %v1713, %v1204
      %v1746 = vsel %vm1737, %v1714, %v1205
      %v1747 = vsel %vm1737, %v1715, %v1206
      %v1748 = vsel %vm1737, %v1716, %v1207
      %v1749 = vsel %vm1737, %v1717, %v1208
      %v1750 = vsel %vm1737, %v1718, %v1209
      %v1751 = vsel %vm1737, %v1719, %v1210
      %v1752 = vsel %vm1737, %v1720, %v1211
      %v1753 = vsel %vm1737, %v1721, %v1212
      %v1754 = vsel %vm1737, %v1722, %v1213
      %v1755 = vsel %vm1737, %v1723, %v1214
      %v1756 = vsel %vm1737, %v1724, %v1215
      %v1757 = vsel %vm1737, %v1725, %v1216
      %v1758 = vsel %vm1737, %v1726, %v1217
      %v1759 = vsel %vm1737, %v1727, %v1218
      %v1760 = vsel %vm1737, %v1728, %v1219
      %v1761 = vsel %vm1737, %v1729, %v1220
      %v1762 = vsel %vm1737, %v1730, %v1221
      %v1763 = vsel %vm1737, %v1731, %v1222
      %v1764 = vsel %vm1737, %v1732, %v1223
      %v1765 = vsel %vm1737, %v1733, %v1224
      %v1766 = vsel %vm1737, %v1734, %v1225
      %v1767 = vsel %vm1737, %v1735, %v1226
      %v1768 = vsel %vm1737, %v1736, %v1227
      %vm1769 = vcmask 1045504
      %v1770 = vsel %vm1769, %v1738, %v1324
      %v1771 = vsel %vm1769, %v1739, %v1325
      %v1772 = vsel %vm1769, %v1740, %v1326
      %v1773 = vsel %vm1769, %v1741, %v1327
      %v1774 = vsel %vm1769, %v1742, %v1328
      %v1775 = vsel %vm1769, %v1743, %v1329
      %v1776 = vsel %vm1769, %v1744, %v1330
      %v1777 = vsel %vm1769, %v1745, %v1331
      %v1778 = vsel %vm1769, %v1746, %v1332
      %v1779 = vsel %vm1769, %v1747, %v1333
      %v1780 = vsel %vm1769, %v1748, %v1334
      %v1781 = vsel %vm1769, %v1749, %v1335
      %v1782 = vsel %vm1769, %v1750, %v1336
      %v1783 = vsel %vm1769, %v1751, %v1337
      %v1784 = vsel %vm1769, %v1752, %v1338
      %v1785 = vsel %vm1769, %v1753, %v1339
      %v1786 = vsel %vm1769, %v1754, %v1340
      %v1787 = vsel %vm1769, %v1755, %v1341
      %v1788 = vsel %vm1769, %v1756, %v1342
      %v1789 = vsel %vm1769, %v1757, %v1343
      %v1790 = vsel %vm1769, %v1758, %v1344
      %v1791 = vsel %vm1769, %v1759, %v1345
      %v1792 = vsel %vm1769, %v1760, %v1346
      %v1793 = vsel %vm1769, %v1761, %v1347
      %v1794 = vsel %vm1769, %v1762, %v1348
      %v1795 = vsel %vm1769, %v1763, %v1349
      %v1796 = vsel %vm1769, %v1764, %v1350
      %v1797 = vsel %vm1769, %v1765, %v1351
      %v1798 = vsel %vm1769, %v1766, %v1352
      %v1799 = vsel %vm1769, %v1767, %v1353
      %v1800 = vsel %vm1769, %v1768, %v1354
      %vm1801 = vcmask 1046528
      %v1802 = vsel %vm1801, %v1770, %v1451
      %v1803 = vsel %vm1801, %v1771, %v1452
      %v1804 = vsel %vm1801, %v1772, %v1453
      %v1805 = vsel %vm1801, %v1773, %v1454
      %v1806 = vsel %vm1801, %v1774, %v1455
      %v1807 = vsel %vm1801, %v1775, %v1456
      %v1808 = vsel %vm1801, %v1776, %v1457
      %v1809 = vsel %vm1801, %v1777, %v1458
      %v1810 = vsel %vm1801, %v1778, %v1459
      %v1811 = vsel %vm1801, %v1779, %v1460
      %v1812 = vsel %vm1801, %v1780, %v1461
      %v1813 = vsel %vm1801, %v1781, %v1462
      %v1814 = vsel %vm1801, %v1782, %v1463
      %v1815 = vsel %vm1801, %v1783, %v1464
      %v1816 = vsel %vm1801, %v1784, %v1465
      %v1817 = vsel %vm1801, %v1785, %v1466
      %v1818 = vsel %vm1801, %v1786, %v1467
      %v1819 = vsel %vm1801, %v1787, %v1468
      %v1820 = vsel %vm1801, %v1788, %v1469
      %v1821 = vsel %vm1801, %v1789, %v1470
      %v1822 = vsel %vm1801, %v1790, %v1471
      %v1823 = vsel %vm1801, %v1791, %v1472
      %v1824 = vsel %vm1801, %v1792, %v1473
      %v1825 = vsel %vm1801, %v1793, %v1474
      %v1826 = vsel %vm1801, %v1794, %v1475
      %v1827 = vsel %vm1801, %v1795, %v1476
      %v1828 = vsel %vm1801, %v1796, %v1477
      %v1829 = vsel %vm1801, %v1797, %v1478
      %v1830 = vsel %vm1801, %v1798, %v1479
      %v1831 = vsel %vm1801, %v1799, %v1480
      %v1832 = vsel %vm1801, %v1800, %v1481
      %v1833 = vld [vmem:[%s1] sm:$0x3f]
      %v1834 = vld [vmem:[%s2] sm:$0x3f]
      %1836 = vset.pattern.permute.xlu0 0
      %1837 = vperm.xlu0 %1836, %v1834
      %v1838 = vpop.permute.xlu0 %1837
      %vm1840 = vcmask 72704
      %v1842 = vsel %vm1840, %v1833, 0
      %v1844 = vsel %vm1609, %v1578, 0
      %v1846 = vsel %vm1609, %v1579, 0
      %v1848 = vsel %vm1609, %v1580, 0
      %v1850 = vsel %vm1609, %v1581, 0
      %v1852 = vsel %vm1609, %v1582, 0
      %v1854 = vsel %vm1609, %v1583, 0
      %v1856 = vsel %vm1609, %v1584, 0
      %v1858 = vsel %vm1609, %v1585, 0
      %v1860 = vsel %vm1609, %v1586, 0
      %v1862 = vsel %vm1609, %v1587, 0
      %v1864 = vsel %vm1609, %v1588, 0
      %v1866 = vsel %vm1609, %v1589, 0
      %v1868 = vsel %vm1609, %v1590, 0
      %v1870 = vsel %vm1609, %v1591, 0
      %v1872 = vsel %vm1609, %v1592, 0
      %v1874 = vsel %vm1609, %v1593, 0
      %v1876 = vsel %vm1609, %v1594, 0
      %v1878 = vsel %vm1609, %v1595, 0
      %v1880 = vsel %vm1609, %v1596, 0
      %v1882 = vsel %vm1609, %v1597, 0
      %v1884 = vsel %vm1609, %v1598, 0
      %v1886 = vsel %vm1609, %v1599, 0
      %v1888 = vsel %vm1609, %v1600, 0
      %v1890 = vsel %vm1609, %v1601, 0
      %v1892 = vsel %vm1609, %v1602, 0
      %v1894 = vsel %vm1609, %v1603, 0
      %v1896 = vsel %vm1609, %v1604, 0
      %v1898 = vsel %vm1609, %v1605, 0
      %v1900 = vsel %vm1609, %v1606, 0
      %v1902 = vsel %vm1609, %v1607, 0
      %v1904 = vsel %vm1609, %v1608, 0
      %1906 = vmatprep.subr.mxu0 0.0
      %1907 = vmatpush1.msra.mxu0 0.0
      %1908 = vmatprep.subr.mxu0 0.0
      %1909 = vmatpush1.msra.mxu0 0.0
      %1910 = vmatprep.subr.mxu0 0.0
      %1911 = vmatpush1.msra.mxu0 0.0
      %1912 = vmatprep.subr.mxu0 0.0
      %1913 = vmatpush1.msra.mxu0 0.0
      %1914 = vmatprep.subr.mxu0 0.0
      %1915 = vmatpush1.msra.mxu0 0.0
      %1916 = vmatprep.subr.mxu0 0.0
      %1917 = vmatpush1.msra.mxu0 0.0
      %1918 = vmatprep.subr.mxu0 0.0
      %1919 = vmatpush1.msra.mxu0 0.0
      %1920 = vmatprep.subr.mxu0 0.0
      %1921 = vmatpush1.msra.mxu0 0.0
      %1922 = vmatprep.subr.mxu0 0.0
      %1923 = vmatpush1.msra.mxu0 0.0
      %1924 = vmatprep.subr.mxu0 0.0
      %1925 = vmatpush1.msra.mxu0 0.0
      %1926 = vmatprep.subr.mxu0 0.0
      %1927 = vmatpush1.msra.mxu0 0.0
      %1928 = vmatprep.subr.mxu0 0.0
      %1929 = vmatpush1.msra.mxu0 0.0
      %1930 = vmatprep.subr.mxu0 0.0
      %1931 = vmatpush1.msra.mxu0 0.0
      %1932 = vmatprep.subr.mxu0 0.0
      %1933 = vmatpush1.msra.mxu0 0.0
      %1934 = vmatprep.subr.mxu0 %v1846
      %1935 = vmatpush1.msra.mxu0 %v1844
      %1936 = vmatprep.subr.mxu0 %v1803
      %1937 = vmatpush1.msra.mxu0 %v1802
      %1938 = vmatprep.subr.mxu0 0.0
      %1939 = vmatpush2.msra.mxu0 0.0
      %1940 = vmatprep.subr.mxu0 0.0
      %1941 = vmatpush2.msra.mxu0 0.0
      %1942 = vmatprep.subr.mxu0 0.0
      %1943 = vmatpush2.msra.mxu0 0.0
      %1944 = vmatprep.subr.mxu0 0.0
      %1945 = vmatpush2.msra.mxu0 0.0
      %1946 = vmatprep.subr.mxu0 0.0
      %1947 = vmatpush2.msra.mxu0 0.0
      %1948 = vmatprep.subr.mxu0 0.0
      %1949 = vmatpush2.msra.mxu0 0.0
      %1950 = vmatprep.subr.mxu0 0.0
      %1951 = vmatpush2.msra.mxu0 0.0
      %1952 = vmatprep.subr.mxu0 0.0
      %1953 = vmatpush2.msra.mxu0 0.0
      %1954 = vmatprep.subr.mxu0 0.0
      %1955 = vmatpush2.msra.mxu0 0.0
      %1956 = vmatprep.subr.mxu0 0.0
      %1957 = vmatpush2.msra.mxu0 0.0
      %1958 = vmatprep.subr.mxu0 0.0
      %1959 = vmatpush2.msra.mxu0 0.0
      %1960 = vmatprep.subr.mxu0 0.0
      %1961 = vmatpush2.msra.mxu0 0.0
      %1962 = vmatprep.subr.mxu0 0.0
      %1963 = vmatpush2.msra.mxu0 0.0
      %1964 = vmatprep.subr.mxu0 0.0
      %1965 = vmatpush2.msra.mxu0 0.0
      %1966 = vmatprep.subr.mxu0 0.0
      %1967 = vmatpush2.msra.mxu0 0.0
      %1968 = vmatprep.subr.mxu0 0.0
      %1969 = vmatpush2.msra.mxu0 0.0
      %1970 = vmatprep.mubr.f32.mxu0 0.0
      %1971 = vmatmul.mubr.f32.gmra.mxu0 %v1842
      %v1972 = vpop.f32.mrf.mxu0
      %v1973 = vadd.f32 %v1838, %v1972
      %v1974 = vpop.f32.mrf.mxu0
      %v1975 = vadd.f32 %v1838, %v1974
      %1976 = vdwg.mxu0
      %1977 = vmatprep.subr.mxu0 0.0
      %1978 = vmatpush1.msra.mxu0 0.0
      %1979 = vmatprep.subr.mxu0 0.0
      %1980 = vmatpush1.msra.mxu0 0.0
      %1981 = vmatprep.subr.mxu0 0.0
      %1982 = vmatpush1.msra.mxu0 0.0
      %1983 = vmatprep.subr.mxu0 0.0
      %1984 = vmatpush1.msra.mxu0 0.0
      %1985 = vmatprep.subr.mxu0 0.0
      %1986 = vmatpush1.msra.mxu0 0.0
      %1987 = vmatprep.subr.mxu0 0.0
      %1988 = vmatpush1.msra.mxu0 0.0
      %1989 = vmatprep.subr.mxu0 0.0
      %1990 = vmatpush1.msra.mxu0 0.0
      %1991 = vmatprep.subr.mxu0 0.0
      %1992 = vmatpush1.msra.mxu0 0.0
      %1993 = vmatprep.subr.mxu0 0.0
      %1994 = vmatpush1.msra.mxu0 0.0
      %1995 = vmatprep.subr.mxu0 0.0
      %1996 = vmatpush1.msra.mxu0 0.0
      %1997 = vmatprep.subr.mxu0 0.0
      %1998 = vmatpush1.msra.mxu0 0.0
      %1999 = vmatprep.subr.mxu0 0.0
      %2000 = vmatpush1.msra.mxu0 0.0
      %2001 = vmatprep.subr.mxu0 0.0
      %2002 = vmatpush1.msra.mxu0 0.0
      %2003 = vmatprep.subr.mxu0 0.0
      %2004 = vmatpush1.msra.mxu0 0.0
      %2005 = vmatprep.subr.mxu0 %v1850
      %2006 = vmatpush1.msra.mxu0 %v1848
      %2007 = vmatprep.subr.mxu0 %v1805
      %2008 = vmatpush1.msra.mxu0 %v1804
      %2009 = vmatprep.subr.mxu0 0.0
      %2010 = vmatpush2.msra.mxu0 0.0
      %2011 = vmatprep.subr.mxu0 0.0
      %2012 = vmatpush2.msra.mxu0 0.0
      %2013 = vmatprep.subr.mxu0 0.0
      %2014 = vmatpush2.msra.mxu0 0.0
      %2015 = vmatprep.subr.mxu0 0.0
      %2016 = vmatpush2.msra.mxu0 0.0
      %2017 = vmatprep.subr.mxu0 0.0
      %2018 = vmatpush2.msra.mxu0 0.0
      %2019 = vmatprep.subr.mxu0 0.0
      %2020 = vmatpush2.msra.mxu0 0.0
      %2021 = vmatprep.subr.mxu0 0.0
      %2022 = vmatpush2.msra.mxu0 0.0
      %2023 = vmatprep.subr.mxu0 0.0
      %2024 = vmatpush2.msra.mxu0 0.0
      %2025 = vmatprep.subr.mxu0 0.0
      %2026 = vmatpush2.msra.mxu0 0.0
      %2027 = vmatprep.subr.mxu0 0.0
      %2028 = vmatpush2.msra.mxu0 0.0
      %2029 = vmatprep.subr.mxu0 0.0
      %2030 = vmatpush2.msra.mxu0 0.0
      %2031 = vmatprep.subr.mxu0 0.0
      %2032 = vmatpush2.msra.mxu0 0.0
      %2033 = vmatprep.subr.mxu0 0.0
      %2034 = vmatpush2.msra.mxu0 0.0
      %2035 = vmatprep.subr.mxu0 0.0
      %2036 = vmatpush2.msra.mxu0 0.0
      %2037 = vmatprep.subr.mxu0 0.0
      %2038 = vmatpush2.msra.mxu0 0.0
      %2039 = vmatprep.subr.mxu0 0.0
      %2040 = vmatpush2.msra.mxu0 0.0
      %2041 = vmatprep.mubr.f32.mxu0 0.0
      %2042 = vmatmul.mubr.f32.gmra.mxu0 %v1842
      %v2043 = vpop.f32.mrf.mxu0
      %v2044 = vadd.f32 %v1838, %v2043
      %v2045 = vpop.f32.mrf.mxu0
      %v2046 = vadd.f32 %v1838, %v2045
      %2047 = vdwg.mxu0
      %2048 = vmatprep.subr.mxu0 0.0
      %2049 = vmatpush1.msra.mxu0 0.0
      %2050 = vmatprep.subr.mxu0 0.0
      %2051 = vmatpush1.msra.mxu0 0.0
      %2052 = vmatprep.subr.mxu0 0.0
      %2053 = vmatpush1.msra.mxu0 0.0
      %2054 = vmatprep.subr.mxu0 0.0
      %2055 = vmatpush1.msra.mxu0 0.0
      %2056 = vmatprep.subr.mxu0 0.0
      %2057 = vmatpush1.msra.mxu0 0.0
      %2058 = vmatprep.subr.mxu0 0.0
      %2059 = vmatpush1.msra.mxu0 0.0
      %2060 = vmatprep.subr.mxu0 0.0
      %2061 = vmatpush1.msra.mxu0 0.0
      %2062 = vmatprep.subr.mxu0 0.0
      %2063 = vmatpush1.msra.mxu0 0.0
      %2064 = vmatprep.subr.mxu0 0.0
      %2065 = vmatpush1.msra.mxu0 0.0
      %2066 = vmatprep.subr.mxu0 0.0
      %2067 = vmatpush1.msra.mxu0 0.0
      %2068 = vmatprep.subr.mxu0 0.0
      %2069 = vmatpush1.msra.mxu0 0.0
      %2070 = vmatprep.subr.mxu0 0.0
      %2071 = vmatpush1.msra.mxu0 0.0
      %2072 = vmatprep.subr.mxu0 0.0
      %2073 = vmatpush1.msra.mxu0 0.0
      %2074 = vmatprep.subr.mxu0 0.0
      %2075 = vmatpush1.msra.mxu0 0.0
      %2076 = vmatprep.subr.mxu0 %v1854
      %2077 = vmatpush1.msra.mxu0 %v1852
      %2078 = vmatprep.subr.mxu0 %v1807
      %2079 = vmatpush1.msra.mxu0 %v1806
      %2080 = vmatprep.subr.mxu0 0.0
      %2081 = vmatpush2.msra.mxu0 0.0
      %2082 = vmatprep.subr.mxu0 0.0
      %2083 = vmatpush2.msra.mxu0 0.0
      %2084 = vmatprep.subr.mxu0 0.0
      %2085 = vmatpush2.msra.mxu0 0.0
      %2086 = vmatprep.subr.mxu0 0.0
      %2087 = vmatpush2.msra.mxu0 0.0
      %2088 = vmatprep.subr.mxu0 0.0
      %2089 = vmatpush2.msra.mxu0 0.0
      %2090 = vmatprep.subr.mxu0 0.0
      %2091 = vmatpush2.msra.mxu0 0.0
      %2092 = vmatprep.subr.mxu0 0.0
      %2093 = vmatpush2.msra.mxu0 0.0
      %2094 = vmatprep.subr.mxu0 0.0
      %2095 = vmatpush2.msra.mxu0 0.0
      %2096 = vmatprep.subr.mxu0 0.0
      %2097 = vmatpush2.msra.mxu0 0.0
      %2098 = vmatprep.subr.mxu0 0.0
      %2099 = vmatpush2.msra.mxu0 0.0
      %2100 = vmatprep.subr.mxu0 0.0
      %2101 = vmatpush2.msra.mxu0 0.0
      %2102 = vmatprep.subr.mxu0 0.0
      %2103 = vmatpush2.msra.mxu0 0.0
      %2104 = vmatprep.subr.mxu0 0.0
      %2105 = vmatpush2.msra.mxu0 0.0
      %2106 = vmatprep.subr.mxu0 0.0
      %2107 = vmatpush2.msra.mxu0 0.0
      %2108 = vmatprep.subr.mxu0 0.0
      %2109 = vmatpush2.msra.mxu0 0.0
      %2110 = vmatprep.subr.mxu0 0.0
      %2111 = vmatpush2.msra.mxu0 0.0
      %2112 = vmatprep.mubr.f32.mxu0 0.0
      %2113 = vmatmul.mubr.f32.gmra.mxu0 %v1842
      %v2114 = vpop.f32.mrf.mxu0
      %v2115 = vadd.f32 %v1838, %v2114
      %v2116 = vpop.f32.mrf.mxu0
      %v2117 = vadd.f32 %v1838, %v2116
      %2118 = vdwg.mxu0
      %2119 = vmatprep.subr.mxu0 0.0
      %2120 = vmatpush1.msra.mxu0 0.0
      %2121 = vmatprep.subr.mxu0 0.0
      %2122 = vmatpush1.msra.mxu0 0.0
      %2123 = vmatprep.subr.mxu0 0.0
      %2124 = vmatpush1.msra.mxu0 0.0
      %2125 = vmatprep.subr.mxu0 0.0
      %2126 = vmatpush1.msra.mxu0 0.0
      %2127 = vmatprep.subr.mxu0 0.0
      %2128 = vmatpush1.msra.mxu0 0.0
      %2129 = vmatprep.subr.mxu0 0.0
      %2130 = vmatpush1.msra.mxu0 0.0
      %2131 = vmatprep.subr.mxu0 0.0
      %2132 = vmatpush1.msra.mxu0 0.0
      %2133 = vmatprep.subr.mxu0 0.0
      %2134 = vmatpush1.msra.mxu0 0.0
      %2135 = vmatprep.subr.mxu0 0.0
      %2136 = vmatpush1.msra.mxu0 0.0
      %2137 = vmatprep.subr.mxu0 0.0
      %2138 = vmatpush1.msra.mxu0 0.0
      %2139 = vmatprep.subr.mxu0 0.0
      %2140 = vmatpush1.msra.mxu0 0.0
      %2141 = vmatprep.subr.mxu0 0.0
      %2142 = vmatpush1.msra.mxu0 0.0
      %2143 = vmatprep.subr.mxu0 0.0
      %2144 = vmatpush1.msra.mxu0 0.0
      %2145 = vmatprep.subr.mxu0 0.0
      %2146 = vmatpush1.msra.mxu0 0.0
      %2147 = vmatprep.subr.mxu0 %v1858
      %2148 = vmatpush1.msra.mxu0 %v1856
      %2149 = vmatprep.subr.mxu0 %v1809
      %2150 = vmatpush1.msra.mxu0 %v1808
      %2151 = vmatprep.subr.mxu0 0.0
      %2152 = vmatpush2.msra.mxu0 0.0
      %2153 = vmatprep.subr.mxu0 0.0
      %2154 = vmatpush2.msra.mxu0 0.0
      %2155 = vmatprep.subr.mxu0 0.0
      %2156 = vmatpush2.msra.mxu0 0.0
      %2157 = vmatprep.subr.mxu0 0.0
      %2158 = vmatpush2.msra.mxu0 0.0
      %2159 = vmatprep.subr.mxu0 0.0
      %2160 = vmatpush2.msra.mxu0 0.0
      %2161 = vmatprep.subr.mxu0 0.0
      %2162 = vmatpush2.msra.mxu0 0.0
      %2163 = vmatprep.subr.mxu0 0.0
      %2164 = vmatpush2.msra.mxu0 0.0
      %2165 = vmatprep.subr.mxu0 0.0
      %2166 = vmatpush2.msra.mxu0 0.0
      %2167 = vmatprep.subr.mxu0 0.0
      %2168 = vmatpush2.msra.mxu0 0.0
      %2169 = vmatprep.subr.mxu0 0.0
      %2170 = vmatpush2.msra.mxu0 0.0
      %2171 = vmatprep.subr.mxu0 0.0
      %2172 = vmatpush2.msra.mxu0 0.0
      %2173 = vmatprep.subr.mxu0 0.0
      %2174 = vmatpush2.msra.mxu0 0.0
      %2175 = vmatprep.subr.mxu0 0.0
      %2176 = vmatpush2.msra.mxu0 0.0
      %2177 = vmatprep.subr.mxu0 0.0
      %2178 = vmatpush2.msra.mxu0 0.0
      %2179 = vmatprep.subr.mxu0 0.0
      %2180 = vmatpush2.msra.mxu0 0.0
      %2181 = vmatprep.subr.mxu0 0.0
      %2182 = vmatpush2.msra.mxu0 0.0
      %2183 = vmatprep.mubr.f32.mxu0 0.0
      %2184 = vmatmul.mubr.f32.gmra.mxu0 %v1842
      %v2185 = vpop.f32.mrf.mxu0
      %v2186 = vadd.f32 %v1838, %v2185
      %v2187 = vpop.f32.mrf.mxu0
      %v2188 = vadd.f32 %v1838, %v2187
      %2189 = vdwg.mxu0
      %2190 = vmatprep.subr.mxu0 0.0
      %2191 = vmatpush1.msra.mxu0 0.0
      %2192 = vmatprep.subr.mxu0 0.0
      %2193 = vmatpush1.msra.mxu0 0.0
      %2194 = vmatprep.subr.mxu0 0.0
      %2195 = vmatpush1.msra.mxu0 0.0
      %2196 = vmatprep.subr.mxu0 0.0
      %2197 = vmatpush1.msra.mxu0 0.0
      %2198 = vmatprep.subr.mxu0 0.0
      %2199 = vmatpush1.msra.mxu0 0.0
      %2200 = vmatprep.subr.mxu0 0.0
      %2201 = vmatpush1.msra.mxu0 0.0
      %2202 = vmatprep.subr.mxu0 0.0
      %2203 = vmatpush1.msra.mxu0 0.0
      %2204 = vmatprep.subr.mxu0 0.0
      %2205 = vmatpush1.msra.mxu0 0.0
      %2206 = vmatprep.subr.mxu0 0.0
      %2207 = vmatpush1.msra.mxu0 0.0
      %2208 = vmatprep.subr.mxu0 0.0
      %2209 = vmatpush1.msra.mxu0 0.0
      %2210 = vmatprep.subr.mxu0 0.0
      %2211 = vmatpush1.msra.mxu0 0.0
      %2212 = vmatprep.subr.mxu0 0.0
      %2213 = vmatpush1.msra.mxu0 0.0
      %2214 = vmatprep.subr.mxu0 0.0
      %2215 = vmatpush1.msra.mxu0 0.0
      %2216 = vmatprep.subr.mxu0 0.0
      %2217 = vmatpush1.msra.mxu0 0.0
      %2218 = vmatprep.subr.mxu0 %v1862
      %2219 = vmatpush1.msra.mxu0 %v1860
      %2220 = vmatprep.subr.mxu0 %v1811
      %2221 = vmatpush1.msra.mxu0 %v1810
      %2222 = vmatprep.subr.mxu0 0.0
      %2223 = vmatpush2.msra.mxu0 0.0
      %2224 = vmatprep.subr.mxu0 0.0
      %2225 = vmatpush2.msra.mxu0 0.0
      %2226 = vmatprep.subr.mxu0 0.0
      %2227 = vmatpush2.msra.mxu0 0.0
      %2228 = vmatprep.subr.mxu0 0.0
      %2229 = vmatpush2.msra.mxu0 0.0
      %2230 = vmatprep.subr.mxu0 0.0
      %2231 = vmatpush2.msra.mxu0 0.0
      %2232 = vmatprep.subr.mxu0 0.0
      %2233 = vmatpush2.msra.mxu0 0.0
      %2234 = vmatprep.subr.mxu0 0.0
      %2235 = vmatpush2.msra.mxu0 0.0
      %2236 = vmatprep.subr.mxu0 0.0
      %2237 = vmatpush2.msra.mxu0 0.0
      %2238 = vmatprep.subr.mxu0 0.0
      %2239 = vmatpush2.msra.mxu0 0.0
      %2240 = vmatprep.subr.mxu0 0.0
      %2241 = vmatpush2.msra.mxu0 0.0
      %2242 = vmatprep.subr.mxu0 0.0
      %2243 = vmatpush2.msra.mxu0 0.0
      %2244 = vmatprep.subr.mxu0 0.0
      %2245 = vmatpush2.msra.mxu0 0.0
      %2246 = vmatprep.subr.mxu0 0.0
      %2247 = vmatpush2.msra.mxu0 0.0
      %2248 = vmatprep.subr.mxu0 0.0
      %2249 = vmatpush2.msra.mxu0 0.0
      %2250 = vmatprep.subr.mxu0 0.0
      %2251 = vmatpush2.msra.mxu0 0.0
      %2252 = vmatprep.subr.mxu0 0.0
      %2253 = vmatpush2.msra.mxu0 0.0
      %2254 = vmatprep.mubr.f32.mxu0 0.0
      %2255 = vmatmul.mubr.f32.gmra.mxu0 %v1842
      %v2256 = vpop.f32.mrf.mxu0
      %v2257 = vadd.f32 %v1838, %v2256
      %v2258 = vpop.f32.mrf.mxu0
      %v2259 = vadd.f32 %v1838, %v2258
      %2260 = vdwg.mxu0
      %2261 = vmatprep.subr.mxu0 0.0
      %2262 = vmatpush1.msra.mxu0 0.0
      %2263 = vmatprep.subr.mxu0 0.0
      %2264 = vmatpush1.msra.mxu0 0.0
      %2265 = vmatprep.subr.mxu0 0.0
      %2266 = vmatpush1.msra.mxu0 0.0
      %2267 = vmatprep.subr.mxu0 0.0
      %2268 = vmatpush1.msra.mxu0 0.0
      %2269 = vmatprep.subr.mxu0 0.0
      %2270 = vmatpush1.msra.mxu0 0.0
      %2271 = vmatprep.subr.mxu0 0.0
      %2272 = vmatpush1.msra.mxu0 0.0
      %2273 = vmatprep.subr.mxu0 0.0
      %2274 = vmatpush1.msra.mxu0 0.0
      %2275 = vmatprep.subr.mxu0 0.0
      %2276 = vmatpush1.msra.mxu0 0.0
      %2277 = vmatprep.subr.mxu0 0.0
      %2278 = vmatpush1.msra.mxu0 0.0
      %2279 = vmatprep.subr.mxu0 0.0
      %2280 = vmatpush1.msra.mxu0 0.0
      %2281 = vmatprep.subr.mxu0 0.0
      %2282 = vmatpush1.msra.mxu0 0.0
      %2283 = vmatprep.subr.mxu0 0.0
      %2284 = vmatpush1.msra.mxu0 0.0
      %2285 = vmatprep.subr.mxu0 0.0
      %2286 = vmatpush1.msra.mxu0 0.0
      %2287 = vmatprep.subr.mxu0 0.0
      %2288 = vmatpush1.msra.mxu0 0.0
      %2289 = vmatprep.subr.mxu0 %v1866
      %2290 = vmatpush1.msra.mxu0 %v1864
      %2291 = vmatprep.subr.mxu0 %v1813
      %2292 = vmatpush1.msra.mxu0 %v1812
      %2293 = vmatprep.subr.mxu0 0.0
      %2294 = vmatpush2.msra.mxu0 0.0
      %2295 = vmatprep.subr.mxu0 0.0
      %2296 = vmatpush2.msra.mxu0 0.0
      %2297 = vmatprep.subr.mxu0 0.0
      %2298 = vmatpush2.msra.mxu0 0.0
      %2299 = vmatprep.subr.mxu0 0.0
      %2300 = vmatpush2.msra.mxu0 0.0
      %2301 = vmatprep.subr.mxu0 0.0
      %2302 = vmatpush2.msra.mxu0 0.0
      %2303 = vmatprep.subr.mxu0 0.0
      %2304 = vmatpush2.msra.mxu0 0.0
      %2305 = vmatprep.subr.mxu0 0.0
      %2306 = vmatpush2.msra.mxu0 0.0
      %2307 = vmatprep.subr.mxu0 0.0
      %2308 = vmatpush2.msra.mxu0 0.0
      %2309 = vmatprep.subr.mxu0 0.0
      %2310 = vmatpush2.msra.mxu0 0.0
      %2311 = vmatprep.subr.mxu0 0.0
      %2312 = vmatpush2.msra.mxu0 0.0
      %2313 = vmatprep.subr.mxu0 0.0
      %2314 = vmatpush2.msra.mxu0 0.0
      %2315 = vmatprep.subr.mxu0 0.0
      %2316 = vmatpush2.msra.mxu0 0.0
      %2317 = vmatprep.subr.mxu0 0.0
      %2318 = vmatpush2.msra.mxu0 0.0
      %2319 = vmatprep.subr.mxu0 0.0
      %2320 = vmatpush2.msra.mxu0 0.0
      %2321 = vmatprep.subr.mxu0 0.0
      %2322 = vmatpush2.msra.mxu0 0.0
      %2323 = vmatprep.subr.mxu0 0.0
      %2324 = vmatpush2.msra.mxu0 0.0
      %2325 = vmatprep.mubr.f32.mxu0 0.0
      %2326 = vmatmul.mubr.f32.gmra.mxu0 %v1842
      %v2327 = vpop.f32.mrf.mxu0
      %v2328 = vadd.f32 %v1838, %v2327
      %v2329 = vpop.f32.mrf.mxu0
      %v2330 = vadd.f32 %v1838, %v2329
      %2331 = vdwg.mxu0
      %2332 = vmatprep.subr.mxu0 0.0
      %2333 = vmatpush1.msra.mxu0 0.0
      %2334 = vmatprep.subr.mxu0 0.0
      %2335 = vmatpush1.msra.mxu0 0.0
      %2336 = vmatprep.subr.mxu0 0.0
      %2337 = vmatpush1.msra.mxu0 0.0
      %2338 = vmatprep.subr.mxu0 0.0
      %2339 = vmatpush1.msra.mxu0 0.0
      %2340 = vmatprep.subr.mxu0 0.0
      %2341 = vmatpush1.msra.mxu0 0.0
      %2342 = vmatprep.subr.mxu0 0.0
      %2343 = vmatpush1.msra.mxu0 0.0
      %2344 = vmatprep.subr.mxu0 0.0
      %2345 = vmatpush1.msra.mxu0 0.0
      %2346 = vmatprep.subr.mxu0 0.0
      %2347 = vmatpush1.msra.mxu0 0.0
      %2348 = vmatprep.subr.mxu0 0.0
      %2349 = vmatpush1.msra.mxu0 0.0
      %2350 = vmatprep.subr.mxu0 0.0
      %2351 = vmatpush1.msra.mxu0 0.0
      %2352 = vmatprep.subr.mxu0 0.0
      %2353 = vmatpush1.msra.mxu0 0.0
      %2354 = vmatprep.subr.mxu0 0.0
      %2355 = vmatpush1.msra.mxu0 0.0
      %2356 = vmatprep.subr.mxu0 0.0
      %2357 = vmatpush1.msra.mxu0 0.0
      %2358 = vmatprep.subr.mxu0 0.0
      %2359 = vmatpush1.msra.mxu0 0.0
      %2360 = vmatprep.subr.mxu0 %v1870
      %2361 = vmatpush1.msra.mxu0 %v1868
      %2362 = vmatprep.subr.mxu0 %v1815
      %2363 = vmatpush1.msra.mxu0 %v1814
      %2364 = vmatprep.subr.mxu0 0.0
      %2365 = vmatpush2.msra.mxu0 0.0
      %2366 = vmatprep.subr.mxu0 0.0
      %2367 = vmatpush2.msra.mxu0 0.0
      %2368 = vmatprep.subr.mxu0 0.0
      %2369 = vmatpush2.msra.mxu0 0.0
      %2370 = vmatprep.subr.mxu0 0.0
      %2371 = vmatpush2.msra.mxu0 0.0
      %2372 = vmatprep.subr.mxu0 0.0
      %2373 = vmatpush2.msra.mxu0 0.0
      %2374 = vmatprep.subr.mxu0 0.0
      %2375 = vmatpush2.msra.mxu0 0.0
      %2376 = vmatprep.subr.mxu0 0.0
      %2377 = vmatpush2.msra.mxu0 0.0
      %2378 = vmatprep.subr.mxu0 0.0
      %2379 = vmatpush2.msra.mxu0 0.0
      %2380 = vmatprep.subr.mxu0 0.0
      %2381 = vmatpush2.msra.mxu0 0.0
      %2382 = vmatprep.subr.mxu0 0.0
      %2383 = vmatpush2.msra.mxu0 0.0
      %2384 = vmatprep.subr.mxu0 0.0
      %2385 = vmatpush2.msra.mxu0 0.0
      %2386 = vmatprep.subr.mxu0 0.0
      %2387 = vmatpush2.msra.mxu0 0.0
      %2388 = vmatprep.subr.mxu0 0.0
      %2389 = vmatpush2.msra.mxu0 0.0
      %2390 = vmatprep.subr.mxu0 0.0
      %2391 = vmatpush2.msra.mxu0 0.0
      %2392 = vmatprep.subr.mxu0 0.0
      %2393 = vmatpush2.msra.mxu0 0.0
      %2394 = vmatprep.subr.mxu0 0.0
      %2395 = vmatpush2.msra.mxu0 0.0
      %2396 = vmatprep.mubr.f32.mxu0 0.0
      %2397 = vmatmul.mubr.f32.gmra.mxu0 %v1842
      %v2398 = vpop.f32.mrf.mxu0
      %v2399 = vadd.f32 %v1838, %v2398
      %v2400 = vpop.f32.mrf.mxu0
      %v2401 = vadd.f32 %v1838, %v2400
      %2402 = vdwg.mxu0
      %2403 = vmatprep.subr.mxu0 0.0
      %2404 = vmatpush1.msra.mxu0 0.0
      %2405 = vmatprep.subr.mxu0 0.0
      %2406 = vmatpush1.msra.mxu0 0.0
      %2407 = vmatprep.subr.mxu0 0.0
      %2408 = vmatpush1.msra.mxu0 0.0
      %2409 = vmatprep.subr.mxu0 0.0
      %2410 = vmatpush1.msra.mxu0 0.0
      %2411 = vmatprep.subr.mxu0 0.0
      %2412 = vmatpush1.msra.mxu0 0.0
      %2413 = vmatprep.subr.mxu0 0.0
      %2414 = vmatpush1.msra.mxu0 0.0
      %2415 = vmatprep.subr.mxu0 0.0
      %2416 = vmatpush1.msra.mxu0 0.0
      %2417 = vmatprep.subr.mxu0 0.0
      %2418 = vmatpush1.msra.mxu0 0.0
      %2419 = vmatprep.subr.mxu0 0.0
      %2420 = vmatpush1.msra.mxu0 0.0
      %2421 = vmatprep.subr.mxu0 0.0
      %2422 = vmatpush1.msra.mxu0 0.0
      %2423 = vmatprep.subr.mxu0 0.0
      %2424 = vmatpush1.msra.mxu0 0.0
      %2425 = vmatprep.subr.mxu0 0.0
      %2426 = vmatpush1.msra.mxu0 0.0
      %2427 = vmatprep.subr.mxu0 0.0
      %2428 = vmatpush1.msra.mxu0 0.0
      %2429 = vmatprep.subr.mxu0 0.0
      %2430 = vmatpush1.msra.mxu0 0.0
      %2431 = vmatprep.subr.mxu0 %v1874
      %2432 = vmatpush1.msra.mxu0 %v1872
      %2433 = vmatprep.subr.mxu0 %v1817
      %2434 = vmatpush1.msra.mxu0 %v1816
      %2435 = vmatprep.subr.mxu0 0.0
      %2436 = vmatpush2.msra.mxu0 0.0
      %2437 = vmatprep.subr.mxu0 0.0
      %2438 = vmatpush2.msra.mxu0 0.0
      %2439 = vmatprep.subr.mxu0 0.0
      %2440 = vmatpush2.msra.mxu0 0.0
      %2441 = vmatprep.subr.mxu0 0.0
      %2442 = vmatpush2.msra.mxu0 0.0
      %2443 = vmatprep.subr.mxu0 0.0
      %2444 = vmatpush2.msra.mxu0 0.0
      %2445 = vmatprep.subr.mxu0 0.0
      %2446 = vmatpush2.msra.mxu0 0.0
      %2447 = vmatprep.subr.mxu0 0.0
      %2448 = vmatpush2.msra.mxu0 0.0
      %2449 = vmatprep.subr.mxu0 0.0
      %2450 = vmatpush2.msra.mxu0 0.0
      %2451 = vmatprep.subr.mxu0 0.0
      %2452 = vmatpush2.msra.mxu0 0.0
      %2453 = vmatprep.subr.mxu0 0.0
      %2454 = vmatpush2.msra.mxu0 0.0
      %2455 = vmatprep.subr.mxu0 0.0
      %2456 = vmatpush2.msra.mxu0 0.0
      %2457 = vmatprep.subr.mxu0 0.0
      %2458 = vmatpush2.msra.mxu0 0.0
      %2459 = vmatprep.subr.mxu0 0.0
      %2460 = vmatpush2.msra.mxu0 0.0
      %2461 = vmatprep.subr.mxu0 0.0
      %2462 = vmatpush2.msra.mxu0 0.0
      %2463 = vmatprep.subr.mxu0 0.0
      %2464 = vmatpush2.msra.mxu0 0.0
      %2465 = vmatprep.subr.mxu0 0.0
      %2466 = vmatpush2.msra.mxu0 0.0
      %2467 = vmatprep.mubr.f32.mxu0 0.0
      %2468 = vmatmul.mubr.f32.gmra.mxu0 %v1842
      %v2469 = vpop.f32.mrf.mxu0
      %v2470 = vadd.f32 %v1838, %v2469
      %v2471 = vpop.f32.mrf.mxu0
      %v2472 = vadd.f32 %v1838, %v2471
      %2473 = vdwg.mxu0
      %2474 = vmatprep.subr.mxu0 0.0
      %2475 = vmatpush1.msra.mxu0 0.0
      %2476 = vmatprep.subr.mxu0 0.0
      %2477 = vmatpush1.msra.mxu0 0.0
      %2478 = vmatprep.subr.mxu0 0.0
      %2479 = vmatpush1.msra.mxu0 0.0
      %2480 = vmatprep.subr.mxu0 0.0
      %2481 = vmatpush1.msra.mxu0 0.0
      %2482 = vmatprep.subr.mxu0 0.0
      %2483 = vmatpush1.msra.mxu0 0.0
      %2484 = vmatprep.subr.mxu0 0.0
      %2485 = vmatpush1.msra.mxu0 0.0
      %2486 = vmatprep.subr.mxu0 0.0
      %2487 = vmatpush1.msra.mxu0 0.0
      %2488 = vmatprep.subr.mxu0 0.0
      %2489 = vmatpush1.msra.mxu0 0.0
      %2490 = vmatprep.subr.mxu0 0.0
      %2491 = vmatpush1.msra.mxu0 0.0
      %2492 = vmatprep.subr.mxu0 0.0
      %2493 = vmatpush1.msra.mxu0 0.0
      %2494 = vmatprep.subr.mxu0 0.0
      %2495 = vmatpush1.msra.mxu0 0.0
      %2496 = vmatprep.subr.mxu0 0.0
      %2497 = vmatpush1.msra.mxu0 0.0
      %2498 = vmatprep.subr.mxu0 0.0
      %2499 = vmatpush1.msra.mxu0 0.0
      %2500 = vmatprep.subr.mxu0 0.0
      %2501 = vmatpush1.msra.mxu0 0.0
      %2502 = vmatprep.subr.mxu0 %v1878
      %2503 = vmatpush1.msra.mxu0 %v1876
      %2504 = vmatprep.subr.mxu0 %v1819
      %2505 = vmatpush1.msra.mxu0 %v1818
      %2506 = vmatprep.subr.mxu0 0.0
      %2507 = vmatpush2.msra.mxu0 0.0
      %2508 = vmatprep.subr.mxu0 0.0
      %2509 = vmatpush2.msra.mxu0 0.0
      %2510 = vmatprep.subr.mxu0 0.0
      %2511 = vmatpush2.msra.mxu0 0.0
      %2512 = vmatprep.subr.mxu0 0.0
      %2513 = vmatpush2.msra.mxu0 0.0
      %2514 = vmatprep.subr.mxu0 0.0
      %2515 = vmatpush2.msra.mxu0 0.0
      %2516 = vmatprep.subr.mxu0 0.0
      %2517 = vmatpush2.msra.mxu0 0.0
      %2518 = vmatprep.subr.mxu0 0.0
      %2519 = vmatpush2.msra.mxu0 0.0
      %2520 = vmatprep.subr.mxu0 0.0
      %2521 = vmatpush2.msra.mxu0 0.0
      %2522 = vmatprep.subr.mxu0 0.0
      %2523 = vmatpush2.msra.mxu0 0.0
      %2524 = vmatprep.subr.mxu0 0.0
      %2525 = vmatpush2.msra.mxu0 0.0
      %2526 = vmatprep.subr.mxu0 0.0
      %2527 = vmatpush2.msra.mxu0 0.0
      %2528 = vmatprep.subr.mxu0 0.0
      %2529 = vmatpush2.msra.mxu0 0.0
      %2530 = vmatprep.subr.mxu0 0.0
      %2531 = vmatpush2.msra.mxu0 0.0
      %2532 = vmatprep.subr.mxu0 0.0
      %2533 = vmatpush2.msra.mxu0 0.0
      %2534 = vmatprep.subr.mxu0 0.0
      %2535 = vmatpush2.msra.mxu0 0.0
      %2536 = vmatprep.subr.mxu0 0.0
      %2537 = vmatpush2.msra.mxu0 0.0
      %2538 = vmatprep.mubr.f32.mxu0 0.0
      %2539 = vmatmul.mubr.f32.gmra.mxu0 %v1842
      %v2540 = vpop.f32.mrf.mxu0
      %v2541 = vadd.f32 %v1838, %v2540
      %v2542 = vpop.f32.mrf.mxu0
      %v2543 = vadd.f32 %v1838, %v2542
      %2544 = vdwg.mxu0
      %2545 = vmatprep.subr.mxu0 0.0
      %2546 = vmatpush1.msra.mxu0 0.0
      %2547 = vmatprep.subr.mxu0 0.0
      %2548 = vmatpush1.msra.mxu0 0.0
      %2549 = vmatprep.subr.mxu0 0.0
      %2550 = vmatpush1.msra.mxu0 0.0
      %2551 = vmatprep.subr.mxu0 0.0
      %2552 = vmatpush1.msra.mxu0 0.0
      %2553 = vmatprep.subr.mxu0 0.0
      %2554 = vmatpush1.msra.mxu0 0.0
      %2555 = vmatprep.subr.mxu0 0.0
      %2556 = vmatpush1.msra.mxu0 0.0
      %2557 = vmatprep.subr.mxu0 0.0
      %2558 = vmatpush1.msra.mxu0 0.0
      %2559 = vmatprep.subr.mxu0 0.0
      %2560 = vmatpush1.msra.mxu0 0.0
      %2561 = vmatprep.subr.mxu0 0.0
      %2562 = vmatpush1.msra.mxu0 0.0
      %2563 = vmatprep.subr.mxu0 0.0
      %2564 = vmatpush1.msra.mxu0 0.0
      %2565 = vmatprep.subr.mxu0 0.0
      %2566 = vmatpush1.msra.mxu0 0.0
      %2567 = vmatprep.subr.mxu0 0.0
      %2568 = vmatpush1.msra.mxu0 0.0
      %2569 = vmatprep.subr.mxu0 0.0
      %2570 = vmatpush1.msra.mxu0 0.0
      %2571 = vmatprep.subr.mxu0 0.0
      %2572 = vmatpush1.msra.mxu0 0.0
      %2573 = vmatprep.subr.mxu0 %v1882
      %2574 = vmatpush1.msra.mxu0 %v1880
      %2575 = vmatprep.subr.mxu0 %v1821
      %2576 = vmatpush1.msra.mxu0 %v1820
      %2577 = vmatprep.subr.mxu0 0.0
      %2578 = vmatpush2.msra.mxu0 0.0
      %2579 = vmatprep.subr.mxu0 0.0
      %2580 = vmatpush2.msra.mxu0 0.0
      %2581 = vmatprep.subr.mxu0 0.0
      %2582 = vmatpush2.msra.mxu0 0.0
      %2583 = vmatprep.subr.mxu0 0.0
      %2584 = vmatpush2.msra.mxu0 0.0
      %2585 = vmatprep.subr.mxu0 0.0
      %2586 = vmatpush2.msra.mxu0 0.0
      %2587 = vmatprep.subr.mxu0 0.0
      %2588 = vmatpush2.msra.mxu0 0.0
      %2589 = vmatprep.subr.mxu0 0.0
      %2590 = vmatpush2.msra.mxu0 0.0
      %2591 = vmatprep.subr.mxu0 0.0
      %2592 = vmatpush2.msra.mxu0 0.0
      %2593 = vmatprep.subr.mxu0 0.0
      %2594 = vmatpush2.msra.mxu0 0.0
      %2595 = vmatprep.subr.mxu0 0.0
      %2596 = vmatpush2.msra.mxu0 0.0
      %2597 = vmatprep.subr.mxu0 0.0
      %2598 = vmatpush2.msra.mxu0 0.0
      %2599 = vmatprep.subr.mxu0 0.0
      %2600 = vmatpush2.msra.mxu0 0.0
      %2601 = vmatprep.subr.mxu0 0.0
      %2602 = vmatpush2.msra.mxu0 0.0
      %2603 = vmatprep.subr.mxu0 0.0
      %2604 = vmatpush2.msra.mxu0 0.0
      %2605 = vmatprep.subr.mxu0 0.0
      %2606 = vmatpush2.msra.mxu0 0.0
      %2607 = vmatprep.subr.mxu0 0.0
      %2608 = vmatpush2.msra.mxu0 0.0
      %2609 = vmatprep.mubr.f32.mxu0 0.0
      %2610 = vmatmul.mubr.f32.gmra.mxu0 %v1842
      %v2611 = vpop.f32.mrf.mxu0
      %v2612 = vadd.f32 %v1838, %v2611
      %v2613 = vpop.f32.mrf.mxu0
      %v2614 = vadd.f32 %v1838, %v2613
      %2615 = vdwg.mxu0
      %2616 = vmatprep.subr.mxu0 0.0
      %2617 = vmatpush1.msra.mxu0 0.0
      %2618 = vmatprep.subr.mxu0 0.0
      %2619 = vmatpush1.msra.mxu0 0.0
      %2620 = vmatprep.subr.mxu0 0.0
      %2621 = vmatpush1.msra.mxu0 0.0
      %2622 = vmatprep.subr.mxu0 0.0
      %2623 = vmatpush1.msra.mxu0 0.0
      %2624 = vmatprep.subr.mxu0 0.0
      %2625 = vmatpush1.msra.mxu0 0.0
      %2626 = vmatprep.subr.mxu0 0.0
      %2627 = vmatpush1.msra.mxu0 0.0
      %2628 = vmatprep.subr.mxu0 0.0
      %2629 = vmatpush1.msra.mxu0 0.0
      %2630 = vmatprep.subr.mxu0 0.0
      %2631 = vmatpush1.msra.mxu0 0.0
      %2632 = vmatprep.subr.mxu0 0.0
      %2633 = vmatpush1.msra.mxu0 0.0
      %2634 = vmatprep.subr.mxu0 0.0
      %2635 = vmatpush1.msra.mxu0 0.0
      %2636 = vmatprep.subr.mxu0 0.0
      %2637 = vmatpush1.msra.mxu0 0.0
      %2638 = vmatprep.subr.mxu0 0.0
      %2639 = vmatpush1.msra.mxu0 0.0
      %2640 = vmatprep.subr.mxu0 0.0
      %2641 = vmatpush1.msra.mxu0 0.0
      %2642 = vmatprep.subr.mxu0 0.0
      %2643 = vmatpush1.msra.mxu0 0.0
      %2644 = vmatprep.subr.mxu0 %v1886
      %2645 = vmatpush1.msra.mxu0 %v1884
      %2646 = vmatprep.subr.mxu0 %v1823
      %2647 = vmatpush1.msra.mxu0 %v1822
      %2648 = vmatprep.subr.mxu0 0.0
      %2649 = vmatpush2.msra.mxu0 0.0
      %2650 = vmatprep.subr.mxu0 0.0
      %2651 = vmatpush2.msra.mxu0 0.0
      %2652 = vmatprep.subr.mxu0 0.0
      %2653 = vmatpush2.msra.mxu0 0.0
      %2654 = vmatprep.subr.mxu0 0.0
      %2655 = vmatpush2.msra.mxu0 0.0
      %2656 = vmatprep.subr.mxu0 0.0
      %2657 = vmatpush2.msra.mxu0 0.0
      %2658 = vmatprep.subr.mxu0 0.0
      %2659 = vmatpush2.msra.mxu0 0.0
      %2660 = vmatprep.subr.mxu0 0.0
      %2661 = vmatpush2.msra.mxu0 0.0
      %2662 = vmatprep.subr.mxu0 0.0
      %2663 = vmatpush2.msra.mxu0 0.0
      %2664 = vmatprep.subr.mxu0 0.0
      %2665 = vmatpush2.msra.mxu0 0.0
      %2666 = vmatprep.subr.mxu0 0.0
      %2667 = vmatpush2.msra.mxu0 0.0
      %2668 = vmatprep.subr.mxu0 0.0
      %2669 = vmatpush2.msra.mxu0 0.0
      %2670 = vmatprep.subr.mxu0 0.0
      %2671 = vmatpush2.msra.mxu0 0.0
      %2672 = vmatprep.subr.mxu0 0.0
      %2673 = vmatpush2.msra.mxu0 0.0
      %2674 = vmatprep.subr.mxu0 0.0
      %2675 = vmatpush2.msra.mxu0 0.0
      %2676 = vmatprep.subr.mxu0 0.0
      %2677 = vmatpush2.msra.mxu0 0.0
      %2678 = vmatprep.subr.mxu0 0.0
      %2679 = vmatpush2.msra.mxu0 0.0
      %2680 = vmatprep.mubr.f32.mxu0 0.0
      %2681 = vmatmul.mubr.f32.gmra.mxu0 %v1842
      %v2682 = vpop.f32.mrf.mxu0
      %v2683 = vadd.f32 %v1838, %v2682
      %v2684 = vpop.f32.mrf.mxu0
      %v2685 = vadd.f32 %v1838, %v2684
      %2686 = vdwg.mxu0
      %2687 = vmatprep.subr.mxu0 0.0
      %2688 = vmatpush1.msra.mxu0 0.0
      %2689 = vmatprep.subr.mxu0 0.0
      %2690 = vmatpush1.msra.mxu0 0.0
      %2691 = vmatprep.subr.mxu0 0.0
      %2692 = vmatpush1.msra.mxu0 0.0
      %2693 = vmatprep.subr.mxu0 0.0
      %2694 = vmatpush1.msra.mxu0 0.0
      %2695 = vmatprep.subr.mxu0 0.0
      %2696 = vmatpush1.msra.mxu0 0.0
      %2697 = vmatprep.subr.mxu0 0.0
      %2698 = vmatpush1.msra.mxu0 0.0
      %2699 = vmatprep.subr.mxu0 0.0
      %2700 = vmatpush1.msra.mxu0 0.0
      %2701 = vmatprep.subr.mxu0 0.0
      %2702 = vmatpush1.msra.mxu0 0.0
      %2703 = vmatprep.subr.mxu0 0.0
      %2704 = vmatpush1.msra.mxu0 0.0
      %2705 = vmatprep.subr.mxu0 0.0
      %2706 = vmatpush1.msra.mxu0 0.0
      %2707 = vmatprep.subr.mxu0 0.0
      %2708 = vmatpush1.msra.mxu0 0.0
      %2709 = vmatprep.subr.mxu0 0.0
      %2710 = vmatpush1.msra.mxu0 0.0
      %2711 = vmatprep.subr.mxu0 0.0
      %2712 = vmatpush1.msra.mxu0 0.0
      %2713 = vmatprep.subr.mxu0 0.0
      %2714 = vmatpush1.msra.mxu0 0.0
      %2715 = vmatprep.subr.mxu0 %v1890
      %2716 = vmatpush1.msra.mxu0 %v1888
      %2717 = vmatprep.subr.mxu0 %v1825
      %2718 = vmatpush1.msra.mxu0 %v1824
      %2719 = vmatprep.subr.mxu0 0.0
      %2720 = vmatpush2.msra.mxu0 0.0
      %2721 = vmatprep.subr.mxu0 0.0
      %2722 = vmatpush2.msra.mxu0 0.0
      %2723 = vmatprep.subr.mxu0 0.0
      %2724 = vmatpush2.msra.mxu0 0.0
      %2725 = vmatprep.subr.mxu0 0.0
      %2726 = vmatpush2.msra.mxu0 0.0
      %2727 = vmatprep.subr.mxu0 0.0
      %2728 = vmatpush2.msra.mxu0 0.0
      %2729 = vmatprep.subr.mxu0 0.0
      %2730 = vmatpush2.msra.mxu0 0.0
      %2731 = vmatprep.subr.mxu0 0.0
      %2732 = vmatpush2.msra.mxu0 0.0
      %2733 = vmatprep.subr.mxu0 0.0
      %2734 = vmatpush2.msra.mxu0 0.0
      %2735 = vmatprep.subr.mxu0 0.0
      %2736 = vmatpush2.msra.mxu0 0.0
      %2737 = vmatprep.subr.mxu0 0.0
      %2738 = vmatpush2.msra.mxu0 0.0
      %2739 = vmatprep.subr.mxu0 0.0
      %2740 = vmatpush2.msra.mxu0 0.0
      %2741 = vmatprep.subr.mxu0 0.0
      %2742 = vmatpush2.msra.mxu0 0.0
      %2743 = vmatprep.subr.mxu0 0.0
      %2744 = vmatpush2.msra.mxu0 0.0
      %2745 = vmatprep.subr.mxu0 0.0
      %2746 = vmatpush2.msra.mxu0 0.0
      %2747 = vmatprep.subr.mxu0 0.0
      %2748 = vmatpush2.msra.mxu0 0.0
      %2749 = vmatprep.subr.mxu0 0.0
      %2750 = vmatpush2.msra.mxu0 0.0
      %2751 = vmatprep.mubr.f32.mxu0 0.0
      %2752 = vmatmul.mubr.f32.gmra.mxu0 %v1842
      %v2753 = vpop.f32.mrf.mxu0
      %v2754 = vadd.f32 %v1838, %v2753
      %v2755 = vpop.f32.mrf.mxu0
      %v2756 = vadd.f32 %v1838, %v2755
      %2757 = vdwg.mxu0
      %2758 = vmatprep.subr.mxu0 0.0
      %2759 = vmatpush1.msra.mxu0 0.0
      %2760 = vmatprep.subr.mxu0 0.0
      %2761 = vmatpush1.msra.mxu0 0.0
      %2762 = vmatprep.subr.mxu0 0.0
      %2763 = vmatpush1.msra.mxu0 0.0
      %2764 = vmatprep.subr.mxu0 0.0
      %2765 = vmatpush1.msra.mxu0 0.0
      %2766 = vmatprep.subr.mxu0 0.0
      %2767 = vmatpush1.msra.mxu0 0.0
      %2768 = vmatprep.subr.mxu0 0.0
      %2769 = vmatpush1.msra.mxu0 0.0
      %2770 = vmatprep.subr.mxu0 0.0
      %2771 = vmatpush1.msra.mxu0 0.0
      %2772 = vmatprep.subr.mxu0 0.0
      %2773 = vmatpush1.msra.mxu0 0.0
      %2774 = vmatprep.subr.mxu0 0.0
      %2775 = vmatpush1.msra.mxu0 0.0
      %2776 = vmatprep.subr.mxu0 0.0
      %2777 = vmatpush1.msra.mxu0 0.0
      %2778 = vmatprep.subr.mxu0 0.0
      %2779 = vmatpush1.msra.mxu0 0.0
      %2780 = vmatprep.subr.mxu0 0.0
      %2781 = vmatpush1.msra.mxu0 0.0
      %2782 = vmatprep.subr.mxu0 0.0
      %2783 = vmatpush1.msra.mxu0 0.0
      %2784 = vmatprep.subr.mxu0 0.0
      %2785 = vmatpush1.msra.mxu0 0.0
      %2786 = vmatprep.subr.mxu0 %v1894
      %2787 = vmatpush1.msra.mxu0 %v1892
      %2788 = vmatprep.subr.mxu0 %v1827
      %2789 = vmatpush1.msra.mxu0 %v1826
      %2790 = vmatprep.subr.mxu0 0.0
      %2791 = vmatpush2.msra.mxu0 0.0
      %2792 = vmatprep.subr.mxu0 0.0
      %2793 = vmatpush2.msra.mxu0 0.0
      %2794 = vmatprep.subr.mxu0 0.0
      %2795 = vmatpush2.msra.mxu0 0.0
      %2796 = vmatprep.subr.mxu0 0.0
      %2797 = vmatpush2.msra.mxu0 0.0
      %2798 = vmatprep.subr.mxu0 0.0
      %2799 = vmatpush2.msra.mxu0 0.0
      %2800 = vmatprep.subr.mxu0 0.0
      %2801 = vmatpush2.msra.mxu0 0.0
      %2802 = vmatprep.subr.mxu0 0.0
      %2803 = vmatpush2.msra.mxu0 0.0
      %2804 = vmatprep.subr.mxu0 0.0
      %2805 = vmatpush2.msra.mxu0 0.0
      %2806 = vmatprep.subr.mxu0 0.0
      %2807 = vmatpush2.msra.mxu0 0.0
      %2808 = vmatprep.subr.mxu0 0.0
      %2809 = vmatpush2.msra.mxu0 0.0
      %2810 = vmatprep.subr.mxu0 0.0
      %2811 = vmatpush2.msra.mxu0 0.0
      %2812 = vmatprep.subr.mxu0 0.0
      %2813 = vmatpush2.msra.mxu0 0.0
      %2814 = vmatprep.subr.mxu0 0.0
      %2815 = vmatpush2.msra.mxu0 0.0
      %2816 = vmatprep.subr.mxu0 0.0
      %2817 = vmatpush2.msra.mxu0 0.0
      %2818 = vmatprep.subr.mxu0 0.0
      %2819 = vmatpush2.msra.mxu0 0.0
      %2820 = vmatprep.subr.mxu0 0.0
      %2821 = vmatpush2.msra.mxu0 0.0
      %2822 = vmatprep.mubr.f32.mxu0 0.0
      %2823 = vmatmul.mubr.f32.gmra.mxu0 %v1842
      %v2824 = vpop.f32.mrf.mxu0
      %v2825 = vadd.f32 %v1838, %v2824
      %v2826 = vpop.f32.mrf.mxu0
      %v2827 = vadd.f32 %v1838, %v2826
      %2828 = vdwg.mxu0
      %2829 = vmatprep.subr.mxu0 0.0
      %2830 = vmatpush1.msra.mxu0 0.0
      %2831 = vmatprep.subr.mxu0 0.0
      %2832 = vmatpush1.msra.mxu0 0.0
      %2833 = vmatprep.subr.mxu0 0.0
      %2834 = vmatpush1.msra.mxu0 0.0
      %2835 = vmatprep.subr.mxu0 0.0
      %2836 = vmatpush1.msra.mxu0 0.0
      %2837 = vmatprep.subr.mxu0 0.0
      %2838 = vmatpush1.msra.mxu0 0.0
      %2839 = vmatprep.subr.mxu0 0.0
      %2840 = vmatpush1.msra.mxu0 0.0
      %2841 = vmatprep.subr.mxu0 0.0
      %2842 = vmatpush1.msra.mxu0 0.0
      %2843 = vmatprep.subr.mxu0 0.0
      %2844 = vmatpush1.msra.mxu0 0.0
      %2845 = vmatprep.subr.mxu0 0.0
      %2846 = vmatpush1.msra.mxu0 0.0
      %2847 = vmatprep.subr.mxu0 0.0
      %2848 = vmatpush1.msra.mxu0 0.0
      %2849 = vmatprep.subr.mxu0 0.0
      %2850 = vmatpush1.msra.mxu0 0.0
      %2851 = vmatprep.subr.mxu0 0.0
      %2852 = vmatpush1.msra.mxu0 0.0
      %2853 = vmatprep.subr.mxu0 0.0
      %2854 = vmatpush1.msra.mxu0 0.0
      %2855 = vmatprep.subr.mxu0 0.0
      %2856 = vmatpush1.msra.mxu0 0.0
      %2857 = vmatprep.subr.mxu0 %v1898
      %2858 = vmatpush1.msra.mxu0 %v1896
      %2859 = vmatprep.subr.mxu0 %v1829
      %2860 = vmatpush1.msra.mxu0 %v1828
      %2861 = vmatprep.subr.mxu0 0.0
      %2862 = vmatpush2.msra.mxu0 0.0
      %2863 = vmatprep.subr.mxu0 0.0
      %2864 = vmatpush2.msra.mxu0 0.0
      %2865 = vmatprep.subr.mxu0 0.0
      %2866 = vmatpush2.msra.mxu0 0.0
      %2867 = vmatprep.subr.mxu0 0.0
      %2868 = vmatpush2.msra.mxu0 0.0
      %2869 = vmatprep.subr.mxu0 0.0
      %2870 = vmatpush2.msra.mxu0 0.0
      %2871 = vmatprep.subr.mxu0 0.0
      %2872 = vmatpush2.msra.mxu0 0.0
      %2873 = vmatprep.subr.mxu0 0.0
      %2874 = vmatpush2.msra.mxu0 0.0
      %2875 = vmatprep.subr.mxu0 0.0
      %2876 = vmatpush2.msra.mxu0 0.0
      %2877 = vmatprep.subr.mxu0 0.0
      %2878 = vmatpush2.msra.mxu0 0.0
      %2879 = vmatprep.subr.mxu0 0.0
      %2880 = vmatpush2.msra.mxu0 0.0
      %2881 = vmatprep.subr.mxu0 0.0
      %2882 = vmatpush2.msra.mxu0 0.0
      %2883 = vmatprep.subr.mxu0 0.0
      %2884 = vmatpush2.msra.mxu0 0.0
      %2885 = vmatprep.subr.mxu0 0.0
      %2886 = vmatpush2.msra.mxu0 0.0
      %2887 = vmatprep.subr.mxu0 0.0
      %2888 = vmatpush2.msra.mxu0 0.0
      %2889 = vmatprep.subr.mxu0 0.0
      %2890 = vmatpush2.msra.mxu0 0.0
      %2891 = vmatprep.subr.mxu0 0.0
      %2892 = vmatpush2.msra.mxu0 0.0
      %2893 = vmatprep.mubr.f32.mxu0 0.0
      %2894 = vmatmul.mubr.f32.gmra.mxu0 %v1842
      %v2895 = vpop.f32.mrf.mxu0
      %v2896 = vadd.f32 %v1838, %v2895
      %v2897 = vpop.f32.mrf.mxu0
      %v2898 = vadd.f32 %v1838, %v2897
      %2899 = vdwg.mxu0
      %2900 = vmatprep.subr.mxu0 0.0
      %2901 = vmatpush1.msra.mxu0 0.0
      %2902 = vmatprep.subr.mxu0 0.0
      %2903 = vmatpush1.msra.mxu0 0.0
      %2904 = vmatprep.subr.mxu0 0.0
      %2905 = vmatpush1.msra.mxu0 0.0
      %2906 = vmatprep.subr.mxu0 0.0
      %2907 = vmatpush1.msra.mxu0 0.0
      %2908 = vmatprep.subr.mxu0 0.0
      %2909 = vmatpush1.msra.mxu0 0.0
      %2910 = vmatprep.subr.mxu0 0.0
      %2911 = vmatpush1.msra.mxu0 0.0
      %2912 = vmatprep.subr.mxu0 0.0
      %2913 = vmatpush1.msra.mxu0 0.0
      %2914 = vmatprep.subr.mxu0 0.0
      %2915 = vmatpush1.msra.mxu0 0.0
      %2916 = vmatprep.subr.mxu0 0.0
      %2917 = vmatpush1.msra.mxu0 0.0
      %2918 = vmatprep.subr.mxu0 0.0
      %2919 = vmatpush1.msra.mxu0 0.0
      %2920 = vmatprep.subr.mxu0 0.0
      %2921 = vmatpush1.msra.mxu0 0.0
      %2922 = vmatprep.subr.mxu0 0.0
      %2923 = vmatpush1.msra.mxu0 0.0
      %2924 = vmatprep.subr.mxu0 0.0
      %2925 = vmatpush1.msra.mxu0 0.0
      %2926 = vmatprep.subr.mxu0 0.0
      %2927 = vmatpush1.msra.mxu0 0.0
      %2928 = vmatprep.subr.mxu0 %v1902
      %2929 = vmatpush1.msra.mxu0 %v1900
      %2930 = vmatprep.subr.mxu0 %v1831
      %2931 = vmatpush1.msra.mxu0 %v1830
      %2932 = vmatprep.subr.mxu0 0.0
      %2933 = vmatpush2.msra.mxu0 0.0
      %2934 = vmatprep.subr.mxu0 0.0
      %2935 = vmatpush2.msra.mxu0 0.0
      %2936 = vmatprep.subr.mxu0 0.0
      %2937 = vmatpush2.msra.mxu0 0.0
      %2938 = vmatprep.subr.mxu0 0.0
      %2939 = vmatpush2.msra.mxu0 0.0
      %2940 = vmatprep.subr.mxu0 0.0
      %2941 = vmatpush2.msra.mxu0 0.0
      %2942 = vmatprep.subr.mxu0 0.0
      %2943 = vmatpush2.msra.mxu0 0.0
      %2944 = vmatprep.subr.mxu0 0.0
      %2945 = vmatpush2.msra.mxu0 0.0
      %2946 = vmatprep.subr.mxu0 0.0
      %2947 = vmatpush2.msra.mxu0 0.0
      %2948 = vmatprep.subr.mxu0 0.0
      %2949 = vmatpush2.msra.mxu0 0.0
      %2950 = vmatprep.subr.mxu0 0.0
      %2951 = vmatpush2.msra.mxu0 0.0
      %2952 = vmatprep.subr.mxu0 0.0
      %2953 = vmatpush2.msra.mxu0 0.0
      %2954 = vmatprep.subr.mxu0 0.0
      %2955 = vmatpush2.msra.mxu0 0.0
      %2956 = vmatprep.subr.mxu0 0.0
      %2957 = vmatpush2.msra.mxu0 0.0
      %2958 = vmatprep.subr.mxu0 0.0
      %2959 = vmatpush2.msra.mxu0 0.0
      %2960 = vmatprep.subr.mxu0 0.0
      %2961 = vmatpush2.msra.mxu0 0.0
      %2962 = vmatprep.subr.mxu0 0.0
      %2963 = vmatpush2.msra.mxu0 0.0
      %2964 = vmatprep.mubr.f32.mxu0 0.0
      %2965 = vmatmul.mubr.f32.gmra.mxu0 %v1842
      %v2966 = vpop.f32.mrf.mxu0
      %v2967 = vadd.f32 %v1838, %v2966
      %v2968 = vpop.f32.mrf.mxu0
      %v2969 = vadd.f32 %v1838, %v2968
      %2970 = vdwg.mxu0
      %2971 = vmatprep.subr.mxu0 0.0
      %2972 = vmatpush1.msra.mxu0 0.0
      %2973 = vmatprep.subr.mxu0 0.0
      %2974 = vmatpush1.msra.mxu0 0.0
      %2975 = vmatprep.subr.mxu0 0.0
      %2976 = vmatpush1.msra.mxu0 0.0
      %2977 = vmatprep.subr.mxu0 0.0
      %2978 = vmatpush1.msra.mxu0 0.0
      %2979 = vmatprep.subr.mxu0 0.0
      %2980 = vmatpush1.msra.mxu0 0.0
      %2981 = vmatprep.subr.mxu0 0.0
      %2982 = vmatpush1.msra.mxu0 0.0
      %2983 = vmatprep.subr.mxu0 0.0
      %2984 = vmatpush1.msra.mxu0 0.0
      %2985 = vmatprep.subr.mxu0 0.0
      %2986 = vmatpush1.msra.mxu0 0.0
      %2987 = vmatprep.subr.mxu0 0.0
      %2988 = vmatpush1.msra.mxu0 0.0
      %2989 = vmatprep.subr.mxu0 0.0
      %2990 = vmatpush1.msra.mxu0 0.0
      %2991 = vmatprep.subr.mxu0 0.0
      %2992 = vmatpush1.msra.mxu0 0.0
      %2993 = vmatprep.subr.mxu0 0.0
      %2994 = vmatpush1.msra.mxu0 0.0
      %2995 = vmatprep.subr.mxu0 0.0
      %2996 = vmatpush1.msra.mxu0 0.0
      %2997 = vmatprep.subr.mxu0 0.0
      %2998 = vmatpush1.msra.mxu0 0.0
      %2999 = vmatprep.subr.mxu0 0.0
      %3000 = vmatpush1.msra.mxu0 %v1904
      %3001 = vmatprep.subr.mxu0 0.0
      %3002 = vmatpush1.msra.mxu0 %v1832
      %3003 = vmatprep.subr.mxu0 0.0
      %3004 = vmatpush2.msra.mxu0 0.0
      %3005 = vmatprep.subr.mxu0 0.0
      %3006 = vmatpush2.msra.mxu0 0.0
      %3007 = vmatprep.subr.mxu0 0.0
      %3008 = vmatpush2.msra.mxu0 0.0
      %3009 = vmatprep.subr.mxu0 0.0
      %3010 = vmatpush2.msra.mxu0 0.0
      %3011 = vmatprep.subr.mxu0 0.0
      %3012 = vmatpush2.msra.mxu0 0.0
      %3013 = vmatprep.subr.mxu0 0.0
      %3014 = vmatpush2.msra.mxu0 0.0
      %3015 = vmatprep.subr.mxu0 0.0
      %3016 = vmatpush2.msra.mxu0 0.0
      %3017 = vmatprep.subr.mxu0 0.0
      %3018 = vmatpush2.msra.mxu0 0.0
      %3019 = vmatprep.subr.mxu0 0.0
      %3020 = vmatpush2.msra.mxu0 0.0
      %3021 = vmatprep.subr.mxu0 0.0
      %3022 = vmatpush2.msra.mxu0 0.0
      %3023 = vmatprep.subr.mxu0 0.0
      %3024 = vmatpush2.msra.mxu0 0.0
      %3025 = vmatprep.subr.mxu0 0.0
      %3026 = vmatpush2.msra.mxu0 0.0
      %3027 = vmatprep.subr.mxu0 0.0
      %3028 = vmatpush2.msra.mxu0 0.0
      %3029 = vmatprep.subr.mxu0 0.0
      %3030 = vmatpush2.msra.mxu0 0.0
      %3031 = vmatprep.subr.mxu0 0.0
      %3032 = vmatpush2.msra.mxu0 0.0
      %3033 = vmatprep.subr.mxu0 0.0
      %3034 = vmatpush2.msra.mxu0 0.0
      %3035 = vmatprep.mubr.f32.mxu0 0.0
      %3036 = vmatmul.mubr.f32.gmra.mxu0 %v1842
      %v3037 = vpop.f32.mrf.mxu0
      %v3038 = vadd.f32 %v1838, %v3037
      %v3039 = vpop.f32.mrf.mxu0
      %3040 = vdwg.mxu0
      %v3041 = vmax.f32 %v1973, 0.0
      %v3042 = vmax.f32 %v1975, 0.0
      %v3043 = vmax.f32 %v2044, 0.0
      %v3044 = vmax.f32 %v2046, 0.0
      %v3045 = vmax.f32 %v2115, 0.0
      %v3046 = vmax.f32 %v2117, 0.0
      %v3047 = vmax.f32 %v2186, 0.0
      %v3048 = vmax.f32 %v2188, 0.0
      %v3049 = vmax.f32 %v2257, 0.0
      %v3050 = vmax.f32 %v2259, 0.0
      %v3051 = vmax.f32 %v2328, 0.0
      %v3052 = vmax.f32 %v2330, 0.0
      %v3053 = vmax.f32 %v2399, 0.0
      %v3054 = vmax.f32 %v2401, 0.0
      %v3055 = vmax.f32 %v2470, 0.0
      %v3056 = vmax.f32 %v2472, 0.0
      %v3057 = vmax.f32 %v2541, 0.0
      %v3058 = vmax.f32 %v2543, 0.0
      %v3059 = vmax.f32 %v2612, 0.0
      %v3060 = vmax.f32 %v2614, 0.0
      %v3061 = vmax.f32 %v2683, 0.0
      %v3062 = vmax.f32 %v2685, 0.0
      %v3063 = vmax.f32 %v2754, 0.0
      %v3064 = vmax.f32 %v2756, 0.0
      %v3065 = vmax.f32 %v2825, 0.0
      %v3066 = vmax.f32 %v2827, 0.0
      %v3067 = vmax.f32 %v2896, 0.0
      %v3068 = vmax.f32 %v2898, 0.0
      %v3069 = vmax.f32 %v2967, 0.0
      %v3070 = vmax.f32 %v2969, 0.0
      %v3071 = vmax.f32 %v3038, 0.0
      %3103 = vrot.lane.b32.xlu0 %v3041, 127
      %v3104 = vpop.permute.xlu0 %3103
      %3105 = vrot.lane.b32.xlu0 %v3042, 127
      %v3106 = vpop.permute.xlu0 %3105
      %3107 = vrot.lane.b32.xlu0 %v3043, 127
      %v3108 = vpop.permute.xlu0 %3107
      %3109 = vrot.lane.b32.xlu0 %v3044, 127
      %v3110 = vpop.permute.xlu0 %3109
      %3111 = vrot.lane.b32.xlu0 %v3045, 127
      %v3112 = vpop.permute.xlu0 %3111
      %3113 = vrot.lane.b32.xlu0 %v3046, 127
      %v3114 = vpop.permute.xlu0 %3113
      %3115 = vrot.lane.b32.xlu0 %v3047, 127
      %v3116 = vpop.permute.xlu0 %3115
      %3117 = vrot.lane.b32.xlu0 %v3048, 127
      %v3118 = vpop.permute.xlu0 %3117
      %3119 = vrot.lane.b32.xlu0 %v3049, 127
      %v3120 = vpop.permute.xlu0 %3119
      %3121 = vrot.lane.b32.xlu0 %v3050, 127
      %v3122 = vpop.permute.xlu0 %3121
      %3123 = vrot.lane.b32.xlu0 %v3051, 127
      %v3124 = vpop.permute.xlu0 %3123
      %3125 = vrot.lane.b32.xlu0 %v3052, 127
      %v3126 = vpop.permute.xlu0 %3125
      %3127 = vrot.lane.b32.xlu0 %v3053, 127
      %v3128 = vpop.permute.xlu0 %3127
      %3129 = vrot.lane.b32.xlu0 %v3054, 127
      %v3130 = vpop.permute.xlu0 %3129
      %3131 = vrot.lane.b32.xlu0 %v3055, 127
      %v3132 = vpop.permute.xlu0 %3131
      %3133 = vrot.lane.b32.xlu0 %v3056, 127
      %v3134 = vpop.permute.xlu0 %3133
      %3135 = vrot.lane.b32.xlu0 %v3057, 127
      %v3136 = vpop.permute.xlu0 %3135
      %3137 = vrot.lane.b32.xlu0 %v3058, 127
      %v3138 = vpop.permute.xlu0 %3137
      %3139 = vrot.lane.b32.xlu0 %v3059, 127
      %v3140 = vpop.permute.xlu0 %3139
      %3141 = vrot.lane.b32.xlu0 %v3060, 127
      %v3142 = vpop.permute.xlu0 %3141
      %3143 = vrot.lane.b32.xlu0 %v3061, 127
      %v3144 = vpop.permute.xlu0 %3143
      %3145 = vrot.lane.b32.xlu0 %v3062, 127
      %v3146 = vpop.permute.xlu0 %3145
      %3147 = vrot.lane.b32.xlu0 %v3063, 127
      %v3148 = vpop.permute.xlu0 %3147
      %3149 = vrot.lane.b32.xlu0 %v3064, 127
      %v3150 = vpop.permute.xlu0 %3149
      %3151 = vrot.lane.b32.xlu0 %v3065, 127
      %v3152 = vpop.permute.xlu0 %3151
      %3153 = vrot.lane.b32.xlu0 %v3066, 127
      %v3154 = vpop.permute.xlu0 %3153
      %3155 = vrot.lane.b32.xlu0 %v3067, 127
      %v3156 = vpop.permute.xlu0 %3155
      %3157 = vrot.lane.b32.xlu0 %v3068, 127
      %v3158 = vpop.permute.xlu0 %3157
      %3159 = vrot.lane.b32.xlu0 %v3069, 127
      %v3160 = vpop.permute.xlu0 %3159
      %3161 = vrot.lane.b32.xlu0 %v3070, 127
      %v3162 = vpop.permute.xlu0 %3161
      %3163 = vrot.lane.b32.xlu0 %v3071, 127
      %v3164 = vpop.permute.xlu0 %3163
      %v3165 = vsel %vm688, %v3104, %v3106
      %v3166 = vsel %vm688, %v3106, %v3108
      %v3167 = vsel %vm688, %v3108, %v3110
      %v3168 = vsel %vm688, %v3110, %v3112
      %v3169 = vsel %vm688, %v3112, %v3114
      %v3170 = vsel %vm688, %v3114, %v3116
      %v3171 = vsel %vm688, %v3116, %v3118
      %v3172 = vsel %vm688, %v3118, %v3120
      %v3173 = vsel %vm688, %v3120, %v3122
      %v3174 = vsel %vm688, %v3122, %v3124
      %v3175 = vsel %vm688, %v3124, %v3126
      %v3176 = vsel %vm688, %v3126, %v3128
      %v3177 = vsel %vm688, %v3128, %v3130
      %v3178 = vsel %vm688, %v3130, %v3132
      %v3179 = vsel %vm688, %v3132, %v3134
      %v3180 = vsel %vm688, %v3134, %v3136
      %v3181 = vsel %vm688, %v3136, %v3138
      %v3182 = vsel %vm688, %v3138, %v3140
      %v3183 = vsel %vm688, %v3140, %v3142
      %v3184 = vsel %vm688, %v3142, %v3144
      %v3185 = vsel %vm688, %v3144, %v3146
      %v3186 = vsel %vm688, %v3146, %v3148
      %v3187 = vsel %vm688, %v3148, %v3150
      %v3188 = vsel %vm688, %v3150, %v3152
      %v3189 = vsel %vm688, %v3152, %v3154
      %v3190 = vsel %vm688, %v3154, %v3156
      %v3191 = vsel %vm688, %v3156, %v3158
      %v3192 = vsel %vm688, %v3158, %v3160
      %v3193 = vsel %vm688, %v3160, %v3162
      %v3194 = vsel %vm688, %v3162, %v3164
      %v3226 = vmax.f32 %v3041, %v3165
      %v3227 = vmax.f32 %v3042, %v3166
      %v3228 = vmax.f32 %v3043, %v3167
      %v3229 = vmax.f32 %v3044, %v3168
      %v3230 = vmax.f32 %v3045, %v3169
      %v3231 = vmax.f32 %v3046, %v3170
      %v3232 = vmax.f32 %v3047, %v3171
      %v3233 = vmax.f32 %v3048, %v3172
      %v3234 = vmax.f32 %v3049, %v3173
      %v3235 = vmax.f32 %v3050, %v3174
      %v3236 = vmax.f32 %v3051, %v3175
      %v3237 = vmax.f32 %v3052, %v3176
      %v3238 = vmax.f32 %v3053, %v3177
      %v3239 = vmax.f32 %v3054, %v3178
      %v3240 = vmax.f32 %v3055, %v3179
      %v3241 = vmax.f32 %v3056, %v3180
      %v3242 = vmax.f32 %v3057, %v3181
      %v3243 = vmax.f32 %v3058, %v3182
      %v3244 = vmax.f32 %v3059, %v3183
      %v3245 = vmax.f32 %v3060, %v3184
      %v3246 = vmax.f32 %v3061, %v3185
      %v3247 = vmax.f32 %v3062, %v3186
      %v3248 = vmax.f32 %v3063, %v3187
      %v3249 = vmax.f32 %v3064, %v3188
      %v3250 = vmax.f32 %v3065, %v3189
      %v3251 = vmax.f32 %v3066, %v3190
      %v3252 = vmax.f32 %v3067, %v3191
      %v3253 = vmax.f32 %v3068, %v3192
      %v3254 = vmax.f32 %v3069, %v3193
      %v3255 = vmax.f32 %v3070, %v3194
      %v3256 = vmax.f32 %v3071, %v3164
      %3288 = vrot.lane.b32.xlu0 %v3226, 96
      %v3289 = vpop.permute.xlu0 %3288
      %3290 = vrot.lane.b32.xlu0 %v3227, 96
      %v3291 = vpop.permute.xlu0 %3290
      %3292 = vrot.lane.b32.xlu0 %v3228, 96
      %v3293 = vpop.permute.xlu0 %3292
      %3294 = vrot.lane.b32.xlu0 %v3229, 96
      %v3295 = vpop.permute.xlu0 %3294
      %3296 = vrot.lane.b32.xlu0 %v3230, 96
      %v3297 = vpop.permute.xlu0 %3296
      %3298 = vrot.lane.b32.xlu0 %v3231, 96
      %v3299 = vpop.permute.xlu0 %3298
      %3300 = vrot.lane.b32.xlu0 %v3232, 96
      %v3301 = vpop.permute.xlu0 %3300
      %3302 = vrot.lane.b32.xlu0 %v3233, 96
      %v3303 = vpop.permute.xlu0 %3302
      %3304 = vrot.lane.b32.xlu0 %v3234, 96
      %v3305 = vpop.permute.xlu0 %3304
      %3306 = vrot.lane.b32.xlu0 %v3235, 96
      %v3307 = vpop.permute.xlu0 %3306
      %3308 = vrot.lane.b32.xlu0 %v3236, 96
      %v3309 = vpop.permute.xlu0 %3308
      %3310 = vrot.lane.b32.xlu0 %v3237, 96
      %v3311 = vpop.permute.xlu0 %3310
      %3312 = vrot.lane.b32.xlu0 %v3238, 96
      %v3313 = vpop.permute.xlu0 %3312
      %3314 = vrot.lane.b32.xlu0 %v3239, 96
      %v3315 = vpop.permute.xlu0 %3314
      %3316 = vrot.lane.b32.xlu0 %v3240, 96
      %v3317 = vpop.permute.xlu0 %3316
      %3318 = vrot.lane.b32.xlu0 %v3241, 96
      %v3319 = vpop.permute.xlu0 %3318
      %3320 = vrot.lane.b32.xlu0 %v3242, 96
      %v3321 = vpop.permute.xlu0 %3320
      %3322 = vrot.lane.b32.xlu0 %v3243, 96
      %v3323 = vpop.permute.xlu0 %3322
      %3324 = vrot.lane.b32.xlu0 %v3244, 96
      %v3325 = vpop.permute.xlu0 %3324
      %3326 = vrot.lane.b32.xlu0 %v3245, 96
      %v3327 = vpop.permute.xlu0 %3326
      %3328 = vrot.lane.b32.xlu0 %v3246, 96
      %v3329 = vpop.permute.xlu0 %3328
      %3330 = vrot.lane.b32.xlu0 %v3247, 96
      %v3331 = vpop.permute.xlu0 %3330
      %3332 = vrot.lane.b32.xlu0 %v3248, 96
      %v3333 = vpop.permute.xlu0 %3332
      %3334 = vrot.lane.b32.xlu0 %v3249, 96
      %v3335 = vpop.permute.xlu0 %3334
      %3336 = vrot.lane.b32.xlu0 %v3250, 96
      %v3337 = vpop.permute.xlu0 %3336
      %3338 = vrot.lane.b32.xlu0 %v3251, 96
      %v3339 = vpop.permute.xlu0 %3338
      %3340 = vrot.lane.b32.xlu0 %v3252, 96
      %v3341 = vpop.permute.xlu0 %3340
      %3342 = vrot.lane.b32.xlu0 %v3253, 96
      %v3343 = vpop.permute.xlu0 %3342
      %3344 = vrot.lane.b32.xlu0 %v3254, 96
      %v3345 = vpop.permute.xlu0 %3344
      %3346 = vrot.lane.b32.xlu0 %v3255, 96
      %v3347 = vpop.permute.xlu0 %3346
      %3348 = vrot.lane.b32.xlu0 %v3256, 96
      %v3349 = vpop.permute.xlu0 %3348
      %v3350 = vsel %vm942, %v3289, %v3291
      %v3351 = vsel %vm942, %v3291, %v3293
      %v3352 = vsel %vm942, %v3293, %v3295
      %v3353 = vsel %vm942, %v3295, %v3297
      %v3354 = vsel %vm942, %v3297, %v3299
      %v3355 = vsel %vm942, %v3299, %v3301
      %v3356 = vsel %vm942, %v3301, %v3303
      %v3357 = vsel %vm942, %v3303, %v3305
      %v3358 = vsel %vm942, %v3305, %v3307
      %v3359 = vsel %vm942, %v3307, %v3309
      %v3360 = vsel %vm942, %v3309, %v3311
      %v3361 = vsel %vm942, %v3311, %v3313
      %v3362 = vsel %vm942, %v3313, %v3315
      %v3363 = vsel %vm942, %v3315, %v3317
      %v3364 = vsel %vm942, %v3317, %v3319
      %v3365 = vsel %vm942, %v3319, %v3321
      %v3366 = vsel %vm942, %v3321, %v3323
      %v3367 = vsel %vm942, %v3323, %v3325
      %v3368 = vsel %vm942, %v3325, %v3327
      %v3369 = vsel %vm942, %v3327, %v3329
      %v3370 = vsel %vm942, %v3329, %v3331
      %v3371 = vsel %vm942, %v3331, %v3333
      %v3372 = vsel %vm942, %v3333, %v3335
      %v3373 = vsel %vm942, %v3335, %v3337
      %v3374 = vsel %vm942, %v3337, %v3339
      %v3375 = vsel %vm942, %v3339, %v3341
      %v3376 = vsel %vm942, %v3341, %v3343
      %v3377 = vsel %vm942, %v3343, %v3345
      %v3378 = vsel %vm942, %v3345, %v3347
      %v3379 = vsel %vm942, %v3347, %v3349
      %v3411 = vmax.f32 %v3226, %v3350
      %v3412 = vmax.f32 %v3227, %v3351
      %v3413 = vmax.f32 %v3228, %v3352
      %v3414 = vmax.f32 %v3229, %v3353
      %v3415 = vmax.f32 %v3230, %v3354
      %v3416 = vmax.f32 %v3231, %v3355
      %v3417 = vmax.f32 %v3232, %v3356
      %v3418 = vmax.f32 %v3233, %v3357
      %v3419 = vmax.f32 %v3234, %v3358
      %v3420 = vmax.f32 %v3235, %v3359
      %v3421 = vmax.f32 %v3236, %v3360
      %v3422 = vmax.f32 %v3237, %v3361
      %v3423 = vmax.f32 %v3238, %v3362
      %v3424 = vmax.f32 %v3239, %v3363
      %v3425 = vmax.f32 %v3240, %v3364
      %v3426 = vmax.f32 %v3241, %v3365
      %v3427 = vmax.f32 %v3242, %v3366
      %v3428 = vmax.f32 %v3243, %v3367
      %v3429 = vmax.f32 %v3244, %v3368
      %v3430 = vmax.f32 %v3245, %v3369
      %v3431 = vmax.f32 %v3246, %v3370
      %v3432 = vmax.f32 %v3247, %v3371
      %v3433 = vmax.f32 %v3248, %v3372
      %v3434 = vmax.f32 %v3249, %v3373
      %v3435 = vmax.f32 %v3250, %v3374
      %v3436 = vmax.f32 %v3251, %v3375
      %v3437 = vmax.f32 %v3252, %v3376
      %v3438 = vmax.f32 %v3253, %v3377
      %v3439 = vmax.f32 %v3254, %v3378
      %v3440 = vmax.f32 %v3255, %v3379
      %v3441 = vmax.f32 %v3256, %v3349
      %v3472 = vrot.slane %v3411, 2
      %v3473 = vrot.slane %v3412, 2
      %v3474 = vrot.slane %v3413, 2
      %v3475 = vrot.slane %v3414, 2
      %v3476 = vrot.slane %v3415, 2
      %v3477 = vrot.slane %v3416, 2
      %v3478 = vrot.slane %v3417, 2
      %v3479 = vrot.slane %v3418, 2
      %v3480 = vrot.slane %v3419, 2
      %v3481 = vrot.slane %v3420, 2
      %v3482 = vrot.slane %v3421, 2
      %v3483 = vrot.slane %v3422, 2
      %v3484 = vrot.slane %v3423, 2
      %v3485 = vrot.slane %v3424, 2
      %v3486 = vrot.slane %v3425, 2
      %v3487 = vrot.slane %v3426, 2
      %v3488 = vrot.slane %v3427, 2
      %v3489 = vrot.slane %v3428, 2
      %v3490 = vrot.slane %v3429, 2
      %v3491 = vrot.slane %v3430, 2
      %v3492 = vrot.slane %v3431, 2
      %v3493 = vrot.slane %v3432, 2
      %v3494 = vrot.slane %v3433, 2
      %v3495 = vrot.slane %v3434, 2
      %v3496 = vrot.slane %v3435, 2
      %v3497 = vrot.slane %v3436, 2
      %v3498 = vrot.slane %v3437, 2
      %v3499 = vrot.slane %v3438, 2
      %v3500 = vrot.slane %v3439, 2
      %v3501 = vrot.slane %v3440, 2
      %3502 = vrot.lane.b32.xlu0 %v3472, 126
      %v3503 = vpop.permute.xlu0 %3502
      %3504 = vrot.lane.b32.xlu0 %v3473, 126
      %v3505 = vpop.permute.xlu0 %3504
      %3506 = vrot.lane.b32.xlu0 %v3474, 126
      %v3507 = vpop.permute.xlu0 %3506
      %3508 = vrot.lane.b32.xlu0 %v3475, 126
      %v3509 = vpop.permute.xlu0 %3508
      %3510 = vrot.lane.b32.xlu0 %v3476, 126
      %v3511 = vpop.permute.xlu0 %3510
      %3512 = vrot.lane.b32.xlu0 %v3477, 126
      %v3513 = vpop.permute.xlu0 %3512
      %3514 = vrot.lane.b32.xlu0 %v3478, 126
      %v3515 = vpop.permute.xlu0 %3514
      %3516 = vrot.lane.b32.xlu0 %v3479, 126
      %v3517 = vpop.permute.xlu0 %3516
      %3518 = vrot.lane.b32.xlu0 %v3480, 126
      %v3519 = vpop.permute.xlu0 %3518
      %3520 = vrot.lane.b32.xlu0 %v3481, 126
      %v3521 = vpop.permute.xlu0 %3520
      %3522 = vrot.lane.b32.xlu0 %v3482, 126
      %v3523 = vpop.permute.xlu0 %3522
      %3524 = vrot.lane.b32.xlu0 %v3483, 126
      %v3525 = vpop.permute.xlu0 %3524
      %3526 = vrot.lane.b32.xlu0 %v3484, 126
      %v3527 = vpop.permute.xlu0 %3526
      %3528 = vrot.lane.b32.xlu0 %v3485, 126
      %v3529 = vpop.permute.xlu0 %3528
      %3530 = vrot.lane.b32.xlu0 %v3486, 126
      %v3531 = vpop.permute.xlu0 %3530
      %3532 = vrot.lane.b32.xlu0 %v3487, 126
      %v3533 = vpop.permute.xlu0 %3532
      %3534 = vrot.lane.b32.xlu0 %v3488, 126
      %v3535 = vpop.permute.xlu0 %3534
      %3536 = vrot.lane.b32.xlu0 %v3489, 126
      %v3537 = vpop.permute.xlu0 %3536
      %3538 = vrot.lane.b32.xlu0 %v3490, 126
      %v3539 = vpop.permute.xlu0 %3538
      %3540 = vrot.lane.b32.xlu0 %v3491, 126
      %v3541 = vpop.permute.xlu0 %3540
      %3542 = vrot.lane.b32.xlu0 %v3492, 126
      %v3543 = vpop.permute.xlu0 %3542
      %3544 = vrot.lane.b32.xlu0 %v3493, 126
      %v3545 = vpop.permute.xlu0 %3544
      %3546 = vrot.lane.b32.xlu0 %v3494, 126
      %v3547 = vpop.permute.xlu0 %3546
      %3548 = vrot.lane.b32.xlu0 %v3495, 126
      %v3549 = vpop.permute.xlu0 %3548
      %3550 = vrot.lane.b32.xlu0 %v3496, 126
      %v3551 = vpop.permute.xlu0 %3550
      %3552 = vrot.lane.b32.xlu0 %v3497, 126
      %v3553 = vpop.permute.xlu0 %3552
      %3554 = vrot.lane.b32.xlu0 %v3498, 126
      %v3555 = vpop.permute.xlu0 %3554
      %3556 = vrot.lane.b32.xlu0 %v3499, 126
      %v3557 = vpop.permute.xlu0 %3556
      %3558 = vrot.lane.b32.xlu0 %v3500, 126
      %v3559 = vpop.permute.xlu0 %3558
      %3560 = vrot.lane.b32.xlu0 %v3501, 126
      %v3561 = vpop.permute.xlu0 %3560
      %v3562 = vsel %vm812, %v3503, %v3505
      %v3563 = vsel %vm812, %v3505, %v3507
      %v3564 = vsel %vm812, %v3507, %v3509
      %v3565 = vsel %vm812, %v3509, %v3511
      %v3566 = vsel %vm812, %v3511, %v3513
      %v3567 = vsel %vm812, %v3513, %v3515
      %v3568 = vsel %vm812, %v3515, %v3517
      %v3569 = vsel %vm812, %v3517, %v3519
      %v3570 = vsel %vm812, %v3519, %v3521
      %v3571 = vsel %vm812, %v3521, %v3523
      %v3572 = vsel %vm812, %v3523, %v3525
      %v3573 = vsel %vm812, %v3525, %v3527
      %v3574 = vsel %vm812, %v3527, %v3529
      %v3575 = vsel %vm812, %v3529, %v3531
      %v3576 = vsel %vm812, %v3531, %v3533
      %v3577 = vsel %vm812, %v3533, %v3535
      %v3578 = vsel %vm812, %v3535, %v3537
      %v3579 = vsel %vm812, %v3537, %v3539
      %v3580 = vsel %vm812, %v3539, %v3541
      %v3581 = vsel %vm812, %v3541, %v3543
      %v3582 = vsel %vm812, %v3543, %v3545
      %v3583 = vsel %vm812, %v3545, %v3547
      %v3584 = vsel %vm812, %v3547, %v3549
      %v3585 = vsel %vm812, %v3549, %v3551
      %v3586 = vsel %vm812, %v3551, %v3553
      %v3587 = vsel %vm812, %v3553, %v3555
      %v3588 = vsel %vm812, %v3555, %v3557
      %v3589 = vsel %vm812, %v3557, %v3559
      %v3590 = vsel %vm812, %v3559, %v3561
      %v3621 = vrot.slane %v3411, 4
      %v3622 = vrot.slane %v3412, 4
      %v3623 = vrot.slane %v3413, 4
      %v3624 = vrot.slane %v3414, 4
      %v3625 = vrot.slane %v3415, 4
      %v3626 = vrot.slane %v3416, 4
      %v3627 = vrot.slane %v3417, 4
      %v3628 = vrot.slane %v3418, 4
      %v3629 = vrot.slane %v3419, 4
      %v3630 = vrot.slane %v3420, 4
      %v3631 = vrot.slane %v3421, 4
      %v3632 = vrot.slane %v3422, 4
      %v3633 = vrot.slane %v3423, 4
      %v3634 = vrot.slane %v3424, 4
      %v3635 = vrot.slane %v3425, 4
      %v3636 = vrot.slane %v3426, 4
      %v3637 = vrot.slane %v3427, 4
      %v3638 = vrot.slane %v3428, 4
      %v3639 = vrot.slane %v3429, 4
      %v3640 = vrot.slane %v3430, 4
      %v3641 = vrot.slane %v3431, 4
      %v3642 = vrot.slane %v3432, 4
      %v3643 = vrot.slane %v3433, 4
      %v3644 = vrot.slane %v3434, 4
      %v3645 = vrot.slane %v3435, 4
      %v3646 = vrot.slane %v3436, 4
      %v3647 = vrot.slane %v3437, 4
      %v3648 = vrot.slane %v3438, 4
      %v3649 = vrot.slane %v3439, 4
      %v3650 = vrot.slane %v3440, 4
      %3651 = vrot.lane.b32.xlu0 %v3621, 124
      %v3652 = vpop.permute.xlu0 %3651
      %3653 = vrot.lane.b32.xlu0 %v3622, 124
      %v3654 = vpop.permute.xlu0 %3653
      %3655 = vrot.lane.b32.xlu0 %v3623, 124
      %v3656 = vpop.permute.xlu0 %3655
      %3657 = vrot.lane.b32.xlu0 %v3624, 124
      %v3658 = vpop.permute.xlu0 %3657
      %3659 = vrot.lane.b32.xlu0 %v3625, 124
      %v3660 = vpop.permute.xlu0 %3659
      %3661 = vrot.lane.b32.xlu0 %v3626, 124
      %v3662 = vpop.permute.xlu0 %3661
      %3663 = vrot.lane.b32.xlu0 %v3627, 124
      %v3664 = vpop.permute.xlu0 %3663
      %3665 = vrot.lane.b32.xlu0 %v3628, 124
      %v3666 = vpop.permute.xlu0 %3665
      %3667 = vrot.lane.b32.xlu0 %v3629, 124
      %v3668 = vpop.permute.xlu0 %3667
      %3669 = vrot.lane.b32.xlu0 %v3630, 124
      %v3670 = vpop.permute.xlu0 %3669
      %3671 = vrot.lane.b32.xlu0 %v3631, 124
      %v3672 = vpop.permute.xlu0 %3671
      %3673 = vrot.lane.b32.xlu0 %v3632, 124
      %v3674 = vpop.permute.xlu0 %3673
      %3675 = vrot.lane.b32.xlu0 %v3633, 124
      %v3676 = vpop.permute.xlu0 %3675
      %3677 = vrot.lane.b32.xlu0 %v3634, 124
      %v3678 = vpop.permute.xlu0 %3677
      %3679 = vrot.lane.b32.xlu0 %v3635, 124
      %v3680 = vpop.permute.xlu0 %3679
      %3681 = vrot.lane.b32.xlu0 %v3636, 124
      %v3682 = vpop.permute.xlu0 %3681
      %3683 = vrot.lane.b32.xlu0 %v3637, 124
      %v3684 = vpop.permute.xlu0 %3683
      %3685 = vrot.lane.b32.xlu0 %v3638, 124
      %v3686 = vpop.permute.xlu0 %3685
      %3687 = vrot.lane.b32.xlu0 %v3639, 124
      %v3688 = vpop.permute.xlu0 %3687
      %3689 = vrot.lane.b32.xlu0 %v3640, 124
      %v3690 = vpop.permute.xlu0 %3689
      %3691 = vrot.lane.b32.xlu0 %v3641, 124
      %v3692 = vpop.permute.xlu0 %3691
      %3693 = vrot.lane.b32.xlu0 %v3642, 124
      %v3694 = vpop.permute.xlu0 %3693
      %3695 = vrot.lane.b32.xlu0 %v3643, 124
      %v3696 = vpop.permute.xlu0 %3695
      %3697 = vrot.lane.b32.xlu0 %v3644, 124
      %v3698 = vpop.permute.xlu0 %3697
      %3699 = vrot.lane.b32.xlu0 %v3645, 124
      %v3700 = vpop.permute.xlu0 %3699
      %3701 = vrot.lane.b32.xlu0 %v3646, 124
      %v3702 = vpop.permute.xlu0 %3701
      %3703 = vrot.lane.b32.xlu0 %v3647, 124
      %v3704 = vpop.permute.xlu0 %3703
      %3705 = vrot.lane.b32.xlu0 %v3648, 124
      %v3706 = vpop.permute.xlu0 %3705
      %3707 = vrot.lane.b32.xlu0 %v3649, 124
      %v3708 = vpop.permute.xlu0 %3707
      %3709 = vrot.lane.b32.xlu0 %v3650, 124
      %v3710 = vpop.permute.xlu0 %3709
      %vm3711 = vcmask 1014784
      %v3712 = vsel %vm3711, %v3652, %v3654
      %v3713 = vsel %vm3711, %v3654, %v3656
      %v3714 = vsel %vm3711, %v3656, %v3658
      %v3715 = vsel %vm3711, %v3658, %v3660
      %v3716 = vsel %vm3711, %v3660, %v3662
      %v3717 = vsel %vm3711, %v3662, %v3664
      %v3718 = vsel %vm3711, %v3664, %v3666
      %v3719 = vsel %vm3711, %v3666, %v3668
      %v3720 = vsel %vm3711, %v3668, %v3670
      %v3721 = vsel %vm3711, %v3670, %v3672
      %v3722 = vsel %vm3711, %v3672, %v3674
      %v3723 = vsel %vm3711, %v3674, %v3676
      %v3724 = vsel %vm3711, %v3676, %v3678
      %v3725 = vsel %vm3711, %v3678, %v3680
      %v3726 = vsel %vm3711, %v3680, %v3682
      %v3727 = vsel %vm3711, %v3682, %v3684
      %v3728 = vsel %vm3711, %v3684, %v3686
      %v3729 = vsel %vm3711, %v3686, %v3688
      %v3730 = vsel %vm3711, %v3688, %v3690
      %v3731 = vsel %vm3711, %v3690, %v3692
      %v3732 = vsel %vm3711, %v3692, %v3694
      %v3733 = vsel %vm3711, %v3694, %v3696
      %v3734 = vsel %vm3711, %v3696, %v3698
      %v3735 = vsel %vm3711, %v3698, %v3700
      %v3736 = vsel %vm3711, %v3700, %v3702
      %v3737 = vsel %vm3711, %v3702, %v3704
      %v3738 = vsel %vm3711, %v3704, %v3706
      %v3739 = vsel %vm3711, %v3706, %v3708
      %v3740 = vsel %vm3711, %v3708, %v3710
      %v3772 = vrot.slane %v3411, 6
      %v3773 = vrot.slane %v3412, 6
      %v3774 = vrot.slane %v3413, 6
      %v3775 = vrot.slane %v3414, 6
      %v3776 = vrot.slane %v3415, 6
      %v3777 = vrot.slane %v3416, 6
      %v3778 = vrot.slane %v3417, 6
      %v3779 = vrot.slane %v3418, 6
      %v3780 = vrot.slane %v3419, 6
      %v3781 = vrot.slane %v3420, 6
      %v3782 = vrot.slane %v3421, 6
      %v3783 = vrot.slane %v3422, 6
      %v3784 = vrot.slane %v3423, 6
      %v3785 = vrot.slane %v3424, 6
      %v3786 = vrot.slane %v3425, 6
      %v3787 = vrot.slane %v3426, 6
      %v3788 = vrot.slane %v3427, 6
      %v3789 = vrot.slane %v3428, 6
      %v3790 = vrot.slane %v3429, 6
      %v3791 = vrot.slane %v3430, 6
      %v3792 = vrot.slane %v3431, 6
      %v3793 = vrot.slane %v3432, 6
      %v3794 = vrot.slane %v3433, 6
      %v3795 = vrot.slane %v3434, 6
      %v3796 = vrot.slane %v3435, 6
      %v3797 = vrot.slane %v3436, 6
      %v3798 = vrot.slane %v3437, 6
      %v3799 = vrot.slane %v3438, 6
      %v3800 = vrot.slane %v3439, 6
      %v3801 = vrot.slane %v3440, 6
      %v3802 = vrot.slane %v3441, 6
      %3803 = vrot.lane.b32.xlu0 %v3772, 64
      %v3804 = vpop.permute.xlu0 %3803
      %3805 = vrot.lane.b32.xlu0 %v3773, 64
      %v3806 = vpop.permute.xlu0 %3805
      %3807 = vrot.lane.b32.xlu0 %v3774, 64
      %v3808 = vpop.permute.xlu0 %3807
      %3809 = vrot.lane.b32.xlu0 %v3775, 64
      %v3810 = vpop.permute.xlu0 %3809
      %3811 = vrot.lane.b32.xlu0 %v3776, 64
      %v3812 = vpop.permute.xlu0 %3811
      %3813 = vrot.lane.b32.xlu0 %v3777, 64
      %v3814 = vpop.permute.xlu0 %3813
      %3815 = vrot.lane.b32.xlu0 %v3778, 64
      %v3816 = vpop.permute.xlu0 %3815
      %3817 = vrot.lane.b32.xlu0 %v3779, 64
      %v3818 = vpop.permute.xlu0 %3817
      %3819 = vrot.lane.b32.xlu0 %v3780, 64
      %v3820 = vpop.permute.xlu0 %3819
      %3821 = vrot.lane.b32.xlu0 %v3781, 64
      %v3822 = vpop.permute.xlu0 %3821
      %3823 = vrot.lane.b32.xlu0 %v3782, 64
      %v3824 = vpop.permute.xlu0 %3823
      %3825 = vrot.lane.b32.xlu0 %v3783, 64
      %v3826 = vpop.permute.xlu0 %3825
      %3827 = vrot.lane.b32.xlu0 %v3784, 64
      %v3828 = vpop.permute.xlu0 %3827
      %3829 = vrot.lane.b32.xlu0 %v3785, 64
      %v3830 = vpop.permute.xlu0 %3829
      %3831 = vrot.lane.b32.xlu0 %v3786, 64
      %v3832 = vpop.permute.xlu0 %3831
      %3833 = vrot.lane.b32.xlu0 %v3787, 64
      %v3834 = vpop.permute.xlu0 %3833
      %3835 = vrot.lane.b32.xlu0 %v3788, 64
      %v3836 = vpop.permute.xlu0 %3835
      %3837 = vrot.lane.b32.xlu0 %v3789, 64
      %v3838 = vpop.permute.xlu0 %3837
      %3839 = vrot.lane.b32.xlu0 %v3790, 64
      %v3840 = vpop.permute.xlu0 %3839
      %3841 = vrot.lane.b32.xlu0 %v3791, 64
      %v3842 = vpop.permute.xlu0 %3841
      %3843 = vrot.lane.b32.xlu0 %v3792, 64
      %v3844 = vpop.permute.xlu0 %3843
      %3845 = vrot.lane.b32.xlu0 %v3793, 64
      %v3846 = vpop.permute.xlu0 %3845
      %3847 = vrot.lane.b32.xlu0 %v3794, 64
      %v3848 = vpop.permute.xlu0 %3847
      %3849 = vrot.lane.b32.xlu0 %v3795, 64
      %v3850 = vpop.permute.xlu0 %3849
      %3851 = vrot.lane.b32.xlu0 %v3796, 64
      %v3852 = vpop.permute.xlu0 %3851
      %3853 = vrot.lane.b32.xlu0 %v3797, 64
      %v3854 = vpop.permute.xlu0 %3853
      %3855 = vrot.lane.b32.xlu0 %v3798, 64
      %v3856 = vpop.permute.xlu0 %3855
      %3857 = vrot.lane.b32.xlu0 %v3799, 64
      %v3858 = vpop.permute.xlu0 %3857
      %3859 = vrot.lane.b32.xlu0 %v3800, 64
      %v3860 = vpop.permute.xlu0 %3859
      %3861 = vrot.lane.b32.xlu0 %v3801, 64
      %v3862 = vpop.permute.xlu0 %3861
      %3863 = vrot.lane.b32.xlu0 %v3802, 64
      %v3864 = vpop.permute.xlu0 %3863
      %v3865 = vsel %vm1323, %v3804, %v3806
      %v3866 = vsel %vm1323, %v3806, %v3808
      %v3867 = vsel %vm1323, %v3808, %v3810
      %v3868 = vsel %vm1323, %v3810, %v3812
      %v3869 = vsel %vm1323, %v3812, %v3814
      %v3870 = vsel %vm1323, %v3814, %v3816
      %v3871 = vsel %vm1323, %v3816, %v3818
      %v3872 = vsel %vm1323, %v3818, %v3820
      %v3873 = vsel %vm1323, %v3820, %v3822
      %v3874 = vsel %vm1323, %v3822, %v3824
      %v3875 = vsel %vm1323, %v3824, %v3826
      %v3876 = vsel %vm1323, %v3826, %v3828
      %v3877 = vsel %vm1323, %v3828, %v3830
      %v3878 = vsel %vm1323, %v3830, %v3832
      %v3879 = vsel %vm1323, %v3832, %v3834
      %v3880 = vsel %vm1323, %v3834, %v3836
      %v3881 = vsel %vm1323, %v3836, %v3838
      %v3882 = vsel %vm1323, %v3838, %v3840
      %v3883 = vsel %vm1323, %v3840, %v3842
      %v3884 = vsel %vm1323, %v3842, %v3844
      %v3885 = vsel %vm1323, %v3844, %v3846
      %v3886 = vsel %vm1323, %v3846, %v3848
      %v3887 = vsel %vm1323, %v3848, %v3850
      %v3888 = vsel %vm1323, %v3850, %v3852
      %v3889 = vsel %vm1323, %v3852, %v3854
      %v3890 = vsel %vm1323, %v3854, %v3856
      %v3891 = vsel %vm1323, %v3856, %v3858
      %v3892 = vsel %vm1323, %v3858, %v3860
      %v3893 = vsel %vm1323, %v3860, %v3862
      %v3894 = vsel %vm1323, %v3862, %v3864
      %3925 = vrot.lane.b32.xlu0 %v3411, 62
      %v3926 = vpop.permute.xlu0 %3925
      %3927 = vrot.lane.b32.xlu0 %v3412, 62
      %v3928 = vpop.permute.xlu0 %3927
      %3929 = vrot.lane.b32.xlu0 %v3413, 62
      %v3930 = vpop.permute.xlu0 %3929
      %3931 = vrot.lane.b32.xlu0 %v3414, 62
      %v3932 = vpop.permute.xlu0 %3931
      %3933 = vrot.lane.b32.xlu0 %v3415, 62
      %v3934 = vpop.permute.xlu0 %3933
      %3935 = vrot.lane.b32.xlu0 %v3416, 62
      %v3936 = vpop.permute.xlu0 %3935
      %3937 = vrot.lane.b32.xlu0 %v3417, 62
      %v3938 = vpop.permute.xlu0 %3937
      %3939 = vrot.lane.b32.xlu0 %v3418, 62
      %v3940 = vpop.permute.xlu0 %3939
      %3941 = vrot.lane.b32.xlu0 %v3419, 62
      %v3942 = vpop.permute.xlu0 %3941
      %3943 = vrot.lane.b32.xlu0 %v3420, 62
      %v3944 = vpop.permute.xlu0 %3943
      %3945 = vrot.lane.b32.xlu0 %v3421, 62
      %v3946 = vpop.permute.xlu0 %3945
      %3947 = vrot.lane.b32.xlu0 %v3422, 62
      %v3948 = vpop.permute.xlu0 %3947
      %3949 = vrot.lane.b32.xlu0 %v3423, 62
      %v3950 = vpop.permute.xlu0 %3949
      %3951 = vrot.lane.b32.xlu0 %v3424, 62
      %v3952 = vpop.permute.xlu0 %3951
      %3953 = vrot.lane.b32.xlu0 %v3425, 62
      %v3954 = vpop.permute.xlu0 %3953
      %3955 = vrot.lane.b32.xlu0 %v3426, 62
      %v3956 = vpop.permute.xlu0 %3955
      %3957 = vrot.lane.b32.xlu0 %v3427, 62
      %v3958 = vpop.permute.xlu0 %3957
      %3959 = vrot.lane.b32.xlu0 %v3428, 62
      %v3960 = vpop.permute.xlu0 %3959
      %3961 = vrot.lane.b32.xlu0 %v3429, 62
      %v3962 = vpop.permute.xlu0 %3961
      %3963 = vrot.lane.b32.xlu0 %v3430, 62
      %v3964 = vpop.permute.xlu0 %3963
      %3965 = vrot.lane.b32.xlu0 %v3431, 62
      %v3966 = vpop.permute.xlu0 %3965
      %3967 = vrot.lane.b32.xlu0 %v3432, 62
      %v3968 = vpop.permute.xlu0 %3967
      %3969 = vrot.lane.b32.xlu0 %v3433, 62
      %v3970 = vpop.permute.xlu0 %3969
      %3971 = vrot.lane.b32.xlu0 %v3434, 62
      %v3972 = vpop.permute.xlu0 %3971
      %3973 = vrot.lane.b32.xlu0 %v3435, 62
      %v3974 = vpop.permute.xlu0 %3973
      %3975 = vrot.lane.b32.xlu0 %v3436, 62
      %v3976 = vpop.permute.xlu0 %3975
      %3977 = vrot.lane.b32.xlu0 %v3437, 62
      %v3978 = vpop.permute.xlu0 %3977
      %3979 = vrot.lane.b32.xlu0 %v3438, 62
      %v3980 = vpop.permute.xlu0 %3979
      %3981 = vrot.lane.b32.xlu0 %v3439, 62
      %v3982 = vpop.permute.xlu0 %3981
      %3983 = vrot.lane.b32.xlu0 %v3440, 62
      %v3984 = vpop.permute.xlu0 %3983
      %3985 = vrot.lane.b32.xlu0 %v3441, 62
      %v3986 = vpop.permute.xlu0 %3985
      %v3987 = vsel %vm1577, %v3926, %v3928
      %v3988 = vsel %vm1577, %v3928, %v3930
      %v3989 = vsel %vm1577, %v3930, %v3932
      %v3990 = vsel %vm1577, %v3932, %v3934
      %v3991 = vsel %vm1577, %v3934, %v3936
      %v3992 = vsel %vm1577, %v3936, %v3938
      %v3993 = vsel %vm1577, %v3938, %v3940
      %v3994 = vsel %vm1577, %v3940, %v3942
      %v3995 = vsel %vm1577, %v3942, %v3944
      %v3996 = vsel %vm1577, %v3944, %v3946
      %v3997 = vsel %vm1577, %v3946, %v3948
      %v3998 = vsel %vm1577, %v3948, %v3950
      %v3999 = vsel %vm1577, %v3950, %v3952
      %v4000 = vsel %vm1577, %v3952, %v3954
      %v4001 = vsel %vm1577, %v3954, %v3956
      %v4002 = vsel %vm1577, %v3956, %v3958
      %v4003 = vsel %vm1577, %v3958, %v3960
      %v4004 = vsel %vm1577, %v3960, %v3962
      %v4005 = vsel %vm1577, %v3962, %v3964
      %v4006 = vsel %vm1577, %v3964, %v3966
      %v4007 = vsel %vm1577, %v3966, %v3968
      %v4008 = vsel %vm1577, %v3968, %v3970
      %v4009 = vsel %vm1577, %v3970, %v3972
      %v4010 = vsel %vm1577, %v3972, %v3974
      %v4011 = vsel %vm1577, %v3974, %v3976
      %v4012 = vsel %vm1577, %v3976, %v3978
      %v4013 = vsel %vm1577, %v3978, %v3980
      %v4014 = vsel %vm1577, %v3980, %v3982
      %v4015 = vsel %vm1577, %v3982, %v3984
      %v4016 = vsel %vm1577, %v3984, %v3986
      %v4047 = vrot.slane %v3441, 2
      %4048 = vrot.lane.b32.xlu0 %v3472, 60
      %v4049 = vpop.permute.xlu0 %4048
      %4050 = vrot.lane.b32.xlu0 %v3473, 60
      %v4051 = vpop.permute.xlu0 %4050
      %4052 = vrot.lane.b32.xlu0 %v3474, 60
      %v4053 = vpop.permute.xlu0 %4052
      %4054 = vrot.lane.b32.xlu0 %v3475, 60
      %v4055 = vpop.permute.xlu0 %4054
      %4056 = vrot.lane.b32.xlu0 %v3476, 60
      %v4057 = vpop.permute.xlu0 %4056
      %4058 = vrot.lane.b32.xlu0 %v3477, 60
      %v4059 = vpop.permute.xlu0 %4058
      %4060 = vrot.lane.b32.xlu0 %v3478, 60
      %v4061 = vpop.permute.xlu0 %4060
      %4062 = vrot.lane.b32.xlu0 %v3479, 60
      %v4063 = vpop.permute.xlu0 %4062
      %4064 = vrot.lane.b32.xlu0 %v3480, 60
      %v4065 = vpop.permute.xlu0 %4064
      %4066 = vrot.lane.b32.xlu0 %v3481, 60
      %v4067 = vpop.permute.xlu0 %4066
      %4068 = vrot.lane.b32.xlu0 %v3482, 60
      %v4069 = vpop.permute.xlu0 %4068
      %4070 = vrot.lane.b32.xlu0 %v3483, 60
      %v4071 = vpop.permute.xlu0 %4070
      %4072 = vrot.lane.b32.xlu0 %v3484, 60
      %v4073 = vpop.permute.xlu0 %4072
      %4074 = vrot.lane.b32.xlu0 %v3485, 60
      %v4075 = vpop.permute.xlu0 %4074
      %4076 = vrot.lane.b32.xlu0 %v3486, 60
      %v4077 = vpop.permute.xlu0 %4076
      %4078 = vrot.lane.b32.xlu0 %v3487, 60
      %v4079 = vpop.permute.xlu0 %4078
      %4080 = vrot.lane.b32.xlu0 %v3488, 60
      %v4081 = vpop.permute.xlu0 %4080
      %4082 = vrot.lane.b32.xlu0 %v3489, 60
      %v4083 = vpop.permute.xlu0 %4082
      %4084 = vrot.lane.b32.xlu0 %v3490, 60
      %v4085 = vpop.permute.xlu0 %4084
      %4086 = vrot.lane.b32.xlu0 %v3491, 60
      %v4087 = vpop.permute.xlu0 %4086
      %4088 = vrot.lane.b32.xlu0 %v3492, 60
      %v4089 = vpop.permute.xlu0 %4088
      %4090 = vrot.lane.b32.xlu0 %v3493, 60
      %v4091 = vpop.permute.xlu0 %4090
      %4092 = vrot.lane.b32.xlu0 %v3494, 60
      %v4093 = vpop.permute.xlu0 %4092
      %4094 = vrot.lane.b32.xlu0 %v3495, 60
      %v4095 = vpop.permute.xlu0 %4094
      %4096 = vrot.lane.b32.xlu0 %v3496, 60
      %v4097 = vpop.permute.xlu0 %4096
      %4098 = vrot.lane.b32.xlu0 %v3497, 60
      %v4099 = vpop.permute.xlu0 %4098
      %4100 = vrot.lane.b32.xlu0 %v3498, 60
      %v4101 = vpop.permute.xlu0 %4100
      %4102 = vrot.lane.b32.xlu0 %v3499, 60
      %v4103 = vpop.permute.xlu0 %4102
      %4104 = vrot.lane.b32.xlu0 %v3500, 60
      %v4105 = vpop.permute.xlu0 %4104
      %4106 = vrot.lane.b32.xlu0 %v3501, 60
      %v4107 = vpop.permute.xlu0 %4106
      %4108 = vrot.lane.b32.xlu0 %v4047, 60
      %v4109 = vpop.permute.xlu0 %4108
      %vm4110 = vcmask 490496
      %v4111 = vsel %vm4110, %v4049, %v4051
      %v4112 = vsel %vm4110, %v4051, %v4053
      %v4113 = vsel %vm4110, %v4053, %v4055
      %v4114 = vsel %vm4110, %v4055, %v4057
      %v4115 = vsel %vm4110, %v4057, %v4059
      %v4116 = vsel %vm4110, %v4059, %v4061
      %v4117 = vsel %vm4110, %v4061, %v4063
      %v4118 = vsel %vm4110, %v4063, %v4065
      %v4119 = vsel %vm4110, %v4065, %v4067
      %v4120 = vsel %vm4110, %v4067, %v4069
      %v4121 = vsel %vm4110, %v4069, %v4071
      %v4122 = vsel %vm4110, %v4071, %v4073
      %v4123 = vsel %vm4110, %v4073, %v4075
      %v4124 = vsel %vm4110, %v4075, %v4077
      %v4125 = vsel %vm4110, %v4077, %v4079
      %v4126 = vsel %vm4110, %v4079, %v4081
      %v4127 = vsel %vm4110, %v4081, %v4083
      %v4128 = vsel %vm4110, %v4083, %v4085
      %v4129 = vsel %vm4110, %v4085, %v4087
      %v4130 = vsel %vm4110, %v4087, %v4089
      %v4131 = vsel %vm4110, %v4089, %v4091
      %v4132 = vsel %vm4110, %v4091, %v4093
      %v4133 = vsel %vm4110, %v4093, %v4095
      %v4134 = vsel %vm4110, %v4095, %v4097
      %v4135 = vsel %vm4110, %v4097, %v4099
      %v4136 = vsel %vm4110, %v4099, %v4101
      %v4137 = vsel %vm4110, %v4101, %v4103
      %v4138 = vsel %vm4110, %v4103, %v4105
      %v4139 = vsel %vm4110, %v4105, %v4107
      %v4140 = vsel %vm4110, %v4107, %v4109
      %v4171 = vrot.slane %v3441, 4
      %4202 = vrot.lane.b32.xlu0 %v3773, 126
      %v4203 = vpop.permute.xlu0 %4202
      %4204 = vrot.lane.b32.xlu0 %v3774, 126
      %v4205 = vpop.permute.xlu0 %4204
      %4206 = vrot.lane.b32.xlu0 %v3775, 126
      %v4207 = vpop.permute.xlu0 %4206
      %4208 = vrot.lane.b32.xlu0 %v3776, 126
      %v4209 = vpop.permute.xlu0 %4208
      %4210 = vrot.lane.b32.xlu0 %v3777, 126
      %v4211 = vpop.permute.xlu0 %4210
      %4212 = vrot.lane.b32.xlu0 %v3778, 126
      %v4213 = vpop.permute.xlu0 %4212
      %4214 = vrot.lane.b32.xlu0 %v3779, 126
      %v4215 = vpop.permute.xlu0 %4214
      %4216 = vrot.lane.b32.xlu0 %v3780, 126
      %v4217 = vpop.permute.xlu0 %4216
      %4218 = vrot.lane.b32.xlu0 %v3781, 126
      %v4219 = vpop.permute.xlu0 %4218
      %4220 = vrot.lane.b32.xlu0 %v3782, 126
      %v4221 = vpop.permute.xlu0 %4220
      %4222 = vrot.lane.b32.xlu0 %v3783, 126
      %v4223 = vpop.permute.xlu0 %4222
      %4224 = vrot.lane.b32.xlu0 %v3784, 126
      %v4225 = vpop.permute.xlu0 %4224
      %4226 = vrot.lane.b32.xlu0 %v3785, 126
      %v4227 = vpop.permute.xlu0 %4226
      %4228 = vrot.lane.b32.xlu0 %v3786, 126
      %v4229 = vpop.permute.xlu0 %4228
      %4230 = vrot.lane.b32.xlu0 %v3787, 126
      %v4231 = vpop.permute.xlu0 %4230
      %4232 = vrot.lane.b32.xlu0 %v3788, 126
      %v4233 = vpop.permute.xlu0 %4232
      %4234 = vrot.lane.b32.xlu0 %v3789, 126
      %v4235 = vpop.permute.xlu0 %4234
      %4236 = vrot.lane.b32.xlu0 %v3790, 126
      %v4237 = vpop.permute.xlu0 %4236
      %4238 = vrot.lane.b32.xlu0 %v3791, 126
      %v4239 = vpop.permute.xlu0 %4238
      %4240 = vrot.lane.b32.xlu0 %v3792, 126
      %v4241 = vpop.permute.xlu0 %4240
      %4242 = vrot.lane.b32.xlu0 %v3793, 126
      %v4243 = vpop.permute.xlu0 %4242
      %4244 = vrot.lane.b32.xlu0 %v3794, 126
      %v4245 = vpop.permute.xlu0 %4244
      %4246 = vrot.lane.b32.xlu0 %v3795, 126
      %v4247 = vpop.permute.xlu0 %4246
      %4248 = vrot.lane.b32.xlu0 %v3796, 126
      %v4249 = vpop.permute.xlu0 %4248
      %4250 = vrot.lane.b32.xlu0 %v3797, 126
      %v4251 = vpop.permute.xlu0 %4250
      %4252 = vrot.lane.b32.xlu0 %v3798, 126
      %v4253 = vpop.permute.xlu0 %4252
      %4254 = vrot.lane.b32.xlu0 %v3799, 126
      %v4255 = vpop.permute.xlu0 %4254
      %4256 = vrot.lane.b32.xlu0 %v3800, 126
      %v4257 = vpop.permute.xlu0 %4256
      %4258 = vrot.lane.b32.xlu0 %v3801, 126
      %v4259 = vpop.permute.xlu0 %4258
      %4260 = vrot.lane.b32.xlu0 %v3802, 126
      %v4261 = vpop.permute.xlu0 %4260
      %v4262 = vsel %vm812, %v4203, %v4205
      %v4263 = vsel %vm812, %v4205, %v4207
      %v4264 = vsel %vm812, %v4207, %v4209
      %v4265 = vsel %vm812, %v4209, %v4211
      %v4266 = vsel %vm812, %v4211, %v4213
      %v4267 = vsel %vm812, %v4213, %v4215
      %v4268 = vsel %vm812, %v4215, %v4217
      %v4269 = vsel %vm812, %v4217, %v4219
      %v4270 = vsel %vm812, %v4219, %v4221
      %v4271 = vsel %vm812, %v4221, %v4223
      %v4272 = vsel %vm812, %v4223, %v4225
      %v4273 = vsel %vm812, %v4225, %v4227
      %v4274 = vsel %vm812, %v4227, %v4229
      %v4275 = vsel %vm812, %v4229, %v4231
      %v4276 = vsel %vm812, %v4231, %v4233
      %v4277 = vsel %vm812, %v4233, %v4235
      %v4278 = vsel %vm812, %v4235, %v4237
      %v4279 = vsel %vm812, %v4237, %v4239
      %v4280 = vsel %vm812, %v4239, %v4241
      %v4281 = vsel %vm812, %v4241, %v4243
      %v4282 = vsel %vm812, %v4243, %v4245
      %v4283 = vsel %vm812, %v4245, %v4247
      %v4284 = vsel %vm812, %v4247, %v4249
      %v4285 = vsel %vm812, %v4249, %v4251
      %v4286 = vsel %vm812, %v4251, %v4253
      %v4287 = vsel %vm812, %v4253, %v4255
      %v4288 = vsel %vm812, %v4255, %v4257
      %v4289 = vsel %vm812, %v4257, %v4259
      %v4290 = vsel %vm812, %v4259, %v4261
      %4321 = vrot.lane.b32.xlu0 %v3412, 124
      %v4322 = vpop.permute.xlu0 %4321
      %4323 = vrot.lane.b32.xlu0 %v3413, 124
      %v4324 = vpop.permute.xlu0 %4323
      %4325 = vrot.lane.b32.xlu0 %v3414, 124
      %v4326 = vpop.permute.xlu0 %4325
      %4327 = vrot.lane.b32.xlu0 %v3415, 124
      %v4328 = vpop.permute.xlu0 %4327
      %4329 = vrot.lane.b32.xlu0 %v3416, 124
      %v4330 = vpop.permute.xlu0 %4329
      %4331 = vrot.lane.b32.xlu0 %v3417, 124
      %v4332 = vpop.permute.xlu0 %4331
      %4333 = vrot.lane.b32.xlu0 %v3418, 124
      %v4334 = vpop.permute.xlu0 %4333
      %4335 = vrot.lane.b32.xlu0 %v3419, 124
      %v4336 = vpop.permute.xlu0 %4335
      %4337 = vrot.lane.b32.xlu0 %v3420, 124
      %v4338 = vpop.permute.xlu0 %4337
      %4339 = vrot.lane.b32.xlu0 %v3421, 124
      %v4340 = vpop.permute.xlu0 %4339
      %4341 = vrot.lane.b32.xlu0 %v3422, 124
      %v4342 = vpop.permute.xlu0 %4341
      %4343 = vrot.lane.b32.xlu0 %v3423, 124
      %v4344 = vpop.permute.xlu0 %4343
      %4345 = vrot.lane.b32.xlu0 %v3424, 124
      %v4346 = vpop.permute.xlu0 %4345
      %4347 = vrot.lane.b32.xlu0 %v3425, 124
      %v4348 = vpop.permute.xlu0 %4347
      %4349 = vrot.lane.b32.xlu0 %v3426, 124
      %v4350 = vpop.permute.xlu0 %4349
      %4351 = vrot.lane.b32.xlu0 %v3427, 124
      %v4352 = vpop.permute.xlu0 %4351
      %4353 = vrot.lane.b32.xlu0 %v3428, 124
      %v4354 = vpop.permute.xlu0 %4353
      %4355 = vrot.lane.b32.xlu0 %v3429, 124
      %v4356 = vpop.permute.xlu0 %4355
      %4357 = vrot.lane.b32.xlu0 %v3430, 124
      %v4358 = vpop.permute.xlu0 %4357
      %4359 = vrot.lane.b32.xlu0 %v3431, 124
      %v4360 = vpop.permute.xlu0 %4359
      %4361 = vrot.lane.b32.xlu0 %v3432, 124
      %v4362 = vpop.permute.xlu0 %4361
      %4363 = vrot.lane.b32.xlu0 %v3433, 124
      %v4364 = vpop.permute.xlu0 %4363
      %4365 = vrot.lane.b32.xlu0 %v3434, 124
      %v4366 = vpop.permute.xlu0 %4365
      %4367 = vrot.lane.b32.xlu0 %v3435, 124
      %v4368 = vpop.permute.xlu0 %4367
      %4369 = vrot.lane.b32.xlu0 %v3436, 124
      %v4370 = vpop.permute.xlu0 %4369
      %4371 = vrot.lane.b32.xlu0 %v3437, 124
      %v4372 = vpop.permute.xlu0 %4371
      %4373 = vrot.lane.b32.xlu0 %v3438, 124
      %v4374 = vpop.permute.xlu0 %4373
      %4375 = vrot.lane.b32.xlu0 %v3439, 124
      %v4376 = vpop.permute.xlu0 %4375
      %4377 = vrot.lane.b32.xlu0 %v3440, 124
      %v4378 = vpop.permute.xlu0 %4377
      %4379 = vrot.lane.b32.xlu0 %v3441, 124
      %v4380 = vpop.permute.xlu0 %4379
      %v4381 = vsel %vm3711, %v4322, %v4324
      %v4382 = vsel %vm3711, %v4324, %v4326
      %v4383 = vsel %vm3711, %v4326, %v4328
      %v4384 = vsel %vm3711, %v4328, %v4330
      %v4385 = vsel %vm3711, %v4330, %v4332
      %v4386 = vsel %vm3711, %v4332, %v4334
      %v4387 = vsel %vm3711, %v4334, %v4336
      %v4388 = vsel %vm3711, %v4336, %v4338
      %v4389 = vsel %vm3711, %v4338, %v4340
      %v4390 = vsel %vm3711, %v4340, %v4342
      %v4391 = vsel %vm3711, %v4342, %v4344
      %v4392 = vsel %vm3711, %v4344, %v4346
      %v4393 = vsel %vm3711, %v4346, %v4348
      %v4394 = vsel %vm3711, %v4348, %v4350
      %v4395 = vsel %vm3711, %v4350, %v4352
      %v4396 = vsel %vm3711, %v4352, %v4354
      %v4397 = vsel %vm3711, %v4354, %v4356
      %v4398 = vsel %vm3711, %v4356, %v4358
      %v4399 = vsel %vm3711, %v4358, %v4360
      %v4400 = vsel %vm3711, %v4360, %v4362
      %v4401 = vsel %vm3711, %v4362, %v4364
      %v4402 = vsel %vm3711, %v4364, %v4366
      %v4403 = vsel %vm3711, %v4366, %v4368
      %v4404 = vsel %vm3711, %v4368, %v4370
      %v4405 = vsel %vm3711, %v4370, %v4372
      %v4406 = vsel %vm3711, %v4372, %v4374
      %v4407 = vsel %vm3711, %v4374, %v4376
      %v4408 = vsel %vm3711, %v4376, %v4378
      %v4409 = vsel %vm3711, %v4378, %v4380
      %v4410 = vsel %vm1769, %v3411, %v3562
      %v4411 = vsel %vm1769, %v3412, %v3563
      %v4412 = vsel %vm1769, %v3413, %v3564
      %v4413 = vsel %vm1769, %v3414, %v3565
      %v4414 = vsel %vm1769, %v3415, %v3566
      %v4415 = vsel %vm1769, %v3416, %v3567
      %v4416 = vsel %vm1769, %v3417, %v3568
      %v4417 = vsel %vm1769, %v3418, %v3569
      %v4418 = vsel %vm1769, %v3419, %v3570
      %v4419 = vsel %vm1769, %v3420, %v3571
      %v4420 = vsel %vm1769, %v3421, %v3572
      %v4421 = vsel %vm1769, %v3422, %v3573
      %v4422 = vsel %vm1769, %v3423, %v3574
      %v4423 = vsel %vm1769, %v3424, %v3575
      %v4424 = vsel %vm1769, %v3425, %v3576
      %v4425 = vsel %vm1769, %v3426, %v3577
      %v4426 = vsel %vm1769, %v3427, %v3578
      %v4427 = vsel %vm1769, %v3428, %v3579
      %v4428 = vsel %vm1769, %v3429, %v3580
      %v4429 = vsel %vm1769, %v3430, %v3581
      %v4430 = vsel %vm1769, %v3431, %v3582
      %v4431 = vsel %vm1769, %v3432, %v3583
      %v4432 = vsel %vm1769, %v3433, %v3584
      %v4433 = vsel %vm1769, %v3434, %v3585
      %v4434 = vsel %vm1769, %v3435, %v3586
      %v4435 = vsel %vm1769, %v3436, %v3587
      %v4436 = vsel %vm1769, %v3437, %v3588
      %v4437 = vsel %vm1769, %v3438, %v3589
      %v4438 = vsel %vm1769, %v3439, %v3590
      %v4439 = vsel %vm1769, %v3440, %v3561
      %v4440 = vsel %vm1705, %v3562, %v3712
      %v4441 = vsel %vm1705, %v3563, %v3713
      %v4442 = vsel %vm1705, %v3564, %v3714
      %v4443 = vsel %vm1705, %v3565, %v3715
      %v4444 = vsel %vm1705, %v3566, %v3716
      %v4445 = vsel %vm1705, %v3567, %v3717
      %v4446 = vsel %vm1705, %v3568, %v3718
      %v4447 = vsel %vm1705, %v3569, %v3719
      %v4448 = vsel %vm1705, %v3570, %v3720
      %v4449 = vsel %vm1705, %v3571, %v3721
      %v4450 = vsel %vm1705, %v3572, %v3722
      %v4451 = vsel %vm1705, %v3573, %v3723
      %v4452 = vsel %vm1705, %v3574, %v3724
      %v4453 = vsel %vm1705, %v3575, %v3725
      %v4454 = vsel %vm1705, %v3576, %v3726
      %v4455 = vsel %vm1705, %v3577, %v3727
      %v4456 = vsel %vm1705, %v3578, %v3728
      %v4457 = vsel %vm1705, %v3579, %v3729
      %v4458 = vsel %vm1705, %v3580, %v3730
      %v4459 = vsel %vm1705, %v3581, %v3731
      %v4460 = vsel %vm1705, %v3582, %v3732
      %v4461 = vsel %vm1705, %v3583, %v3733
      %v4462 = vsel %vm1705, %v3584, %v3734
      %v4463 = vsel %vm1705, %v3585, %v3735
      %v4464 = vsel %vm1705, %v3586, %v3736
      %v4465 = vsel %vm1705, %v3587, %v3737
      %v4466 = vsel %vm1705, %v3588, %v3738
      %v4467 = vsel %vm1705, %v3589, %v3739
      %v4468 = vsel %vm1705, %v3590, %v3740
      %v4469 = vsel %vm1705, %v3561, %v3710
      %v4470 = vsel %vm1641, %v3712, %v3865
      %v4471 = vsel %vm1641, %v3713, %v3866
      %v4472 = vsel %vm1641, %v3714, %v3867
      %v4473 = vsel %vm1641, %v3715, %v3868
      %v4474 = vsel %vm1641, %v3716, %v3869
      %v4475 = vsel %vm1641, %v3717, %v3870
      %v4476 = vsel %vm1641, %v3718, %v3871
      %v4477 = vsel %vm1641, %v3719, %v3872
      %v4478 = vsel %vm1641, %v3720, %v3873
      %v4479 = vsel %vm1641, %v3721, %v3874
      %v4480 = vsel %vm1641, %v3722, %v3875
      %v4481 = vsel %vm1641, %v3723, %v3876
      %v4482 = vsel %vm1641, %v3724, %v3877
      %v4483 = vsel %vm1641, %v3725, %v3878
      %v4484 = vsel %vm1641, %v3726, %v3879
      %v4485 = vsel %vm1641, %v3727, %v3880
      %v4486 = vsel %vm1641, %v3728, %v3881
      %v4487 = vsel %vm1641, %v3729, %v3882
      %v4488 = vsel %vm1641, %v3730, %v3883
      %v4489 = vsel %vm1641, %v3731, %v3884
      %v4490 = vsel %vm1641, %v3732, %v3885
      %v4491 = vsel %vm1641, %v3733, %v3886
      %v4492 = vsel %vm1641, %v3734, %v3887
      %v4493 = vsel %vm1641, %v3735, %v3888
      %v4494 = vsel %vm1641, %v3736, %v3889
      %v4495 = vsel %vm1641, %v3737, %v3890
      %v4496 = vsel %vm1641, %v3738, %v3891
      %v4497 = vsel %vm1641, %v3739, %v3892
      %v4498 = vsel %vm1641, %v3740, %v3893
      %v4499 = vsel %vm1641, %v3710, %v3894
      %v4500 = vsel %vm1769, %v3987, %v4111
      %v4501 = vsel %vm1769, %v3988, %v4112
      %v4502 = vsel %vm1769, %v3989, %v4113
      %v4503 = vsel %vm1769, %v3990, %v4114
      %v4504 = vsel %vm1769, %v3991, %v4115
      %v4505 = vsel %vm1769, %v3992, %v4116
      %v4506 = vsel %vm1769, %v3993, %v4117
      %v4507 = vsel %vm1769, %v3994, %v4118
      %v4508 = vsel %vm1769, %v3995, %v4119
      %v4509 = vsel %vm1769, %v3996, %v4120
      %v4510 = vsel %vm1769, %v3997, %v4121
      %v4511 = vsel %vm1769, %v3998, %v4122
      %v4512 = vsel %vm1769, %v3999, %v4123
      %v4513 = vsel %vm1769, %v4000, %v4124
      %v4514 = vsel %vm1769, %v4001, %v4125
      %v4515 = vsel %vm1769, %v4002, %v4126
      %v4516 = vsel %vm1769, %v4003, %v4127
      %v4517 = vsel %vm1769, %v4004, %v4128
      %v4518 = vsel %vm1769, %v4005, %v4129
      %v4519 = vsel %vm1769, %v4006, %v4130
      %v4520 = vsel %vm1769, %v4007, %v4131
      %v4521 = vsel %vm1769, %v4008, %v4132
      %v4522 = vsel %vm1769, %v4009, %v4133
      %v4523 = vsel %vm1769, %v4010, %v4134
      %v4524 = vsel %vm1769, %v4011, %v4135
      %v4525 = vsel %vm1769, %v4012, %v4136
      %v4526 = vsel %vm1769, %v4013, %v4137
      %v4527 = vsel %vm1769, %v4014, %v4138
      %v4528 = vsel %vm1769, %v4015, %v4139
      %v4529 = vsel %vm1769, %v4016, %v4140
      %v4530 = vsel %vm1705, %v4111, %v3622
      %v4531 = vsel %vm1705, %v4112, %v3623
      %v4532 = vsel %vm1705, %v4113, %v3624
      %v4533 = vsel %vm1705, %v4114, %v3625
      %v4534 = vsel %vm1705, %v4115, %v3626
      %v4535 = vsel %vm1705, %v4116, %v3627
      %v4536 = vsel %vm1705, %v4117, %v3628
      %v4537 = vsel %vm1705, %v4118, %v3629
      %v4538 = vsel %vm1705, %v4119, %v3630
      %v4539 = vsel %vm1705, %v4120, %v3631
      %v4540 = vsel %vm1705, %v4121, %v3632
      %v4541 = vsel %vm1705, %v4122, %v3633
      %v4542 = vsel %vm1705, %v4123, %v3634
      %v4543 = vsel %vm1705, %v4124, %v3635
      %v4544 = vsel %vm1705, %v4125, %v3636
      %v4545 = vsel %vm1705, %v4126, %v3637
      %v4546 = vsel %vm1705, %v4127, %v3638
      %v4547 = vsel %vm1705, %v4128, %v3639
      %v4548 = vsel %vm1705, %v4129, %v3640
      %v4549 = vsel %vm1705, %v4130, %v3641
      %v4550 = vsel %vm1705, %v4131, %v3642
      %v4551 = vsel %vm1705, %v4132, %v3643
      %v4552 = vsel %vm1705, %v4133, %v3644
      %v4553 = vsel %vm1705, %v4134, %v3645
      %v4554 = vsel %vm1705, %v4135, %v3646
      %v4555 = vsel %vm1705, %v4136, %v3647
      %v4556 = vsel %vm1705, %v4137, %v3648
      %v4557 = vsel %vm1705, %v4138, %v3649
      %v4558 = vsel %vm1705, %v4139, %v3650
      %v4559 = vsel %vm1705, %v4140, %v4171
      %v4560 = vsel %vm1641, %v3622, %v4262
      %v4561 = vsel %vm1641, %v3623, %v4263
      %v4562 = vsel %vm1641, %v3624, %v4264
      %v4563 = vsel %vm1641, %v3625, %v4265
      %v4564 = vsel %vm1641, %v3626, %v4266
      %v4565 = vsel %vm1641, %v3627, %v4267
      %v4566 = vsel %vm1641, %v3628, %v4268
      %v4567 = vsel %vm1641, %v3629, %v4269
      %v4568 = vsel %vm1641, %v3630, %v4270
      %v4569 = vsel %vm1641, %v3631, %v4271
      %v4570 = vsel %vm1641, %v3632, %v4272
      %v4571 = vsel %vm1641, %v3633, %v4273
      %v4572 = vsel %vm1641, %v3634, %v4274
      %v4573 = vsel %vm1641, %v3635, %v4275
      %v4574 = vsel %vm1641, %v3636, %v4276
      %v4575 = vsel %vm1641, %v3637, %v4277
      %v4576 = vsel %vm1641, %v3638, %v4278
      %v4577 = vsel %vm1641, %v3639, %v4279
      %v4578 = vsel %vm1641, %v3640, %v4280
      %v4579 = vsel %vm1641, %v3641, %v4281
      %v4580 = vsel %vm1641, %v3642, %v4282
      %v4581 = vsel %vm1641, %v3643, %v4283
      %v4582 = vsel %vm1641, %v3644, %v4284
      %v4583 = vsel %vm1641, %v3645, %v4285
      %v4584 = vsel %vm1641, %v3646, %v4286
      %v4585 = vsel %vm1641, %v3647, %v4287
      %v4586 = vsel %vm1641, %v3648, %v4288
      %v4587 = vsel %vm1641, %v3649, %v4289
      %v4588 = vsel %vm1641, %v3650, %v4290
      %v4589 = vsel %vm1641, %v4171, %v4261
      %v4590 = vld [vmem:[%s3] sm:$0xff]
      %v4591 = vld [vmem:[%s3 + $0x8] sm:$0xff]
      %v4592 = vld [vmem:[%s4] sm:$0xff]
      %v4593 = vld [vmem:[%s4 + $0x8] sm:$0xff]
      %4595 = vset.pattern.permute.xlu0 0
      %4596 = vperm.xlu0 %4595, %v4592
      %v4597 = vpop.permute.xlu0 %4596
      %4600 = vset.pattern.permute.xlu0 0
      %4601 = vperm.xlu0 %4600, %v4593
      %v4602 = vpop.permute.xlu0 %4601
      %vm4604 = vcmask 441344
      %v4606 = vsel %vm4604, %v4590, 0
      %v4609 = vsel %vm4604, %v4591, 0
      %v4611 = vsel %vm1769, %v4381, 0
      %v4613 = vsel %vm1769, %v4382, 0
      %v4615 = vsel %vm1769, %v4383, 0
      %v4617 = vsel %vm1769, %v4384, 0
      %v4619 = vsel %vm1769, %v4385, 0
      %v4621 = vsel %vm1769, %v4386, 0
      %v4623 = vsel %vm1769, %v4387, 0
      %v4625 = vsel %vm1769, %v4388, 0
      %v4627 = vsel %vm1769, %v4389, 0
      %v4629 = vsel %vm1769, %v4390, 0
      %v4631 = vsel %vm1769, %v4391, 0
      %v4633 = vsel %vm1769, %v4392, 0
      %v4635 = vsel %vm1769, %v4393, 0
      %v4637 = vsel %vm1769, %v4394, 0
      %v4639 = vsel %vm1769, %v4395, 0
      %v4641 = vsel %vm1769, %v4396, 0
      %v4643 = vsel %vm1769, %v4397, 0
      %v4645 = vsel %vm1769, %v4398, 0
      %v4647 = vsel %vm1769, %v4399, 0
      %v4649 = vsel %vm1769, %v4400, 0
      %v4651 = vsel %vm1769, %v4401, 0
      %v4653 = vsel %vm1769, %v4402, 0
      %v4655 = vsel %vm1769, %v4403, 0
      %v4657 = vsel %vm1769, %v4404, 0
      %v4659 = vsel %vm1769, %v4405, 0
      %v4661 = vsel %vm1769, %v4406, 0
      %v4663 = vsel %vm1769, %v4407, 0
      %v4665 = vsel %vm1769, %v4408, 0
      %v4667 = vsel %vm1769, %v4409, 0
      %v4669 = vsel %vm1769, %v4380, 0
      %4671 = vmatprep.subr.mxu0 0.0
      %4672 = vmatpush1.msra.mxu0 0.0
      %4673 = vmatprep.subr.mxu0 0.0
      %4674 = vmatpush1.msra.mxu0 0.0
      %4675 = vmatprep.subr.mxu0 0.0
      %4676 = vmatpush1.msra.mxu0 0.0
      %4677 = vmatprep.subr.mxu0 0.0
      %4678 = vmatpush1.msra.mxu0 0.0
      %4679 = vmatprep.subr.mxu0 0.0
      %4680 = vmatpush1.msra.mxu0 0.0
      %4681 = vmatprep.subr.mxu0 0.0
      %4682 = vmatpush1.msra.mxu0 0.0
      %4683 = vmatprep.subr.mxu0 0.0
      %4684 = vmatpush1.msra.mxu0 0.0
      %4685 = vmatprep.subr.mxu0 0.0
      %4686 = vmatpush1.msra.mxu0 0.0
      %4687 = vmatprep.subr.mxu0 0.0
      %4688 = vmatpush1.msra.mxu0 0.0
      %4689 = vmatprep.subr.mxu0 %v4613
      %4690 = vmatpush1.msra.mxu0 %v4611
      %4691 = vmatprep.subr.mxu0 %v4561
      %4692 = vmatpush1.msra.mxu0 %v4560
      %4693 = vmatprep.subr.mxu0 %v4531
      %4694 = vmatpush1.msra.mxu0 %v4530
      %4695 = vmatprep.subr.mxu0 %v4501
      %4696 = vmatpush1.msra.mxu0 %v4500
      %4697 = vmatprep.subr.mxu0 %v4471
      %4698 = vmatpush1.msra.mxu0 %v4470
      %4699 = vmatprep.subr.mxu0 %v4441
      %4700 = vmatpush1.msra.mxu0 %v4440
      %4701 = vmatprep.subr.mxu0 %v4411
      %4702 = vmatpush1.msra.mxu0 %v4410
      %4703 = vmatprep.subr.mxu0 0.0
      %4704 = vmatpush2.msra.mxu0 0.0
      %4705 = vmatprep.subr.mxu0 0.0
      %4706 = vmatpush2.msra.mxu0 0.0
      %4707 = vmatprep.subr.mxu0 0.0
      %4708 = vmatpush2.msra.mxu0 0.0
      %4709 = vmatprep.subr.mxu0 0.0
      %4710 = vmatpush2.msra.mxu0 0.0
      %4711 = vmatprep.subr.mxu0 0.0
      %4712 = vmatpush2.msra.mxu0 0.0
      %4713 = vmatprep.subr.mxu0 0.0
      %4714 = vmatpush2.msra.mxu0 0.0
      %4715 = vmatprep.subr.mxu0 0.0
      %4716 = vmatpush2.msra.mxu0 0.0
      %4717 = vmatprep.subr.mxu0 0.0
      %4718 = vmatpush2.msra.mxu0 0.0
      %4719 = vmatprep.subr.mxu0 0.0
      %4720 = vmatpush2.msra.mxu0 0.0
      %4721 = vmatprep.subr.mxu0 0.0
      %4722 = vmatpush2.msra.mxu0 0.0
      %4723 = vmatprep.subr.mxu0 0.0
      %4724 = vmatpush2.msra.mxu0 0.0
      %4725 = vmatprep.subr.mxu0 0.0
      %4726 = vmatpush2.msra.mxu0 0.0
      %4727 = vmatprep.subr.mxu0 0.0
      %4728 = vmatpush2.msra.mxu0 0.0
      %4729 = vmatprep.subr.mxu0 0.0
      %4730 = vmatpush2.msra.mxu0 0.0
      %4731 = vmatprep.subr.mxu0 0.0
      %4732 = vmatpush2.msra.mxu0 0.0
      %4733 = vmatprep.subr.mxu0 0.0
      %4734 = vmatpush2.msra.mxu0 0.0
      %4735 = vmatprep.mubr.f32.mxu0 0.0
      %4736 = vmatmul.mubr.f32.gmra.mxu0 %v4606
      %v4737 = vpop.f32.mrf.mxu0
      %v4738 = vadd.f32 %v4597, %v4737
      %v4739 = vpop.f32.mrf.mxu0
      %v4740 = vadd.f32 %v4597, %v4739
      %4741 = vmatprep.mubr.f32.mxu0 0.0
      %4742 = vmatmul.mubr.f32.gmra.mxu0 %v4609
      %v4743 = vpop.f32.mrf.mxu0
      %v4744 = vadd.f32 %v4602, %v4743
      %v4745 = vpop.f32.mrf.mxu0
      %v4746 = vadd.f32 %v4602, %v4745
      %4747 = vdwg.mxu0
      %4748 = vmatprep.subr.mxu0 0.0
      %4749 = vmatpush1.msra.mxu0 0.0
      %4750 = vmatprep.subr.mxu0 0.0
      %4751 = vmatpush1.msra.mxu0 0.0
      %4752 = vmatprep.subr.mxu0 0.0
      %4753 = vmatpush1.msra.mxu0 0.0
      %4754 = vmatprep.subr.mxu0 0.0
      %4755 = vmatpush1.msra.mxu0 0.0
      %4756 = vmatprep.subr.mxu0 0.0
      %4757 = vmatpush1.msra.mxu0 0.0
      %4758 = vmatprep.subr.mxu0 0.0
      %4759 = vmatpush1.msra.mxu0 0.0
      %4760 = vmatprep.subr.mxu0 0.0
      %4761 = vmatpush1.msra.mxu0 0.0
      %4762 = vmatprep.subr.mxu0 0.0
      %4763 = vmatpush1.msra.mxu0 0.0
      %4764 = vmatprep.subr.mxu0 0.0
      %4765 = vmatpush1.msra.mxu0 0.0
      %4766 = vmatprep.subr.mxu0 %v4617
      %4767 = vmatpush1.msra.mxu0 %v4615
      %4768 = vmatprep.subr.mxu0 %v4563
      %4769 = vmatpush1.msra.mxu0 %v4562
      %4770 = vmatprep.subr.mxu0 %v4533
      %4771 = vmatpush1.msra.mxu0 %v4532
      %4772 = vmatprep.subr.mxu0 %v4503
      %4773 = vmatpush1.msra.mxu0 %v4502
      %4774 = vmatprep.subr.mxu0 %v4473
      %4775 = vmatpush1.msra.mxu0 %v4472
      %4776 = vmatprep.subr.mxu0 %v4443
      %4777 = vmatpush1.msra.mxu0 %v4442
      %4778 = vmatprep.subr.mxu0 %v4413
      %4779 = vmatpush1.msra.mxu0 %v4412
      %4780 = vmatprep.subr.mxu0 0.0
      %4781 = vmatpush2.msra.mxu0 0.0
      %4782 = vmatprep.subr.mxu0 0.0
      %4783 = vmatpush2.msra.mxu0 0.0
      %4784 = vmatprep.subr.mxu0 0.0
      %4785 = vmatpush2.msra.mxu0 0.0
      %4786 = vmatprep.subr.mxu0 0.0
      %4787 = vmatpush2.msra.mxu0 0.0
      %4788 = vmatprep.subr.mxu0 0.0
      %4789 = vmatpush2.msra.mxu0 0.0
      %4790 = vmatprep.subr.mxu0 0.0
      %4791 = vmatpush2.msra.mxu0 0.0
      %4792 = vmatprep.subr.mxu0 0.0
      %4793 = vmatpush2.msra.mxu0 0.0
      %4794 = vmatprep.subr.mxu0 0.0
      %4795 = vmatpush2.msra.mxu0 0.0
      %4796 = vmatprep.subr.mxu0 0.0
      %4797 = vmatpush2.msra.mxu0 0.0
      %4798 = vmatprep.subr.mxu0 0.0
      %4799 = vmatpush2.msra.mxu0 0.0
      %4800 = vmatprep.subr.mxu0 0.0
      %4801 = vmatpush2.msra.mxu0 0.0
      %4802 = vmatprep.subr.mxu0 0.0
      %4803 = vmatpush2.msra.mxu0 0.0
      %4804 = vmatprep.subr.mxu0 0.0
      %4805 = vmatpush2.msra.mxu0 0.0
      %4806 = vmatprep.subr.mxu0 0.0
      %4807 = vmatpush2.msra.mxu0 0.0
      %4808 = vmatprep.subr.mxu0 0.0
      %4809 = vmatpush2.msra.mxu0 0.0
      %4810 = vmatprep.subr.mxu0 0.0
      %4811 = vmatpush2.msra.mxu0 0.0
      %4812 = vmatprep.mubr.f32.mxu0 0.0
      %4813 = vmatmul.mubr.f32.gmra.mxu0 %v4606
      %v4814 = vpop.f32.mrf.mxu0
      %v4815 = vadd.f32 %v4597, %v4814
      %v4816 = vpop.f32.mrf.mxu0
      %v4817 = vadd.f32 %v4597, %v4816
      %4818 = vmatprep.mubr.f32.mxu0 0.0
      %4819 = vmatmul.mubr.f32.gmra.mxu0 %v4609
      %v4820 = vpop.f32.mrf.mxu0
      %v4821 = vadd.f32 %v4602, %v4820
      %v4822 = vpop.f32.mrf.mxu0
      %v4823 = vadd.f32 %v4602, %v4822
      %4824 = vdwg.mxu0
      %4825 = vmatprep.subr.mxu0 0.0
      %4826 = vmatpush1.msra.mxu0 0.0
      %4827 = vmatprep.subr.mxu0 0.0
      %4828 = vmatpush1.msra.mxu0 0.0
      %4829 = vmatprep.subr.mxu0 0.0
      %4830 = vmatpush1.msra.mxu0 0.0
      %4831 = vmatprep.subr.mxu0 0.0
      %4832 = vmatpush1.msra.mxu0 0.0
      %4833 = vmatprep.subr.mxu0 0.0
      %4834 = vmatpush1.msra.mxu0 0.0
      %4835 = vmatprep.subr.mxu0 0.0
      %4836 = vmatpush1.msra.mxu0 0.0
      %4837 = vmatprep.subr.mxu0 0.0
      %4838 = vmatpush1.msra.mxu0 0.0
      %4839 = vmatprep.subr.mxu0 0.0
      %4840 = vmatpush1.msra.mxu0 0.0
      %4841 = vmatprep.subr.mxu0 0.0
      %4842 = vmatpush1.msra.mxu0 0.0
      %4843 = vmatprep.subr.mxu0 %v4621
      %4844 = vmatpush1.msra.mxu0 %v4619
      %4845 = vmatprep.subr.mxu0 %v4565
      %4846 = vmatpush1.msra.mxu0 %v4564
      %4847 = vmatprep.subr.mxu0 %v4535
      %4848 = vmatpush1.msra.mxu0 %v4534
      %4849 = vmatprep.subr.mxu0 %v4505
      %4850 = vmatpush1.msra.mxu0 %v4504
      %4851 = vmatprep.subr.mxu0 %v4475
      %4852 = vmatpush1.msra.mxu0 %v4474
      %4853 = vmatprep.subr.mxu0 %v4445
      %4854 = vmatpush1.msra.mxu0 %v4444
      %4855 = vmatprep.subr.mxu0 %v4415
      %4856 = vmatpush1.msra.mxu0 %v4414
      %4857 = vmatprep.subr.mxu0 0.0
      %4858 = vmatpush2.msra.mxu0 0.0
      %4859 = vmatprep.subr.mxu0 0.0
      %4860 = vmatpush2.msra.mxu0 0.0
      %4861 = vmatprep.subr.mxu0 0.0
      %4862 = vmatpush2.msra.mxu0 0.0
      %4863 = vmatprep.subr.mxu0 0.0
      %4864 = vmatpush2.msra.mxu0 0.0
      %4865 = vmatprep.subr.mxu0 0.0
      %4866 = vmatpush2.msra.mxu0 0.0
      %4867 = vmatprep.subr.mxu0 0.0
      %4868 = vmatpush2.msra.mxu0 0.0
      %4869 = vmatprep.subr.mxu0 0.0
      %4870 = vmatpush2.msra.mxu0 0.0
      %4871 = vmatprep.subr.mxu0 0.0
      %4872 = vmatpush2.msra.mxu0 0.0
      %4873 = vmatprep.subr.mxu0 0.0
      %4874 = vmatpush2.msra.mxu0 0.0
      %4875 = vmatprep.subr.mxu0 0.0
      %4876 = vmatpush2.msra.mxu0 0.0
      %4877 = vmatprep.subr.mxu0 0.0
      %4878 = vmatpush2.msra.mxu0 0.0
      %4879 = vmatprep.subr.mxu0 0.0
      %4880 = vmatpush2.msra.mxu0 0.0
      %4881 = vmatprep.subr.mxu0 0.0
      %4882 = vmatpush2.msra.mxu0 0.0
      %4883 = vmatprep.subr.mxu0 0.0
      %4884 = vmatpush2.msra.mxu0 0.0
      %4885 = vmatprep.subr.mxu0 0.0
      %4886 = vmatpush2.msra.mxu0 0.0
      %4887 = vmatprep.subr.mxu0 0.0
      %4888 = vmatpush2.msra.mxu0 0.0
      %4889 = vmatprep.mubr.f32.mxu0 0.0
      %4890 = vmatmul.mubr.f32.gmra.mxu0 %v4606
      %v4891 = vpop.f32.mrf.mxu0
      %v4892 = vadd.f32 %v4597, %v4891
      %v4893 = vpop.f32.mrf.mxu0
      %v4894 = vadd.f32 %v4597, %v4893
      %4895 = vmatprep.mubr.f32.mxu0 0.0
      %4896 = vmatmul.mubr.f32.gmra.mxu0 %v4609
      %v4897 = vpop.f32.mrf.mxu0
      %v4898 = vadd.f32 %v4602, %v4897
      %v4899 = vpop.f32.mrf.mxu0
      %v4900 = vadd.f32 %v4602, %v4899
      %4901 = vdwg.mxu0
      %4902 = vmatprep.subr.mxu0 0.0
      %4903 = vmatpush1.msra.mxu0 0.0
      %4904 = vmatprep.subr.mxu0 0.0
      %4905 = vmatpush1.msra.mxu0 0.0
      %4906 = vmatprep.subr.mxu0 0.0
      %4907 = vmatpush1.msra.mxu0 0.0
      %4908 = vmatprep.subr.mxu0 0.0
      %4909 = vmatpush1.msra.mxu0 0.0
      %4910 = vmatprep.subr.mxu0 0.0
      %4911 = vmatpush1.msra.mxu0 0.0
      %4912 = vmatprep.subr.mxu0 0.0
      %4913 = vmatpush1.msra.mxu0 0.0
      %4914 = vmatprep.subr.mxu0 0.0
      %4915 = vmatpush1.msra.mxu0 0.0
      %4916 = vmatprep.subr.mxu0 0.0
      %4917 = vmatpush1.msra.mxu0 0.0
      %4918 = vmatprep.subr.mxu0 0.0
      %4919 = vmatpush1.msra.mxu0 0.0
      %4920 = vmatprep.subr.mxu0 %v4625
      %4921 = vmatpush1.msra.mxu0 %v4623
      %4922 = vmatprep.subr.mxu0 %v4567
      %4923 = vmatpush1.msra.mxu0 %v4566
      %4924 = vmatprep.subr.mxu0 %v4537
      %4925 = vmatpush1.msra.mxu0 %v4536
      %4926 = vmatprep.subr.mxu0 %v4507
      %4927 = vmatpush1.msra.mxu0 %v4506
      %4928 = vmatprep.subr.mxu0 %v4477
      %4929 = vmatpush1.msra.mxu0 %v4476
      %4930 = vmatprep.subr.mxu0 %v4447
      %4931 = vmatpush1.msra.mxu0 %v4446
      %4932 = vmatprep.subr.mxu0 %v4417
      %4933 = vmatpush1.msra.mxu0 %v4416
      %4934 = vmatprep.subr.mxu0 0.0
      %4935 = vmatpush2.msra.mxu0 0.0
      %4936 = vmatprep.subr.mxu0 0.0
      %4937 = vmatpush2.msra.mxu0 0.0
      %4938 = vmatprep.subr.mxu0 0.0
      %4939 = vmatpush2.msra.mxu0 0.0
      %4940 = vmatprep.subr.mxu0 0.0
      %4941 = vmatpush2.msra.mxu0 0.0
      %4942 = vmatprep.subr.mxu0 0.0
      %4943 = vmatpush2.msra.mxu0 0.0
      %4944 = vmatprep.subr.mxu0 0.0
      %4945 = vmatpush2.msra.mxu0 0.0
      %4946 = vmatprep.subr.mxu0 0.0
      %4947 = vmatpush2.msra.mxu0 0.0
      %4948 = vmatprep.subr.mxu0 0.0
      %4949 = vmatpush2.msra.mxu0 0.0
      %4950 = vmatprep.subr.mxu0 0.0
      %4951 = vmatpush2.msra.mxu0 0.0
      %4952 = vmatprep.subr.mxu0 0.0
      %4953 = vmatpush2.msra.mxu0 0.0
      %4954 = vmatprep.subr.mxu0 0.0
      %4955 = vmatpush2.msra.mxu0 0.0
      %4956 = vmatprep.subr.mxu0 0.0
      %4957 = vmatpush2.msra.mxu0 0.0
      %4958 = vmatprep.subr.mxu0 0.0
      %4959 = vmatpush2.msra.mxu0 0.0
      %4960 = vmatprep.subr.mxu0 0.0
      %4961 = vmatpush2.msra.mxu0 0.0
      %4962 = vmatprep.subr.mxu0 0.0
      %4963 = vmatpush2.msra.mxu0 0.0
      %4964 = vmatprep.subr.mxu0 0.0
      %4965 = vmatpush2.msra.mxu0 0.0
      %4966 = vmatprep.mubr.f32.mxu0 0.0
      %4967 = vmatmul.mubr.f32.gmra.mxu0 %v4606
      %v4968 = vpop.f32.mrf.mxu0
      %v4969 = vadd.f32 %v4597, %v4968
      %v4970 = vpop.f32.mrf.mxu0
      %v4971 = vadd.f32 %v4597, %v4970
      %4972 = vmatprep.mubr.f32.mxu0 0.0
      %4973 = vmatmul.mubr.f32.gmra.mxu0 %v4609
      %v4974 = vpop.f32.mrf.mxu0
      %v4975 = vadd.f32 %v4602, %v4974
      %v4976 = vpop.f32.mrf.mxu0
      %v4977 = vadd.f32 %v4602, %v4976
      %4978 = vdwg.mxu0
      %4979 = vmatprep.subr.mxu0 0.0
      %4980 = vmatpush1.msra.mxu0 0.0
      %4981 = vmatprep.subr.mxu0 0.0
      %4982 = vmatpush1.msra.mxu0 0.0
      %4983 = vmatprep.subr.mxu0 0.0
      %4984 = vmatpush1.msra.mxu0 0.0
      %4985 = vmatprep.subr.mxu0 0.0
      %4986 = vmatpush1.msra.mxu0 0.0
      %4987 = vmatprep.subr.mxu0 0.0
      %4988 = vmatpush1.msra.mxu0 0.0
      %4989 = vmatprep.subr.mxu0 0.0
      %4990 = vmatpush1.msra.mxu0 0.0
      %4991 = vmatprep.subr.mxu0 0.0
      %4992 = vmatpush1.msra.mxu0 0.0
      %4993 = vmatprep.subr.mxu0 0.0
      %4994 = vmatpush1.msra.mxu0 0.0
      %4995 = vmatprep.subr.mxu0 0.0
      %4996 = vmatpush1.msra.mxu0 0.0
      %4997 = vmatprep.subr.mxu0 %v4629
      %4998 = vmatpush1.msra.mxu0 %v4627
      %4999 = vmatprep.subr.mxu0 %v4569
      %5000 = vmatpush1.msra.mxu0 %v4568
      %5001 = vmatprep.subr.mxu0 %v4539
      %5002 = vmatpush1.msra.mxu0 %v4538
      %5003 = vmatprep.subr.mxu0 %v4509
      %5004 = vmatpush1.msra.mxu0 %v4508
      %5005 = vmatprep.subr.mxu0 %v4479
      %5006 = vmatpush1.msra.mxu0 %v4478
      %5007 = vmatprep.subr.mxu0 %v4449
      %5008 = vmatpush1.msra.mxu0 %v4448
      %5009 = vmatprep.subr.mxu0 %v4419
      %5010 = vmatpush1.msra.mxu0 %v4418
      %5011 = vmatprep.subr.mxu0 0.0
      %5012 = vmatpush2.msra.mxu0 0.0
      %5013 = vmatprep.subr.mxu0 0.0
      %5014 = vmatpush2.msra.mxu0 0.0
      %5015 = vmatprep.subr.mxu0 0.0
      %5016 = vmatpush2.msra.mxu0 0.0
      %5017 = vmatprep.subr.mxu0 0.0
      %5018 = vmatpush2.msra.mxu0 0.0
      %5019 = vmatprep.subr.mxu0 0.0
      %5020 = vmatpush2.msra.mxu0 0.0
      %5021 = vmatprep.subr.mxu0 0.0
      %5022 = vmatpush2.msra.mxu0 0.0
      %5023 = vmatprep.subr.mxu0 0.0
      %5024 = vmatpush2.msra.mxu0 0.0
      %5025 = vmatprep.subr.mxu0 0.0
      %5026 = vmatpush2.msra.mxu0 0.0
      %5027 = vmatprep.subr.mxu0 0.0
      %5028 = vmatpush2.msra.mxu0 0.0
      %5029 = vmatprep.subr.mxu0 0.0
      %5030 = vmatpush2.msra.mxu0 0.0
      %5031 = vmatprep.subr.mxu0 0.0
      %5032 = vmatpush2.msra.mxu0 0.0
      %5033 = vmatprep.subr.mxu0 0.0
      %5034 = vmatpush2.msra.mxu0 0.0
      %5035 = vmatprep.subr.mxu0 0.0
      %5036 = vmatpush2.msra.mxu0 0.0
      %5037 = vmatprep.subr.mxu0 0.0
      %5038 = vmatpush2.msra.mxu0 0.0
      %5039 = vmatprep.subr.mxu0 0.0
      %5040 = vmatpush2.msra.mxu0 0.0
      %5041 = vmatprep.subr.mxu0 0.0
      %5042 = vmatpush2.msra.mxu0 0.0
      %5043 = vmatprep.mubr.f32.mxu0 0.0
      %5044 = vmatmul.mubr.f32.gmra.mxu0 %v4606
      %v5045 = vpop.f32.mrf.mxu0
      %v5046 = vadd.f32 %v4597, %v5045
      %v5047 = vpop.f32.mrf.mxu0
      %v5048 = vadd.f32 %v4597, %v5047
      %5049 = vmatprep.mubr.f32.mxu0 0.0
      %5050 = vmatmul.mubr.f32.gmra.mxu0 %v4609
      %v5051 = vpop.f32.mrf.mxu0
      %v5052 = vadd.f32 %v4602, %v5051
      %v5053 = vpop.f32.mrf.mxu0
      %v5054 = vadd.f32 %v4602, %v5053
      %5055 = vdwg.mxu0
      %5056 = vmatprep.subr.mxu0 0.0
      %5057 = vmatpush1.msra.mxu0 0.0
      %5058 = vmatprep.subr.mxu0 0.0
      %5059 = vmatpush1.msra.mxu0 0.0
      %5060 = vmatprep.subr.mxu0 0.0
      %5061 = vmatpush1.msra.mxu0 0.0
      %5062 = vmatprep.subr.mxu0 0.0
      %5063 = vmatpush1.msra.mxu0 0.0
      %5064 = vmatprep.subr.mxu0 0.0
      %5065 = vmatpush1.msra.mxu0 0.0
      %5066 = vmatprep.subr.mxu0 0.0
      %5067 = vmatpush1.msra.mxu0 0.0
      %5068 = vmatprep.subr.mxu0 0.0
      %5069 = vmatpush1.msra.mxu0 0.0
      %5070 = vmatprep.subr.mxu0 0.0
      %5071 = vmatpush1.msra.mxu0 0.0
      %5072 = vmatprep.subr.mxu0 0.0
      %5073 = vmatpush1.msra.mxu0 0.0
      %5074 = vmatprep.subr.mxu0 %v4633
      %5075 = vmatpush1.msra.mxu0 %v4631
      %5076 = vmatprep.subr.mxu0 %v4571
      %5077 = vmatpush1.msra.mxu0 %v4570
      %5078 = vmatprep.subr.mxu0 %v4541
      %5079 = vmatpush1.msra.mxu0 %v4540
      %5080 = vmatprep.subr.mxu0 %v4511
      %5081 = vmatpush1.msra.mxu0 %v4510
      %5082 = vmatprep.subr.mxu0 %v4481
      %5083 = vmatpush1.msra.mxu0 %v4480
      %5084 = vmatprep.subr.mxu0 %v4451
      %5085 = vmatpush1.msra.mxu0 %v4450
      %5086 = vmatprep.subr.mxu0 %v4421
      %5087 = vmatpush1.msra.mxu0 %v4420
      %5088 = vmatprep.subr.mxu0 0.0
      %5089 = vmatpush2.msra.mxu0 0.0
      %5090 = vmatprep.subr.mxu0 0.0
      %5091 = vmatpush2.msra.mxu0 0.0
      %5092 = vmatprep.subr.mxu0 0.0
      %5093 = vmatpush2.msra.mxu0 0.0
      %5094 = vmatprep.subr.mxu0 0.0
      %5095 = vmatpush2.msra.mxu0 0.0
      %5096 = vmatprep.subr.mxu0 0.0
      %5097 = vmatpush2.msra.mxu0 0.0
      %5098 = vmatprep.subr.mxu0 0.0
      %5099 = vmatpush2.msra.mxu0 0.0
      %5100 = vmatprep.subr.mxu0 0.0
      %5101 = vmatpush2.msra.mxu0 0.0
      %5102 = vmatprep.subr.mxu0 0.0
      %5103 = vmatpush2.msra.mxu0 0.0
      %5104 = vmatprep.subr.mxu0 0.0
      %5105 = vmatpush2.msra.mxu0 0.0
      %5106 = vmatprep.subr.mxu0 0.0
      %5107 = vmatpush2.msra.mxu0 0.0
      %5108 = vmatprep.subr.mxu0 0.0
      %5109 = vmatpush2.msra.mxu0 0.0
      %5110 = vmatprep.subr.mxu0 0.0
      %5111 = vmatpush2.msra.mxu0 0.0
      %5112 = vmatprep.subr.mxu0 0.0
      %5113 = vmatpush2.msra.mxu0 0.0
      %5114 = vmatprep.subr.mxu0 0.0
      %5115 = vmatpush2.msra.mxu0 0.0
      %5116 = vmatprep.subr.mxu0 0.0
      %5117 = vmatpush2.msra.mxu0 0.0
      %5118 = vmatprep.subr.mxu0 0.0
      %5119 = vmatpush2.msra.mxu0 0.0
      %5120 = vmatprep.mubr.f32.mxu0 0.0
      %5121 = vmatmul.mubr.f32.gmra.mxu0 %v4606
      %v5122 = vpop.f32.mrf.mxu0
      %v5123 = vadd.f32 %v4597, %v5122
      %v5124 = vpop.f32.mrf.mxu0
      %v5125 = vadd.f32 %v4597, %v5124
      %5126 = vmatprep.mubr.f32.mxu0 0.0
      %5127 = vmatmul.mubr.f32.gmra.mxu0 %v4609
      %v5128 = vpop.f32.mrf.mxu0
      %v5129 = vadd.f32 %v4602, %v5128
      %v5130 = vpop.f32.mrf.mxu0
      %v5131 = vadd.f32 %v4602, %v5130
      %5132 = vdwg.mxu0
      %5133 = vmatprep.subr.mxu0 0.0
      %5134 = vmatpush1.msra.mxu0 0.0
      %5135 = vmatprep.subr.mxu0 0.0
      %5136 = vmatpush1.msra.mxu0 0.0
      %5137 = vmatprep.subr.mxu0 0.0
      %5138 = vmatpush1.msra.mxu0 0.0
      %5139 = vmatprep.subr.mxu0 0.0
      %5140 = vmatpush1.msra.mxu0 0.0
      %5141 = vmatprep.subr.mxu0 0.0
      %5142 = vmatpush1.msra.mxu0 0.0
      %5143 = vmatprep.subr.mxu0 0.0
      %5144 = vmatpush1.msra.mxu0 0.0
      %5145 = vmatprep.subr.mxu0 0.0
      %5146 = vmatpush1.msra.mxu0 0.0
      %5147 = vmatprep.subr.mxu0 0.0
      %5148 = vmatpush1.msra.mxu0 0.0
      %5149 = vmatprep.subr.mxu0 0.0
      %5150 = vmatpush1.msra.mxu0 0.0
      %5151 = vmatprep.subr.mxu0 %v4637
      %5152 = vmatpush1.msra.mxu0 %v4635
      %5153 = vmatprep.subr.mxu0 %v4573
      %5154 = vmatpush1.msra.mxu0 %v4572
      %5155 = vmatprep.subr.mxu0 %v4543
      %5156 = vmatpush1.msra.mxu0 %v4542
      %5157 = vmatprep.subr.mxu0 %v4513
      %5158 = vmatpush1.msra.mxu0 %v4512
      %5159 = vmatprep.subr.mxu0 %v4483
      %5160 = vmatpush1.msra.mxu0 %v4482
      %5161 = vmatprep.subr.mxu0 %v4453
      %5162 = vmatpush1.msra.mxu0 %v4452
      %5163 = vmatprep.subr.mxu0 %v4423
      %5164 = vmatpush1.msra.mxu0 %v4422
      %5165 = vmatprep.subr.mxu0 0.0
      %5166 = vmatpush2.msra.mxu0 0.0
      %5167 = vmatprep.subr.mxu0 0.0
      %5168 = vmatpush2.msra.mxu0 0.0
      %5169 = vmatprep.subr.mxu0 0.0
      %5170 = vmatpush2.msra.mxu0 0.0
      %5171 = vmatprep.subr.mxu0 0.0
      %5172 = vmatpush2.msra.mxu0 0.0
      %5173 = vmatprep.subr.mxu0 0.0
      %5174 = vmatpush2.msra.mxu0 0.0
      %5175 = vmatprep.subr.mxu0 0.0
      %5176 = vmatpush2.msra.mxu0 0.0
      %5177 = vmatprep.subr.mxu0 0.0
      %5178 = vmatpush2.msra.mxu0 0.0
      %5179 = vmatprep.subr.mxu0 0.0
      %5180 = vmatpush2.msra.mxu0 0.0
      %5181 = vmatprep.subr.mxu0 0.0
      %5182 = vmatpush2.msra.mxu0 0.0
      %5183 = vmatprep.subr.mxu0 0.0
      %5184 = vmatpush2.msra.mxu0 0.0
      %5185 = vmatprep.subr.mxu0 0.0
      %5186 = vmatpush2.msra.mxu0 0.0
      %5187 = vmatprep.subr.mxu0 0.0
      %5188 = vmatpush2.msra.mxu0 0.0
      %5189 = vmatprep.subr.mxu0 0.0
      %5190 = vmatpush2.msra.mxu0 0.0
      %5191 = vmatprep.subr.mxu0 0.0
      %5192 = vmatpush2.msra.mxu0 0.0
      %5193 = vmatprep.subr.mxu0 0.0
      %5194 = vmatpush2.msra.mxu0 0.0
      %5195 = vmatprep.subr.mxu0 0.0
      %5196 = vmatpush2.msra.mxu0 0.0
      %5197 = vmatprep.mubr.f32.mxu0 0.0
      %5198 = vmatmul.mubr.f32.gmra.mxu0 %v4606
      %v5199 = vpop.f32.mrf.mxu0
      %v5200 = vadd.f32 %v4597, %v5199
      %v5201 = vpop.f32.mrf.mxu0
      %v5202 = vadd.f32 %v4597, %v5201
      %5203 = vmatprep.mubr.f32.mxu0 0.0
      %5204 = vmatmul.mubr.f32.gmra.mxu0 %v4609
      %v5205 = vpop.f32.mrf.mxu0
      %v5206 = vadd.f32 %v4602, %v5205
      %v5207 = vpop.f32.mrf.mxu0
      %v5208 = vadd.f32 %v4602, %v5207
      %5209 = vdwg.mxu0
      %5210 = vmatprep.subr.mxu0 0.0
      %5211 = vmatpush1.msra.mxu0 0.0
      %5212 = vmatprep.subr.mxu0 0.0
      %5213 = vmatpush1.msra.mxu0 0.0
      %5214 = vmatprep.subr.mxu0 0.0
      %5215 = vmatpush1.msra.mxu0 0.0
      %5216 = vmatprep.subr.mxu0 0.0
      %5217 = vmatpush1.msra.mxu0 0.0
      %5218 = vmatprep.subr.mxu0 0.0
      %5219 = vmatpush1.msra.mxu0 0.0
      %5220 = vmatprep.subr.mxu0 0.0
      %5221 = vmatpush1.msra.mxu0 0.0
      %5222 = vmatprep.subr.mxu0 0.0
      %5223 = vmatpush1.msra.mxu0 0.0
      %5224 = vmatprep.subr.mxu0 0.0
      %5225 = vmatpush1.msra.mxu0 0.0
      %5226 = vmatprep.subr.mxu0 0.0
      %5227 = vmatpush1.msra.mxu0 0.0
      %5228 = vmatprep.subr.mxu0 %v4641
      %5229 = vmatpush1.msra.mxu0 %v4639
      %5230 = vmatprep.subr.mxu0 %v4575
      %5231 = vmatpush1.msra.mxu0 %v4574
      %5232 = vmatprep.subr.mxu0 %v4545
      %5233 = vmatpush1.msra.mxu0 %v4544
      %5234 = vmatprep.subr.mxu0 %v4515
      %5235 = vmatpush1.msra.mxu0 %v4514
      %5236 = vmatprep.subr.mxu0 %v4485
      %5237 = vmatpush1.msra.mxu0 %v4484
      %5238 = vmatprep.subr.mxu0 %v4455
      %5239 = vmatpush1.msra.mxu0 %v4454
      %5240 = vmatprep.subr.mxu0 %v4425
      %5241 = vmatpush1.msra.mxu0 %v4424
      %5242 = vmatprep.subr.mxu0 0.0
      %5243 = vmatpush2.msra.mxu0 0.0
      %5244 = vmatprep.subr.mxu0 0.0
      %5245 = vmatpush2.msra.mxu0 0.0
      %5246 = vmatprep.subr.mxu0 0.0
      %5247 = vmatpush2.msra.mxu0 0.0
      %5248 = vmatprep.subr.mxu0 0.0
      %5249 = vmatpush2.msra.mxu0 0.0
      %5250 = vmatprep.subr.mxu0 0.0
      %5251 = vmatpush2.msra.mxu0 0.0
      %5252 = vmatprep.subr.mxu0 0.0
      %5253 = vmatpush2.msra.mxu0 0.0
      %5254 = vmatprep.subr.mxu0 0.0
      %5255 = vmatpush2.msra.mxu0 0.0
      %5256 = vmatprep.subr.mxu0 0.0
      %5257 = vmatpush2.msra.mxu0 0.0
      %5258 = vmatprep.subr.mxu0 0.0
      %5259 = vmatpush2.msra.mxu0 0.0
      %5260 = vmatprep.subr.mxu0 0.0
      %5261 = vmatpush2.msra.mxu0 0.0
      %5262 = vmatprep.subr.mxu0 0.0
      %5263 = vmatpush2.msra.mxu0 0.0
      %5264 = vmatprep.subr.mxu0 0.0
      %5265 = vmatpush2.msra.mxu0 0.0
      %5266 = vmatprep.subr.mxu0 0.0
      %5267 = vmatpush2.msra.mxu0 0.0
      %5268 = vmatprep.subr.mxu0 0.0
      %5269 = vmatpush2.msra.mxu0 0.0
      %5270 = vmatprep.subr.mxu0 0.0
      %5271 = vmatpush2.msra.mxu0 0.0
      %5272 = vmatprep.subr.mxu0 0.0
      %5273 = vmatpush2.msra.mxu0 0.0
      %5274 = vmatprep.mubr.f32.mxu0 0.0
      %5275 = vmatmul.mubr.f32.gmra.mxu0 %v4606
      %v5276 = vpop.f32.mrf.mxu0
      %v5277 = vadd.f32 %v4597, %v5276
      %v5278 = vpop.f32.mrf.mxu0
      %v5279 = vadd.f32 %v4597, %v5278
      %5280 = vmatprep.mubr.f32.mxu0 0.0
      %5281 = vmatmul.mubr.f32.gmra.mxu0 %v4609
      %v5282 = vpop.f32.mrf.mxu0
      %v5283 = vadd.f32 %v4602, %v5282
      %v5284 = vpop.f32.mrf.mxu0
      %v5285 = vadd.f32 %v4602, %v5284
      %5286 = vdwg.mxu0
      %5287 = vmatprep.subr.mxu0 0.0
      %5288 = vmatpush1.msra.mxu0 0.0
      %5289 = vmatprep.subr.mxu0 0.0
      %5290 = vmatpush1.msra.mxu0 0.0
      %5291 = vmatprep.subr.mxu0 0.0
      %5292 = vmatpush1.msra.mxu0 0.0
      %5293 = vmatprep.subr.mxu0 0.0
      %5294 = vmatpush1.msra.mxu0 0.0
      %5295 = vmatprep.subr.mxu0 0.0
      %5296 = vmatpush1.msra.mxu0 0.0
      %5297 = vmatprep.subr.mxu0 0.0
      %5298 = vmatpush1.msra.mxu0 0.0
      %5299 = vmatprep.subr.mxu0 0.0
      %5300 = vmatpush1.msra.mxu0 0.0
      %5301 = vmatprep.subr.mxu0 0.0
      %5302 = vmatpush1.msra.mxu0 0.0
      %5303 = vmatprep.subr.mxu0 0.0
      %5304 = vmatpush1.msra.mxu0 0.0
      %5305 = vmatprep.subr.mxu0 %v4645
      %5306 = vmatpush1.msra.mxu0 %v4643
      %5307 = vmatprep.subr.mxu0 %v4577
      %5308 = vmatpush1.msra.mxu0 %v4576
      %5309 = vmatprep.subr.mxu0 %v4547
      %5310 = vmatpush1.msra.mxu0 %v4546
      %5311 = vmatprep.subr.mxu0 %v4517
      %5312 = vmatpush1.msra.mxu0 %v4516
      %5313 = vmatprep.subr.mxu0 %v4487
      %5314 = vmatpush1.msra.mxu0 %v4486
      %5315 = vmatprep.subr.mxu0 %v4457
      %5316 = vmatpush1.msra.mxu0 %v4456
      %5317 = vmatprep.subr.mxu0 %v4427
      %5318 = vmatpush1.msra.mxu0 %v4426
      %5319 = vmatprep.subr.mxu0 0.0
      %5320 = vmatpush2.msra.mxu0 0.0
      %5321 = vmatprep.subr.mxu0 0.0
      %5322 = vmatpush2.msra.mxu0 0.0
      %5323 = vmatprep.subr.mxu0 0.0
      %5324 = vmatpush2.msra.mxu0 0.0
      %5325 = vmatprep.subr.mxu0 0.0
      %5326 = vmatpush2.msra.mxu0 0.0
      %5327 = vmatprep.subr.mxu0 0.0
      %5328 = vmatpush2.msra.mxu0 0.0
      %5329 = vmatprep.subr.mxu0 0.0
      %5330 = vmatpush2.msra.mxu0 0.0
      %5331 = vmatprep.subr.mxu0 0.0
      %5332 = vmatpush2.msra.mxu0 0.0
      %5333 = vmatprep.subr.mxu0 0.0
      %5334 = vmatpush2.msra.mxu0 0.0
      %5335 = vmatprep.subr.mxu0 0.0
      %5336 = vmatpush2.msra.mxu0 0.0
      %5337 = vmatprep.subr.mxu0 0.0
      %5338 = vmatpush2.msra.mxu0 0.0
      %5339 = vmatprep.subr.mxu0 0.0
      %5340 = vmatpush2.msra.mxu0 0.0
      %5341 = vmatprep.subr.mxu0 0.0
      %5342 = vmatpush2.msra.mxu0 0.0
      %5343 = vmatprep.subr.mxu0 0.0
      %5344 = vmatpush2.msra.mxu0 0.0
      %5345 = vmatprep.subr.mxu0 0.0
      %5346 = vmatpush2.msra.mxu0 0.0
      %5347 = vmatprep.subr.mxu0 0.0
      %5348 = vmatpush2.msra.mxu0 0.0
      %5349 = vmatprep.subr.mxu0 0.0
      %5350 = vmatpush2.msra.mxu0 0.0
      %5351 = vmatprep.mubr.f32.mxu0 0.0
      %5352 = vmatmul.mubr.f32.gmra.mxu0 %v4606
      %v5353 = vpop.f32.mrf.mxu0
      %v5354 = vadd.f32 %v4597, %v5353
      %v5355 = vpop.f32.mrf.mxu0
      %v5356 = vadd.f32 %v4597, %v5355
      %5357 = vmatprep.mubr.f32.mxu0 0.0
      %5358 = vmatmul.mubr.f32.gmra.mxu0 %v4609
      %v5359 = vpop.f32.mrf.mxu0
      %v5360 = vadd.f32 %v4602, %v5359
      %v5361 = vpop.f32.mrf.mxu0
      %v5362 = vadd.f32 %v4602, %v5361
      %5363 = vdwg.mxu0
      %5364 = vmatprep.subr.mxu0 0.0
      %5365 = vmatpush1.msra.mxu0 0.0
      %5366 = vmatprep.subr.mxu0 0.0
      %5367 = vmatpush1.msra.mxu0 0.0
      %5368 = vmatprep.subr.mxu0 0.0
      %5369 = vmatpush1.msra.mxu0 0.0
      %5370 = vmatprep.subr.mxu0 0.0
      %5371 = vmatpush1.msra.mxu0 0.0
      %5372 = vmatprep.subr.mxu0 0.0
      %5373 = vmatpush1.msra.mxu0 0.0
      %5374 = vmatprep.subr.mxu0 0.0
      %5375 = vmatpush1.msra.mxu0 0.0
      %5376 = vmatprep.subr.mxu0 0.0
      %5377 = vmatpush1.msra.mxu0 0.0
      %5378 = vmatprep.subr.mxu0 0.0
      %5379 = vmatpush1.msra.mxu0 0.0
      %5380 = vmatprep.subr.mxu0 0.0
      %5381 = vmatpush1.msra.mxu0 0.0
      %5382 = vmatprep.subr.mxu0 %v4649
      %5383 = vmatpush1.msra.mxu0 %v4647
      %5384 = vmatprep.subr.mxu0 %v4579
      %5385 = vmatpush1.msra.mxu0 %v4578
      %5386 = vmatprep.subr.mxu0 %v4549
      %5387 = vmatpush1.msra.mxu0 %v4548
      %5388 = vmatprep.subr.mxu0 %v4519
      %5389 = vmatpush1.msra.mxu0 %v4518
      %5390 = vmatprep.subr.mxu0 %v4489
      %5391 = vmatpush1.msra.mxu0 %v4488
      %5392 = vmatprep.subr.mxu0 %v4459
      %5393 = vmatpush1.msra.mxu0 %v4458
      %5394 = vmatprep.subr.mxu0 %v4429
      %5395 = vmatpush1.msra.mxu0 %v4428
      %5396 = vmatprep.subr.mxu0 0.0
      %5397 = vmatpush2.msra.mxu0 0.0
      %5398 = vmatprep.subr.mxu0 0.0
      %5399 = vmatpush2.msra.mxu0 0.0
      %5400 = vmatprep.subr.mxu0 0.0
      %5401 = vmatpush2.msra.mxu0 0.0
      %5402 = vmatprep.subr.mxu0 0.0
      %5403 = vmatpush2.msra.mxu0 0.0
      %5404 = vmatprep.subr.mxu0 0.0
      %5405 = vmatpush2.msra.mxu0 0.0
      %5406 = vmatprep.subr.mxu0 0.0
      %5407 = vmatpush2.msra.mxu0 0.0
      %5408 = vmatprep.subr.mxu0 0.0
      %5409 = vmatpush2.msra.mxu0 0.0
      %5410 = vmatprep.subr.mxu0 0.0
      %5411 = vmatpush2.msra.mxu0 0.0
      %5412 = vmatprep.subr.mxu0 0.0
      %5413 = vmatpush2.msra.mxu0 0.0
      %5414 = vmatprep.subr.mxu0 0.0
      %5415 = vmatpush2.msra.mxu0 0.0
      %5416 = vmatprep.subr.mxu0 0.0
      %5417 = vmatpush2.msra.mxu0 0.0
      %5418 = vmatprep.subr.mxu0 0.0
      %5419 = vmatpush2.msra.mxu0 0.0
      %5420 = vmatprep.subr.mxu0 0.0
      %5421 = vmatpush2.msra.mxu0 0.0
      %5422 = vmatprep.subr.mxu0 0.0
      %5423 = vmatpush2.msra.mxu0 0.0
      %5424 = vmatprep.subr.mxu0 0.0
      %5425 = vmatpush2.msra.mxu0 0.0
      %5426 = vmatprep.subr.mxu0 0.0
      %5427 = vmatpush2.msra.mxu0 0.0
      %5428 = vmatprep.mubr.f32.mxu0 0.0
      %5429 = vmatmul.mubr.f32.gmra.mxu0 %v4606
      %v5430 = vpop.f32.mrf.mxu0
      %v5431 = vadd.f32 %v4597, %v5430
      %v5432 = vpop.f32.mrf.mxu0
      %v5433 = vadd.f32 %v4597, %v5432
      %5434 = vmatprep.mubr.f32.mxu0 0.0
      %5435 = vmatmul.mubr.f32.gmra.mxu0 %v4609
      %v5436 = vpop.f32.mrf.mxu0
      %v5437 = vadd.f32 %v4602, %v5436
      %v5438 = vpop.f32.mrf.mxu0
      %v5439 = vadd.f32 %v4602, %v5438
      %5440 = vdwg.mxu0
      %5441 = vmatprep.subr.mxu0 0.0
      %5442 = vmatpush1.msra.mxu0 0.0
      %5443 = vmatprep.subr.mxu0 0.0
      %5444 = vmatpush1.msra.mxu0 0.0
      %5445 = vmatprep.subr.mxu0 0.0
      %5446 = vmatpush1.msra.mxu0 0.0
      %5447 = vmatprep.subr.mxu0 0.0
      %5448 = vmatpush1.msra.mxu0 0.0
      %5449 = vmatprep.subr.mxu0 0.0
      %5450 = vmatpush1.msra.mxu0 0.0
      %5451 = vmatprep.subr.mxu0 0.0
      %5452 = vmatpush1.msra.mxu0 0.0
      %5453 = vmatprep.subr.mxu0 0.0
      %5454 = vmatpush1.msra.mxu0 0.0
      %5455 = vmatprep.subr.mxu0 0.0
      %5456 = vmatpush1.msra.mxu0 0.0
      %5457 = vmatprep.subr.mxu0 0.0
      %5458 = vmatpush1.msra.mxu0 0.0
      %5459 = vmatprep.subr.mxu0 %v4653
      %5460 = vmatpush1.msra.mxu0 %v4651
      %5461 = vmatprep.subr.mxu0 %v4581
      %5462 = vmatpush1.msra.mxu0 %v4580
      %5463 = vmatprep.subr.mxu0 %v4551
      %5464 = vmatpush1.msra.mxu0 %v4550
      %5465 = vmatprep.subr.mxu0 %v4521
      %5466 = vmatpush1.msra.mxu0 %v4520
      %5467 = vmatprep.subr.mxu0 %v4491
      %5468 = vmatpush1.msra.mxu0 %v4490
      %5469 = vmatprep.subr.mxu0 %v4461
      %5470 = vmatpush1.msra.mxu0 %v4460
      %5471 = vmatprep.subr.mxu0 %v4431
      %5472 = vmatpush1.msra.mxu0 %v4430
      %5473 = vmatprep.subr.mxu0 0.0
      %5474 = vmatpush2.msra.mxu0 0.0
      %5475 = vmatprep.subr.mxu0 0.0
      %5476 = vmatpush2.msra.mxu0 0.0
      %5477 = vmatprep.subr.mxu0 0.0
      %5478 = vmatpush2.msra.mxu0 0.0
      %5479 = vmatprep.subr.mxu0 0.0
      %5480 = vmatpush2.msra.mxu0 0.0
      %5481 = vmatprep.subr.mxu0 0.0
      %5482 = vmatpush2.msra.mxu0 0.0
      %5483 = vmatprep.subr.mxu0 0.0
      %5484 = vmatpush2.msra.mxu0 0.0
      %5485 = vmatprep.subr.mxu0 0.0
      %5486 = vmatpush2.msra.mxu0 0.0
      %5487 = vmatprep.subr.mxu0 0.0
      %5488 = vmatpush2.msra.mxu0 0.0
      %5489 = vmatprep.subr.mxu0 0.0
      %5490 = vmatpush2.msra.mxu0 0.0
      %5491 = vmatprep.subr.mxu0 0.0
      %5492 = vmatpush2.msra.mxu0 0.0
      %5493 = vmatprep.subr.mxu0 0.0
      %5494 = vmatpush2.msra.mxu0 0.0
      %5495 = vmatprep.subr.mxu0 0.0
      %5496 = vmatpush2.msra.mxu0 0.0
      %5497 = vmatprep.subr.mxu0 0.0
      %5498 = vmatpush2.msra.mxu0 0.0
      %5499 = vmatprep.subr.mxu0 0.0
      %5500 = vmatpush2.msra.mxu0 0.0
      %5501 = vmatprep.subr.mxu0 0.0
      %5502 = vmatpush2.msra.mxu0 0.0
      %5503 = vmatprep.subr.mxu0 0.0
      %5504 = vmatpush2.msra.mxu0 0.0
      %5505 = vmatprep.mubr.f32.mxu0 0.0
      %5506 = vmatmul.mubr.f32.gmra.mxu0 %v4606
      %v5507 = vpop.f32.mrf.mxu0
      %v5508 = vadd.f32 %v4597, %v5507
      %v5509 = vpop.f32.mrf.mxu0
      %v5510 = vadd.f32 %v4597, %v5509
      %5511 = vmatprep.mubr.f32.mxu0 0.0
      %5512 = vmatmul.mubr.f32.gmra.mxu0 %v4609
      %v5513 = vpop.f32.mrf.mxu0
      %v5514 = vadd.f32 %v4602, %v5513
      %v5515 = vpop.f32.mrf.mxu0
      %v5516 = vadd.f32 %v4602, %v5515
      %5517 = vdwg.mxu0
      %5518 = vmatprep.subr.mxu0 0.0
      %5519 = vmatpush1.msra.mxu0 0.0
      %5520 = vmatprep.subr.mxu0 0.0
      %5521 = vmatpush1.msra.mxu0 0.0
      %5522 = vmatprep.subr.mxu0 0.0
      %5523 = vmatpush1.msra.mxu0 0.0
      %5524 = vmatprep.subr.mxu0 0.0
      %5525 = vmatpush1.msra.mxu0 0.0
      %5526 = vmatprep.subr.mxu0 0.0
      %5527 = vmatpush1.msra.mxu0 0.0
      %5528 = vmatprep.subr.mxu0 0.0
      %5529 = vmatpush1.msra.mxu0 0.0
      %5530 = vmatprep.subr.mxu0 0.0
      %5531 = vmatpush1.msra.mxu0 0.0
      %5532 = vmatprep.subr.mxu0 0.0
      %5533 = vmatpush1.msra.mxu0 0.0
      %5534 = vmatprep.subr.mxu0 0.0
      %5535 = vmatpush1.msra.mxu0 0.0
      %5536 = vmatprep.subr.mxu0 %v4657
      %5537 = vmatpush1.msra.mxu0 %v4655
      %5538 = vmatprep.subr.mxu0 %v4583
      %5539 = vmatpush1.msra.mxu0 %v4582
      %5540 = vmatprep.subr.mxu0 %v4553
      %5541 = vmatpush1.msra.mxu0 %v4552
      %5542 = vmatprep.subr.mxu0 %v4523
      %5543 = vmatpush1.msra.mxu0 %v4522
      %5544 = vmatprep.subr.mxu0 %v4493
      %5545 = vmatpush1.msra.mxu0 %v4492
      %5546 = vmatprep.subr.mxu0 %v4463
      %5547 = vmatpush1.msra.mxu0 %v4462
      %5548 = vmatprep.subr.mxu0 %v4433
      %5549 = vmatpush1.msra.mxu0 %v4432
      %5550 = vmatprep.subr.mxu0 0.0
      %5551 = vmatpush2.msra.mxu0 0.0
      %5552 = vmatprep.subr.mxu0 0.0
      %5553 = vmatpush2.msra.mxu0 0.0
      %5554 = vmatprep.subr.mxu0 0.0
      %5555 = vmatpush2.msra.mxu0 0.0
      %5556 = vmatprep.subr.mxu0 0.0
      %5557 = vmatpush2.msra.mxu0 0.0
      %5558 = vmatprep.subr.mxu0 0.0
      %5559 = vmatpush2.msra.mxu0 0.0
      %5560 = vmatprep.subr.mxu0 0.0
      %5561 = vmatpush2.msra.mxu0 0.0
      %5562 = vmatprep.subr.mxu0 0.0
      %5563 = vmatpush2.msra.mxu0 0.0
      %5564 = vmatprep.subr.mxu0 0.0
      %5565 = vmatpush2.msra.mxu0 0.0
      %5566 = vmatprep.subr.mxu0 0.0
      %5567 = vmatpush2.msra.mxu0 0.0
      %5568 = vmatprep.subr.mxu0 0.0
      %5569 = vmatpush2.msra.mxu0 0.0
      %5570 = vmatprep.subr.mxu0 0.0
      %5571 = vmatpush2.msra.mxu0 0.0
      %5572 = vmatprep.subr.mxu0 0.0
      %5573 = vmatpush2.msra.mxu0 0.0
      %5574 = vmatprep.subr.mxu0 0.0
      %5575 = vmatpush2.msra.mxu0 0.0
      %5576 = vmatprep.subr.mxu0 0.0
      %5577 = vmatpush2.msra.mxu0 0.0
      %5578 = vmatprep.subr.mxu0 0.0
      %5579 = vmatpush2.msra.mxu0 0.0
      %5580 = vmatprep.subr.mxu0 0.0
      %5581 = vmatpush2.msra.mxu0 0.0
      %5582 = vmatprep.mubr.f32.mxu0 0.0
      %5583 = vmatmul.mubr.f32.gmra.mxu0 %v4606
      %v5584 = vpop.f32.mrf.mxu0
      %v5585 = vadd.f32 %v4597, %v5584
      %v5586 = vpop.f32.mrf.mxu0
      %v5587 = vadd.f32 %v4597, %v5586
      %5588 = vmatprep.mubr.f32.mxu0 0.0
      %5589 = vmatmul.mubr.f32.gmra.mxu0 %v4609
      %v5590 = vpop.f32.mrf.mxu0
      %v5591 = vadd.f32 %v4602, %v5590
      %v5592 = vpop.f32.mrf.mxu0
      %v5593 = vadd.f32 %v4602, %v5592
      %5594 = vdwg.mxu0
      %5595 = vmatprep.subr.mxu0 0.0
      %5596 = vmatpush1.msra.mxu0 0.0
      %5597 = vmatprep.subr.mxu0 0.0
      %5598 = vmatpush1.msra.mxu0 0.0
      %5599 = vmatprep.subr.mxu0 0.0
      %5600 = vmatpush1.msra.mxu0 0.0
      %5601 = vmatprep.subr.mxu0 0.0
      %5602 = vmatpush1.msra.mxu0 0.0
      %5603 = vmatprep.subr.mxu0 0.0
      %5604 = vmatpush1.msra.mxu0 0.0
      %5605 = vmatprep.subr.mxu0 0.0
      %5606 = vmatpush1.msra.mxu0 0.0
      %5607 = vmatprep.subr.mxu0 0.0
      %5608 = vmatpush1.msra.mxu0 0.0
      %5609 = vmatprep.subr.mxu0 0.0
      %5610 = vmatpush1.msra.mxu0 0.0
      %5611 = vmatprep.subr.mxu0 0.0
      %5612 = vmatpush1.msra.mxu0 0.0
      %5613 = vmatprep.subr.mxu0 %v4661
      %5614 = vmatpush1.msra.mxu0 %v4659
      %5615 = vmatprep.subr.mxu0 %v4585
      %5616 = vmatpush1.msra.mxu0 %v4584
      %5617 = vmatprep.subr.mxu0 %v4555
      %5618 = vmatpush1.msra.mxu0 %v4554
      %5619 = vmatprep.subr.mxu0 %v4525
      %5620 = vmatpush1.msra.mxu0 %v4524
      %5621 = vmatprep.subr.mxu0 %v4495
      %5622 = vmatpush1.msra.mxu0 %v4494
      %5623 = vmatprep.subr.mxu0 %v4465
      %5624 = vmatpush1.msra.mxu0 %v4464
      %5625 = vmatprep.subr.mxu0 %v4435
      %5626 = vmatpush1.msra.mxu0 %v4434
      %5627 = vmatprep.subr.mxu0 0.0
      %5628 = vmatpush2.msra.mxu0 0.0
      %5629 = vmatprep.subr.mxu0 0.0
      %5630 = vmatpush2.msra.mxu0 0.0
      %5631 = vmatprep.subr.mxu0 0.0
      %5632 = vmatpush2.msra.mxu0 0.0
      %5633 = vmatprep.subr.mxu0 0.0
      %5634 = vmatpush2.msra.mxu0 0.0
      %5635 = vmatprep.subr.mxu0 0.0
      %5636 = vmatpush2.msra.mxu0 0.0
      %5637 = vmatprep.subr.mxu0 0.0
      %5638 = vmatpush2.msra.mxu0 0.0
      %5639 = vmatprep.subr.mxu0 0.0
      %5640 = vmatpush2.msra.mxu0 0.0
      %5641 = vmatprep.subr.mxu0 0.0
      %5642 = vmatpush2.msra.mxu0 0.0
      %5643 = vmatprep.subr.mxu0 0.0
      %5644 = vmatpush2.msra.mxu0 0.0
      %5645 = vmatprep.subr.mxu0 0.0
      %5646 = vmatpush2.msra.mxu0 0.0
      %5647 = vmatprep.subr.mxu0 0.0
      %5648 = vmatpush2.msra.mxu0 0.0
      %5649 = vmatprep.subr.mxu0 0.0
      %5650 = vmatpush2.msra.mxu0 0.0
      %5651 = vmatprep.subr.mxu0 0.0
      %5652 = vmatpush2.msra.mxu0 0.0
      %5653 = vmatprep.subr.mxu0 0.0
      %5654 = vmatpush2.msra.mxu0 0.0
      %5655 = vmatprep.subr.mxu0 0.0
      %5656 = vmatpush2.msra.mxu0 0.0
      %5657 = vmatprep.subr.mxu0 0.0
      %5658 = vmatpush2.msra.mxu0 0.0
      %5659 = vmatprep.mubr.f32.mxu0 0.0
      %5660 = vmatmul.mubr.f32.gmra.mxu0 %v4606
      %v5661 = vpop.f32.mrf.mxu0
      %v5662 = vadd.f32 %v4597, %v5661
      %v5663 = vpop.f32.mrf.mxu0
      %v5664 = vadd.f32 %v4597, %v5663
      %5665 = vmatprep.mubr.f32.mxu0 0.0
      %5666 = vmatmul.mubr.f32.gmra.mxu0 %v4609
      %v5667 = vpop.f32.mrf.mxu0
      %v5668 = vadd.f32 %v4602, %v5667
      %v5669 = vpop.f32.mrf.mxu0
      %v5670 = vadd.f32 %v4602, %v5669
      %5671 = vdwg.mxu0
      %5672 = vmatprep.subr.mxu0 0.0
      %5673 = vmatpush1.msra.mxu0 0.0
      %5674 = vmatprep.subr.mxu0 0.0
      %5675 = vmatpush1.msra.mxu0 0.0
      %5676 = vmatprep.subr.mxu0 0.0
      %5677 = vmatpush1.msra.mxu0 0.0
      %5678 = vmatprep.subr.mxu0 0.0
      %5679 = vmatpush1.msra.mxu0 0.0
      %5680 = vmatprep.subr.mxu0 0.0
      %5681 = vmatpush1.msra.mxu0 0.0
      %5682 = vmatprep.subr.mxu0 0.0
      %5683 = vmatpush1.msra.mxu0 0.0
      %5684 = vmatprep.subr.mxu0 0.0
      %5685 = vmatpush1.msra.mxu0 0.0
      %5686 = vmatprep.subr.mxu0 0.0
      %5687 = vmatpush1.msra.mxu0 0.0
      %5688 = vmatprep.subr.mxu0 0.0
      %5689 = vmatpush1.msra.mxu0 0.0
      %5690 = vmatprep.subr.mxu0 %v4665
      %5691 = vmatpush1.msra.mxu0 %v4663
      %5692 = vmatprep.subr.mxu0 %v4587
      %5693 = vmatpush1.msra.mxu0 %v4586
      %5694 = vmatprep.subr.mxu0 %v4557
      %5695 = vmatpush1.msra.mxu0 %v4556
      %5696 = vmatprep.subr.mxu0 %v4527
      %5697 = vmatpush1.msra.mxu0 %v4526
      %5698 = vmatprep.subr.mxu0 %v4497
      %5699 = vmatpush1.msra.mxu0 %v4496
      %5700 = vmatprep.subr.mxu0 %v4467
      %5701 = vmatpush1.msra.mxu0 %v4466
      %5702 = vmatprep.subr.mxu0 %v4437
      %5703 = vmatpush1.msra.mxu0 %v4436
      %5704 = vmatprep.subr.mxu0 0.0
      %5705 = vmatpush2.msra.mxu0 0.0
      %5706 = vmatprep.subr.mxu0 0.0
      %5707 = vmatpush2.msra.mxu0 0.0
      %5708 = vmatprep.subr.mxu0 0.0
      %5709 = vmatpush2.msra.mxu0 0.0
      %5710 = vmatprep.subr.mxu0 0.0
      %5711 = vmatpush2.msra.mxu0 0.0
      %5712 = vmatprep.subr.mxu0 0.0
      %5713 = vmatpush2.msra.mxu0 0.0
      %5714 = vmatprep.subr.mxu0 0.0
      %5715 = vmatpush2.msra.mxu0 0.0
      %5716 = vmatprep.subr.mxu0 0.0
      %5717 = vmatpush2.msra.mxu0 0.0
      %5718 = vmatprep.subr.mxu0 0.0
      %5719 = vmatpush2.msra.mxu0 0.0
      %5720 = vmatprep.subr.mxu0 0.0
      %5721 = vmatpush2.msra.mxu0 0.0
      %5722 = vmatprep.subr.mxu0 0.0
      %5723 = vmatpush2.msra.mxu0 0.0
      %5724 = vmatprep.subr.mxu0 0.0
      %5725 = vmatpush2.msra.mxu0 0.0
      %5726 = vmatprep.subr.mxu0 0.0
      %5727 = vmatpush2.msra.mxu0 0.0
      %5728 = vmatprep.subr.mxu0 0.0
      %5729 = vmatpush2.msra.mxu0 0.0
      %5730 = vmatprep.subr.mxu0 0.0
      %5731 = vmatpush2.msra.mxu0 0.0
      %5732 = vmatprep.subr.mxu0 0.0
      %5733 = vmatpush2.msra.mxu0 0.0
      %5734 = vmatprep.subr.mxu0 0.0
      %5735 = vmatpush2.msra.mxu0 0.0
      %5736 = vmatprep.mubr.f32.mxu0 0.0
      %5737 = vmatmul.mubr.f32.gmra.mxu0 %v4606
      %v5738 = vpop.f32.mrf.mxu0
      %v5739 = vadd.f32 %v4597, %v5738
      %v5740 = vpop.f32.mrf.mxu0
      %v5741 = vadd.f32 %v4597, %v5740
      %5742 = vmatprep.mubr.f32.mxu0 0.0
      %5743 = vmatmul.mubr.f32.gmra.mxu0 %v4609
      %v5744 = vpop.f32.mrf.mxu0
      %v5745 = vadd.f32 %v4602, %v5744
      %v5746 = vpop.f32.mrf.mxu0
      %v5747 = vadd.f32 %v4602, %v5746
      %5748 = vdwg.mxu0
      %5749 = vmatprep.subr.mxu0 0.0
      %5750 = vmatpush1.msra.mxu0 0.0
      %5751 = vmatprep.subr.mxu0 0.0
      %5752 = vmatpush1.msra.mxu0 0.0
      %5753 = vmatprep.subr.mxu0 0.0
      %5754 = vmatpush1.msra.mxu0 0.0
      %5755 = vmatprep.subr.mxu0 0.0
      %5756 = vmatpush1.msra.mxu0 0.0
      %5757 = vmatprep.subr.mxu0 0.0
      %5758 = vmatpush1.msra.mxu0 0.0
      %5759 = vmatprep.subr.mxu0 0.0
      %5760 = vmatpush1.msra.mxu0 0.0
      %5761 = vmatprep.subr.mxu0 0.0
      %5762 = vmatpush1.msra.mxu0 0.0
      %5763 = vmatprep.subr.mxu0 0.0
      %5764 = vmatpush1.msra.mxu0 0.0
      %5765 = vmatprep.subr.mxu0 0.0
      %5766 = vmatpush1.msra.mxu0 0.0
      %5767 = vmatprep.subr.mxu0 %v4669
      %5768 = vmatpush1.msra.mxu0 %v4667
      %5769 = vmatprep.subr.mxu0 %v4589
      %5770 = vmatpush1.msra.mxu0 %v4588
      %5771 = vmatprep.subr.mxu0 %v4559
      %5772 = vmatpush1.msra.mxu0 %v4558
      %5773 = vmatprep.subr.mxu0 %v4529
      %5774 = vmatpush1.msra.mxu0 %v4528
      %5775 = vmatprep.subr.mxu0 %v4499
      %5776 = vmatpush1.msra.mxu0 %v4498
      %5777 = vmatprep.subr.mxu0 %v4469
      %5778 = vmatpush1.msra.mxu0 %v4468
      %5779 = vmatprep.subr.mxu0 %v4439
      %5780 = vmatpush1.msra.mxu0 %v4438
      %5781 = vmatprep.subr.mxu0 0.0
      %5782 = vmatpush2.msra.mxu0 0.0
      %5783 = vmatprep.subr.mxu0 0.0
      %5784 = vmatpush2.msra.mxu0 0.0
      %5785 = vmatprep.subr.mxu0 0.0
      %5786 = vmatpush2.msra.mxu0 0.0
      %5787 = vmatprep.subr.mxu0 0.0
      %5788 = vmatpush2.msra.mxu0 0.0
      %5789 = vmatprep.subr.mxu0 0.0
      %5790 = vmatpush2.msra.mxu0 0.0
      %5791 = vmatprep.subr.mxu0 0.0
      %5792 = vmatpush2.msra.mxu0 0.0
      %5793 = vmatprep.subr.mxu0 0.0
      %5794 = vmatpush2.msra.mxu0 0.0
      %5795 = vmatprep.subr.mxu0 0.0
      %5796 = vmatpush2.msra.mxu0 0.0
      %5797 = vmatprep.subr.mxu0 0.0
      %5798 = vmatpush2.msra.mxu0 0.0
      %5799 = vmatprep.subr.mxu0 0.0
      %5800 = vmatpush2.msra.mxu0 0.0
      %5801 = vmatprep.subr.mxu0 0.0
      %5802 = vmatpush2.msra.mxu0 0.0
      %5803 = vmatprep.subr.mxu0 0.0
      %5804 = vmatpush2.msra.mxu0 0.0
      %5805 = vmatprep.subr.mxu0 0.0
      %5806 = vmatpush2.msra.mxu0 0.0
      %5807 = vmatprep.subr.mxu0 0.0
      %5808 = vmatpush2.msra.mxu0 0.0
      %5809 = vmatprep.subr.mxu0 0.0
      %5810 = vmatpush2.msra.mxu0 0.0
      %5811 = vmatprep.subr.mxu0 0.0
      %5812 = vmatpush2.msra.mxu0 0.0
      %5813 = vmatprep.mubr.f32.mxu0 0.0
      %5814 = vmatmul.mubr.f32.gmra.mxu0 %v4606
      %v5815 = vpop.f32.mrf.mxu0
      %v5816 = vadd.f32 %v4597, %v5815
      %v5817 = vpop.f32.mrf.mxu0
      %v5818 = vadd.f32 %v4597, %v5817
      %5819 = vmatprep.mubr.f32.mxu0 0.0
      %5820 = vmatmul.mubr.f32.gmra.mxu0 %v4609
      %v5821 = vpop.f32.mrf.mxu0
      %v5822 = vadd.f32 %v4602, %v5821
      %v5823 = vpop.f32.mrf.mxu0
      %v5824 = vadd.f32 %v4602, %v5823
      %5825 = vdwg.mxu0
      %v5826 = vmax.f32 %v4738, 0.0
      %v5827 = vmax.f32 %v4740, 0.0
      %v5828 = vmax.f32 %v4815, 0.0
      %v5829 = vmax.f32 %v4817, 0.0
      %v5830 = vmax.f32 %v4892, 0.0
      %v5831 = vmax.f32 %v4894, 0.0
      %v5832 = vmax.f32 %v4969, 0.0
      %v5833 = vmax.f32 %v4971, 0.0
      %v5834 = vmax.f32 %v5046, 0.0
      %v5835 = vmax.f32 %v5048, 0.0
      %v5836 = vmax.f32 %v5123, 0.0
      %v5837 = vmax.f32 %v5125, 0.0
      %v5838 = vmax.f32 %v5200, 0.0
      %v5839 = vmax.f32 %v5202, 0.0
      %v5840 = vmax.f32 %v5277, 0.0
      %v5841 = vmax.f32 %v5279, 0.0
      %v5842 = vmax.f32 %v5354, 0.0
      %v5843 = vmax.f32 %v5356, 0.0
      %v5844 = vmax.f32 %v5431, 0.0
      %v5845 = vmax.f32 %v5433, 0.0
      %v5846 = vmax.f32 %v5508, 0.0
      %v5847 = vmax.f32 %v5510, 0.0
      %v5848 = vmax.f32 %v5585, 0.0
      %v5849 = vmax.f32 %v5587, 0.0
      %v5850 = vmax.f32 %v5662, 0.0
      %v5851 = vmax.f32 %v5664, 0.0
      %v5852 = vmax.f32 %v5739, 0.0
      %v5853 = vmax.f32 %v5741, 0.0
      %v5854 = vmax.f32 %v5816, 0.0
      %v5855 = vmax.f32 %v5818, 0.0
      %v5856 = vmax.f32 %v4744, 0.0
      %v5857 = vmax.f32 %v4746, 0.0
      %v5858 = vmax.f32 %v4821, 0.0
      %v5859 = vmax.f32 %v4823, 0.0
      %v5860 = vmax.f32 %v4898, 0.0
      %v5861 = vmax.f32 %v4900, 0.0
      %v5862 = vmax.f32 %v4975, 0.0
      %v5863 = vmax.f32 %v4977, 0.0
      %v5864 = vmax.f32 %v5052, 0.0
      %v5865 = vmax.f32 %v5054, 0.0
      %v5866 = vmax.f32 %v5129, 0.0
      %v5867 = vmax.f32 %v5131, 0.0
      %v5868 = vmax.f32 %v5206, 0.0
      %v5869 = vmax.f32 %v5208, 0.0
      %v5870 = vmax.f32 %v5283, 0.0
      %v5871 = vmax.f32 %v5285, 0.0
      %v5872 = vmax.f32 %v5360, 0.0
      %v5873 = vmax.f32 %v5362, 0.0
      %v5874 = vmax.f32 %v5437, 0.0
      %v5875 = vmax.f32 %v5439, 0.0
      %v5876 = vmax.f32 %v5514, 0.0
      %v5877 = vmax.f32 %v5516, 0.0
      %v5878 = vmax.f32 %v5591, 0.0
      %v5879 = vmax.f32 %v5593, 0.0
      %v5880 = vmax.f32 %v5668, 0.0
      %v5881 = vmax.f32 %v5670, 0.0
      %v5882 = vmax.f32 %v5745, 0.0
      %v5883 = vmax.f32 %v5747, 0.0
      %v5884 = vmax.f32 %v5822, 0.0
      %v5885 = vmax.f32 %v5824, 0.0
      %5940 = vrot.lane.b32.xlu0 %v5826, 126
      %v5941 = vpop.permute.xlu0 %5940
      %5942 = vrot.lane.b32.xlu0 %v5827, 126
      %v5943 = vpop.permute.xlu0 %5942
      %5944 = vrot.lane.b32.xlu0 %v5828, 126
      %v5945 = vpop.permute.xlu0 %5944
      %5946 = vrot.lane.b32.xlu0 %v5829, 126
      %v5947 = vpop.permute.xlu0 %5946
      %5948 = vrot.lane.b32.xlu0 %v5830, 126
      %v5949 = vpop.permute.xlu0 %5948
      %5950 = vrot.lane.b32.xlu0 %v5831, 126
      %v5951 = vpop.permute.xlu0 %5950
      %5952 = vrot.lane.b32.xlu0 %v5832, 126
      %v5953 = vpop.permute.xlu0 %5952
      %5954 = vrot.lane.b32.xlu0 %v5834, 126
      %v5955 = vpop.permute.xlu0 %5954
      %5956 = vrot.lane.b32.xlu0 %v5835, 126
      %v5957 = vpop.permute.xlu0 %5956
      %5958 = vrot.lane.b32.xlu0 %v5836, 126
      %v5959 = vpop.permute.xlu0 %5958
      %5960 = vrot.lane.b32.xlu0 %v5837, 126
      %v5961 = vpop.permute.xlu0 %5960
      %5962 = vrot.lane.b32.xlu0 %v5838, 126
      %v5963 = vpop.permute.xlu0 %5962
      %5964 = vrot.lane.b32.xlu0 %v5839, 126
      %v5965 = vpop.permute.xlu0 %5964
      %5966 = vrot.lane.b32.xlu0 %v5840, 126
      %v5967 = vpop.permute.xlu0 %5966
      %5968 = vrot.lane.b32.xlu0 %v5842, 126
      %v5969 = vpop.permute.xlu0 %5968
      %5970 = vrot.lane.b32.xlu0 %v5843, 126
      %v5971 = vpop.permute.xlu0 %5970
      %5972 = vrot.lane.b32.xlu0 %v5844, 126
      %v5973 = vpop.permute.xlu0 %5972
      %5974 = vrot.lane.b32.xlu0 %v5845, 126
      %v5975 = vpop.permute.xlu0 %5974
      %5976 = vrot.lane.b32.xlu0 %v5846, 126
      %v5977 = vpop.permute.xlu0 %5976
      %5978 = vrot.lane.b32.xlu0 %v5847, 126
      %v5979 = vpop.permute.xlu0 %5978
      %5980 = vrot.lane.b32.xlu0 %v5848, 126
      %v5981 = vpop.permute.xlu0 %5980
      %5982 = vrot.lane.b32.xlu0 %v5850, 126
      %v5983 = vpop.permute.xlu0 %5982
      %5984 = vrot.lane.b32.xlu0 %v5851, 126
      %v5985 = vpop.permute.xlu0 %5984
      %5986 = vrot.lane.b32.xlu0 %v5852, 126
      %v5987 = vpop.permute.xlu0 %5986
      %5988 = vrot.lane.b32.xlu0 %v5853, 126
      %v5989 = vpop.permute.xlu0 %5988
      %5990 = vrot.lane.b32.xlu0 %v5854, 126
      %v5991 = vpop.permute.xlu0 %5990
      %5992 = vrot.lane.b32.xlu0 %v5855, 126
      %v5993 = vpop.permute.xlu0 %5992
      %5994 = vrot.lane.b32.xlu0 %v5856, 126
      %v5995 = vpop.permute.xlu0 %5994
      %5996 = vrot.lane.b32.xlu0 %v5857, 126
      %v5997 = vpop.permute.xlu0 %5996
      %5998 = vrot.lane.b32.xlu0 %v5858, 126
      %v5999 = vpop.permute.xlu0 %5998
      %6000 = vrot.lane.b32.xlu0 %v5859, 126
      %v6001 = vpop.permute.xlu0 %6000
      %6002 = vrot.lane.b32.xlu0 %v5860, 126
      %v6003 = vpop.permute.xlu0 %6002
      %6004 = vrot.lane.b32.xlu0 %v5861, 126
      %v6005 = vpop.permute.xlu0 %6004
      %6006 = vrot.lane.b32.xlu0 %v5862, 126
      %v6007 = vpop.permute.xlu0 %6006
      %6008 = vrot.lane.b32.xlu0 %v5864, 126
      %v6009 = vpop.permute.xlu0 %6008
      %6010 = vrot.lane.b32.xlu0 %v5865, 126
      %v6011 = vpop.permute.xlu0 %6010
      %6012 = vrot.lane.b32.xlu0 %v5866, 126
      %v6013 = vpop.permute.xlu0 %6012
      %6014 = vrot.lane.b32.xlu0 %v5867, 126
      %v6015 = vpop.permute.xlu0 %6014
      %6016 = vrot.lane.b32.xlu0 %v5868, 126
      %v6017 = vpop.permute.xlu0 %6016
      %6018 = vrot.lane.b32.xlu0 %v5869, 126
      %v6019 = vpop.permute.xlu0 %6018
      %6020 = vrot.lane.b32.xlu0 %v5870, 126
      %v6021 = vpop.permute.xlu0 %6020
      %6022 = vrot.lane.b32.xlu0 %v5872, 126
      %v6023 = vpop.permute.xlu0 %6022
      %6024 = vrot.lane.b32.xlu0 %v5873, 126
      %v6025 = vpop.permute.xlu0 %6024
      %6026 = vrot.lane.b32.xlu0 %v5874, 126
      %v6027 = vpop.permute.xlu0 %6026
      %6028 = vrot.lane.b32.xlu0 %v5875, 126
      %v6029 = vpop.permute.xlu0 %6028
      %6030 = vrot.lane.b32.xlu0 %v5876, 126
      %v6031 = vpop.permute.xlu0 %6030
      %6032 = vrot.lane.b32.xlu0 %v5877, 126
      %v6033 = vpop.permute.xlu0 %6032
      %6034 = vrot.lane.b32.xlu0 %v5878, 126
      %v6035 = vpop.permute.xlu0 %6034
      %6036 = vrot.lane.b32.xlu0 %v5880, 126
      %v6037 = vpop.permute.xlu0 %6036
      %6038 = vrot.lane.b32.xlu0 %v5881, 126
      %v6039 = vpop.permute.xlu0 %6038
      %6040 = vrot.lane.b32.xlu0 %v5882, 126
      %v6041 = vpop.permute.xlu0 %6040
      %6042 = vrot.lane.b32.xlu0 %v5883, 126
      %v6043 = vpop.permute.xlu0 %6042
      %6044 = vrot.lane.b32.xlu0 %v5884, 126
      %v6045 = vpop.permute.xlu0 %6044
      %6046 = vrot.lane.b32.xlu0 %v5885, 126
      %v6047 = vpop.permute.xlu0 %6046
      %v6048 = vsel %vm812, %v5941, %v5943
      %v6049 = vsel %vm812, %v5943, %v5945
      %v6050 = vsel %vm812, %v5945, %v5947
      %v6051 = vsel %vm812, %v5947, %v5949
      %v6052 = vsel %vm812, %v5949, %v5951
      %v6053 = vsel %vm812, %v5951, %v5953
      %v6054 = vsel %vm812, %v5955, %v5957
      %v6055 = vsel %vm812, %v5957, %v5959
      %v6056 = vsel %vm812, %v5959, %v5961
      %v6057 = vsel %vm812, %v5961, %v5963
      %v6058 = vsel %vm812, %v5963, %v5965
      %v6059 = vsel %vm812, %v5965, %v5967
      %v6060 = vsel %vm812, %v5969, %v5971
      %v6061 = vsel %vm812, %v5971, %v5973
      %v6062 = vsel %vm812, %v5973, %v5975
      %v6063 = vsel %vm812, %v5975, %v5977
      %v6064 = vsel %vm812, %v5977, %v5979
      %v6065 = vsel %vm812, %v5979, %v5981
      %v6066 = vsel %vm812, %v5983, %v5985
      %v6067 = vsel %vm812, %v5985, %v5987
      %v6068 = vsel %vm812, %v5987, %v5989
      %v6069 = vsel %vm812, %v5989, %v5991
      %v6070 = vsel %vm812, %v5991, %v5993
      %v6071 = vsel %vm812, %v5995, %v5997
      %v6072 = vsel %vm812, %v5997, %v5999
      %v6073 = vsel %vm812, %v5999, %v6001
      %v6074 = vsel %vm812, %v6001, %v6003
      %v6075 = vsel %vm812, %v6003, %v6005
      %v6076 = vsel %vm812, %v6005, %v6007
      %v6077 = vsel %vm812, %v6009, %v6011
      %v6078 = vsel %vm812, %v6011, %v6013
      %v6079 = vsel %vm812, %v6013, %v6015
      %v6080 = vsel %vm812, %v6015, %v6017
      %v6081 = vsel %vm812, %v6017, %v6019
      %v6082 = vsel %vm812, %v6019, %v6021
      %v6083 = vsel %vm812, %v6023, %v6025
      %v6084 = vsel %vm812, %v6025, %v6027
      %v6085 = vsel %vm812, %v6027, %v6029
      %v6086 = vsel %vm812, %v6029, %v6031
      %v6087 = vsel %vm812, %v6031, %v6033
      %v6088 = vsel %vm812, %v6033, %v6035
      %v6089 = vsel %vm812, %v6037, %v6039
      %v6090 = vsel %vm812, %v6039, %v6041
      %v6091 = vsel %vm812, %v6041, %v6043
      %v6092 = vsel %vm812, %v6043, %v6045
      %v6093 = vsel %vm812, %v6045, %v6047
      %v6142 = vmax.f32 %v5826, %v6048
      %v6143 = vmax.f32 %v5827, %v6049
      %v6144 = vmax.f32 %v5828, %v6050
      %v6145 = vmax.f32 %v5829, %v6051
      %v6146 = vmax.f32 %v5830, %v6052
      %v6147 = vmax.f32 %v5831, %v6053
      %v6148 = vmax.f32 %v5834, %v6054
      %v6149 = vmax.f32 %v5835, %v6055
      %v6150 = vmax.f32 %v5836, %v6056
      %v6151 = vmax.f32 %v5837, %v6057
      %v6152 = vmax.f32 %v5838, %v6058
      %v6153 = vmax.f32 %v5839, %v6059
      %v6154 = vmax.f32 %v5842, %v6060
      %v6155 = vmax.f32 %v5843, %v6061
      %v6156 = vmax.f32 %v5844, %v6062
      %v6157 = vmax.f32 %v5845, %v6063
      %v6158 = vmax.f32 %v5846, %v6064
      %v6159 = vmax.f32 %v5847, %v6065
      %v6160 = vmax.f32 %v5850, %v6066
      %v6161 = vmax.f32 %v5851, %v6067
      %v6162 = vmax.f32 %v5852, %v6068
      %v6163 = vmax.f32 %v5853, %v6069
      %v6164 = vmax.f32 %v5854, %v6070
      %v6165 = vmax.f32 %v5855, %v5993
      %v6166 = vmax.f32 %v5856, %v6071
      %v6167 = vmax.f32 %v5857, %v6072
      %v6168 = vmax.f32 %v5858, %v6073
      %v6169 = vmax.f32 %v5859, %v6074
      %v6170 = vmax.f32 %v5860, %v6075
      %v6171 = vmax.f32 %v5861, %v6076
      %v6172 = vmax.f32 %v5864, %v6077
      %v6173 = vmax.f32 %v5865, %v6078
      %v6174 = vmax.f32 %v5866, %v6079
      %v6175 = vmax.f32 %v5867, %v6080
      %v6176 = vmax.f32 %v5868, %v6081
      %v6177 = vmax.f32 %v5869, %v6082
      %v6178 = vmax.f32 %v5872, %v6083
      %v6179 = vmax.f32 %v5873, %v6084
      %v6180 = vmax.f32 %v5874, %v6085
      %v6181 = vmax.f32 %v5875, %v6086
      %v6182 = vmax.f32 %v5876, %v6087
      %v6183 = vmax.f32 %v5877, %v6088
      %v6184 = vmax.f32 %v5880, %v6089
      %v6185 = vmax.f32 %v5881, %v6090
      %v6186 = vmax.f32 %v5882, %v6091
      %v6187 = vmax.f32 %v5883, %v6092
      %v6188 = vmax.f32 %v5884, %v6093
      %v6189 = vmax.f32 %v5885, %v6047
      %6196 = vrot.lane.b32.xlu0 %v5833, 126
      %v6197 = vpop.permute.xlu0 %6196
      %6198 = vrot.lane.b32.xlu0 %v5841, 126
      %v6199 = vpop.permute.xlu0 %6198
      %6200 = vrot.lane.b32.xlu0 %v5849, 126
      %v6201 = vpop.permute.xlu0 %6200
      %6202 = vrot.lane.b32.xlu0 %v5863, 126
      %v6203 = vpop.permute.xlu0 %6202
      %6204 = vrot.lane.b32.xlu0 %v5871, 126
      %v6205 = vpop.permute.xlu0 %6204
      %6206 = vrot.lane.b32.xlu0 %v5879, 126
      %v6207 = vpop.permute.xlu0 %6206
      %v6208 = vsel %vm812, %v5953, %v6197
      %v6209 = vsel %vm812, %v5967, %v6199
      %v6210 = vsel %vm812, %v5981, %v6201
      %v6211 = vsel %vm812, %v6007, %v6203
      %v6212 = vsel %vm812, %v6021, %v6205
      %v6213 = vsel %vm812, %v6035, %v6207
      %v6220 = vmax.f32 %v5832, %v6208
      %v6221 = vmax.f32 %v5840, %v6209
      %v6222 = vmax.f32 %v5848, %v6210
      %v6223 = vmax.f32 %v5862, %v6211
      %v6224 = vmax.f32 %v5870, %v6212
      %v6225 = vmax.f32 %v5878, %v6213
      %6280 = vrot.lane.b32.xlu0 %v6142, 64
      %v6281 = vpop.permute.xlu0 %6280
      %6282 = vrot.lane.b32.xlu0 %v6143, 64
      %v6283 = vpop.permute.xlu0 %6282
      %6284 = vrot.lane.b32.xlu0 %v6144, 64
      %v6285 = vpop.permute.xlu0 %6284
      %6286 = vrot.lane.b32.xlu0 %v6145, 64
      %v6287 = vpop.permute.xlu0 %6286
      %6288 = vrot.lane.b32.xlu0 %v6146, 64
      %v6289 = vpop.permute.xlu0 %6288
      %6290 = vrot.lane.b32.xlu0 %v6147, 64
      %v6291 = vpop.permute.xlu0 %6290
      %6292 = vrot.lane.b32.xlu0 %v6220, 64
      %v6293 = vpop.permute.xlu0 %6292
      %6294 = vrot.lane.b32.xlu0 %v6148, 64
      %v6295 = vpop.permute.xlu0 %6294
      %6296 = vrot.lane.b32.xlu0 %v6149, 64
      %v6297 = vpop.permute.xlu0 %6296
      %6298 = vrot.lane.b32.xlu0 %v6150, 64
      %v6299 = vpop.permute.xlu0 %6298
      %6300 = vrot.lane.b32.xlu0 %v6151, 64
      %v6301 = vpop.permute.xlu0 %6300
      %6302 = vrot.lane.b32.xlu0 %v6152, 64
      %v6303 = vpop.permute.xlu0 %6302
      %6304 = vrot.lane.b32.xlu0 %v6153, 64
      %v6305 = vpop.permute.xlu0 %6304
      %6306 = vrot.lane.b32.xlu0 %v6221, 64
      %v6307 = vpop.permute.xlu0 %6306
      %6308 = vrot.lane.b32.xlu0 %v6154, 64
      %v6309 = vpop.permute.xlu0 %6308
      %6310 = vrot.lane.b32.xlu0 %v6155, 64
      %v6311 = vpop.permute.xlu0 %6310
      %6312 = vrot.lane.b32.xlu0 %v6156, 64
      %v6313 = vpop.permute.xlu0 %6312
      %6314 = vrot.lane.b32.xlu0 %v6157, 64
      %v6315 = vpop.permute.xlu0 %6314
      %6316 = vrot.lane.b32.xlu0 %v6158, 64
      %v6317 = vpop.permute.xlu0 %6316
      %6318 = vrot.lane.b32.xlu0 %v6159, 64
      %v6319 = vpop.permute.xlu0 %6318
      %6320 = vrot.lane.b32.xlu0 %v6222, 64
      %v6321 = vpop.permute.xlu0 %6320
      %6322 = vrot.lane.b32.xlu0 %v6160, 64
      %v6323 = vpop.permute.xlu0 %6322
      %6324 = vrot.lane.b32.xlu0 %v6161, 64
      %v6325 = vpop.permute.xlu0 %6324
      %6326 = vrot.lane.b32.xlu0 %v6162, 64
      %v6327 = vpop.permute.xlu0 %6326
      %6328 = vrot.lane.b32.xlu0 %v6163, 64
      %v6329 = vpop.permute.xlu0 %6328
      %6330 = vrot.lane.b32.xlu0 %v6164, 64
      %v6331 = vpop.permute.xlu0 %6330
      %6332 = vrot.lane.b32.xlu0 %v6165, 64
      %v6333 = vpop.permute.xlu0 %6332
      %6334 = vrot.lane.b32.xlu0 %v6166, 64
      %v6335 = vpop.permute.xlu0 %6334
      %6336 = vrot.lane.b32.xlu0 %v6167, 64
      %v6337 = vpop.permute.xlu0 %6336
      %6338 = vrot.lane.b32.xlu0 %v6168, 64
      %v6339 = vpop.permute.xlu0 %6338
      %6340 = vrot.lane.b32.xlu0 %v6169, 64
      %v6341 = vpop.permute.xlu0 %6340
      %6342 = vrot.lane.b32.xlu0 %v6170, 64
      %v6343 = vpop.permute.xlu0 %6342
      %6344 = vrot.lane.b32.xlu0 %v6171, 64
      %v6345 = vpop.permute.xlu0 %6344
      %6346 = vrot.lane.b32.xlu0 %v6223, 64
      %v6347 = vpop.permute.xlu0 %6346
      %6348 = vrot.lane.b32.xlu0 %v6172, 64
      %v6349 = vpop.permute.xlu0 %6348
      %6350 = vrot.lane.b32.xlu0 %v6173, 64
      %v6351 = vpop.permute.xlu0 %6350
      %6352 = vrot.lane.b32.xlu0 %v6174, 64
      %v6353 = vpop.permute.xlu0 %6352
      %6354 = vrot.lane.b32.xlu0 %v6175, 64
      %v6355 = vpop.permute.xlu0 %6354
      %6356 = vrot.lane.b32.xlu0 %v6176, 64
      %v6357 = vpop.permute.xlu0 %6356
      %6358 = vrot.lane.b32.xlu0 %v6177, 64
      %v6359 = vpop.permute.xlu0 %6358
      %6360 = vrot.lane.b32.xlu0 %v6224, 64
      %v6361 = vpop.permute.xlu0 %6360
      %6362 = vrot.lane.b32.xlu0 %v6178, 64
      %v6363 = vpop.permute.xlu0 %6362
      %6364 = vrot.lane.b32.xlu0 %v6179, 64
      %v6365 = vpop.permute.xlu0 %6364
      %6366 = vrot.lane.b32.xlu0 %v6180, 64
      %v6367 = vpop.permute.xlu0 %6366
      %6368 = vrot.lane.b32.xlu0 %v6181, 64
      %v6369 = vpop.permute.xlu0 %6368
      %6370 = vrot.lane.b32.xlu0 %v6182, 64
      %v6371 = vpop.permute.xlu0 %6370
      %6372 = vrot.lane.b32.xlu0 %v6183, 64
      %v6373 = vpop.permute.xlu0 %6372
      %6374 = vrot.lane.b32.xlu0 %v6225, 64
      %v6375 = vpop.permute.xlu0 %6374
      %6376 = vrot.lane.b32.xlu0 %v6184, 64
      %v6377 = vpop.permute.xlu0 %6376
      %6378 = vrot.lane.b32.xlu0 %v6185, 64
      %v6379 = vpop.permute.xlu0 %6378
      %6380 = vrot.lane.b32.xlu0 %v6186, 64
      %v6381 = vpop.permute.xlu0 %6380
      %6382 = vrot.lane.b32.xlu0 %v6187, 64
      %v6383 = vpop.permute.xlu0 %6382
      %6384 = vrot.lane.b32.xlu0 %v6188, 64
      %v6385 = vpop.permute.xlu0 %6384
      %6386 = vrot.lane.b32.xlu0 %v6189, 64
      %v6387 = vpop.permute.xlu0 %6386
      %v6388 = vsel %vm1323, %v6281, %v6283
      %v6389 = vsel %vm1323, %v6283, %v6285
      %v6390 = vsel %vm1323, %v6285, %v6287
      %v6391 = vsel %vm1323, %v6287, %v6289
      %v6392 = vsel %vm1323, %v6289, %v6291
      %v6393 = vsel %vm1323, %v6291, %v6293
      %v6394 = vsel %vm1323, %v6295, %v6297
      %v6395 = vsel %vm1323, %v6297, %v6299
      %v6396 = vsel %vm1323, %v6299, %v6301
      %v6397 = vsel %vm1323, %v6301, %v6303
      %v6398 = vsel %vm1323, %v6303, %v6305
      %v6399 = vsel %vm1323, %v6305, %v6307
      %v6400 = vsel %vm1323, %v6309, %v6311
      %v6401 = vsel %vm1323, %v6311, %v6313
      %v6402 = vsel %vm1323, %v6313, %v6315
      %v6403 = vsel %vm1323, %v6315, %v6317
      %v6404 = vsel %vm1323, %v6317, %v6319
      %v6405 = vsel %vm1323, %v6319, %v6321
      %v6406 = vsel %vm1323, %v6323, %v6325
      %v6407 = vsel %vm1323, %v6325, %v6327
      %v6408 = vsel %vm1323, %v6327, %v6329
      %v6409 = vsel %vm1323, %v6329, %v6331
      %v6410 = vsel %vm1323, %v6331, %v6333
      %v6411 = vsel %vm1323, %v6335, %v6337
      %v6412 = vsel %vm1323, %v6337, %v6339
      %v6413 = vsel %vm1323, %v6339, %v6341
      %v6414 = vsel %vm1323, %v6341, %v6343
      %v6415 = vsel %vm1323, %v6343, %v6345
      %v6416 = vsel %vm1323, %v6345, %v6347
      %v6417 = vsel %vm1323, %v6349, %v6351
      %v6418 = vsel %vm1323, %v6351, %v6353
      %v6419 = vsel %vm1323, %v6353, %v6355
      %v6420 = vsel %vm1323, %v6355, %v6357
      %v6421 = vsel %vm1323, %v6357, %v6359
      %v6422 = vsel %vm1323, %v6359, %v6361
      %v6423 = vsel %vm1323, %v6363, %v6365
      %v6424 = vsel %vm1323, %v6365, %v6367
      %v6425 = vsel %vm1323, %v6367, %v6369
      %v6426 = vsel %vm1323, %v6369, %v6371
      %v6427 = vsel %vm1323, %v6371, %v6373
      %v6428 = vsel %vm1323, %v6373, %v6375
      %v6429 = vsel %vm1323, %v6377, %v6379
      %v6430 = vsel %vm1323, %v6379, %v6381
      %v6431 = vsel %vm1323, %v6381, %v6383
      %v6432 = vsel %vm1323, %v6383, %v6385
      %v6433 = vsel %vm1323, %v6385, %v6387
      %v6482 = vmax.f32 %v6142, %v6388
      %v6483 = vmax.f32 %v6143, %v6389
      %v6484 = vmax.f32 %v6144, %v6390
      %v6485 = vmax.f32 %v6145, %v6391
      %v6486 = vmax.f32 %v6146, %v6392
      %v6487 = vmax.f32 %v6147, %v6393
      %v6488 = vmax.f32 %v6148, %v6394
      %v6489 = vmax.f32 %v6149, %v6395
      %v6490 = vmax.f32 %v6150, %v6396
      %v6491 = vmax.f32 %v6151, %v6397
      %v6492 = vmax.f32 %v6152, %v6398
      %v6493 = vmax.f32 %v6153, %v6399
      %v6494 = vmax.f32 %v6154, %v6400
      %v6495 = vmax.f32 %v6155, %v6401
      %v6496 = vmax.f32 %v6156, %v6402
      %v6497 = vmax.f32 %v6157, %v6403
      %v6498 = vmax.f32 %v6158, %v6404
      %v6499 = vmax.f32 %v6159, %v6405
      %v6500 = vmax.f32 %v6160, %v6406
      %v6501 = vmax.f32 %v6161, %v6407
      %v6502 = vmax.f32 %v6162, %v6408
      %v6503 = vmax.f32 %v6163, %v6409
      %v6504 = vmax.f32 %v6164, %v6410
      %v6505 = vmax.f32 %v6165, %v6333
      %v6506 = vmax.f32 %v6166, %v6411
      %v6507 = vmax.f32 %v6167, %v6412
      %v6508 = vmax.f32 %v6168, %v6413
      %v6509 = vmax.f32 %v6169, %v6414
      %v6510 = vmax.f32 %v6170, %v6415
      %v6511 = vmax.f32 %v6171, %v6416
      %v6512 = vmax.f32 %v6172, %v6417
      %v6513 = vmax.f32 %v6173, %v6418
      %v6514 = vmax.f32 %v6174, %v6419
      %v6515 = vmax.f32 %v6175, %v6420
      %v6516 = vmax.f32 %v6176, %v6421
      %v6517 = vmax.f32 %v6177, %v6422
      %v6518 = vmax.f32 %v6178, %v6423
      %v6519 = vmax.f32 %v6179, %v6424
      %v6520 = vmax.f32 %v6180, %v6425
      %v6521 = vmax.f32 %v6181, %v6426
      %v6522 = vmax.f32 %v6182, %v6427
      %v6523 = vmax.f32 %v6183, %v6428
      %v6524 = vmax.f32 %v6184, %v6429
      %v6525 = vmax.f32 %v6185, %v6430
      %v6526 = vmax.f32 %v6186, %v6431
      %v6527 = vmax.f32 %v6187, %v6432
      %v6528 = vmax.f32 %v6188, %v6433
      %v6529 = vmax.f32 %v6189, %v6387
      %6530 = vst [vmem:[#allocation2] sm:$0xff] %v6482
      %6531 = vst [vmem:[#allocation2 + $0x8] sm:$0xff] %v6483
      %6532 = vst [vmem:[#allocation2 + $0x10] sm:$0xff] %v6484
      %6533 = vst [vmem:[#allocation2 + $0x18] sm:$0xff] %v6485
      %6534 = vst [vmem:[#allocation2 + $0x20] sm:$0xff] %v6486
      %vm6535 = vcmask 171008
      %6536 = vst.msk [vmem:[#allocation2 + $0x28] sm:$0xff] %vm6535, %v6487
      %6537 = vst [vmem:[#allocation2 + $0x30] sm:$0xff] %v6506
      %6538 = vst [vmem:[#allocation2 + $0x38] sm:$0xff] %v6507
      %6539 = vst [vmem:[#allocation2 + $0x40] sm:$0xff] %v6508
      %6540 = vst [vmem:[#allocation2 + $0x48] sm:$0xff] %v6509
      %6541 = vst [vmem:[#allocation2 + $0x50] sm:$0xff] %v6510
      %6542 = vst.msk [vmem:[#allocation2 + $0x58] sm:$0xff] %vm6535, %v6511
      %6543 = vst [vmem:[#allocation2 + $0x60] sm:$0xff] %v6488
      %6544 = vst [vmem:[#allocation2 + $0x68] sm:$0xff] %v6489
      %6545 = vst [vmem:[#allocation2 + $0x70] sm:$0xff] %v6490
      %6546 = vst [vmem:[#allocation2 + $0x78] sm:$0xff] %v6491
      %6547 = vst [vmem:[#allocation2 + $0x80] sm:$0xff] %v6492
      %6548 = vst.msk [vmem:[#allocation2 + $0x88] sm:$0xff] %vm6535, %v6493
      %6549 = vst [vmem:[#allocation2 + $0x90] sm:$0xff] %v6512
      %6550 = vst [vmem:[#allocation2 + $0x98] sm:$0xff] %v6513
      %6551 = vst [vmem:[#allocation2 + $0xa0] sm:$0xff] %v6514
      %6552 = vst [vmem:[#allocation2 + $0xa8] sm:$0xff] %v6515
      %6553 = vst [vmem:[#allocation2 + $0xb0] sm:$0xff] %v6516
      %6554 = vst.msk [vmem:[#allocation2 + $0xb8] sm:$0xff] %vm6535, %v6517
      %6555 = vst [vmem:[#allocation2 + $0xc0] sm:$0xff] %v6494
      %6556 = vst [vmem:[#allocation2 + $0xc8] sm:$0xff] %v6495
      %6557 = vst [vmem:[#allocation2 + $0xd0] sm:$0xff] %v6496
      %6558 = vst [vmem:[#allocation2 + $0xd8] sm:$0xff] %v6497
      %6559 = vst [vmem:[#allocation2 + $0xe0] sm:$0xff] %v6498
      %6560 = vst.msk [vmem:[#allocation2 + $0xe8] sm:$0xff] %vm6535, %v6499
      %6561 = vst [vmem:[#allocation2 + $0xf0] sm:$0xff] %v6518
      %6562 = vst [vmem:[#allocation2 + $0xf8] sm:$0xff] %v6519
      %6563 = vst [vmem:[#allocation2 + $0x100] sm:$0xff] %v6520
      %6564 = vst [vmem:[#allocation2 + $0x108] sm:$0xff] %v6521
      %6565 = vst [vmem:[#allocation2 + $0x110] sm:$0xff] %v6522
      %6566 = vst.msk [vmem:[#allocation2 + $0x118] sm:$0xff] %vm6535, %v6523
      %6567 = vst [vmem:[#allocation2 + $0x120] sm:$0xff] %v6500
      %6568 = vst [vmem:[#allocation2 + $0x128] sm:$0xff] %v6501
      %6569 = vst [vmem:[#allocation2 + $0x130] sm:$0xff] %v6502
      %6570 = vst [vmem:[#allocation2 + $0x138] sm:$0xff] %v6503
      %6571 = vst [vmem:[#allocation2 + $0x140] sm:$0xff] %v6504
      %6572 = vst.msk [vmem:[#allocation2 + $0x148] sm:$0xff] %vm6535, %v6505
      %6573 = vst [vmem:[#allocation2 + $0x150] sm:$0xff] %v6524
      %6574 = vst [vmem:[#allocation2 + $0x158] sm:$0xff] %v6525
      %6575 = vst [vmem:[#allocation2 + $0x160] sm:$0xff] %v6526
      %6576 = vst [vmem:[#allocation2 + $0x168] sm:$0xff] %v6527
      %6577 = vst [vmem:[#allocation2 + $0x170] sm:$0xff] %v6528
      %6578 = vst.msk [vmem:[#allocation2 + $0x178] sm:$0xff] %vm6535, %v6529
      %v6579 = vld [vmem:[#allocation2] sm:$0xff]
      %v6580 = vld [vmem:[#allocation2 + $0x8] sm:$0xff]
      %v6581 = vld [vmem:[#allocation2 + $0x10] sm:$0xff]
      %v6582 = vld [vmem:[#allocation2 + $0x18] sm:$0xff]
      %v6583 = vld [vmem:[#allocation2 + $0x20] sm:$0xff]
      %v6584 = vld [vmem:[#allocation2 + $0x28] sm:$0xff]
      %v6585 = vld [vmem:[#allocation2 + $0x30] sm:$0xff]
      %v6586 = vld [vmem:[#allocation2 + $0x38] sm:$0xff]
      %v6587 = vld [vmem:[#allocation2 + $0x40] sm:$0xff]
      %v6588 = vld [vmem:[#allocation2 + $0x48] sm:$0xff]
      %v6589 = vld [vmem:[#allocation2 + $0x50] sm:$0xff]
      %v6590 = vld [vmem:[#allocation2 + $0x58] sm:$0xff]
      %v6591 = vld [vmem:[#allocation2 + $0x60] sm:$0xff]
      %v6592 = vld [vmem:[#allocation2 + $0x68] sm:$0xff]
      %v6593 = vld [vmem:[#allocation2 + $0x70] sm:$0xff]
      %v6594 = vld [vmem:[#allocation2 + $0x78] sm:$0xff]
      %v6595 = vld [vmem:[#allocation2 + $0x80] sm:$0xff]
      %v6596 = vld [vmem:[#allocation2 + $0x88] sm:$0xff]
      %v6597 = vld [vmem:[#allocation2 + $0x90] sm:$0xff]
      %v6598 = vld [vmem:[#allocation2 + $0x98] sm:$0xff]
      %v6599 = vld [vmem:[#allocation2 + $0xa0] sm:$0xff]
      %v6600 = vld [vmem:[#allocation2 + $0xa8] sm:$0xff]
      %v6601 = vld [vmem:[#allocation2 + $0xb0] sm:$0xff]
      %v6602 = vld [vmem:[#allocation2 + $0xb8] sm:$0xff]
      %v6603 = vld [vmem:[#allocation2 + $0xc0] sm:$0xff]
      %v6604 = vld [vmem:[#allocation2 + $0xc8] sm:$0xff]
      %v6605 = vld [vmem:[#allocation2 + $0xd0] sm:$0xff]
      %v6606 = vld [vmem:[#allocation2 + $0xd8] sm:$0xff]
      %v6607 = vld [vmem:[#allocation2 + $0xe0] sm:$0xff]
      %v6608 = vld [vmem:[#allocation2 + $0xe8] sm:$0xff]
      %v6609 = vld [vmem:[#allocation2 + $0xf0] sm:$0xff]
      %v6610 = vld [vmem:[#allocation2 + $0xf8] sm:$0xff]
      %v6611 = vld [vmem:[#allocation2 + $0x100] sm:$0xff]
      %v6612 = vld [vmem:[#allocation2 + $0x108] sm:$0xff]
      %v6613 = vld [vmem:[#allocation2 + $0x110] sm:$0xff]
      %v6614 = vld [vmem:[#allocation2 + $0x118] sm:$0xff]
      %v6615 = vld [vmem:[#allocation2 + $0x120] sm:$0xff]
      %v6616 = vld [vmem:[#allocation2 + $0x128] sm:$0xff]
      %v6617 = vld [vmem:[#allocation2 + $0x130] sm:$0xff]
      %v6618 = vld [vmem:[#allocation2 + $0x138] sm:$0xff]
      %v6619 = vld [vmem:[#allocation2 + $0x140] sm:$0xff]
      %v6620 = vld [vmem:[#allocation2 + $0x148] sm:$0xff]
      %v6621 = vld [vmem:[#allocation2 + $0x150] sm:$0xff]
      %v6622 = vld [vmem:[#allocation2 + $0x158] sm:$0xff]
      %v6623 = vld [vmem:[#allocation2 + $0x160] sm:$0xff]
      %v6624 = vld [vmem:[#allocation2 + $0x168] sm:$0xff]
      %v6625 = vld [vmem:[#allocation2 + $0x170] sm:$0xff]
      %v6626 = vld [vmem:[#allocation2 + $0x178] sm:$0xff]
      %v6627 = vld [vmem:[%s5] sm:$0xff]
      %v6628 = vld [vmem:[%s5 + $0x8] sm:$0xff]
      %v6629 = vld [vmem:[%s5 + $0x10] sm:$0xff]
      %v6630 = vld [vmem:[%s5 + $0x18] sm:$0xff]
      %v6631 = vld [vmem:[%s5 + $0x20] sm:$0xff]
      %v6632 = vld [vmem:[%s5 + $0x28] sm:$0xff]
      %v6633 = vld [vmem:[%s5 + $0x30] sm:$0xff]
      %v6634 = vld [vmem:[%s5 + $0x38] sm:$0xff]
      %v6635 = vld [vmem:[%s5 + $0x40] sm:$0xff]
      %v6636 = vld [vmem:[%s5 + $0x48] sm:$0xff]
      %v6637 = vld [vmem:[%s5 + $0x50] sm:$0xff]
      %v6638 = vld [vmem:[%s5 + $0x58] sm:$0xff]
      %v6639 = vld [vmem:[%s5 + $0x60] sm:$0xff]
      %v6640 = vld [vmem:[%s5 + $0x68] sm:$0xff]
      %v6641 = vld [vmem:[%s5 + $0x70] sm:$0xff]
      %v6642 = vld [vmem:[%s5 + $0x78] sm:$0xff]
      %v6643 = vld [vmem:[%s5 + $0x80] sm:$0xff]
      %v6644 = vld [vmem:[%s5 + $0x88] sm:$0xff]
      %v6645 = vld [vmem:[%s5 + $0x90] sm:$0xff]
      %v6646 = vld [vmem:[%s5 + $0x98] sm:$0xff]
      %v6647 = vld [vmem:[%s5 + $0xa0] sm:$0xff]
      %v6648 = vld [vmem:[%s5 + $0xa8] sm:$0xff]
      %v6649 = vld [vmem:[%s5 + $0xb0] sm:$0xff]
      %v6650 = vld [vmem:[%s5 + $0xb8] sm:$0xff]
      %v6651 = vld [vmem:[%s5 + $0xc0] sm:$0xff]
      %v6652 = vld [vmem:[%s5 + $0xc8] sm:$0xff]
      %v6653 = vld [vmem:[%s5 + $0xd0] sm:$0xff]
      %v6654 = vld [vmem:[%s5 + $0xd8] sm:$0xff]
      %v6655 = vld [vmem:[%s5 + $0xe0] sm:$0xff]
      %v6656 = vld [vmem:[%s5 + $0xe8] sm:$0xff]
      %v6657 = vld [vmem:[%s5 + $0xf0] sm:$0xff]
      %v6658 = vld [vmem:[%s5 + $0xf8] sm:$0xff]
      %v6659 = vld [vmem:[%s5 + $0x100] sm:$0xff]
      %v6660 = vld [vmem:[%s5 + $0x108] sm:$0xff]
      %v6661 = vld [vmem:[%s5 + $0x110] sm:$0xff]
      %v6662 = vld [vmem:[%s5 + $0x118] sm:$0xff]
      %v6663 = vld [vmem:[%s5 + $0x120] sm:$0xff]
      %v6664 = vld [vmem:[%s5 + $0x128] sm:$0xff]
      %v6665 = vld [vmem:[%s5 + $0x130] sm:$0xff]
      %v6666 = vld [vmem:[%s5 + $0x138] sm:$0xff]
      %v6667 = vld [vmem:[%s5 + $0x140] sm:$0xff]
      %v6668 = vld [vmem:[%s5 + $0x148] sm:$0xff]
      %v6669 = vld [vmem:[%s5 + $0x150] sm:$0xff]
      %v6670 = vld [vmem:[%s5 + $0x158] sm:$0xff]
      %v6671 = vld [vmem:[%s5 + $0x160] sm:$0xff]
      %v6672 = vld [vmem:[%s5 + $0x168] sm:$0xff]
      %v6673 = vld [vmem:[%s5 + $0x170] sm:$0xff]
      %v6674 = vld [vmem:[%s5 + $0x178] sm:$0xff]
      %v6675 = vld [vmem:[%s5 + $0x180] sm:$0xff]
      %v6676 = vld [vmem:[%s5 + $0x188] sm:$0xff]
      %v6677 = vld [vmem:[%s5 + $0x190] sm:$0xff]
      %v6678 = vld [vmem:[%s5 + $0x198] sm:$0xff]
      %v6679 = vld [vmem:[%s5 + $0x1a0] sm:$0xff]
      %v6680 = vld [vmem:[%s5 + $0x1a8] sm:$0xff]
      %v6681 = vld [vmem:[%s5 + $0x1b0] sm:$0xff]
      %v6682 = vld [vmem:[%s5 + $0x1b8] sm:$0xff]
      %v6683 = vld [vmem:[%s5 + $0x1c0] sm:$0xff]
      %v6684 = vld [vmem:[%s5 + $0x1c8] sm:$0xff]
      %v6685 = vld [vmem:[%s5 + $0x1d0] sm:$0xff]
      %v6686 = vld [vmem:[%s5 + $0x1d8] sm:$0xff]
      %v6687 = vld [vmem:[%s5 + $0x1e0] sm:$0xff]
      %v6688 = vld [vmem:[%s5 + $0x1e8] sm:$0xff]
      %v6689 = vld [vmem:[%s5 + $0x1f0] sm:$0xff]
      %v6690 = vld [vmem:[%s5 + $0x1f8] sm:$0xff]
      %v6691 = vld [vmem:[%s5 + $0x200] sm:$0xff]
      %v6692 = vld [vmem:[%s5 + $0x208] sm:$0xff]
      %v6693 = vld [vmem:[%s5 + $0x210] sm:$0xff]
      %v6694 = vld [vmem:[%s5 + $0x218] sm:$0xff]
      %v6695 = vld [vmem:[%s5 + $0x220] sm:$0xff]
      %v6696 = vld [vmem:[%s5 + $0x228] sm:$0xff]
      %v6697 = vld [vmem:[%s5 + $0x230] sm:$0xff]
      %v6698 = vld [vmem:[%s5 + $0x238] sm:$0xff]
      %v6699 = vld [vmem:[%s5 + $0x240] sm:$0xff]
      %v6700 = vld [vmem:[%s5 + $0x248] sm:$0xff]
      %v6701 = vld [vmem:[%s5 + $0x250] sm:$0xff]
      %v6702 = vld [vmem:[%s5 + $0x258] sm:$0xff]
      %v6703 = vld [vmem:[%s5 + $0x260] sm:$0xff]
      %v6704 = vld [vmem:[%s5 + $0x268] sm:$0xff]
      %v6705 = vld [vmem:[%s5 + $0x270] sm:$0xff]
      %v6706 = vld [vmem:[%s5 + $0x278] sm:$0xff]
      %v6707 = vld [vmem:[%s5 + $0x280] sm:$0xff]
      %v6708 = vld [vmem:[%s5 + $0x288] sm:$0xff]
      %v6709 = vld [vmem:[%s5 + $0x290] sm:$0x1f]
      %v6711 = vsel %vm6535, %v6584, 0
      %v6714 = vsel %vm6535, %v6590, 0
      %v6717 = vsel %vm6535, %v6596, 0
      %v6720 = vsel %vm6535, %v6602, 0
      %v6723 = vsel %vm6535, %v6608, 0
      %v6726 = vsel %vm6535, %v6614, 0
      %v6729 = vsel %vm6535, %v6620, 0
      %v6732 = vsel %vm6535, %v6626, 0
      %v6735 = vsel %vm1737, %v6709, 0
      %6737 = vmatprep.subr.mxu0 0.0
      %6738 = vmatpush1.msra.mxu0 %v6642
      %6739 = vmatprep.subr.mxu0 0.0
      %6740 = vmatpush1.msra.mxu0 %v6641
      %6741 = vmatprep.subr.mxu0 0.0
      %6742 = vmatpush1.msra.mxu0 %v6640
      %6743 = vmatprep.subr.mxu0 0.0
      %6744 = vmatpush1.msra.mxu0 %v6639
      %6745 = vmatprep.subr.mxu0 0.0
      %6746 = vmatpush1.msra.mxu0 %v6638
      %6747 = vmatprep.subr.mxu0 0.0
      %6748 = vmatpush1.msra.mxu0 %v6637
      %6749 = vmatprep.subr.mxu0 0.0
      %6750 = vmatpush1.msra.mxu0 %v6636
      %6751 = vmatprep.subr.mxu0 0.0
      %6752 = vmatpush1.msra.mxu0 %v6635
      %6753 = vmatprep.subr.mxu0 0.0
      %6754 = vmatpush1.msra.mxu0 %v6634
      %6755 = vmatprep.subr.mxu0 0.0
      %6756 = vmatpush1.msra.mxu0 %v6633
      %6757 = vmatprep.subr.mxu0 0.0
      %6758 = vmatpush1.msra.mxu0 %v6632
      %6759 = vmatprep.subr.mxu0 0.0
      %6760 = vmatpush1.msra.mxu0 %v6631
      %6761 = vmatprep.subr.mxu0 0.0
      %6762 = vmatpush1.msra.mxu0 %v6630
      %6763 = vmatprep.subr.mxu0 0.0
      %6764 = vmatpush1.msra.mxu0 %v6629
      %6765 = vmatprep.subr.mxu0 0.0
      %6766 = vmatpush1.msra.mxu0 %v6628
      %6767 = vmatprep.subr.mxu0 0.0
      %6768 = vmatpush1.msra.mxu0 %v6627
      %6769 = vmatprep.subr.mxu0 0.0
      %6770 = vmatpush2.msra.mxu0 %v6658
      %6771 = vmatprep.subr.mxu0 0.0
      %6772 = vmatpush2.msra.mxu0 %v6657
      %6773 = vmatprep.subr.mxu0 0.0
      %6774 = vmatpush2.msra.mxu0 %v6656
      %6775 = vmatprep.subr.mxu0 0.0
      %6776 = vmatpush2.msra.mxu0 %v6655
      %6777 = vmatprep.subr.mxu0 0.0
      %6778 = vmatpush2.msra.mxu0 %v6654
      %6779 = vmatprep.subr.mxu0 0.0
      %6780 = vmatpush2.msra.mxu0 %v6653
      %6781 = vmatprep.subr.mxu0 0.0
      %6782 = vmatpush2.msra.mxu0 %v6652
      %6783 = vmatprep.subr.mxu0 0.0
      %6784 = vmatpush2.msra.mxu0 %v6651
      %6785 = vmatprep.subr.mxu0 0.0
      %6786 = vmatpush2.msra.mxu0 %v6650
      %6787 = vmatprep.subr.mxu0 0.0
      %6788 = vmatpush2.msra.mxu0 %v6649
      %6789 = vmatprep.subr.mxu0 0.0
      %6790 = vmatpush2.msra.mxu0 %v6648
      %6791 = vmatprep.subr.mxu0 0.0
      %6792 = vmatpush2.msra.mxu0 %v6647
      %6793 = vmatprep.subr.mxu0 0.0
      %6794 = vmatpush2.msra.mxu0 %v6646
      %6795 = vmatprep.subr.mxu0 0.0
      %6796 = vmatpush2.msra.mxu0 %v6645
      %6797 = vmatprep.subr.mxu0 0.0
      %6798 = vmatpush2.msra.mxu0 %v6644
      %6799 = vmatprep.subr.mxu0 0.0
      %6800 = vmatpush2.msra.mxu0 %v6643
      %6801 = vmatprep.mubr.f32.mxu0 %v6580
      %6802 = vmatmul.mubr.f32.gmra.mxu0 %v6579
      %v6803 = vpop.f32.mrf.mxu0
      %v6804 = vadd.f32 0.0, %v6803
      %v6805 = vpop.f32.mrf.mxu0
      %6806 = vmatprep.mubr.f32.mxu0 %v6586
      %6807 = vmatmul.mubr.f32.gmra.mxu0 %v6585
      %v6808 = vpop.f32.mrf.mxu0
      %v6809 = vadd.f32 0.0, %v6808
      %v6810 = vpop.f32.mrf.mxu0
      %6811 = vmatprep.mubr.f32.mxu0 %v6592
      %6812 = vmatmul.mubr.f32.gmra.mxu0 %v6591
      %v6813 = vpop.f32.mrf.mxu0
      %v6814 = vadd.f32 0.0, %v6813
      %v6815 = vpop.f32.mrf.mxu0
      %6816 = vmatprep.mubr.f32.mxu0 %v6598
      %6817 = vmatmul.mubr.f32.gmra.mxu0 %v6597
      %v6818 = vpop.f32.mrf.mxu0
      %v6819 = vadd.f32 0.0, %v6818
      %v6820 = vpop.f32.mrf.mxu0
      %6821 = vmatprep.mubr.f32.mxu0 %v6604
      %6822 = vmatmul.mubr.f32.gmra.mxu0 %v6603
      %v6823 = vpop.f32.mrf.mxu0
      %v6824 = vadd.f32 0.0, %v6823
      %v6825 = vpop.f32.mrf.mxu0
      %6826 = vmatprep.mubr.f32.mxu0 %v6610
      %6827 = vmatmul.mubr.f32.gmra.mxu0 %v6609
      %v6828 = vpop.f32.mrf.mxu0
      %v6829 = vadd.f32 0.0, %v6828
      %v6830 = vpop.f32.mrf.mxu0
      %6831 = vmatprep.mubr.f32.mxu0 %v6616
      %6832 = vmatmul.mubr.f32.gmra.mxu0 %v6615
      %v6833 = vpop.f32.mrf.mxu0
      %v6834 = vadd.f32 0.0, %v6833
      %v6835 = vpop.f32.mrf.mxu0
      %6836 = vmatprep.mubr.f32.mxu0 %v6622
      %6837 = vmatmul.mubr.f32.gmra.mxu0 %v6621
      %v6838 = vpop.f32.mrf.mxu0
      %v6839 = vadd.f32 0.0, %v6838
      %v6840 = vpop.f32.mrf.mxu0
      %6841 = vdwg.mxu0
      %6842 = vmatprep.subr.mxu0 0.0
      %6843 = vmatpush1.msra.mxu0 %v6674
      %6844 = vmatprep.subr.mxu0 0.0
      %6845 = vmatpush1.msra.mxu0 %v6673
      %6846 = vmatprep.subr.mxu0 0.0
      %6847 = vmatpush1.msra.mxu0 %v6672
      %6848 = vmatprep.subr.mxu0 0.0
      %6849 = vmatpush1.msra.mxu0 %v6671
      %6850 = vmatprep.subr.mxu0 0.0
      %6851 = vmatpush1.msra.mxu0 %v6670
      %6852 = vmatprep.subr.mxu0 0.0
      %6853 = vmatpush1.msra.mxu0 %v6669
      %6854 = vmatprep.subr.mxu0 0.0
      %6855 = vmatpush1.msra.mxu0 %v6668
      %6856 = vmatprep.subr.mxu0 0.0
      %6857 = vmatpush1.msra.mxu0 %v6667
      %6858 = vmatprep.subr.mxu0 0.0
      %6859 = vmatpush1.msra.mxu0 %v6666
      %6860 = vmatprep.subr.mxu0 0.0
      %6861 = vmatpush1.msra.mxu0 %v6665
      %6862 = vmatprep.subr.mxu0 0.0
      %6863 = vmatpush1.msra.mxu0 %v6664
      %6864 = vmatprep.subr.mxu0 0.0
      %6865 = vmatpush1.msra.mxu0 %v6663
      %6866 = vmatprep.subr.mxu0 0.0
      %6867 = vmatpush1.msra.mxu0 %v6662
      %6868 = vmatprep.subr.mxu0 0.0
      %6869 = vmatpush1.msra.mxu0 %v6661
      %6870 = vmatprep.subr.mxu0 0.0
      %6871 = vmatpush1.msra.mxu0 %v6660
      %6872 = vmatprep.subr.mxu0 0.0
      %6873 = vmatpush1.msra.mxu0 %v6659
      %6874 = vmatprep.subr.mxu0 0.0
      %6875 = vmatpush2.msra.mxu0 %v6690
      %6876 = vmatprep.subr.mxu0 0.0
      %6877 = vmatpush2.msra.mxu0 %v6689
      %6878 = vmatprep.subr.mxu0 0.0
      %6879 = vmatpush2.msra.mxu0 %v6688
      %6880 = vmatprep.subr.mxu0 0.0
      %6881 = vmatpush2.msra.mxu0 %v6687
      %6882 = vmatprep.subr.mxu0 0.0
      %6883 = vmatpush2.msra.mxu0 %v6686
      %6884 = vmatprep.subr.mxu0 0.0
      %6885 = vmatpush2.msra.mxu0 %v6685
      %6886 = vmatprep.subr.mxu0 0.0
      %6887 = vmatpush2.msra.mxu0 %v6684
      %6888 = vmatprep.subr.mxu0 0.0
      %6889 = vmatpush2.msra.mxu0 %v6683
      %6890 = vmatprep.subr.mxu0 0.0
      %6891 = vmatpush2.msra.mxu0 %v6682
      %6892 = vmatprep.subr.mxu0 0.0
      %6893 = vmatpush2.msra.mxu0 %v6681
      %6894 = vmatprep.subr.mxu0 0.0
      %6895 = vmatpush2.msra.mxu0 %v6680
      %6896 = vmatprep.subr.mxu0 0.0
      %6897 = vmatpush2.msra.mxu0 %v6679
      %6898 = vmatprep.subr.mxu0 0.0
      %6899 = vmatpush2.msra.mxu0 %v6678
      %6900 = vmatprep.subr.mxu0 0.0
      %6901 = vmatpush2.msra.mxu0 %v6677
      %6902 = vmatprep.subr.mxu0 0.0
      %6903 = vmatpush2.msra.mxu0 %v6676
      %6904 = vmatprep.subr.mxu0 0.0
      %6905 = vmatpush2.msra.mxu0 %v6675
      %6906 = vmatprep.mubr.f32.mxu0 %v6582
      %6907 = vmatmul.mubr.f32.gmra.mxu0 %v6581
      %v6908 = vpop.f32.mrf.mxu0
      %v6909 = vadd.f32 %v6804, %v6908
      %v6910 = vpop.f32.mrf.mxu0
      %6911 = vmatprep.mubr.f32.mxu0 %v6588
      %6912 = vmatmul.mubr.f32.gmra.mxu0 %v6587
      %v6913 = vpop.f32.mrf.mxu0
      %v6914 = vadd.f32 %v6809, %v6913
      %v6915 = vpop.f32.mrf.mxu0
      %6916 = vmatprep.mubr.f32.mxu0 %v6594
      %6917 = vmatmul.mubr.f32.gmra.mxu0 %v6593
      %v6918 = vpop.f32.mrf.mxu0
      %v6919 = vadd.f32 %v6814, %v6918
      %v6920 = vpop.f32.mrf.mxu0
      %6921 = vmatprep.mubr.f32.mxu0 %v6600
      %6922 = vmatmul.mubr.f32.gmra.mxu0 %v6599
      %v6923 = vpop.f32.mrf.mxu0
      %v6924 = vadd.f32 %v6819, %v6923
      %v6925 = vpop.f32.mrf.mxu0
      %6926 = vmatprep.mubr.f32.mxu0 %v6606
      %6927 = vmatmul.mubr.f32.gmra.mxu0 %v6605
      %v6928 = vpop.f32.mrf.mxu0
      %v6929 = vadd.f32 %v6824, %v6928
      %v6930 = vpop.f32.mrf.mxu0
      %6931 = vmatprep.mubr.f32.mxu0 %v6612
      %6932 = vmatmul.mubr.f32.gmra.mxu0 %v6611
      %v6933 = vpop.f32.mrf.mxu0
      %v6934 = vadd.f32 %v6829, %v6933
      %v6935 = vpop.f32.mrf.mxu0
      %6936 = vmatprep.mubr.f32.mxu0 %v6618
      %6937 = vmatmul.mubr.f32.gmra.mxu0 %v6617
      %v6938 = vpop.f32.mrf.mxu0
      %v6939 = vadd.f32 %v6834, %v6938
      %v6940 = vpop.f32.mrf.mxu0
      %6941 = vmatprep.mubr.f32.mxu0 %v6624
      %6942 = vmatmul.mubr.f32.gmra.mxu0 %v6623
      %v6943 = vpop.f32.mrf.mxu0
      %v6944 = vadd.f32 %v6839, %v6943
      %v6945 = vpop.f32.mrf.mxu0
      %6946 = vdwg.mxu0
      %6947 = vmatprep.subr.mxu0 0.0
      %6948 = vmatpush1.msra.mxu0 %v6706
      %6949 = vmatprep.subr.mxu0 0.0
      %6950 = vmatpush1.msra.mxu0 %v6705
      %6951 = vmatprep.subr.mxu0 0.0
      %6952 = vmatpush1.msra.mxu0 %v6704
      %6953 = vmatprep.subr.mxu0 0.0
      %6954 = vmatpush1.msra.mxu0 %v6703
      %6955 = vmatprep.subr.mxu0 0.0
      %6956 = vmatpush1.msra.mxu0 %v6702
      %6957 = vmatprep.subr.mxu0 0.0
      %6958 = vmatpush1.msra.mxu0 %v6701
      %6959 = vmatprep.subr.mxu0 0.0
      %6960 = vmatpush1.msra.mxu0 %v6700
      %6961 = vmatprep.subr.mxu0 0.0
      %6962 = vmatpush1.msra.mxu0 %v6699
      %6963 = vmatprep.subr.mxu0 0.0
      %6964 = vmatpush1.msra.mxu0 %v6698
      %6965 = vmatprep.subr.mxu0 0.0
      %6966 = vmatpush1.msra.mxu0 %v6697
      %6967 = vmatprep.subr.mxu0 0.0
      %6968 = vmatpush1.msra.mxu0 %v6696
      %6969 = vmatprep.subr.mxu0 0.0
      %6970 = vmatpush1.msra.mxu0 %v6695
      %6971 = vmatprep.subr.mxu0 0.0
      %6972 = vmatpush1.msra.mxu0 %v6694
      %6973 = vmatprep.subr.mxu0 0.0
      %6974 = vmatpush1.msra.mxu0 %v6693
      %6975 = vmatprep.subr.mxu0 0.0
      %6976 = vmatpush1.msra.mxu0 %v6692
      %6977 = vmatprep.subr.mxu0 0.0
      %6978 = vmatpush1.msra.mxu0 %v6691
      %6979 = vmatprep.subr.mxu0 0.0
      %6980 = vmatpush2.msra.mxu0 0.0
      %6981 = vmatprep.subr.mxu0 0.0
      %6982 = vmatpush2.msra.mxu0 0.0
      %6983 = vmatprep.subr.mxu0 0.0
      %6984 = vmatpush2.msra.mxu0 0.0
      %6985 = vmatprep.subr.mxu0 0.0
      %6986 = vmatpush2.msra.mxu0 0.0
      %6987 = vmatprep.subr.mxu0 0.0
      %6988 = vmatpush2.msra.mxu0 0.0
      %6989 = vmatprep.subr.mxu0 0.0
      %6990 = vmatpush2.msra.mxu0 0.0
      %6991 = vmatprep.subr.mxu0 0.0
      %6992 = vmatpush2.msra.mxu0 0.0
      %6993 = vmatprep.subr.mxu0 0.0
      %6994 = vmatpush2.msra.mxu0 0.0
      %6995 = vmatprep.subr.mxu0 0.0
      %6996 = vmatpush2.msra.mxu0 0.0
      %6997 = vmatprep.subr.mxu0 0.0
      %6998 = vmatpush2.msra.mxu0 0.0
      %6999 = vmatprep.subr.mxu0 0.0
      %7000 = vmatpush2.msra.mxu0 0.0
      %7001 = vmatprep.subr.mxu0 0.0
      %7002 = vmatpush2.msra.mxu0 0.0
      %7003 = vmatprep.subr.mxu0 0.0
      %7004 = vmatpush2.msra.mxu0 0.0
      %7005 = vmatprep.subr.mxu0 0.0
      %7006 = vmatpush2.msra.mxu0 %v6735
      %7007 = vmatprep.subr.mxu0 0.0
      %7008 = vmatpush2.msra.mxu0 %v6708
      %7009 = vmatprep.subr.mxu0 0.0
      %7010 = vmatpush2.msra.mxu0 %v6707
      %7011 = vmatprep.mubr.f32.mxu0 %v6711
      %7012 = vmatmul.mubr.f32.gmra.mxu0 %v6583
      %v7013 = vpop.f32.mrf.mxu0
      %v7014 = vadd.f32 %v6909, %v7013
      %v7015 = vpop.f32.mrf.mxu0
      %7016 = vmatprep.mubr.f32.mxu0 %v6714
      %7017 = vmatmul.mubr.f32.gmra.mxu0 %v6589
      %v7018 = vpop.f32.mrf.mxu0
      %v7019 = vadd.f32 %v6914, %v7018
      %v7020 = vpop.f32.mrf.mxu0
      %7021 = vmatprep.mubr.f32.mxu0 %v6717
      %7022 = vmatmul.mubr.f32.gmra.mxu0 %v6595
      %v7023 = vpop.f32.mrf.mxu0
      %v7024 = vadd.f32 %v6919, %v7023
      %v7025 = vpop.f32.mrf.mxu0
      %7026 = vmatprep.mubr.f32.mxu0 %v6720
      %7027 = vmatmul.mubr.f32.gmra.mxu0 %v6601
      %v7028 = vpop.f32.mrf.mxu0
      %v7029 = vadd.f32 %v6924, %v7028
      %v7030 = vpop.f32.mrf.mxu0
      %7031 = vmatprep.mubr.f32.mxu0 %v6723
      %7032 = vmatmul.mubr.f32.gmra.mxu0 %v6607
      %v7033 = vpop.f32.mrf.mxu0
      %v7034 = vadd.f32 %v6929, %v7033
      %v7035 = vpop.f32.mrf.mxu0
      %7036 = vmatprep.mubr.f32.mxu0 %v6726
      %7037 = vmatmul.mubr.f32.gmra.mxu0 %v6613
      %v7038 = vpop.f32.mrf.mxu0
      %v7039 = vadd.f32 %v6934, %v7038
      %v7040 = vpop.f32.mrf.mxu0
      %7041 = vmatprep.mubr.f32.mxu0 %v6729
      %7042 = vmatmul.mubr.f32.gmra.mxu0 %v6619
      %v7043 = vpop.f32.mrf.mxu0
      %v7044 = vadd.f32 %v6939, %v7043
      %v7045 = vpop.f32.mrf.mxu0
      %7046 = vmatprep.mubr.f32.mxu0 %v6732
      %7047 = vmatmul.mubr.f32.gmra.mxu0 %v6625
      %v7048 = vpop.f32.mrf.mxu0
      %v7049 = vadd.f32 %v6944, %v7048
      %v7050 = vpop.f32.mrf.mxu0
      %7051 = vdwg.mxu0
      %v7052 = vld [vmem:[%s6] sm:$0xff]
      %v7053 = vld [vmem:[%s6 + $0x8] sm:$0xff]
      %v7054 = vld [vmem:[%s6 + $0x10] sm:$0xff]
      %v7055 = vld [vmem:[%s6 + $0x18] sm:$0xff]
      %v7056 = vld [vmem:[%s6 + $0x20] sm:$0xff]
      %v7057 = vld [vmem:[%s6 + $0x28] sm:$0xff]
      %v7058 = vld [vmem:[%s6 + $0x30] sm:$0xff]
      %v7059 = vld [vmem:[%s6 + $0x38] sm:$0xff]
      %7061 = vset.pattern.permute.xlu0 0
      %7062 = vperm.xlu0 %7061, %v7052
      %v7063 = vpop.permute.xlu0 %7062
      %7066 = vset.pattern.permute.xlu0 0
      %7067 = vperm.xlu0 %7066, %v7053
      %v7068 = vpop.permute.xlu0 %7067
      %7071 = vset.pattern.permute.xlu0 0
      %7072 = vperm.xlu0 %7071, %v7054
      %v7073 = vpop.permute.xlu0 %7072
      %7076 = vset.pattern.permute.xlu0 0
      %7077 = vperm.xlu0 %7076, %v7055
      %v7078 = vpop.permute.xlu0 %7077
      %7081 = vset.pattern.permute.xlu0 0
      %7082 = vperm.xlu0 %7081, %v7056
      %v7083 = vpop.permute.xlu0 %7082
      %7086 = vset.pattern.permute.xlu0 0
      %7087 = vperm.xlu0 %7086, %v7057
      %v7088 = vpop.permute.xlu0 %7087
      %7091 = vset.pattern.permute.xlu0 0
      %7092 = vperm.xlu0 %7091, %v7058
      %v7093 = vpop.permute.xlu0 %7092
      %7096 = vset.pattern.permute.xlu0 0
      %7097 = vperm.xlu0 %7096, %v7059
      %v7098 = vpop.permute.xlu0 %7097
      %v7100 = vmul.f32 %v7014, %v7063
      %v7101 = vmul.f32 %v7019, %v7068
      %v7102 = vmul.f32 %v7024, %v7073
      %v7103 = vmul.f32 %v7029, %v7078
      %v7104 = vmul.f32 %v7034, %v7083
      %v7105 = vmul.f32 %v7039, %v7088
      %v7106 = vmul.f32 %v7044, %v7093
      %v7107 = vmul.f32 %v7049, %v7098
      %7108 = vset.pattern.permute.xlu0 1
      %7109 = vperm.xlu0 %7108, %v7052
      %v7110 = vpop.permute.xlu0 %7109
      %7112 = vset.pattern.permute.xlu0 1
      %7113 = vperm.xlu0 %7112, %v7053
      %v7114 = vpop.permute.xlu0 %7113
      %7116 = vset.pattern.permute.xlu0 1
      %7117 = vperm.xlu0 %7116, %v7054
      %v7118 = vpop.permute.xlu0 %7117
      %7120 = vset.pattern.permute.xlu0 1
      %7121 = vperm.xlu0 %7120, %v7055
      %v7122 = vpop.permute.xlu0 %7121
      %7124 = vset.pattern.permute.xlu0 1
      %7125 = vperm.xlu0 %7124, %v7056
      %v7126 = vpop.permute.xlu0 %7125
      %7128 = vset.pattern.permute.xlu0 1
      %7129 = vperm.xlu0 %7128, %v7057
      %v7130 = vpop.permute.xlu0 %7129
      %7132 = vset.pattern.permute.xlu0 1
      %7133 = vperm.xlu0 %7132, %v7058
      %v7134 = vpop.permute.xlu0 %7133
      %7136 = vset.pattern.permute.xlu0 1
      %7137 = vperm.xlu0 %7136, %v7059
      %v7138 = vpop.permute.xlu0 %7137
      %v7140 = vmul.f32 %v7014, %v7110
      %v7141 = vmul.f32 %v7019, %v7114
      %v7142 = vmul.f32 %v7024, %v7118
      %v7143 = vmul.f32 %v7029, %v7122
      %v7144 = vmul.f32 %v7034, %v7126
      %v7145 = vmul.f32 %v7039, %v7130
      %v7146 = vmul.f32 %v7044, %v7134
      %v7147 = vmul.f32 %v7049, %v7138
      %7148 = vset.pattern.permute.xlu0 2
      %7149 = vperm.xlu0 %7148, %v7052
      %v7150 = vpop.permute.xlu0 %7149
      %7152 = vset.pattern.permute.xlu0 2
      %7153 = vperm.xlu0 %7152, %v7053
      %v7154 = vpop.permute.xlu0 %7153
      %7156 = vset.pattern.permute.xlu0 2
      %7157 = vperm.xlu0 %7156, %v7054
      %v7158 = vpop.permute.xlu0 %7157
      %7160 = vset.pattern.permute.xlu0 2
      %7161 = vperm.xlu0 %7160, %v7055
      %v7162 = vpop.permute.xlu0 %7161
      %7164 = vset.pattern.permute.xlu0 2
      %7165 = vperm.xlu0 %7164, %v7056
      %v7166 = vpop.permute.xlu0 %7165
      %7168 = vset.pattern.permute.xlu0 2
      %7169 = vperm.xlu0 %7168, %v7057
      %v7170 = vpop.permute.xlu0 %7169
      %7172 = vset.pattern.permute.xlu0 2
      %7173 = vperm.xlu0 %7172, %v7058
      %v7174 = vpop.permute.xlu0 %7173
      %7176 = vset.pattern.permute.xlu0 2
      %7177 = vperm.xlu0 %7176, %v7059
      %v7178 = vpop.permute.xlu0 %7177
      %v7180 = vmul.f32 %v7014, %v7150
      %v7181 = vmul.f32 %v7019, %v7154
      %v7182 = vmul.f32 %v7024, %v7158
      %v7183 = vmul.f32 %v7029, %v7162
      %v7184 = vmul.f32 %v7034, %v7166
      %v7185 = vmul.f32 %v7039, %v7170
      %v7186 = vmul.f32 %v7044, %v7174
      %v7187 = vmul.f32 %v7049, %v7178
      %7188 = vset.pattern.permute.xlu0 3
      %7189 = vperm.xlu0 %7188, %v7052
      %v7190 = vpop.permute.xlu0 %7189
      %7192 = vset.pattern.permute.xlu0 3
      %7193 = vperm.xlu0 %7192, %v7053
      %v7194 = vpop.permute.xlu0 %7193
      %7196 = vset.pattern.permute.xlu0 3
      %7197 = vperm.xlu0 %7196, %v7054
      %v7198 = vpop.permute.xlu0 %7197
      %7200 = vset.pattern.permute.xlu0 3
      %7201 = vperm.xlu0 %7200, %v7055
      %v7202 = vpop.permute.xlu0 %7201
      %7204 = vset.pattern.permute.xlu0 3
      %7205 = vperm.xlu0 %7204, %v7056
      %v7206 = vpop.permute.xlu0 %7205
      %7208 = vset.pattern.permute.xlu0 3
      %7209 = vperm.xlu0 %7208, %v7057
      %v7210 = vpop.permute.xlu0 %7209
      %7212 = vset.pattern.permute.xlu0 3
      %7213 = vperm.xlu0 %7212, %v7058
      %v7214 = vpop.permute.xlu0 %7213
      %7216 = vset.pattern.permute.xlu0 3
      %7217 = vperm.xlu0 %7216, %v7059
      %v7218 = vpop.permute.xlu0 %7217
      %v7220 = vmul.f32 %v7014, %v7190
      %v7221 = vmul.f32 %v7019, %v7194
      %v7222 = vmul.f32 %v7024, %v7198
      %v7223 = vmul.f32 %v7029, %v7202
      %v7224 = vmul.f32 %v7034, %v7206
      %v7225 = vmul.f32 %v7039, %v7210
      %v7226 = vmul.f32 %v7044, %v7214
      %v7227 = vmul.f32 %v7049, %v7218
      %7228 = vset.pattern.permute.xlu0 4
      %7229 = vperm.xlu0 %7228, %v7052
      %v7230 = vpop.permute.xlu0 %7229
      %7232 = vset.pattern.permute.xlu0 4
      %7233 = vperm.xlu0 %7232, %v7053
      %v7234 = vpop.permute.xlu0 %7233
      %7236 = vset.pattern.permute.xlu0 4
      %7237 = vperm.xlu0 %7236, %v7054
      %v7238 = vpop.permute.xlu0 %7237
      %7240 = vset.pattern.permute.xlu0 4
      %7241 = vperm.xlu0 %7240, %v7055
      %v7242 = vpop.permute.xlu0 %7241
      %7244 = vset.pattern.permute.xlu0 4
      %7245 = vperm.xlu0 %7244, %v7056
      %v7246 = vpop.permute.xlu0 %7245
      %7248 = vset.pattern.permute.xlu0 4
      %7249 = vperm.xlu0 %7248, %v7057
      %v7250 = vpop.permute.xlu0 %7249
      %7252 = vset.pattern.permute.xlu0 4
      %7253 = vperm.xlu0 %7252, %v7058
      %v7254 = vpop.permute.xlu0 %7253
      %7256 = vset.pattern.permute.xlu0 4
      %7257 = vperm.xlu0 %7256, %v7059
      %v7258 = vpop.permute.xlu0 %7257
      %v7260 = vmul.f32 %v7014, %v7230
      %v7261 = vmul.f32 %v7019, %v7234
      %v7262 = vmul.f32 %v7024, %v7238
      %v7263 = vmul.f32 %v7029, %v7242
      %v7264 = vmul.f32 %v7034, %v7246
      %v7265 = vmul.f32 %v7039, %v7250
      %v7266 = vmul.f32 %v7044, %v7254
      %v7267 = vmul.f32 %v7049, %v7258
      %7268 = vset.pattern.permute.xlu0 5
      %7269 = vperm.xlu0 %7268, %v7052
      %v7270 = vpop.permute.xlu0 %7269
      %7272 = vset.pattern.permute.xlu0 5
      %7273 = vperm.xlu0 %7272, %v7053
      %v7274 = vpop.permute.xlu0 %7273
      %7276 = vset.pattern.permute.xlu0 5
      %7277 = vperm.xlu0 %7276, %v7054
      %v7278 = vpop.permute.xlu0 %7277
      %7280 = vset.pattern.permute.xlu0 5
      %7281 = vperm.xlu0 %7280, %v7055
      %v7282 = vpop.permute.xlu0 %7281
      %7284 = vset.pattern.permute.xlu0 5
      %7285 = vperm.xlu0 %7284, %v7056
      %v7286 = vpop.permute.xlu0 %7285
      %7288 = vset.pattern.permute.xlu0 5
      %7289 = vperm.xlu0 %7288, %v7057
      %v7290 = vpop.permute.xlu0 %7289
      %7292 = vset.pattern.permute.xlu0 5
      %7293 = vperm.xlu0 %7292, %v7058
      %v7294 = vpop.permute.xlu0 %7293
      %7296 = vset.pattern.permute.xlu0 5
      %7297 = vperm.xlu0 %7296, %v7059
      %v7298 = vpop.permute.xlu0 %7297
      %v7300 = vmul.f32 %v7014, %v7270
      %v7301 = vmul.f32 %v7019, %v7274
      %v7302 = vmul.f32 %v7024, %v7278
      %v7303 = vmul.f32 %v7029, %v7282
      %v7304 = vmul.f32 %v7034, %v7286
      %v7305 = vmul.f32 %v7039, %v7290
      %v7306 = vmul.f32 %v7044, %v7294
      %v7307 = vmul.f32 %v7049, %v7298
      %7308 = vset.pattern.permute.xlu0 6
      %7309 = vperm.xlu0 %7308, %v7052
      %v7310 = vpop.permute.xlu0 %7309
      %7312 = vset.pattern.permute.xlu0 6
      %7313 = vperm.xlu0 %7312, %v7053
      %v7314 = vpop.permute.xlu0 %7313
      %7316 = vset.pattern.permute.xlu0 6
      %7317 = vperm.xlu0 %7316, %v7054
      %v7318 = vpop.permute.xlu0 %7317
      %7320 = vset.pattern.permute.xlu0 6
      %7321 = vperm.xlu0 %7320, %v7055
      %v7322 = vpop.permute.xlu0 %7321
      %7324 = vset.pattern.permute.xlu0 6
      %7325 = vperm.xlu0 %7324, %v7056
      %v7326 = vpop.permute.xlu0 %7325
      %7328 = vset.pattern.permute.xlu0 6
      %7329 = vperm.xlu0 %7328, %v7057
      %v7330 = vpop.permute.xlu0 %7329
      %7332 = vset.pattern.permute.xlu0 6
      %7333 = vperm.xlu0 %7332, %v7058
      %v7334 = vpop.permute.xlu0 %7333
      %7336 = vset.pattern.permute.xlu0 6
      %7337 = vperm.xlu0 %7336, %v7059
      %v7338 = vpop.permute.xlu0 %7337
      %v7340 = vmul.f32 %v7014, %v7310
      %v7341 = vmul.f32 %v7019, %v7314
      %v7342 = vmul.f32 %v7024, %v7318
      %v7343 = vmul.f32 %v7029, %v7322
      %v7344 = vmul.f32 %v7034, %v7326
      %v7345 = vmul.f32 %v7039, %v7330
      %v7346 = vmul.f32 %v7044, %v7334
      %v7347 = vmul.f32 %v7049, %v7338
      %7348 = vset.pattern.permute.xlu0 7
      %7349 = vperm.xlu0 %7348, %v7052
      %v7350 = vpop.permute.xlu0 %7349
      %7352 = vset.pattern.permute.xlu0 7
      %7353 = vperm.xlu0 %7352, %v7053
      %v7354 = vpop.permute.xlu0 %7353
      %7356 = vset.pattern.permute.xlu0 7
      %7357 = vperm.xlu0 %7356, %v7054
      %v7358 = vpop.permute.xlu0 %7357
      %7360 = vset.pattern.permute.xlu0 7
      %7361 = vperm.xlu0 %7360, %v7055
      %v7362 = vpop.permute.xlu0 %7361
      %7364 = vset.pattern.permute.xlu0 7
      %7365 = vperm.xlu0 %7364, %v7056
      %v7366 = vpop.permute.xlu0 %7365
      %7368 = vset.pattern.permute.xlu0 7
      %7369 = vperm.xlu0 %7368, %v7057
      %v7370 = vpop.permute.xlu0 %7369
      %7372 = vset.pattern.permute.xlu0 7
      %7373 = vperm.xlu0 %7372, %v7058
      %v7374 = vpop.permute.xlu0 %7373
      %7376 = vset.pattern.permute.xlu0 7
      %7377 = vperm.xlu0 %7376, %v7059
      %v7378 = vpop.permute.xlu0 %7377
      %v7380 = vmul.f32 %v7014, %v7350
      %v7381 = vmul.f32 %v7019, %v7354
      %v7382 = vmul.f32 %v7024, %v7358
      %v7383 = vmul.f32 %v7029, %v7362
      %v7384 = vmul.f32 %v7034, %v7366
      %v7385 = vmul.f32 %v7039, %v7370
      %v7386 = vmul.f32 %v7044, %v7374
      %v7387 = vmul.f32 %v7049, %v7378
      %7388 = vset.pattern.permute.xlu0 8
      %7389 = vperm.xlu0 %7388, %v7052
      %v7390 = vpop.permute.xlu0 %7389
      %7392 = vset.pattern.permute.xlu0 8
      %7393 = vperm.xlu0 %7392, %v7053
      %v7394 = vpop.permute.xlu0 %7393
      %7396 = vset.pattern.permute.xlu0 8
      %7397 = vperm.xlu0 %7396, %v7054
      %v7398 = vpop.permute.xlu0 %7397
      %7400 = vset.pattern.permute.xlu0 8
      %7401 = vperm.xlu0 %7400, %v7055
      %v7402 = vpop.permute.xlu0 %7401
      %7404 = vset.pattern.permute.xlu0 8
      %7405 = vperm.xlu0 %7404, %v7056
      %v7406 = vpop.permute.xlu0 %7405
      %7408 = vset.pattern.permute.xlu0 8
      %7409 = vperm.xlu0 %7408, %v7057
      %v7410 = vpop.permute.xlu0 %7409
      %7412 = vset.pattern.permute.xlu0 8
      %7413 = vperm.xlu0 %7412, %v7058
      %v7414 = vpop.permute.xlu0 %7413
      %7416 = vset.pattern.permute.xlu0 8
      %7417 = vperm.xlu0 %7416, %v7059
      %v7418 = vpop.permute.xlu0 %7417
      %v7420 = vmul.f32 %v7014, %v7390
      %v7421 = vmul.f32 %v7019, %v7394
      %v7422 = vmul.f32 %v7024, %v7398
      %v7423 = vmul.f32 %v7029, %v7402
      %v7424 = vmul.f32 %v7034, %v7406
      %v7425 = vmul.f32 %v7039, %v7410
      %v7426 = vmul.f32 %v7044, %v7414
      %v7427 = vmul.f32 %v7049, %v7418
      %7428 = vset.pattern.permute.xlu0 9
      %7429 = vperm.xlu0 %7428, %v7052
      %v7430 = vpop.permute.xlu0 %7429
      %7432 = vset.pattern.permute.xlu0 9
      %7433 = vperm.xlu0 %7432, %v7053
      %v7434 = vpop.permute.xlu0 %7433
      %7436 = vset.pattern.permute.xlu0 9
      %7437 = vperm.xlu0 %7436, %v7054
      %v7438 = vpop.permute.xlu0 %7437
      %7440 = vset.pattern.permute.xlu0 9
      %7441 = vperm.xlu0 %7440, %v7055
      %v7442 = vpop.permute.xlu0 %7441
      %7444 = vset.pattern.permute.xlu0 9
      %7445 = vperm.xlu0 %7444, %v7056
      %v7446 = vpop.permute.xlu0 %7445
      %7448 = vset.pattern.permute.xlu0 9
      %7449 = vperm.xlu0 %7448, %v7057
      %v7450 = vpop.permute.xlu0 %7449
      %7452 = vset.pattern.permute.xlu0 9
      %7453 = vperm.xlu0 %7452, %v7058
      %v7454 = vpop.permute.xlu0 %7453
      %7456 = vset.pattern.permute.xlu0 9
      %7457 = vperm.xlu0 %7456, %v7059
      %v7458 = vpop.permute.xlu0 %7457
      %v7460 = vmul.f32 %v7014, %v7430
      %v7461 = vmul.f32 %v7019, %v7434
      %v7462 = vmul.f32 %v7024, %v7438
      %v7463 = vmul.f32 %v7029, %v7442
      %v7464 = vmul.f32 %v7034, %v7446
      %v7465 = vmul.f32 %v7039, %v7450
      %v7466 = vmul.f32 %v7044, %v7454
      %v7467 = vmul.f32 %v7049, %v7458
      %7468 = vset.pattern.permute.xlu0 10
      %7469 = vperm.xlu0 %7468, %v7052
      %v7470 = vpop.permute.xlu0 %7469
      %7472 = vset.pattern.permute.xlu0 10
      %7473 = vperm.xlu0 %7472, %v7053
      %v7474 = vpop.permute.xlu0 %7473
      %7476 = vset.pattern.permute.xlu0 10
      %7477 = vperm.xlu0 %7476, %v7054
      %v7478 = vpop.permute.xlu0 %7477
      %7480 = vset.pattern.permute.xlu0 10
      %7481 = vperm.xlu0 %7480, %v7055
      %v7482 = vpop.permute.xlu0 %7481
      %7484 = vset.pattern.permute.xlu0 10
      %7485 = vperm.xlu0 %7484, %v7056
      %v7486 = vpop.permute.xlu0 %7485
      %7488 = vset.pattern.permute.xlu0 10
      %7489 = vperm.xlu0 %7488, %v7057
      %v7490 = vpop.permute.xlu0 %7489
      %7492 = vset.pattern.permute.xlu0 10
      %7493 = vperm.xlu0 %7492, %v7058
      %v7494 = vpop.permute.xlu0 %7493
      %7496 = vset.pattern.permute.xlu0 10
      %7497 = vperm.xlu0 %7496, %v7059
      %v7498 = vpop.permute.xlu0 %7497
      %v7500 = vmul.f32 %v7014, %v7470
      %v7501 = vmul.f32 %v7019, %v7474
      %v7502 = vmul.f32 %v7024, %v7478
      %v7503 = vmul.f32 %v7029, %v7482
      %v7504 = vmul.f32 %v7034, %v7486
      %v7505 = vmul.f32 %v7039, %v7490
      %v7506 = vmul.f32 %v7044, %v7494
      %v7507 = vmul.f32 %v7049, %v7498
      %7508 = vset.pattern.permute.xlu0 11
      %7509 = vperm.xlu0 %7508, %v7052
      %v7510 = vpop.permute.xlu0 %7509
      %7512 = vset.pattern.permute.xlu0 11
      %7513 = vperm.xlu0 %7512, %v7053
      %v7514 = vpop.permute.xlu0 %7513
      %7516 = vset.pattern.permute.xlu0 11
      %7517 = vperm.xlu0 %7516, %v7054
      %v7518 = vpop.permute.xlu0 %7517
      %7520 = vset.pattern.permute.xlu0 11
      %7521 = vperm.xlu0 %7520, %v7055
      %v7522 = vpop.permute.xlu0 %7521
      %7524 = vset.pattern.permute.xlu0 11
      %7525 = vperm.xlu0 %7524, %v7056
      %v7526 = vpop.permute.xlu0 %7525
      %7528 = vset.pattern.permute.xlu0 11
      %7529 = vperm.xlu0 %7528, %v7057
      %v7530 = vpop.permute.xlu0 %7529
      %7532 = vset.pattern.permute.xlu0 11
      %7533 = vperm.xlu0 %7532, %v7058
      %v7534 = vpop.permute.xlu0 %7533
      %7536 = vset.pattern.permute.xlu0 11
      %7537 = vperm.xlu0 %7536, %v7059
      %v7538 = vpop.permute.xlu0 %7537
      %v7540 = vmul.f32 %v7014, %v7510
      %v7541 = vmul.f32 %v7019, %v7514
      %v7542 = vmul.f32 %v7024, %v7518
      %v7543 = vmul.f32 %v7029, %v7522
      %v7544 = vmul.f32 %v7034, %v7526
      %v7545 = vmul.f32 %v7039, %v7530
      %v7546 = vmul.f32 %v7044, %v7534
      %v7547 = vmul.f32 %v7049, %v7538
      %7548 = vset.pattern.permute.xlu0 12
      %7549 = vperm.xlu0 %7548, %v7052
      %v7550 = vpop.permute.xlu0 %7549
      %7552 = vset.pattern.permute.xlu0 12
      %7553 = vperm.xlu0 %7552, %v7053
      %v7554 = vpop.permute.xlu0 %7553
      %7556 = vset.pattern.permute.xlu0 12
      %7557 = vperm.xlu0 %7556, %v7054
      %v7558 = vpop.permute.xlu0 %7557
      %7560 = vset.pattern.permute.xlu0 12
      %7561 = vperm.xlu0 %7560, %v7055
      %v7562 = vpop.permute.xlu0 %7561
      %7564 = vset.pattern.permute.xlu0 12
      %7565 = vperm.xlu0 %7564, %v7056
      %v7566 = vpop.permute.xlu0 %7565
      %7568 = vset.pattern.permute.xlu0 12
      %7569 = vperm.xlu0 %7568, %v7057
      %v7570 = vpop.permute.xlu0 %7569
      %7572 = vset.pattern.permute.xlu0 12
      %7573 = vperm.xlu0 %7572, %v7058
      %v7574 = vpop.permute.xlu0 %7573
      %7576 = vset.pattern.permute.xlu0 12
      %7577 = vperm.xlu0 %7576, %v7059
      %v7578 = vpop.permute.xlu0 %7577
      %v7580 = vmul.f32 %v7014, %v7550
      %v7581 = vmul.f32 %v7019, %v7554
      %v7582 = vmul.f32 %v7024, %v7558
      %v7583 = vmul.f32 %v7029, %v7562
      %v7584 = vmul.f32 %v7034, %v7566
      %v7585 = vmul.f32 %v7039, %v7570
      %v7586 = vmul.f32 %v7044, %v7574
      %v7587 = vmul.f32 %v7049, %v7578
      %7588 = vset.pattern.permute.xlu0 13
      %7589 = vperm.xlu0 %7588, %v7052
      %v7590 = vpop.permute.xlu0 %7589
      %7592 = vset.pattern.permute.xlu0 13
      %7593 = vperm.xlu0 %7592, %v7053
      %v7594 = vpop.permute.xlu0 %7593
      %7596 = vset.pattern.permute.xlu0 13
      %7597 = vperm.xlu0 %7596, %v7054
      %v7598 = vpop.permute.xlu0 %7597
      %7600 = vset.pattern.permute.xlu0 13
      %7601 = vperm.xlu0 %7600, %v7055
      %v7602 = vpop.permute.xlu0 %7601
      %7604 = vset.pattern.permute.xlu0 13
      %7605 = vperm.xlu0 %7604, %v7056
      %v7606 = vpop.permute.xlu0 %7605
      %7608 = vset.pattern.permute.xlu0 13
      %7609 = vperm.xlu0 %7608, %v7057
      %v7610 = vpop.permute.xlu0 %7609
      %7612 = vset.pattern.permute.xlu0 13
      %7613 = vperm.xlu0 %7612, %v7058
      %v7614 = vpop.permute.xlu0 %7613
      %7616 = vset.pattern.permute.xlu0 13
      %7617 = vperm.xlu0 %7616, %v7059
      %v7618 = vpop.permute.xlu0 %7617
      %v7620 = vmul.f32 %v7014, %v7590
      %v7621 = vmul.f32 %v7019, %v7594
      %v7622 = vmul.f32 %v7024, %v7598
      %v7623 = vmul.f32 %v7029, %v7602
      %v7624 = vmul.f32 %v7034, %v7606
      %v7625 = vmul.f32 %v7039, %v7610
      %v7626 = vmul.f32 %v7044, %v7614
      %v7627 = vmul.f32 %v7049, %v7618
      %7628 = vset.pattern.permute.xlu0 14
      %7629 = vperm.xlu0 %7628, %v7052
      %v7630 = vpop.permute.xlu0 %7629
      %7632 = vset.pattern.permute.xlu0 14
      %7633 = vperm.xlu0 %7632, %v7053
      %v7634 = vpop.permute.xlu0 %7633
      %7636 = vset.pattern.permute.xlu0 14
      %7637 = vperm.xlu0 %7636, %v7054
      %v7638 = vpop.permute.xlu0 %7637
      %7640 = vset.pattern.permute.xlu0 14
      %7641 = vperm.xlu0 %7640, %v7055
      %v7642 = vpop.permute.xlu0 %7641
      %7644 = vset.pattern.permute.xlu0 14
      %7645 = vperm.xlu0 %7644, %v7056
      %v7646 = vpop.permute.xlu0 %7645
      %7648 = vset.pattern.permute.xlu0 14
      %7649 = vperm.xlu0 %7648, %v7057
      %v7650 = vpop.permute.xlu0 %7649
      %7652 = vset.pattern.permute.xlu0 14
      %7653 = vperm.xlu0 %7652, %v7058
      %v7654 = vpop.permute.xlu0 %7653
      %7656 = vset.pattern.permute.xlu0 14
      %7657 = vperm.xlu0 %7656, %v7059
      %v7658 = vpop.permute.xlu0 %7657
      %v7660 = vmul.f32 %v7014, %v7630
      %v7661 = vmul.f32 %v7019, %v7634
      %v7662 = vmul.f32 %v7024, %v7638
      %v7663 = vmul.f32 %v7029, %v7642
      %v7664 = vmul.f32 %v7034, %v7646
      %v7665 = vmul.f32 %v7039, %v7650
      %v7666 = vmul.f32 %v7044, %v7654
      %v7667 = vmul.f32 %v7049, %v7658
      %7668 = vset.pattern.permute.xlu0 15
      %7669 = vperm.xlu0 %7668, %v7052
      %v7670 = vpop.permute.xlu0 %7669
      %7672 = vset.pattern.permute.xlu0 15
      %7673 = vperm.xlu0 %7672, %v7053
      %v7674 = vpop.permute.xlu0 %7673
      %7676 = vset.pattern.permute.xlu0 15
      %7677 = vperm.xlu0 %7676, %v7054
      %v7678 = vpop.permute.xlu0 %7677
      %7680 = vset.pattern.permute.xlu0 15
      %7681 = vperm.xlu0 %7680, %v7055
      %v7682 = vpop.permute.xlu0 %7681
      %7684 = vset.pattern.permute.xlu0 15
      %7685 = vperm.xlu0 %7684, %v7056
      %v7686 = vpop.permute.xlu0 %7685
      %7688 = vset.pattern.permute.xlu0 15
      %7689 = vperm.xlu0 %7688, %v7057
      %v7690 = vpop.permute.xlu0 %7689
      %7692 = vset.pattern.permute.xlu0 15
      %7693 = vperm.xlu0 %7692, %v7058
      %v7694 = vpop.permute.xlu0 %7693
      %7696 = vset.pattern.permute.xlu0 15
      %7697 = vperm.xlu0 %7696, %v7059
      %v7698 = vpop.permute.xlu0 %7697
      %v7700 = vmul.f32 %v7014, %v7670
      %v7701 = vmul.f32 %v7019, %v7674
      %v7702 = vmul.f32 %v7024, %v7678
      %v7703 = vmul.f32 %v7029, %v7682
      %v7704 = vmul.f32 %v7034, %v7686
      %v7705 = vmul.f32 %v7039, %v7690
      %v7706 = vmul.f32 %v7044, %v7694
      %v7707 = vmul.f32 %v7049, %v7698
      %7716 = vrot.lane.b32.xlu0 %v7140, 36
      %v7717 = vpop.permute.xlu0 %7716
      %7718 = vrot.lane.b32.xlu0 %v7141, 36
      %v7719 = vpop.permute.xlu0 %7718
      %7720 = vrot.lane.b32.xlu0 %v7142, 36
      %v7721 = vpop.permute.xlu0 %7720
      %7722 = vrot.lane.b32.xlu0 %v7143, 36
      %v7723 = vpop.permute.xlu0 %7722
      %7724 = vrot.lane.b32.xlu0 %v7144, 36
      %v7725 = vpop.permute.xlu0 %7724
      %7726 = vrot.lane.b32.xlu0 %v7145, 36
      %v7727 = vpop.permute.xlu0 %7726
      %7728 = vrot.lane.b32.xlu0 %v7146, 36
      %v7729 = vpop.permute.xlu0 %7728
      %7730 = vrot.lane.b32.xlu0 %v7147, 36
      %v7731 = vpop.permute.xlu0 %7730
      %7748 = vrot.lane.b32.xlu0 %v7180, 72
      %v7749 = vpop.permute.xlu0 %7748
      %7750 = vrot.lane.b32.xlu0 %v7181, 72
      %v7751 = vpop.permute.xlu0 %7750
      %7752 = vrot.lane.b32.xlu0 %v7182, 72
      %v7753 = vpop.permute.xlu0 %7752
      %7754 = vrot.lane.b32.xlu0 %v7183, 72
      %v7755 = vpop.permute.xlu0 %7754
      %7756 = vrot.lane.b32.xlu0 %v7184, 72
      %v7757 = vpop.permute.xlu0 %7756
      %7758 = vrot.lane.b32.xlu0 %v7185, 72
      %v7759 = vpop.permute.xlu0 %7758
      %7760 = vrot.lane.b32.xlu0 %v7186, 72
      %v7761 = vpop.permute.xlu0 %7760
      %7762 = vrot.lane.b32.xlu0 %v7187, 72
      %v7763 = vpop.permute.xlu0 %7762
      %7780 = vrot.lane.b32.xlu0 %v7220, 108
      %v7781 = vpop.permute.xlu0 %7780
      %7782 = vrot.lane.b32.xlu0 %v7221, 108
      %v7783 = vpop.permute.xlu0 %7782
      %7784 = vrot.lane.b32.xlu0 %v7222, 108
      %v7785 = vpop.permute.xlu0 %7784
      %7786 = vrot.lane.b32.xlu0 %v7223, 108
      %v7787 = vpop.permute.xlu0 %7786
      %7788 = vrot.lane.b32.xlu0 %v7224, 108
      %v7789 = vpop.permute.xlu0 %7788
      %7790 = vrot.lane.b32.xlu0 %v7225, 108
      %v7791 = vpop.permute.xlu0 %7790
      %7792 = vrot.lane.b32.xlu0 %v7226, 108
      %v7793 = vpop.permute.xlu0 %7792
      %7794 = vrot.lane.b32.xlu0 %v7227, 108
      %v7795 = vpop.permute.xlu0 %7794
      %7812 = vrot.lane.b32.xlu0 %v7260, 16
      %v7813 = vpop.permute.xlu0 %7812
      %7814 = vrot.lane.b32.xlu0 %v7261, 16
      %v7815 = vpop.permute.xlu0 %7814
      %7816 = vrot.lane.b32.xlu0 %v7262, 16
      %v7817 = vpop.permute.xlu0 %7816
      %7818 = vrot.lane.b32.xlu0 %v7263, 16
      %v7819 = vpop.permute.xlu0 %7818
      %7820 = vrot.lane.b32.xlu0 %v7264, 16
      %v7821 = vpop.permute.xlu0 %7820
      %7822 = vrot.lane.b32.xlu0 %v7265, 16
      %v7823 = vpop.permute.xlu0 %7822
      %7824 = vrot.lane.b32.xlu0 %v7266, 16
      %v7825 = vpop.permute.xlu0 %7824
      %7826 = vrot.lane.b32.xlu0 %v7267, 16
      %v7827 = vpop.permute.xlu0 %7826
      %7844 = vrot.lane.b32.xlu0 %v7300, 52
      %v7845 = vpop.permute.xlu0 %7844
      %7846 = vrot.lane.b32.xlu0 %v7301, 52
      %v7847 = vpop.permute.xlu0 %7846
      %7848 = vrot.lane.b32.xlu0 %v7302, 52
      %v7849 = vpop.permute.xlu0 %7848
      %7850 = vrot.lane.b32.xlu0 %v7303, 52
      %v7851 = vpop.permute.xlu0 %7850
      %7852 = vrot.lane.b32.xlu0 %v7304, 52
      %v7853 = vpop.permute.xlu0 %7852
      %7854 = vrot.lane.b32.xlu0 %v7305, 52
      %v7855 = vpop.permute.xlu0 %7854
      %7856 = vrot.lane.b32.xlu0 %v7306, 52
      %v7857 = vpop.permute.xlu0 %7856
      %7858 = vrot.lane.b32.xlu0 %v7307, 52
      %v7859 = vpop.permute.xlu0 %7858
      %7876 = vrot.lane.b32.xlu0 %v7340, 88
      %v7877 = vpop.permute.xlu0 %7876
      %7878 = vrot.lane.b32.xlu0 %v7341, 88
      %v7879 = vpop.permute.xlu0 %7878
      %7880 = vrot.lane.b32.xlu0 %v7342, 88
      %v7881 = vpop.permute.xlu0 %7880
      %7882 = vrot.lane.b32.xlu0 %v7343, 88
      %v7883 = vpop.permute.xlu0 %7882
      %7884 = vrot.lane.b32.xlu0 %v7344, 88
      %v7885 = vpop.permute.xlu0 %7884
      %7886 = vrot.lane.b32.xlu0 %v7345, 88
      %v7887 = vpop.permute.xlu0 %7886
      %7888 = vrot.lane.b32.xlu0 %v7346, 88
      %v7889 = vpop.permute.xlu0 %7888
      %7890 = vrot.lane.b32.xlu0 %v7347, 88
      %v7891 = vpop.permute.xlu0 %7890
      %7908 = vrot.lane.b32.xlu0 %v7380, 124
      %v7909 = vpop.permute.xlu0 %7908
      %7910 = vrot.lane.b32.xlu0 %v7381, 124
      %v7911 = vpop.permute.xlu0 %7910
      %7912 = vrot.lane.b32.xlu0 %v7382, 124
      %v7913 = vpop.permute.xlu0 %7912
      %7914 = vrot.lane.b32.xlu0 %v7383, 124
      %v7915 = vpop.permute.xlu0 %7914
      %7916 = vrot.lane.b32.xlu0 %v7384, 124
      %v7917 = vpop.permute.xlu0 %7916
      %7918 = vrot.lane.b32.xlu0 %v7385, 124
      %v7919 = vpop.permute.xlu0 %7918
      %7920 = vrot.lane.b32.xlu0 %v7386, 124
      %v7921 = vpop.permute.xlu0 %7920
      %7922 = vrot.lane.b32.xlu0 %v7387, 124
      %v7923 = vpop.permute.xlu0 %7922
      %7940 = vrot.lane.b32.xlu0 %v7420, 32
      %v7941 = vpop.permute.xlu0 %7940
      %7942 = vrot.lane.b32.xlu0 %v7421, 32
      %v7943 = vpop.permute.xlu0 %7942
      %7944 = vrot.lane.b32.xlu0 %v7422, 32
      %v7945 = vpop.permute.xlu0 %7944
      %7946 = vrot.lane.b32.xlu0 %v7423, 32
      %v7947 = vpop.permute.xlu0 %7946
      %7948 = vrot.lane.b32.xlu0 %v7424, 32
      %v7949 = vpop.permute.xlu0 %7948
      %7950 = vrot.lane.b32.xlu0 %v7425, 32
      %v7951 = vpop.permute.xlu0 %7950
      %7952 = vrot.lane.b32.xlu0 %v7426, 32
      %v7953 = vpop.permute.xlu0 %7952
      %7954 = vrot.lane.b32.xlu0 %v7427, 32
      %v7955 = vpop.permute.xlu0 %7954
      %7972 = vrot.lane.b32.xlu0 %v7460, 68
      %v7973 = vpop.permute.xlu0 %7972
      %7974 = vrot.lane.b32.xlu0 %v7461, 68
      %v7975 = vpop.permute.xlu0 %7974
      %7976 = vrot.lane.b32.xlu0 %v7462, 68
      %v7977 = vpop.permute.xlu0 %7976
      %7978 = vrot.lane.b32.xlu0 %v7463, 68
      %v7979 = vpop.permute.xlu0 %7978
      %7980 = vrot.lane.b32.xlu0 %v7464, 68
      %v7981 = vpop.permute.xlu0 %7980
      %7982 = vrot.lane.b32.xlu0 %v7465, 68
      %v7983 = vpop.permute.xlu0 %7982
      %7984 = vrot.lane.b32.xlu0 %v7466, 68
      %v7985 = vpop.permute.xlu0 %7984
      %7986 = vrot.lane.b32.xlu0 %v7467, 68
      %v7987 = vpop.permute.xlu0 %7986
      %8004 = vrot.lane.b32.xlu0 %v7500, 104
      %v8005 = vpop.permute.xlu0 %8004
      %8006 = vrot.lane.b32.xlu0 %v7501, 104
      %v8007 = vpop.permute.xlu0 %8006
      %8008 = vrot.lane.b32.xlu0 %v7502, 104
      %v8009 = vpop.permute.xlu0 %8008
      %8010 = vrot.lane.b32.xlu0 %v7503, 104
      %v8011 = vpop.permute.xlu0 %8010
      %8012 = vrot.lane.b32.xlu0 %v7504, 104
      %v8013 = vpop.permute.xlu0 %8012
      %8014 = vrot.lane.b32.xlu0 %v7505, 104
      %v8015 = vpop.permute.xlu0 %8014
      %8016 = vrot.lane.b32.xlu0 %v7506, 104
      %v8017 = vpop.permute.xlu0 %8016
      %8018 = vrot.lane.b32.xlu0 %v7507, 104
      %v8019 = vpop.permute.xlu0 %8018
      %8036 = vrot.lane.b32.xlu0 %v7540, 12
      %v8037 = vpop.permute.xlu0 %8036
      %8038 = vrot.lane.b32.xlu0 %v7541, 12
      %v8039 = vpop.permute.xlu0 %8038
      %8040 = vrot.lane.b32.xlu0 %v7542, 12
      %v8041 = vpop.permute.xlu0 %8040
      %8042 = vrot.lane.b32.xlu0 %v7543, 12
      %v8043 = vpop.permute.xlu0 %8042
      %8044 = vrot.lane.b32.xlu0 %v7544, 12
      %v8045 = vpop.permute.xlu0 %8044
      %8046 = vrot.lane.b32.xlu0 %v7545, 12
      %v8047 = vpop.permute.xlu0 %8046
      %8048 = vrot.lane.b32.xlu0 %v7546, 12
      %v8049 = vpop.permute.xlu0 %8048
      %8050 = vrot.lane.b32.xlu0 %v7547, 12
      %v8051 = vpop.permute.xlu0 %8050
      %8068 = vrot.lane.b32.xlu0 %v7580, 48
      %v8069 = vpop.permute.xlu0 %8068
      %8070 = vrot.lane.b32.xlu0 %v7581, 48
      %v8071 = vpop.permute.xlu0 %8070
      %8072 = vrot.lane.b32.xlu0 %v7582, 48
      %v8073 = vpop.permute.xlu0 %8072
      %8074 = vrot.lane.b32.xlu0 %v7583, 48
      %v8075 = vpop.permute.xlu0 %8074
      %8076 = vrot.lane.b32.xlu0 %v7584, 48
      %v8077 = vpop.permute.xlu0 %8076
      %8078 = vrot.lane.b32.xlu0 %v7585, 48
      %v8079 = vpop.permute.xlu0 %8078
      %8080 = vrot.lane.b32.xlu0 %v7586, 48
      %v8081 = vpop.permute.xlu0 %8080
      %8082 = vrot.lane.b32.xlu0 %v7587, 48
      %v8083 = vpop.permute.xlu0 %8082
      %8100 = vrot.lane.b32.xlu0 %v7620, 84
      %v8101 = vpop.permute.xlu0 %8100
      %8102 = vrot.lane.b32.xlu0 %v7621, 84
      %v8103 = vpop.permute.xlu0 %8102
      %8104 = vrot.lane.b32.xlu0 %v7622, 84
      %v8105 = vpop.permute.xlu0 %8104
      %8106 = vrot.lane.b32.xlu0 %v7623, 84
      %v8107 = vpop.permute.xlu0 %8106
      %8108 = vrot.lane.b32.xlu0 %v7624, 84
      %v8109 = vpop.permute.xlu0 %8108
      %8110 = vrot.lane.b32.xlu0 %v7625, 84
      %v8111 = vpop.permute.xlu0 %8110
      %8112 = vrot.lane.b32.xlu0 %v7626, 84
      %v8113 = vpop.permute.xlu0 %8112
      %8114 = vrot.lane.b32.xlu0 %v7627, 84
      %v8115 = vpop.permute.xlu0 %8114
      %8132 = vrot.lane.b32.xlu0 %v7660, 120
      %v8133 = vpop.permute.xlu0 %8132
      %8134 = vrot.lane.b32.xlu0 %v7661, 120
      %v8135 = vpop.permute.xlu0 %8134
      %8136 = vrot.lane.b32.xlu0 %v7662, 120
      %v8137 = vpop.permute.xlu0 %8136
      %8138 = vrot.lane.b32.xlu0 %v7663, 120
      %v8139 = vpop.permute.xlu0 %8138
      %8140 = vrot.lane.b32.xlu0 %v7664, 120
      %v8141 = vpop.permute.xlu0 %8140
      %8142 = vrot.lane.b32.xlu0 %v7665, 120
      %v8143 = vpop.permute.xlu0 %8142
      %8144 = vrot.lane.b32.xlu0 %v7666, 120
      %v8145 = vpop.permute.xlu0 %8144
      %8146 = vrot.lane.b32.xlu0 %v7667, 120
      %v8147 = vpop.permute.xlu0 %8146
      %8164 = vrot.lane.b32.xlu0 %v7700, 28
      %v8165 = vpop.permute.xlu0 %8164
      %8166 = vrot.lane.b32.xlu0 %v7701, 28
      %v8167 = vpop.permute.xlu0 %8166
      %8168 = vrot.lane.b32.xlu0 %v7702, 28
      %v8169 = vpop.permute.xlu0 %8168
      %8170 = vrot.lane.b32.xlu0 %v7703, 28
      %v8171 = vpop.permute.xlu0 %8170
      %8172 = vrot.lane.b32.xlu0 %v7704, 28
      %v8173 = vpop.permute.xlu0 %8172
      %8174 = vrot.lane.b32.xlu0 %v7705, 28
      %v8175 = vpop.permute.xlu0 %8174
      %8176 = vrot.lane.b32.xlu0 %v7706, 28
      %v8177 = vpop.permute.xlu0 %8176
      %8178 = vrot.lane.b32.xlu0 %v7707, 28
      %v8179 = vpop.permute.xlu0 %8178
      %vm8188 = vcmask 293888
      %v8189 = vsel %vm8188, %v7100, %v7717
      %v8190 = vsel %vm8188, %v7101, %v7719
      %v8191 = vsel %vm8188, %v7102, %v7721
      %v8192 = vsel %vm8188, %v7103, %v7723
      %v8193 = vsel %vm8188, %v7104, %v7725
      %v8194 = vsel %vm8188, %v7105, %v7727
      %v8195 = vsel %vm8188, %v7106, %v7729
      %v8196 = vsel %vm8188, %v7107, %v7731
      %vm8197 = vcmask 588800
      %v8198 = vsel %vm8197, %v8189, %v7749
      %v8199 = vsel %vm8197, %v8190, %v7751
      %v8200 = vsel %vm8197, %v8191, %v7753
      %v8201 = vsel %vm8197, %v8192, %v7755
      %v8202 = vsel %vm8197, %v8193, %v7757
      %v8203 = vsel %vm8197, %v8194, %v7759
      %v8204 = vsel %vm8197, %v8195, %v7761
      %v8205 = vsel %vm8197, %v8196, %v7763
      %vm8206 = vcmask 883712
      %v8207 = vsel %vm8206, %v8198, %v7781
      %v8208 = vsel %vm8206, %v8199, %v7783
      %v8209 = vsel %vm8206, %v8200, %v7785
      %v8210 = vsel %vm8206, %v8201, %v7787
      %v8211 = vsel %vm8206, %v8202, %v7789
      %v8212 = vsel %vm8206, %v8203, %v7791
      %v8213 = vsel %vm8206, %v8204, %v7793
      %v8214 = vsel %vm8206, %v8205, %v7795
      %vm8215 = vcmask 130048
      %v8216 = vsel %vm8215, %v7781, %v7813
      %v8217 = vsel %vm8215, %v7783, %v7815
      %v8218 = vsel %vm8215, %v7785, %v7817
      %v8219 = vsel %vm8215, %v7787, %v7819
      %v8220 = vsel %vm8215, %v7789, %v7821
      %v8221 = vsel %vm8215, %v7791, %v7823
      %v8222 = vsel %vm8215, %v7793, %v7825
      %v8223 = vsel %vm8215, %v7795, %v7827
      %vm8224 = vcmask 424960
      %v8225 = vsel %vm8224, %v8216, %v7845
      %v8226 = vsel %vm8224, %v8217, %v7847
      %v8227 = vsel %vm8224, %v8218, %v7849
      %v8228 = vsel %vm8224, %v8219, %v7851
      %v8229 = vsel %vm8224, %v8220, %v7853
      %v8230 = vsel %vm8224, %v8221, %v7855
      %v8231 = vsel %vm8224, %v8222, %v7857
      %v8232 = vsel %vm8224, %v8223, %v7859
      %vm8233 = vcmask 719872
      %v8234 = vsel %vm8233, %v8225, %v7877
      %v8235 = vsel %vm8233, %v8226, %v7879
      %v8236 = vsel %vm8233, %v8227, %v7881
      %v8237 = vsel %vm8233, %v8228, %v7883
      %v8238 = vsel %vm8233, %v8229, %v7885
      %v8239 = vsel %vm8233, %v8230, %v7887
      %v8240 = vsel %vm8233, %v8231, %v7889
      %v8241 = vsel %vm8233, %v8232, %v7891
      %v8242 = vsel %vm3711, %v8234, %v7909
      %v8243 = vsel %vm3711, %v8235, %v7911
      %v8244 = vsel %vm3711, %v8236, %v7913
      %v8245 = vsel %vm3711, %v8237, %v7915
      %v8246 = vsel %vm3711, %v8238, %v7917
      %v8247 = vsel %vm3711, %v8239, %v7919
      %v8248 = vsel %vm3711, %v8240, %v7921
      %v8249 = vsel %vm3711, %v8241, %v7923
      %vm8250 = vcmask 261120
      %v8251 = vsel %vm8250, %v7909, %v7941
      %v8252 = vsel %vm8250, %v7911, %v7943
      %v8253 = vsel %vm8250, %v7913, %v7945
      %v8254 = vsel %vm8250, %v7915, %v7947
      %v8255 = vsel %vm8250, %v7917, %v7949
      %v8256 = vsel %vm8250, %v7919, %v7951
      %v8257 = vsel %vm8250, %v7921, %v7953
      %v8258 = vsel %vm8250, %v7923, %v7955
      %vm8259 = vcmask 556032
      %v8260 = vsel %vm8259, %v8251, %v7973
      %v8261 = vsel %vm8259, %v8252, %v7975
      %v8262 = vsel %vm8259, %v8253, %v7977
      %v8263 = vsel %vm8259, %v8254, %v7979
      %v8264 = vsel %vm8259, %v8255, %v7981
      %v8265 = vsel %vm8259, %v8256, %v7983
      %v8266 = vsel %vm8259, %v8257, %v7985
      %v8267 = vsel %vm8259, %v8258, %v7987
      %vm8268 = vcmask 850944
      %v8269 = vsel %vm8268, %v8260, %v8005
      %v8270 = vsel %vm8268, %v8261, %v8007
      %v8271 = vsel %vm8268, %v8262, %v8009
      %v8272 = vsel %vm8268, %v8263, %v8011
      %v8273 = vsel %vm8268, %v8264, %v8013
      %v8274 = vsel %vm8268, %v8265, %v8015
      %v8275 = vsel %vm8268, %v8266, %v8017
      %v8276 = vsel %vm8268, %v8267, %v8019
      %vm8277 = vcmask 97280
      %v8278 = vsel %vm8277, %v8005, %v8037
      %v8279 = vsel %vm8277, %v8007, %v8039
      %v8280 = vsel %vm8277, %v8009, %v8041
      %v8281 = vsel %vm8277, %v8011, %v8043
      %v8282 = vsel %vm8277, %v8013, %v8045
      %v8283 = vsel %vm8277, %v8015, %v8047
      %v8284 = vsel %vm8277, %v8017, %v8049
      %v8285 = vsel %vm8277, %v8019, %v8051
      %vm8286 = vcmask 392192
      %v8287 = vsel %vm8286, %v8278, %v8069
      %v8288 = vsel %vm8286, %v8279, %v8071
      %v8289 = vsel %vm8286, %v8280, %v8073
      %v8290 = vsel %vm8286, %v8281, %v8075
      %v8291 = vsel %vm8286, %v8282, %v8077
      %v8292 = vsel %vm8286, %v8283, %v8079
      %v8293 = vsel %vm8286, %v8284, %v8081
      %v8294 = vsel %vm8286, %v8285, %v8083
      %vm8295 = vcmask 687104
      %v8296 = vsel %vm8295, %v8287, %v8101
      %v8297 = vsel %vm8295, %v8288, %v8103
      %v8298 = vsel %vm8295, %v8289, %v8105
      %v8299 = vsel %vm8295, %v8290, %v8107
      %v8300 = vsel %vm8295, %v8291, %v8109
      %v8301 = vsel %vm8295, %v8292, %v8111
      %v8302 = vsel %vm8295, %v8293, %v8113
      %v8303 = vsel %vm8295, %v8294, %v8115
      %vm8304 = vcmask 982016
      %v8305 = vsel %vm8304, %v8296, %v8133
      %v8306 = vsel %vm8304, %v8297, %v8135
      %v8307 = vsel %vm8304, %v8298, %v8137
      %v8308 = vsel %vm8304, %v8299, %v8139
      %v8309 = vsel %vm8304, %v8300, %v8141
      %v8310 = vsel %vm8304, %v8301, %v8143
      %v8311 = vsel %vm8304, %v8302, %v8145
      %v8312 = vsel %vm8304, %v8303, %v8147
      %vm8313 = vcmask 228352
      %v8314 = vsel %vm8313, %v8133, %v8165
      %v8315 = vsel %vm8313, %v8135, %v8167
      %v8316 = vsel %vm8313, %v8137, %v8169
      %v8317 = vsel %vm8313, %v8139, %v8171
      %v8318 = vsel %vm8313, %v8141, %v8173
      %v8319 = vsel %vm8313, %v8143, %v8175
      %v8320 = vsel %vm8313, %v8145, %v8177
      %v8321 = vsel %vm8313, %v8147, %v8179
      %v8322 = vld [vmem:[%s7] sm:$0xf]
      %v8324 = vsel %vm1323, %v8322, 0
      %8326 = vmatprep.subr.mxu0 0.0
      %8327 = vmatpush1.msra.mxu0 0.0
      %8328 = vmatprep.subr.mxu0 0.0
      %8329 = vmatpush1.msra.mxu0 0.0
      %8330 = vmatprep.subr.mxu0 0.0
      %8331 = vmatpush1.msra.mxu0 0.0
      %8332 = vmatprep.subr.mxu0 0.0
      %8333 = vmatpush1.msra.mxu0 0.0
      %8334 = vmatprep.subr.mxu0 0.0
      %8335 = vmatpush1.msra.mxu0 0.0
      %8336 = vmatprep.subr.mxu0 0.0
      %8337 = vmatpush1.msra.mxu0 0.0
      %8338 = vmatprep.subr.mxu0 0.0
      %8339 = vmatpush1.msra.mxu0 0.0
      %8340 = vmatprep.subr.mxu0 0.0
      %8341 = vmatpush1.msra.mxu0 0.0
      %8342 = vmatprep.subr.mxu0 %v8249
      %8343 = vmatpush1.msra.mxu0 %v8214
      %8344 = vmatprep.subr.mxu0 %v8248
      %8345 = vmatpush1.msra.mxu0 %v8213
      %8346 = vmatprep.subr.mxu0 %v8247
      %8347 = vmatpush1.msra.mxu0 %v8212
      %8348 = vmatprep.subr.mxu0 %v8246
      %8349 = vmatpush1.msra.mxu0 %v8211
      %8350 = vmatprep.subr.mxu0 %v8245
      %8351 = vmatpush1.msra.mxu0 %v8210
      %8352 = vmatprep.subr.mxu0 %v8244
      %8353 = vmatpush1.msra.mxu0 %v8209
      %8354 = vmatprep.subr.mxu0 %v8243
      %8355 = vmatpush1.msra.mxu0 %v8208
      %8356 = vmatprep.subr.mxu0 %v8242
      %8357 = vmatpush1.msra.mxu0 %v8207
      %8358 = vmatprep.subr.mxu0 0.0
      %8359 = vmatpush2.msra.mxu0 0.0
      %8360 = vmatprep.subr.mxu0 0.0
      %8361 = vmatpush2.msra.mxu0 0.0
      %8362 = vmatprep.subr.mxu0 0.0
      %8363 = vmatpush2.msra.mxu0 0.0
      %8364 = vmatprep.subr.mxu0 0.0
      %8365 = vmatpush2.msra.mxu0 0.0
      %8366 = vmatprep.subr.mxu0 0.0
      %8367 = vmatpush2.msra.mxu0 0.0
      %8368 = vmatprep.subr.mxu0 0.0
      %8369 = vmatpush2.msra.mxu0 0.0
      %8370 = vmatprep.subr.mxu0 0.0
      %8371 = vmatpush2.msra.mxu0 0.0
      %8372 = vmatprep.subr.mxu0 0.0
      %8373 = vmatpush2.msra.mxu0 0.0
      %8374 = vmatprep.subr.mxu0 0.0
      %8375 = vmatpush2.msra.mxu0 0.0
      %8376 = vmatprep.subr.mxu0 0.0
      %8377 = vmatpush2.msra.mxu0 0.0
      %8378 = vmatprep.subr.mxu0 0.0
      %8379 = vmatpush2.msra.mxu0 0.0
      %8380 = vmatprep.subr.mxu0 0.0
      %8381 = vmatpush2.msra.mxu0 0.0
      %8382 = vmatprep.subr.mxu0 0.0
      %8383 = vmatpush2.msra.mxu0 0.0
      %8384 = vmatprep.subr.mxu0 0.0
      %8385 = vmatpush2.msra.mxu0 0.0
      %8386 = vmatprep.subr.mxu0 0.0
      %8387 = vmatpush2.msra.mxu0 0.0
      %8388 = vmatprep.subr.mxu0 0.0
      %8389 = vmatpush2.msra.mxu0 0.0
      %8390 = vmatprep.mubr.f32.mxu0 0.0
      %8391 = vmatmul.mubr.f32.gmra.mxu0 %v8324
      %v8392 = vpop.f32.mrf.mxu0
      %v8393 = vadd.f32 0.0, %v8392
      %v8394 = vpop.f32.mrf.mxu0
      %v8395 = vadd.f32 0.0, %v8394
      %8396 = vdwg.mxu0
      %8397 = vmatprep.subr.mxu0 0.0
      %8398 = vmatpush1.msra.mxu0 0.0
      %8399 = vmatprep.subr.mxu0 0.0
      %8400 = vmatpush1.msra.mxu0 0.0
      %8401 = vmatprep.subr.mxu0 0.0
      %8402 = vmatpush1.msra.mxu0 0.0
      %8403 = vmatprep.subr.mxu0 0.0
      %8404 = vmatpush1.msra.mxu0 0.0
      %8405 = vmatprep.subr.mxu0 0.0
      %8406 = vmatpush1.msra.mxu0 0.0
      %8407 = vmatprep.subr.mxu0 0.0
      %8408 = vmatpush1.msra.mxu0 0.0
      %8409 = vmatprep.subr.mxu0 0.0
      %8410 = vmatpush1.msra.mxu0 0.0
      %8411 = vmatprep.subr.mxu0 0.0
      %8412 = vmatpush1.msra.mxu0 0.0
      %8413 = vmatprep.subr.mxu0 %v8312
      %8414 = vmatpush1.msra.mxu0 %v8276
      %8415 = vmatprep.subr.mxu0 %v8311
      %8416 = vmatpush1.msra.mxu0 %v8275
      %8417 = vmatprep.subr.mxu0 %v8310
      %8418 = vmatpush1.msra.mxu0 %v8274
      %8419 = vmatprep.subr.mxu0 %v8309
      %8420 = vmatpush1.msra.mxu0 %v8273
      %8421 = vmatprep.subr.mxu0 %v8308
      %8422 = vmatpush1.msra.mxu0 %v8272
      %8423 = vmatprep.subr.mxu0 %v8307
      %8424 = vmatpush1.msra.mxu0 %v8271
      %8425 = vmatprep.subr.mxu0 %v8306
      %8426 = vmatpush1.msra.mxu0 %v8270
      %8427 = vmatprep.subr.mxu0 %v8305
      %8428 = vmatpush1.msra.mxu0 %v8269
      %8429 = vmatprep.subr.mxu0 0.0
      %8430 = vmatpush2.msra.mxu0 0.0
      %8431 = vmatprep.subr.mxu0 0.0
      %8432 = vmatpush2.msra.mxu0 0.0
      %8433 = vmatprep.subr.mxu0 0.0
      %8434 = vmatpush2.msra.mxu0 0.0
      %8435 = vmatprep.subr.mxu0 0.0
      %8436 = vmatpush2.msra.mxu0 0.0
      %8437 = vmatprep.subr.mxu0 0.0
      %8438 = vmatpush2.msra.mxu0 0.0
      %8439 = vmatprep.subr.mxu0 0.0
      %8440 = vmatpush2.msra.mxu0 0.0
      %8441 = vmatprep.subr.mxu0 0.0
      %8442 = vmatpush2.msra.mxu0 0.0
      %8443 = vmatprep.subr.mxu0 0.0
      %8444 = vmatpush2.msra.mxu0 0.0
      %8445 = vmatprep.subr.mxu0 0.0
      %8446 = vmatpush2.msra.mxu0 0.0
      %8447 = vmatprep.subr.mxu0 0.0
      %8448 = vmatpush2.msra.mxu0 0.0
      %8449 = vmatprep.subr.mxu0 0.0
      %8450 = vmatpush2.msra.mxu0 0.0
      %8451 = vmatprep.subr.mxu0 0.0
      %8452 = vmatpush2.msra.mxu0 0.0
      %8453 = vmatprep.subr.mxu0 0.0
      %8454 = vmatpush2.msra.mxu0 0.0
      %8455 = vmatprep.subr.mxu0 0.0
      %8456 = vmatpush2.msra.mxu0 0.0
      %8457 = vmatprep.subr.mxu0 0.0
      %8458 = vmatpush2.msra.mxu0 0.0
      %8459 = vmatprep.subr.mxu0 0.0
      %8460 = vmatpush2.msra.mxu0 0.0
      %8461 = vmatprep.mubr.f32.mxu0 0.0
      %8462 = vmatmul.mubr.f32.gmra.mxu0 %v8324
      %v8463 = vpop.f32.mrf.mxu0
      %v8464 = vadd.f32 0.0, %v8463
      %v8465 = vpop.f32.mrf.mxu0
      %v8466 = vadd.f32 0.0, %v8465
      %8467 = vdwg.mxu0
      %8468 = vmatprep.subr.mxu0 0.0
      %8469 = vmatpush1.msra.mxu0 0.0
      %8470 = vmatprep.subr.mxu0 0.0
      %8471 = vmatpush1.msra.mxu0 0.0
      %8472 = vmatprep.subr.mxu0 0.0
      %8473 = vmatpush1.msra.mxu0 0.0
      %8474 = vmatprep.subr.mxu0 0.0
      %8475 = vmatpush1.msra.mxu0 0.0
      %8476 = vmatprep.subr.mxu0 0.0
      %8477 = vmatpush1.msra.mxu0 0.0
      %8478 = vmatprep.subr.mxu0 0.0
      %8479 = vmatpush1.msra.mxu0 0.0
      %8480 = vmatprep.subr.mxu0 0.0
      %8481 = vmatpush1.msra.mxu0 0.0
      %8482 = vmatprep.subr.mxu0 0.0
      %8483 = vmatpush1.msra.mxu0 0.0
      %8484 = vmatprep.subr.mxu0 0.0
      %8485 = vmatpush1.msra.mxu0 %v8321
      %8486 = vmatprep.subr.mxu0 0.0
      %8487 = vmatpush1.msra.mxu0 %v8320
      %8488 = vmatprep.subr.mxu0 0.0
      %8489 = vmatpush1.msra.mxu0 %v8319
      %8490 = vmatprep.subr.mxu0 0.0
      %8491 = vmatpush1.msra.mxu0 %v8318
      %8492 = vmatprep.subr.mxu0 0.0
      %8493 = vmatpush1.msra.mxu0 %v8317
      %8494 = vmatprep.subr.mxu0 0.0
      %8495 = vmatpush1.msra.mxu0 %v8316
      %8496 = vmatprep.subr.mxu0 0.0
      %8497 = vmatpush1.msra.mxu0 %v8315
      %8498 = vmatprep.subr.mxu0 0.0
      %8499 = vmatpush1.msra.mxu0 %v8314
      %8500 = vmatprep.subr.mxu0 0.0
      %8501 = vmatpush2.msra.mxu0 0.0
      %8502 = vmatprep.subr.mxu0 0.0
      %8503 = vmatpush2.msra.mxu0 0.0
      %8504 = vmatprep.subr.mxu0 0.0
      %8505 = vmatpush2.msra.mxu0 0.0
      %8506 = vmatprep.subr.mxu0 0.0
      %8507 = vmatpush2.msra.mxu0 0.0
      %8508 = vmatprep.subr.mxu0 0.0
      %8509 = vmatpush2.msra.mxu0 0.0
      %8510 = vmatprep.subr.mxu0 0.0
      %8511 = vmatpush2.msra.mxu0 0.0
      %8512 = vmatprep.subr.mxu0 0.0
      %8513 = vmatpush2.msra.mxu0 0.0
      %8514 = vmatprep.subr.mxu0 0.0
      %8515 = vmatpush2.msra.mxu0 0.0
      %8516 = vmatprep.subr.mxu0 0.0
      %8517 = vmatpush2.msra.mxu0 0.0
      %8518 = vmatprep.subr.mxu0 0.0
      %8519 = vmatpush2.msra.mxu0 0.0
      %8520 = vmatprep.subr.mxu0 0.0
      %8521 = vmatpush2.msra.mxu0 0.0
      %8522 = vmatprep.subr.mxu0 0.0
      %8523 = vmatpush2.msra.mxu0 0.0
      %8524 = vmatprep.subr.mxu0 0.0
      %8525 = vmatpush2.msra.mxu0 0.0
      %8526 = vmatprep.subr.mxu0 0.0
      %8527 = vmatpush2.msra.mxu0 0.0
      %8528 = vmatprep.subr.mxu0 0.0
      %8529 = vmatpush2.msra.mxu0 0.0
      %8530 = vmatprep.subr.mxu0 0.0
      %8531 = vmatpush2.msra.mxu0 0.0
      %8532 = vmatprep.mubr.f32.mxu0 0.0
      %8533 = vmatmul.mubr.f32.gmra.mxu0 %v8324
      %v8534 = vpop.f32.mrf.mxu0
      %v8535 = vadd.f32 0.0, %v8534
      %v8536 = vpop.f32.mrf.mxu0
      %8537 = vdwg.mxu0
      %v8538 = vld [vmem:[%s8] sm:$0xff]
      %v8539 = vld [vmem:[%s8 + $0x8] sm:$0xff]
      %v8540 = vld [vmem:[%s8 + $0x10] sm:$0xff]
      %v8541 = vld [vmem:[%s8 + $0x18] sm:$0xff]
      %v8542 = vld [vmem:[%s8 + $0x20] sm:$0xff]
      %v8543 = vld [vmem:[%s8 + $0x28] sm:$0xff]
      %v8544 = vld [vmem:[%s8 + $0x30] sm:$0xff]
      %v8545 = vld [vmem:[%s8 + $0x38] sm:$0xff]
      %v8546 = vld [vmem:[%s8 + $0x40] sm:$0xff]
      %v8547 = vld [vmem:[%s8 + $0x48] sm:$0xff]
      %v8548 = vld [vmem:[%s8 + $0x50] sm:$0xff]
      %v8549 = vld [vmem:[%s8 + $0x58] sm:$0xff]
      %v8550 = vld [vmem:[%s8 + $0x60] sm:$0xff]
      %v8551 = vld [vmem:[%s8 + $0x68] sm:$0xff]
      %v8552 = vld [vmem:[%s8 + $0x70] sm:$0xff]
      %v8553 = vld [vmem:[%s8 + $0x78] sm:$0xff]
      %v8554 = vld [vmem:[%s8 + $0x80] sm:$0xff]
      %v8555 = vld [vmem:[%s8 + $0x88] sm:$0xff]
      %v8556 = vld [vmem:[%s8 + $0x90] sm:$0xff]
      %v8557 = vld [vmem:[%s8 + $0x98] sm:$0xff]
      %v8558 = vld [vmem:[%s8 + $0xa0] sm:$0xff]
      %v8559 = vld [vmem:[%s8 + $0xa8] sm:$0xff]
      %v8560 = vld [vmem:[%s8 + $0xb0] sm:$0xff]
      %v8561 = vld [vmem:[%s8 + $0xb8] sm:$0xff]
      %v8562 = vld [vmem:[%s8 + $0xc0] sm:$0xff]
      %v8563 = vld [vmem:[%s8 + $0xc8] sm:$0xff]
      %v8564 = vld [vmem:[%s8 + $0xd0] sm:$0xff]
      %v8565 = vld [vmem:[%s8 + $0xd8] sm:$0xff]
      %v8566 = vld [vmem:[%s8 + $0xe0] sm:$0xff]
      %v8567 = vld [vmem:[%s8 + $0xe8] sm:$0xff]
      %v8568 = vld [vmem:[%s8 + $0xf0] sm:$0xff]
      %v8569 = vld [vmem:[%s8 + $0xf8] sm:$0xff]
      %v8570 = vld [vmem:[%s8 + $0x100] sm:$0xff]
      %v8571 = vld [vmem:[%s8 + $0x108] sm:$0xff]
      %v8572 = vld [vmem:[%s8 + $0x110] sm:$0xff]
      %v8573 = vld [vmem:[%s8 + $0x118] sm:$0xff]
      %v8574 = vld [vmem:[%s8 + $0x120] sm:$0xff]
      %v8575 = vld [vmem:[%s8 + $0x128] sm:$0xff]
      %v8576 = vld [vmem:[%s8 + $0x130] sm:$0xff]
      %v8577 = vld [vmem:[%s8 + $0x138] sm:$0xff]
      %v8578 = vld [vmem:[%s8 + $0x140] sm:$0xff]
      %v8579 = vld [vmem:[%s8 + $0x148] sm:$0xff]
      %v8580 = vld [vmem:[%s8 + $0x150] sm:$0xff]
      %v8581 = vld [vmem:[%s8 + $0x158] sm:$0xff]
      %v8582 = vld [vmem:[%s8 + $0x160] sm:$0xff]
      %v8583 = vld [vmem:[%s8 + $0x168] sm:$0xff]
      %v8584 = vld [vmem:[%s8 + $0x170] sm:$0xff]
      %v8585 = vld [vmem:[%s8 + $0x178] sm:$0xff]
      %v8586 = vld [vmem:[%s8 + $0x180] sm:$0xff]
      %v8587 = vld [vmem:[%s8 + $0x188] sm:$0xff]
      %v8588 = vld [vmem:[%s8 + $0x190] sm:$0xff]
      %v8589 = vld [vmem:[%s8 + $0x198] sm:$0xff]
      %v8590 = vld [vmem:[%s8 + $0x1a0] sm:$0xff]
      %v8591 = vld [vmem:[%s8 + $0x1a8] sm:$0xff]
      %v8592 = vld [vmem:[%s8 + $0x1b0] sm:$0xff]
      %v8593 = vld [vmem:[%s8 + $0x1b8] sm:$0xff]
      %v8594 = vld [vmem:[%s8 + $0x1c0] sm:$0xff]
      %v8595 = vld [vmem:[%s8 + $0x1c8] sm:$0xff]
      %v8596 = vld [vmem:[%s8 + $0x1d0] sm:$0xff]
      %v8597 = vld [vmem:[%s8 + $0x1d8] sm:$0xff]
      %v8598 = vld [vmem:[%s8 + $0x1e0] sm:$0xff]
      %v8599 = vld [vmem:[%s8 + $0x1e8] sm:$0xff]
      %v8600 = vld [vmem:[%s8 + $0x1f0] sm:$0xff]
      %v8601 = vld [vmem:[%s8 + $0x1f8] sm:$0xff]
      %v8602 = vld [vmem:[%s8 + $0x200] sm:$0xff]
      %v8603 = vld [vmem:[%s8 + $0x208] sm:$0xff]
      %v8604 = vld [vmem:[%s8 + $0x210] sm:$0xff]
      %v8605 = vld [vmem:[%s8 + $0x218] sm:$0xff]
      %v8606 = vld [vmem:[%s8 + $0x220] sm:$0xff]
      %v8607 = vld [vmem:[%s8 + $0x228] sm:$0xff]
      %v8608 = vld [vmem:[%s8 + $0x230] sm:$0xff]
      %v8609 = vld [vmem:[%s8 + $0x238] sm:$0xff]
      %v8610 = vld [vmem:[%s9] sm:$0x1]
      %v8612 = vlaneseq
      %v8613 = vshrl.u32 %v8612, 7
      %v8614 = vsub.s32 0, %v8613
      %v8615 = vrot.slane %v8610, %v8614
      %v8618 = vsel %vm1323, %v8535, 0
      %8620 = vmatprep.subr.mxu0 0.0
      %8621 = vmatpush1.msra.mxu0 %v8553
      %8622 = vmatprep.subr.mxu0 0.0
      %8623 = vmatpush1.msra.mxu0 %v8552
      %8624 = vmatprep.subr.mxu0 0.0
      %8625 = vmatpush1.msra.mxu0 %v8551
      %8626 = vmatprep.subr.mxu0 0.0
      %8627 = vmatpush1.msra.mxu0 %v8550
      %8628 = vmatprep.subr.mxu0 0.0
      %8629 = vmatpush1.msra.mxu0 %v8549
      %8630 = vmatprep.subr.mxu0 0.0
      %8631 = vmatpush1.msra.mxu0 %v8548
      %8632 = vmatprep.subr.mxu0 0.0
      %8633 = vmatpush1.msra.mxu0 %v8547
      %8634 = vmatprep.subr.mxu0 0.0
      %8635 = vmatpush1.msra.mxu0 %v8546
      %8636 = vmatprep.subr.mxu0 0.0
      %8637 = vmatpush1.msra.mxu0 %v8545
      %8638 = vmatprep.subr.mxu0 0.0
      %8639 = vmatpush1.msra.mxu0 %v8544
      %8640 = vmatprep.subr.mxu0 0.0
      %8641 = vmatpush1.msra.mxu0 %v8543
      %8642 = vmatprep.subr.mxu0 0.0
      %8643 = vmatpush1.msra.mxu0 %v8542
      %8644 = vmatprep.subr.mxu0 0.0
      %8645 = vmatpush1.msra.mxu0 %v8541
      %8646 = vmatprep.subr.mxu0 0.0
      %8647 = vmatpush1.msra.mxu0 %v8540
      %8648 = vmatprep.subr.mxu0 0.0
      %8649 = vmatpush1.msra.mxu0 %v8539
      %8650 = vmatprep.subr.mxu0 0.0
      %8651 = vmatpush1.msra.mxu0 %v8538
      %8652 = vmatprep.subr.mxu0 0.0
      %8653 = vmatpush2.msra.mxu0 %v8569
      %8654 = vmatprep.subr.mxu0 0.0
      %8655 = vmatpush2.msra.mxu0 %v8568
      %8656 = vmatprep.subr.mxu0 0.0
      %8657 = vmatpush2.msra.mxu0 %v8567
      %8658 = vmatprep.subr.mxu0 0.0
      %8659 = vmatpush2.msra.mxu0 %v8566
      %8660 = vmatprep.subr.mxu0 0.0
      %8661 = vmatpush2.msra.mxu0 %v8565
      %8662 = vmatprep.subr.mxu0 0.0
      %8663 = vmatpush2.msra.mxu0 %v8564
      %8664 = vmatprep.subr.mxu0 0.0
      %8665 = vmatpush2.msra.mxu0 %v8563
      %8666 = vmatprep.subr.mxu0 0.0
      %8667 = vmatpush2.msra.mxu0 %v8562
      %8668 = vmatprep.subr.mxu0 0.0
      %8669 = vmatpush2.msra.mxu0 %v8561
      %8670 = vmatprep.subr.mxu0 0.0
      %8671 = vmatpush2.msra.mxu0 %v8560
      %8672 = vmatprep.subr.mxu0 0.0
      %8673 = vmatpush2.msra.mxu0 %v8559
      %8674 = vmatprep.subr.mxu0 0.0
      %8675 = vmatpush2.msra.mxu0 %v8558
      %8676 = vmatprep.subr.mxu0 0.0
      %8677 = vmatpush2.msra.mxu0 %v8557
      %8678 = vmatprep.subr.mxu0 0.0
      %8679 = vmatpush2.msra.mxu0 %v8556
      %8680 = vmatprep.subr.mxu0 0.0
      %8681 = vmatpush2.msra.mxu0 %v8555
      %8682 = vmatprep.subr.mxu0 0.0
      %8683 = vmatpush2.msra.mxu0 %v8554
      %8684 = vmatprep.mubr.f32.mxu0 %v8395
      %8685 = vmatmul.mubr.f32.gmra.mxu0 %v8393
      %v8686 = vpop.f32.mrf.mxu0
      %v8687 = vadd.f32 %v8615, %v8686
      %v8688 = vpop.f32.mrf.mxu0
      %8689 = vdwg.mxu0
      %8690 = vmatprep.subr.mxu0 0.0
      %8691 = vmatpush1.msra.mxu0 %v8585
      %8692 = vmatprep.subr.mxu0 0.0
      %8693 = vmatpush1.msra.mxu0 %v8584
      %8694 = vmatprep.subr.mxu0 0.0
      %8695 = vmatpush1.msra.mxu0 %v8583
      %8696 = vmatprep.subr.mxu0 0.0
      %8697 = vmatpush1.msra.mxu0 %v8582
      %8698 = vmatprep.subr.mxu0 0.0
      %8699 = vmatpush1.msra.mxu0 %v8581
      %8700 = vmatprep.subr.mxu0 0.0
      %8701 = vmatpush1.msra.mxu0 %v8580
      %8702 = vmatprep.subr.mxu0 0.0
      %8703 = vmatpush1.msra.mxu0 %v8579
      %8704 = vmatprep.subr.mxu0 0.0
      %8705 = vmatpush1.msra.mxu0 %v8578
      %8706 = vmatprep.subr.mxu0 0.0
      %8707 = vmatpush1.msra.mxu0 %v8577
      %8708 = vmatprep.subr.mxu0 0.0
      %8709 = vmatpush1.msra.mxu0 %v8576
      %8710 = vmatprep.subr.mxu0 0.0
      %8711 = vmatpush1.msra.mxu0 %v8575
      %8712 = vmatprep.subr.mxu0 0.0
      %8713 = vmatpush1.msra.mxu0 %v8574
      %8714 = vmatprep.subr.mxu0 0.0
      %8715 = vmatpush1.msra.mxu0 %v8573
      %8716 = vmatprep.subr.mxu0 0.0
      %8717 = vmatpush1.msra.mxu0 %v8572
      %8718 = vmatprep.subr.mxu0 0.0
      %8719 = vmatpush1.msra.mxu0 %v8571
      %8720 = vmatprep.subr.mxu0 0.0
      %8721 = vmatpush1.msra.mxu0 %v8570
      %8722 = vmatprep.subr.mxu0 0.0
      %8723 = vmatpush2.msra.mxu0 %v8601
      %8724 = vmatprep.subr.mxu0 0.0
      %8725 = vmatpush2.msra.mxu0 %v8600
      %8726 = vmatprep.subr.mxu0 0.0
      %8727 = vmatpush2.msra.mxu0 %v8599
      %8728 = vmatprep.subr.mxu0 0.0
      %8729 = vmatpush2.msra.mxu0 %v8598
      %8730 = vmatprep.subr.mxu0 0.0
      %8731 = vmatpush2.msra.mxu0 %v8597
      %8732 = vmatprep.subr.mxu0 0.0
      %8733 = vmatpush2.msra.mxu0 %v8596
      %8734 = vmatprep.subr.mxu0 0.0
      %8735 = vmatpush2.msra.mxu0 %v8595
      %8736 = vmatprep.subr.mxu0 0.0
      %8737 = vmatpush2.msra.mxu0 %v8594
      %8738 = vmatprep.subr.mxu0 0.0
      %8739 = vmatpush2.msra.mxu0 %v8593
      %8740 = vmatprep.subr.mxu0 0.0
      %8741 = vmatpush2.msra.mxu0 %v8592
      %8742 = vmatprep.subr.mxu0 0.0
      %8743 = vmatpush2.msra.mxu0 %v8591
      %8744 = vmatprep.subr.mxu0 0.0
      %8745 = vmatpush2.msra.mxu0 %v8590
      %8746 = vmatprep.subr.mxu0 0.0
      %8747 = vmatpush2.msra.mxu0 %v8589
      %8748 = vmatprep.subr.mxu0 0.0
      %8749 = vmatpush2.msra.mxu0 %v8588
      %8750 = vmatprep.subr.mxu0 0.0
      %8751 = vmatpush2.msra.mxu0 %v8587
      %8752 = vmatprep.subr.mxu0 0.0
      %8753 = vmatpush2.msra.mxu0 %v8586
      %8754 = vmatprep.mubr.f32.mxu0 %v8466
      %8755 = vmatmul.mubr.f32.gmra.mxu0 %v8464
      %v8756 = vpop.f32.mrf.mxu0
      %v8757 = vadd.f32 %v8687, %v8756
      %v8758 = vpop.f32.mrf.mxu0
      %8759 = vdwg.mxu0
      %8760 = vmatprep.subr.mxu0 0.0
      %8761 = vmatpush1.msra.mxu0 0.0
      %8762 = vmatprep.subr.mxu0 0.0
      %8763 = vmatpush1.msra.mxu0 0.0
      %8764 = vmatprep.subr.mxu0 0.0
      %8765 = vmatpush1.msra.mxu0 0.0
      %8766 = vmatprep.subr.mxu0 0.0
      %8767 = vmatpush1.msra.mxu0 0.0
      %8768 = vmatprep.subr.mxu0 0.0
      %8769 = vmatpush1.msra.mxu0 0.0
      %8770 = vmatprep.subr.mxu0 0.0
      %8771 = vmatpush1.msra.mxu0 0.0
      %8772 = vmatprep.subr.mxu0 0.0
      %8773 = vmatpush1.msra.mxu0 0.0
      %8774 = vmatprep.subr.mxu0 0.0
      %8775 = vmatpush1.msra.mxu0 0.0
      %8776 = vmatprep.subr.mxu0 0.0
      %8777 = vmatpush1.msra.mxu0 %v8609
      %8778 = vmatprep.subr.mxu0 0.0
      %8779 = vmatpush1.msra.mxu0 %v8608
      %8780 = vmatprep.subr.mxu0 0.0
      %8781 = vmatpush1.msra.mxu0 %v8607
      %8782 = vmatprep.subr.mxu0 0.0
      %8783 = vmatpush1.msra.mxu0 %v8606
      %8784 = vmatprep.subr.mxu0 0.0
      %8785 = vmatpush1.msra.mxu0 %v8605
      %8786 = vmatprep.subr.mxu0 0.0
      %8787 = vmatpush1.msra.mxu0 %v8604
      %8788 = vmatprep.subr.mxu0 0.0
      %8789 = vmatpush1.msra.mxu0 %v8603
      %8790 = vmatprep.subr.mxu0 0.0
      %8791 = vmatpush1.msra.mxu0 %v8602
      %8792 = vmatprep.subr.mxu0 0.0
      %8793 = vmatpush2.msra.mxu0 0.0
      %8794 = vmatprep.subr.mxu0 0.0
      %8795 = vmatpush2.msra.mxu0 0.0
      %8796 = vmatprep.subr.mxu0 0.0
      %8797 = vmatpush2.msra.mxu0 0.0
      %8798 = vmatprep.subr.mxu0 0.0
      %8799 = vmatpush2.msra.mxu0 0.0
      %8800 = vmatprep.subr.mxu0 0.0
      %8801 = vmatpush2.msra.mxu0 0.0
      %8802 = vmatprep.subr.mxu0 0.0
      %8803 = vmatpush2.msra.mxu0 0.0
      %8804 = vmatprep.subr.mxu0 0.0
      %8805 = vmatpush2.msra.mxu0 0.0
      %8806 = vmatprep.subr.mxu0 0.0
      %8807 = vmatpush2.msra.mxu0 0.0
      %8808 = vmatprep.subr.mxu0 0.0
      %8809 = vmatpush2.msra.mxu0 0.0
      %8810 = vmatprep.subr.mxu0 0.0
      %8811 = vmatpush2.msra.mxu0 0.0
      %8812 = vmatprep.subr.mxu0 0.0
      %8813 = vmatpush2.msra.mxu0 0.0
      %8814 = vmatprep.subr.mxu0 0.0
      %8815 = vmatpush2.msra.mxu0 0.0
      %8816 = vmatprep.subr.mxu0 0.0
      %8817 = vmatpush2.msra.mxu0 0.0
      %8818 = vmatprep.subr.mxu0 0.0
      %8819 = vmatpush2.msra.mxu0 0.0
      %8820 = vmatprep.subr.mxu0 0.0
      %8821 = vmatpush2.msra.mxu0 0.0
      %8822 = vmatprep.subr.mxu0 0.0
      %8823 = vmatpush2.msra.mxu0 0.0
      %8824 = vmatprep.mubr.f32.mxu0 0.0
      %8825 = vmatmul.mubr.f32.gmra.mxu0 %v8618
      %v8826 = vpop.f32.mrf.mxu0
      %v8827 = vadd.f32 %v8757, %v8826
      %v8828 = vpop.f32.mrf.mxu0
      %8829 = vdwg.mxu0
      %v8830 = vmax.f32 %v8827, 0.0
      %v8831 = vld [vmem:[%s10] sm:$0xff]
      %v8832 = vld [vmem:[%s10 + $0x8] sm:$0xff]
      %v8833 = vld [vmem:[%s10 + $0x10] sm:$0xff]
      %v8834 = vld [vmem:[%s10 + $0x18] sm:$0xff]
      %v8835 = vld [vmem:[%s10 + $0x20] sm:$0xff]
      %v8836 = vld [vmem:[%s10 + $0x28] sm:$0xff]
      %v8837 = vld [vmem:[%s10 + $0x30] sm:$0xff]
      %v8838 = vld [vmem:[%s10 + $0x38] sm:$0xff]
      %v8839 = vld [vmem:[%s10 + $0x40] sm:$0xff]
      %v8840 = vld [vmem:[%s10 + $0x48] sm:$0xff]
      %v8841 = vld [vmem:[%s10 + $0x50] sm:$0xff]
      %v8842 = vld [vmem:[%s10 + $0x58] sm:$0xff]
      %v8843 = vld [vmem:[%s10 + $0x60] sm:$0xff]
      %v8844 = vld [vmem:[%s10 + $0x68] sm:$0xff]
      %v8845 = vld [vmem:[%s10 + $0x70] sm:$0xff]
      %v8846 = vld [vmem:[%s11] sm:$0x1]
      %v8848 = vlaneseq
      %v8849 = vshrl.u32 %v8848, 7
      %v8850 = vsub.s32 0, %v8849
      %v8851 = vrot.slane %v8846, %v8850
      %v8854 = vsel %vm8304, %v8830, 0
      %8856 = vmatprep.subr.mxu0 0.0
      %8857 = vmatpush1.msra.mxu0 0.0
      %8858 = vmatprep.subr.mxu0 0.0
      %8859 = vmatpush1.msra.mxu0 %v8845
      %8860 = vmatprep.subr.mxu0 0.0
      %8861 = vmatpush1.msra.mxu0 %v8844
      %8862 = vmatprep.subr.mxu0 0.0
      %8863 = vmatpush1.msra.mxu0 %v8843
      %8864 = vmatprep.subr.mxu0 0.0
      %8865 = vmatpush1.msra.mxu0 %v8842
      %8866 = vmatprep.subr.mxu0 0.0
      %8867 = vmatpush1.msra.mxu0 %v8841
      %8868 = vmatprep.subr.mxu0 0.0
      %8869 = vmatpush1.msra.mxu0 %v8840
      %8870 = vmatprep.subr.mxu0 0.0
      %8871 = vmatpush1.msra.mxu0 %v8839
      %8872 = vmatprep.subr.mxu0 0.0
      %8873 = vmatpush1.msra.mxu0 %v8838
      %8874 = vmatprep.subr.mxu0 0.0
      %8875 = vmatpush1.msra.mxu0 %v8837
      %8876 = vmatprep.subr.mxu0 0.0
      %8877 = vmatpush1.msra.mxu0 %v8836
      %8878 = vmatprep.subr.mxu0 0.0
      %8879 = vmatpush1.msra.mxu0 %v8835
      %8880 = vmatprep.subr.mxu0 0.0
      %8881 = vmatpush1.msra.mxu0 %v8834
      %8882 = vmatprep.subr.mxu0 0.0
      %8883 = vmatpush1.msra.mxu0 %v8833
      %8884 = vmatprep.subr.mxu0 0.0
      %8885 = vmatpush1.msra.mxu0 %v8832
      %8886 = vmatprep.subr.mxu0 0.0
      %8887 = vmatpush1.msra.mxu0 %v8831
      %8888 = vmatprep.subr.mxu0 0.0
      %8889 = vmatpush2.msra.mxu0 0.0
      %8890 = vmatprep.subr.mxu0 0.0
      %8891 = vmatpush2.msra.mxu0 0.0
      %8892 = vmatprep.subr.mxu0 0.0
      %8893 = vmatpush2.msra.mxu0 0.0
      %8894 = vmatprep.subr.mxu0 0.0
      %8895 = vmatpush2.msra.mxu0 0.0
      %8896 = vmatprep.subr.mxu0 0.0
      %8897 = vmatpush2.msra.mxu0 0.0
      %8898 = vmatprep.subr.mxu0 0.0
      %8899 = vmatpush2.msra.mxu0 0.0
      %8900 = vmatprep.subr.mxu0 0.0
      %8901 = vmatpush2.msra.mxu0 0.0
      %8902 = vmatprep.subr.mxu0 0.0
      %8903 = vmatpush2.msra.mxu0 0.0
      %8904 = vmatprep.subr.mxu0 0.0
      %8905 = vmatpush2.msra.mxu0 0.0
      %8906 = vmatprep.subr.mxu0 0.0
      %8907 = vmatpush2.msra.mxu0 0.0
      %8908 = vmatprep.subr.mxu0 0.0
      %8909 = vmatpush2.msra.mxu0 0.0
      %8910 = vmatprep.subr.mxu0 0.0
      %8911 = vmatpush2.msra.mxu0 0.0
      %8912 = vmatprep.subr.mxu0 0.0
      %8913 = vmatpush2.msra.mxu0 0.0
      %8914 = vmatprep.subr.mxu0 0.0
      %8915 = vmatpush2.msra.mxu0 0.0
      %8916 = vmatprep.subr.mxu0 0.0
      %8917 = vmatpush2.msra.mxu0 0.0
      %8918 = vmatprep.subr.mxu0 0.0
      %8919 = vmatpush2.msra.mxu0 0.0
      %8920 = vmatprep.mubr.f32.mxu0 0.0
      %8921 = vmatmul.mubr.f32.gmra.mxu0 %v8854
      %v8922 = vpop.f32.mrf.mxu0
      %v8923 = vadd.f32 %v8851, %v8922
      %v8924 = vpop.f32.mrf.mxu0
      %8925 = vdwg.mxu0
      %v8926 = vmax.f32 %v8923, 0.0
      %v8927 = vld [vmem:[%s12] sm:$0xff]
      %v8928 = vld [vmem:[%s12 + $0x8] sm:$0xff]
      %v8929 = vld [vmem:[%s12 + $0x10] sm:$0xff]
      %v8930 = vld [vmem:[%s12 + $0x18] sm:$0xff]
      %v8931 = vld [vmem:[%s12 + $0x20] sm:$0xff]
      %v8932 = vld [vmem:[%s12 + $0x28] sm:$0xff]
      %v8933 = vld [vmem:[%s12 + $0x30] sm:$0xff]
      %v8934 = vld [vmem:[%s12 + $0x38] sm:$0xff]
      %v8935 = vld [vmem:[%s12 + $0x40] sm:$0xff]
      %v8936 = vld [vmem:[%s12 + $0x48] sm:$0xff]
      %v8937 = vld [vmem:[%s12 + $0x50] sm:$0xf]
      %v8938 = vld [vmem:[%s13] sm:$0x1]
      %v8940 = vlaneseq
      %v8941 = vshrl.u32 %v8940, 7
      %v8942 = vsub.s32 0, %v8941
      %v8943 = vrot.slane %v8938, %v8942
      %v8946 = vsel %vm8295, %v8926, 0
      %v8949 = vsel %vm1705, %v8937, 0
      %8951 = vmatprep.subr.mxu0 0.0
      %8952 = vmatpush1.msra.mxu0 0.0
      %8953 = vmatprep.subr.mxu0 0.0
      %8954 = vmatpush1.msra.mxu0 0.0
      %8955 = vmatprep.subr.mxu0 0.0
      %8956 = vmatpush1.msra.mxu0 0.0
      %8957 = vmatprep.subr.mxu0 0.0
      %8958 = vmatpush1.msra.mxu0 0.0
      %8959 = vmatprep.subr.mxu0 0.0
      %8960 = vmatpush1.msra.mxu0 0.0
      %8961 = vmatprep.subr.mxu0 0.0
      %8962 = vmatpush1.msra.mxu0 %v8949
      %8963 = vmatprep.subr.mxu0 0.0
      %8964 = vmatpush1.msra.mxu0 %v8936
      %8965 = vmatprep.subr.mxu0 0.0
      %8966 = vmatpush1.msra.mxu0 %v8935
      %8967 = vmatprep.subr.mxu0 0.0
      %8968 = vmatpush1.msra.mxu0 %v8934
      %8969 = vmatprep.subr.mxu0 0.0
      %8970 = vmatpush1.msra.mxu0 %v8933
      %8971 = vmatprep.subr.mxu0 0.0
      %8972 = vmatpush1.msra.mxu0 %v8932
      %8973 = vmatprep.subr.mxu0 0.0
      %8974 = vmatpush1.msra.mxu0 %v8931
      %8975 = vmatprep.subr.mxu0 0.0
      %8976 = vmatpush1.msra.mxu0 %v8930
      %8977 = vmatprep.subr.mxu0 0.0
      %8978 = vmatpush1.msra.mxu0 %v8929
      %8979 = vmatprep.subr.mxu0 0.0
      %8980 = vmatpush1.msra.mxu0 %v8928
      %8981 = vmatprep.subr.mxu0 0.0
      %8982 = vmatpush1.msra.mxu0 %v8927
      %8983 = vmatprep.subr.mxu0 0.0
      %8984 = vmatpush2.msra.mxu0 0.0
      %8985 = vmatprep.subr.mxu0 0.0
      %8986 = vmatpush2.msra.mxu0 0.0
      %8987 = vmatprep.subr.mxu0 0.0
      %8988 = vmatpush2.msra.mxu0 0.0
      %8989 = vmatprep.subr.mxu0 0.0
      %8990 = vmatpush2.msra.mxu0 0.0
      %8991 = vmatprep.subr.mxu0 0.0
      %8992 = vmatpush2.msra.mxu0 0.0
      %8993 = vmatprep.subr.mxu0 0.0
      %8994 = vmatpush2.msra.mxu0 0.0
      %8995 = vmatprep.subr.mxu0 0.0
      %8996 = vmatpush2.msra.mxu0 0.0
      %8997 = vmatprep.subr.mxu0 0.0
      %8998 = vmatpush2.msra.mxu0 0.0
      %8999 = vmatprep.subr.mxu0 0.0
      %9000 = vmatpush2.msra.mxu0 0.0
      %9001 = vmatprep.subr.mxu0 0.0
      %9002 = vmatpush2.msra.mxu0 0.0
      %9003 = vmatprep.subr.mxu0 0.0
      %9004 = vmatpush2.msra.mxu0 0.0
      %9005 = vmatprep.subr.mxu0 0.0
      %9006 = vmatpush2.msra.mxu0 0.0
      %9007 = vmatprep.subr.mxu0 0.0
      %9008 = vmatpush2.msra.mxu0 0.0
      %9009 = vmatprep.subr.mxu0 0.0
      %9010 = vmatpush2.msra.mxu0 0.0
      %9011 = vmatprep.subr.mxu0 0.0
      %9012 = vmatpush2.msra.mxu0 0.0
      %9013 = vmatprep.subr.mxu0 0.0
      %9014 = vmatpush2.msra.mxu0 0.0
      %9015 = vmatprep.mubr.f32.mxu0 0.0
      %9016 = vmatmul.mubr.f32.gmra.mxu0 %v8946
      %v9017 = vpop.f32.mrf.mxu0
      %v9018 = vadd.f32 %v8943, %v9017
      %v9019 = vpop.f32.mrf.mxu0
      %9020 = vdwg.mxu0
      %9021 = vst [vmem:[%s462] sm:$0xf] %v9018
      %p9022 = scmp.lt.s32.totalorder %s25, 2
      %s9023 = scalar_select %p9022, %s25, 2
      %s9024 = smul.addr %s9023, 4
      %s9025 = scalar_lea.vmem %s14, %s9024
      // Predicated region
      $region77: #{net_forward.1} parent=75 // pred_check
        %p9026 = pneg %p342
      $region78: #{net_forward.1} parent=75 // pred_check_branch
        %9028 = sbr.rel (%p9026) target = $region80
      $region79: #{net_forward.1} parent=75 // pred_region
        _
      $region80: #{net_forward.1} parent=75 // pred_fallthru
        _
    $region76: #{net_forward.1} parent=5 // pred_fallthru
      _
    %p9029 = scmp.le.s32.totalorder 2, %s20
    // Predicated region
    $region81: #{net_forward.1} parent=5 // pred_check
      %p9030 = pneg %p9029
    $region82: #{net_forward.1} parent=5 // pred_check_branch
      %9032 = sbr.rel (%p9030) target = $region84
    $region83: #{net_forward.1} parent=5 // pred_region
      %s9033 = ssub.s32 %s20, 2
      // Predicated region
      $region85: #{net_forward.1} parent=83 // pred_check
        %p9034 = pneg %p348
      $region86: #{net_forward.1} parent=83 // pred_check_branch
        %9036 = sbr.rel (%p9034) target = $region88
      $region87: #{net_forward.1} parent=83 // pred_region
        %p9037 = scmp.lt.s32.totalorder %s26, 2
        %s9038 = scalar_select %p9037, %s26, 2
        %s9039 = smul.addr %s9038, 4
        %s9040 = scalar_lea.vmem %s14, %s9039
      $region88: #{net_forward.1} parent=83 // pred_fallthru
        _
    $region84: #{net_forward.1} parent=5 // pred_fallthru
      _
  $region6: #{net_forward.1} parent=0 // loop_footer
    %s24 = sadd.s32 1, %s20
  $region7: #{net_forward.1} parent=0 // loop_footer_branch
    %19 = sbr.rel target = $region3
  $region8: #{net_forward.1} parent=0 // loop_exit
    _

</llo_original>
